<compile_context>
chip_gen: v7x
topology: tpu7x:2x2x1
jax: 0.10.0
libtpu: 0.0.40
codegen_flags: <defaults>
</compile_context>

<pallas_src>
import functools

import jax
import jax.numpy as jnp
from jax import lax
from jax.experimental import pallas as pl
from jax.experimental.pallas import tpu as pltpu

NEG = -1.0e30          # finite "-inf": keeps all log-space math NaN/Inf free
LANE = 128             # lane width; extended-label axis padded to this
SUBLANE = 8            # f32 sublane tile; batch axis padded to a multiple
CLASS_SLAB = 512       # class slab for the tiled log-softmax / gather matmuls


def _ctc_kernel(xs_ref, onehot_ref, skip_ref, aux_ref, out_ref,
                alpha_ref, em_ref, act_ref, *, precise_gather=True):
    """One (batch-block, time-chunk) grid step of the CTC forward DP."""
    g = pl.program_id(1)                     # time-chunk index (sequential)
    n_chunks = pl.num_programs(1)

    nb, tt, c_pad = xs_ref.shape             # (NB, TT, C_pad)
    L = alpha_ref.shape[1]                   # padded extended-label length

    inlen = aux_ref[:, 0:1].astype(jnp.int32)   # per-sample input length T_n
    l_ext = aux_ref[:, 1:2].astype(jnp.int32)   # 2 * label_len + 1
    w = aux_ref[:, 2:3]                         # per-sample ctc loss weight

    s_iota = lax.broadcasted_iota(jnp.int32, (nb, L), 1)
    a1_add = jnp.where(s_iota >= 1, 0.0, NEG)   # masks the lane wrapped by roll(1)
    skip_add = skip_ref[...]                    # 0 where the s-2 skip is legal, else NEG

    # ---- emission log-probs for this chunk, stored as (TT, NB, L) -----------
    # Per-sample static loop keeps everything 2-D (simple Mosaic lowering),
    # tiles the log-softmax normaliser over class slabs (bounded temporaries),
    # and writes directly into the DP-friendly (TT, NB, L) layout so the serial
    # loop below reads one aligned (8,128) tile per step.
    for n in range(nb):
        m = jnp.full((tt, 1), NEG, jnp.float32)
        s = jnp.zeros((tt, 1), jnp.float32)
        acc = jnp.zeros((tt, L), jnp.float32)
        for c0 in range(0, c_pad, CLASS_SLAB):
            cb = min(CLASS_SLAB, c_pad - c0)
            x = xs_ref[n, :, c0:c0 + cb]                     # (TT, cb) f32 logits
            oh = onehot_ref[n, c0:c0 + cb, :]                # (cb, L) bf16 one-hot
            # running max/sum -> log-softmax normaliser, slab by slab
            m_new = jnp.maximum(m, jnp.max(x, axis=-1, keepdims=True))
            s = s * jnp.exp(m - m_new) + jnp.sum(
                jnp.exp(x - m_new), axis=-1, keepdims=True)
            m = m_new
            # MXU gather of the extended-label logits
            x_hi = x.astype(jnp.bfloat16)
            acc = acc + jnp.dot(x_hi, oh, preferred_element_type=jnp.float32)
            if precise_gather:
                # hi/lo bf16 split: recover the mantissa bits lost in the cast
                # (one extra MXU pass; the gather becomes f32-accurate).
                x_lo = (x - x_hi.astype(jnp.float32)).astype(jnp.bfloat16)
                acc = acc + jnp.dot(x_lo, oh, preferred_element_type=jnp.float32)
        em_ref[:, n, :] = acc - (m + jnp.log(s))             # log P(ext s | t)

    # hoisted activity mask for all TT steps (recurrence applies for 1<=t<T_n);
    # full lane width so the DP loop does one compare+select per step.
    t_iota = lax.broadcasted_iota(jnp.int32, (tt, nb, L), 0) + g * tt
    act_ref[...] = jnp.where(
        jnp.logical_and(t_iota >= 1, t_iota < inlen[None, :, :]), 1.0, 0.0)

    @pl.when(g == 0)
    def _init():
        out_ref[...] = jnp.zeros_like(out_ref)   # no garbage for padded rows
        # alpha_0[s] = em_0[s] for s in {0, 1}, else -inf
        alpha_ref[...] = jnp.where(s_iota < 2, em_ref[0], NEG)

    # ---- CTC forward recurrence over this chunk's TT steps -------------------
    U = 8   # manual 8-way unroll inside a fori_loop: scheduler visibility
            # without fully unrolling TT=32..128 steps (vreg pressure stays tiny
            # because em/act are re-loaded from VMEM scratch each step).

    def dp_macro(j, alpha):
        base = j * U
        for u in range(U):
            i = base + u
            em_t = em_ref[i]                                    # (NB, L) aligned
            act_t = act_ref[i]
            a1 = pltpu.roll(alpha, shift=1, axis=1) + a1_add    # alpha[s-1] (XLU)
            a2 = pltpu.roll(alpha, shift=2, axis=1) + skip_add  # alpha[s-2] (skip)
            mx = jnp.maximum(jnp.maximum(alpha, a1), a2)
            comb = mx + jnp.log(jnp.exp(alpha - mx) +
                                jnp.exp(a1 - mx) + jnp.exp(a2 - mx))
            alpha = jnp.where(act_t > 0.5, em_t + comb, alpha)
        return alpha

    alpha = lax.fori_loop(0, tt // U, dp_macro, alpha_ref[...])
    alpha_ref[...] = alpha

    @pl.when(g == n_chunks - 1)
    def _finalize():
        sel = (s_iota == (l_ext - 1)) | (s_iota == (l_ext - 2))
        masked = jnp.where(sel, alpha, NEG)
        mmax = jnp.max(masked, axis=-1, keepdims=True)
        tot = mmax + jnp.log(
            jnp.sum(jnp.exp(masked - mmax), axis=-1, keepdims=True))
        out_ref[...] = (-tot) * w            # weighted per-sample NLL


def _round_up(x, m):
    return (x + m - 1) // m * m


def _pick_time_chunk(requested, T, c_pad, nb):
    """Pick the time chunk TT (multiple of 8) from this generation's VMEM."""
    try:
        vmem_cap = int(getattr(pltpu.get_tpu_info(), "vmem_capacity_bytes",
                               64 << 20))
    except Exception:                       # hardware query unavailable
        vmem_cap = 64 << 20                 # assume the smallest (v7x) VMEM
    budget = int(vmem_cap * 0.6)            # headroom for Mosaic internals
    # Budget the one-hot as double-buffered even though we request Buffered(1),
    # so the fallback path also fits.
    fixed = 2 * nb * c_pad * LANE * 2 + 6 * nb * LANE * 4
    per_tt = 2 * nb * c_pad * 4 + 2 * nb * LANE * 4   # dbl-buf logits + em/act rows
    tt = (budget - fixed) // per_tt if budget > fixed else 8
    tt = max(8, (int(tt) // 8) * 8)
    tt = min(tt, _round_up(max(int(requested), 8), 8), _round_up(T, 8))
    return int(tt), vmem_cap


def ctc_loss(config, pre_batch, gt_batch, *, time_chunk=32, precise_gather=True):
    """Pallas port of ptocr CTCLoss.forward (torch-CTC path)."""
    preds = pre_batch["preds"].astype(jnp.float32)            # (T, N, C) logits
    preds_size = pre_batch["preds_size"].astype(jnp.int32)    # (N,)
    labels = gt_batch["labels"].astype(jnp.int32)             # (N, S), blank = 0
    labels_len = gt_batch["labels_len"].astype(jnp.int32)     # (N,)

    T, N, C = preds.shape
    S = labels.shape[1]
    L = 2 * S + 1
    assert L <= LANE, "extended label length must fit a single 128-lane vreg"

    if config["loss"]["use_ctc_weight"]:
        w = gt_batch["ctc_loss_weight"].astype(jnp.float32)
    else:
        w = jnp.ones((N,), jnp.float32)

    # NB=8 keeps one (8,128) alpha vreg per block; v6e/v5e (128 MiB VMEM) could
    # use 16 for two independent DP chains.  On v7x, N <= 8 means a single
    # batch block and one idle TensorCore (see perf review).
    NB = SUBLANE
    n_pad = _round_up(max(N, NB), NB)
    c_pad = _round_up(C, LANE)
    TT, vmem_cap = _pick_time_chunk(time_chunk, T, c_pad, NB)
    t_pad = _round_up(T, TT)

    # logits: (T,N,C) -> (N_pad, T_pad, C_pad); class padding = NEG so the
    # normaliser ignores it, batch/time padding = 0 (masked / zero-weighted).
    xs = jnp.transpose(preds, (1, 0, 2))
    xs = jnp.pad(xs, ((0, 0), (0, 0), (0, c_pad - C)), constant_values=NEG)
    xs = jnp.pad(xs, ((0, n_pad - N), (0, t_pad - T), (0, 0)))

    # extended label sequence: blank, l1, blank, ..., lS, blank (pad = blank)
    ext = jnp.zeros((N, 2 * S), jnp.int32).at[:, 1::2].set(labels)
    ext = jnp.concatenate([ext, jnp.zeros((N, 1), jnp.int32)], axis=1)   # (N, L)
    ext = jnp.pad(ext, ((0, n_pad - N), (0, LANE - L)))                  # (N_pad, LANE)

    # time-invariant one-hot gather matrix, bf16 for the MXU
    onehot = (ext[:, None, :] ==
              jnp.arange(c_pad, dtype=jnp.int32)[None, :, None]).astype(jnp.bfloat16)

    # additive skip mask: 0 where the s-2 transition is legal, else NEG
    ext_m2 = jnp.pad(ext[:, :-2], ((0, 0), (2, 0)))
    pos = jnp.arange(LANE, dtype=jnp.int32)[None, :]
    skip_ok = (pos >= 2) & (ext != 0) & (ext != ext_m2)
    skip_add = jnp.where(skip_ok, 0.0, NEG).astype(jnp.float32)          # (N_pad, LANE)

    # per-sample scalars packed into one lane-padded block:
    #   col 0 = input length, col 1 = 2*label_len + 1, col 2 = ctc weight
    aux = jnp.zeros((n_pad, LANE), jnp.float32)
    aux = aux.at[:, 1].set(1.0)                      # harmless default, padded rows
    aux = aux.at[:N, 0].set(preds_size.astype(jnp.float32))
    aux = aux.at[:N, 1].set((2 * labels_len + 1).astype(jnp.float32))
    aux = aux.at[:N, 2].set(w)                       # padded rows keep weight 0

    grid = (n_pad // NB, t_pad // TT)    # (batch blocks [parallel], time chunks)

    # Explicit VMEM budget (default scoped limits are 16/32 MiB): double-
    # buffered logits chunk + one-hot + scratch + compiler headroom.
    need = (2 * NB * TT * c_pad * 4          # logits chunk, double-buffered
            + 2 * NB * c_pad * LANE * 2      # one-hot (budgeted double-buffered)
            + 2 * TT * NB * LANE * 4         # em + act scratch
            + 16 * NB * LANE * 4             # alpha / skip / aux / out + slack
            + (8 << 20))                     # Mosaic-internal temporaries
    vmem_limit = int(min(int(vmem_cap * 0.9), max(need, 32 << 20)))

    kernel = functools.partial(_ctc_kernel, precise_gather=precise_gather)

    def call(onehot_spec):
        return pl.pallas_call(
            kernel,
            out_shape=jax.ShapeDtypeStruct((n_pad, 1), jnp.float32),
            grid_spec=pltpu.PrefetchScalarGridSpec(
                num_scalar_prefetch=0,
                grid=grid,
                in_specs=[
                    pl.BlockSpec((NB, TT, c_pad), lambda b, g: (b, g, 0)),  # logits
                    onehot_spec,                                            # one-hot
                    pl.BlockSpec((NB, LANE), lambda b, g: (b, 0)),          # skip mask
                    pl.BlockSpec((NB, LANE), lambda b, g: (b, 0)),          # scalars
                ],
                out_specs=pl.BlockSpec((NB, 1), lambda b, g: (b, 0)),
                scratch_shapes=[
                    pltpu.VMEM((NB, LANE), jnp.float32),      # alpha DP row
                    pltpu.VMEM((TT, NB, LANE), jnp.float32),  # emission log-probs
                    pltpu.VMEM((TT, NB, LANE), jnp.float32),  # activity mask
                ]),
            compiler_params=pltpu.CompilerParams(
                dimension_semantics=("parallel", "arbitrary"),
                vmem_limit_bytes=vmem_limit),
        )(xs, onehot, skip_add, aux)

    oh_shape = (NB, c_pad, LANE)
    oh_idx = lambda b, g: (b, 0, 0)
    try:
        # The one-hot block is constant along the sequential time axis, so
        # single-buffering it only saves VMEM (halves the biggest consumer).
        per_sample = call(pl.BlockSpec(oh_shape, oh_idx,
                                       pipeline_mode=pl.Buffered(1)))
    except Exception:
        # pipeline_mode / Buffered(1) unsupported on this jax: default 2-deep.
        per_sample = call(pl.BlockSpec(oh_shape, oh_idx))

    loss = jnp.sum(per_sample)            # padded samples contribute exactly 0
    return loss / float(config["trainload"]["batch_size"])


def _ctc_loss_reference(config, pre_batch, gt_batch):
    """Pure-JAX CTC forward algorithm (numerical reference for the kernel)."""
    preds = pre_batch["preds"].astype(jnp.float32)
    preds_size = pre_batch["preds_size"].astype(jnp.int32)
    labels = gt_batch["labels"].astype(jnp.int32)
    labels_len = gt_batch["labels_len"].astype(jnp.int32)
    T, N, C = preds.shape
    S = labels.shape[1]
    L = 2 * S + 1

    logp = jax.nn.log_softmax(preds, axis=2)                            # (T, N, C)
    ext = jnp.zeros((N, 2 * S), jnp.int32).at[:, 1::2].set(labels)
    ext = jnp.concatenate([ext, jnp.zeros((N, 1), jnp.int32)], axis=1)  # (N, L)
    em = logp[:, jnp.arange(N)[:, None], ext]                           # (T, N, L)

    pos = jnp.arange(L)[None, :]
    ext_m2 = jnp.pad(ext[:, :-2], ((0, 0), (2, 0)))
    can_skip = (pos >= 2) & (ext != 0) & (ext != ext_m2)

    alpha0 = jnp.where(pos < 2, em[0], NEG)

    def step(alpha, inp):
        em_t, t = inp
        a1 = jnp.concatenate([jnp.full((N, 1), NEG), alpha[:, :-1]], axis=1)
        a2 = jnp.concatenate([jnp.full((N, 2), NEG), alpha[:, :-2]], axis=1)
        a2 = jnp.where(can_skip, a2, NEG)
        mx = jnp.maximum(jnp.maximum(alpha, a1), a2)
        comb = mx + jnp.log(
            jnp.exp(alpha - mx) + jnp.exp(a1 - mx) + jnp.exp(a2 - mx))
        new = em_t + comb
        active = (t < preds_size)[:, None]
        return jnp.where(active, new, alpha), None

    alpha, _ = lax.scan(step, alpha0, (em[1:], jnp.arange(1, T)))
    l_ext = (2 * labels_len + 1)[:, None]
    sel = (pos == l_ext - 1) | (pos == l_ext - 2)
    masked = jnp.where(sel, alpha, NEG)
    per = -jax.scipy.special.logsumexp(masked, axis=1)
    if config["loss"]["use_ctc_weight"]:
        per = gt_batch["ctc_loss_weight"].astype(jnp.float32) * per
    return jnp.sum(per) / float(config["trainload"]["batch_size"])


if __name__ == "__main__":
    key = jax.random.PRNGKey(0)
    T, N, C, S = 24, 4, 128, 5

    k1, k2, k3 = jax.random.split(key, 3)
    preds = jax.random.normal(k1, (T, N, C), jnp.float32)      # raw logits
    labels = jax.random.randint(k2, (N, S), 1, C)              # class 0 = blank
    labels_len = jnp.array([5, 4, 3, 5], jnp.int32)
    preds_size = jnp.array([24, 20, 17, 24], jnp.int32)
    ctc_w = jax.random.uniform(k3, (N,), jnp.float32, minval=0.5, maxval=1.5)

    config = {"loss": {"ctc_type": "torch", "use_ctc_weight": True},
              "trainload": {"batch_size": N}}
    pre_batch = {"preds": preds, "preds_size": preds_size}
    gt_batch = {"labels": labels, "labels_len": labels_len,
                "ctc_loss_weight": ctc_w}

    ref = jax.block_until_ready(_ctc_loss_reference(config, pre_batch, gt_batch))
    # default (VMEM-budgeted) time chunk: single chunk at this small T
    loss_big = jax.block_until_ready(ctc_loss(config, pre_batch, gt_batch))
    # small chunk: exercises the multi-chunk alpha carry across grid steps
    loss_small = jax.block_until_ready(
        ctc_loss(config, pre_batch, gt_batch, time_chunk=8))

    for name, val in (("TT=auto", loss_big), ("TT=8", loss_small)):
        assert jnp.isfinite(val), f"non-finite CTC loss ({name}): {val}"
        assert abs(float(val) - float(ref)) <= 2e-2 + 2e-3 * abs(float(ref)), (
            f"{name}: kernel {float(val)} vs reference {float(ref)}")
    assert abs(float(loss_big) - float(loss_small)) <= 1e-2, (
        f"chunk-size mismatch: {float(loss_big)} vs {float(loss_small)}")
    print("KERNEL_OK")
</pallas_src>

<mosaic_0001>
module attributes {stable_mosaic.version = 11 : i64} {
  func.func @_ctc_kernel(%arg0: i32, %arg1: i32, %arg2: memref<8x24x128xf32, #tpu.memory_space<vmem>>, %arg3: memref<8x128x128xbf16, #tpu.memory_space<vmem>>, %arg4: memref<8x128xf32, #tpu.memory_space<vmem>>, %arg5: memref<8x128xf32, #tpu.memory_space<vmem>>, %arg6: memref<8x1xf32, #tpu.memory_space<vmem>>, %arg7: memref<8x128xf32, #tpu.memory_space<vmem>>, %arg8: memref<24x8x128xf32, #tpu.memory_space<vmem>>, %arg9: memref<24x8x128xf32, #tpu.memory_space<vmem>>) attributes {dimension_semantics = [#tpu.dimension_semantics<parallel>, #tpu.dimension_semantics<arbitrary>], iteration_bounds = array<i64: 1, 1>, scalar_prefetch = 0 : i64, scratch_operands = 3 : i64, tpu.core_type = #tpu.core_type<tc>, window_params = [{transform_indices = @transform_0, window_bounds = array<i64: 8, 24, 128>}, {pipeline_mode = #tpu.pipeline_mode<synchronous>, transform_indices = @transform_1, window_bounds = array<i64: 8, 128, 128>}, {transform_indices = @transform_2, window_bounds = array<i64: 8, 128>}, {transform_indices = @transform_3, window_bounds = array<i64: 8, 128>}, {transform_indices = @transform_4, window_bounds = array<i64: 8, 1>}]} {
    %c0 = arith.constant 0 : index
    %c0_0 = arith.constant 0 : index
    %0 = vector.load %arg5[%c0, %c0_0] : memref<8x128xf32, #tpu.memory_space<vmem>>, vector<8x1xf32>
    %1 = arith.fptosi %0 : vector<8x1xf32> to vector<8x1xi32>
    %c0_1 = arith.constant 0 : index
    %c1 = arith.constant 1 : index
    %2 = vector.load %arg5[%c0_1, %c1] : memref<8x128xf32, #tpu.memory_space<vmem>>, vector<8x1xf32>
    %3 = arith.fptosi %2 : vector<8x1xf32> to vector<8x1xi32>
    %c0_2 = arith.constant 0 : index
    %c2 = arith.constant 2 : index
    %4 = vector.load %arg5[%c0_2, %c2] : memref<8x128xf32, #tpu.memory_space<vmem>>, vector<8x1xf32>
    %5 = tpu.iota {dimensions = array<i32: 1>} : vector<8x128xi32>
    %c1_i32 = arith.constant 1 : i32
    %6 = vector.broadcast %c1_i32 : i32 to vector<8x128xi32>
    %7 = arith.cmpi sge, %5, %6 : vector<8x128xi32>
    %cst = arith.constant 0.000000e+00 : f32
    %cst_3 = arith.constant -1.000000e+30 : f32
    %8 = vector.broadcast %cst : f32 to vector<8x128xf32>
    %9 = vector.broadcast %cst_3 : f32 to vector<8x128xf32>
    %10 = arith.select %7, %8, %9 : vector<8x128xi1>, vector<8x128xf32>
    %c0_4 = arith.constant 0 : index
    %c0_5 = arith.constant 0 : index
    %11 = vector.load %arg4[%c0_4, %c0_5] : memref<8x128xf32, #tpu.memory_space<vmem>>, vector<8x128xf32>
    %cst_6 = arith.constant -1.000000e+30 : f32
    %12 = vector.broadcast %cst_6 : f32 to vector<24x1xf32>
    %cst_7 = arith.constant 0.000000e+00 : f32
    %13 = vector.broadcast %cst_7 : f32 to vector<24x1xf32>
    %cst_8 = arith.constant 0.000000e+00 : f32
    %14 = vector.broadcast %cst_8 : f32 to vector<24x128xf32>
    %c0_9 = arith.constant 0 : index
    %c0_10 = arith.constant 0 : index
    %c0_11 = arith.constant 0 : index
    %15 = vector.load %arg2[%c0_9, %c0_10, %c0_11] : memref<8x24x128xf32, #tpu.memory_space<vmem>>, vector<1x24x128xf32>
    %16 = vector.shape_cast %15 : vector<1x24x128xf32> to vector<24x128xf32>
    %c0_12 = arith.constant 0 : index
    %c0_13 = arith.constant 0 : index
    %c0_14 = arith.constant 0 : index
    %17 = vector.load %arg3[%c0_12, %c0_13, %c0_14] : memref<8x128x128xbf16, #tpu.memory_space<vmem>>, vector<1x128x128xbf16>
    %18 = vector.shape_cast %17 : vector<1x128x128xbf16> to vector<128x128xbf16>
    %cst_15 = arith.constant dense<0xFF800000> : vector<24xf32>
    %19 = vector.multi_reduction <maximumf>, %16, %cst_15 [1] : vector<24x128xf32> to vector<24xf32>
    %20 = vector.shape_cast %19 : vector<24xf32> to vector<24x1xf32>
    %21 = arith.maximumf %12, %20 : vector<24x1xf32>
    %22 = arith.subf %12, %21 : vector<24x1xf32>
    %23 = math.exp %22 : vector<24x1xf32>
    %24 = arith.mulf %13, %23 : vector<24x1xf32>
    %25 = vector.broadcast %21 : vector<24x1xf32> to vector<24x128xf32>
    %26 = arith.subf %16, %25 : vector<24x128xf32>
    %27 = math.exp %26 : vector<24x128xf32>
    %cst_16 = arith.constant dense<0.000000e+00> : vector<24xf32>
    %28 = vector.multi_reduction <add>, %27, %cst_16 [1] : vector<24x128xf32> to vector<24xf32>
    %29 = vector.shape_cast %28 : vector<24xf32> to vector<24x1xf32>
    %30 = arith.addf %24, %29 : vector<24x1xf32>
    %31 = arith.truncf %16 : vector<24x128xf32> to vector<24x128xbf16>
    %cst_17 = arith.constant dense<0.000000e+00> : vector<24x128xf32>
    %32 = tpu.matmul %31, %18, %cst_17 {dimension_numbers = #tpu.dot_dimension_numbers<[1], [0], [0], [1], [0, 0, 1, 1], [], []>} : vector<24x128xbf16>, vector<128x128xbf16>, vector<24x128xf32> -> vector<24x128xf32>
    %33 = arith.addf %14, %32 : vector<24x128xf32>
    %34 = arith.extf %31 : vector<24x128xbf16> to vector<24x128xf32>
    %35 = arith.subf %16, %34 : vector<24x128xf32>
    %36 = arith.truncf %35 : vector<24x128xf32> to vector<24x128xbf16>
    %cst_18 = arith.constant dense<0.000000e+00> : vector<24x128xf32>
    %37 = tpu.matmul %36, %18, %cst_18 {dimension_numbers = #tpu.dot_dimension_numbers<[1], [0], [0], [1], [0, 0, 1, 1], [], []>} : vector<24x128xbf16>, vector<128x128xbf16>, vector<24x128xf32> -> vector<24x128xf32>
    %38 = arith.addf %33, %37 : vector<24x128xf32>
    %39 = math.log %30 : vector<24x1xf32>
    %40 = arith.addf %21, %39 : vector<24x1xf32>
    %41 = vector.broadcast %40 : vector<24x1xf32> to vector<24x128xf32>
    %42 = arith.subf %38, %41 : vector<24x128xf32>
    %c0_19 = arith.constant 0 : index
    %c0_20 = arith.constant 0 : index
    %c0_21 = arith.constant 0 : index
    %43 = vector.load %arg8[%c0_19, %c0_20, %c0_21] : memref<24x8x128xf32, #tpu.memory_space<vmem>>, vector<24x1x128xf32>
    %44 = vector.shape_cast %43 : vector<24x1x128xf32> to vector<24x128xf32>
    %45 = vector.shape_cast %42 : vector<24x128xf32> to vector<24x1x128xf32>
    tpu.vector_store %arg8[%c0_19, %c0_20, %c0_21], %45 {strides = array<i32>} : memref<24x8x128xf32, #tpu.memory_space<vmem>>, vector<24x1x128xf32>,
    %cst_22 = arith.constant -1.000000e+30 : f32
    %46 = vector.broadcast %cst_22 : f32 to vector<24x1xf32>
    %cst_23 = arith.constant 0.000000e+00 : f32
    %47 = vector.broadcast %cst_23 : f32 to vector<24x1xf32>
    %cst_24 = arith.constant 0.000000e+00 : f32
    %48 = vector.broadcast %cst_24 : f32 to vector<24x128xf32>
    %c1_25 = arith.constant 1 : index
    %c0_26 = arith.constant 0 : index
    %c0_27 = arith.constant 0 : index
    %49 = vector.load %arg2[%c1_25, %c0_26, %c0_27] : memref<8x24x128xf32, #tpu.memory_space<vmem>>, vector<1x24x128xf32>
    %50 = vector.shape_cast %49 : vector<1x24x128xf32> to vector<24x128xf32>
    %c1_28 = arith.constant 1 : index
    %c0_29 = arith.constant 0 : index
    %c0_30 = arith.constant 0 : index
    %51 = vector.load %arg3[%c1_28, %c0_29, %c0_30] : memref<8x128x128xbf16, #tpu.memory_space<vmem>>, vector<1x128x128xbf16>
    %52 = vector.shape_cast %51 : vector<1x128x128xbf16> to vector<128x128xbf16>
    %cst_31 = arith.constant dense<0xFF800000> : vector<24xf32>
    %53 = vector.multi_reduction <maximumf>, %50, %cst_31 [1] : vector<24x128xf32> to vector<24xf32>
    %54 = vector.shape_cast %53 : vector<24xf32> to vector<24x1xf32>
    %55 = arith.maximumf %46, %54 : vector<24x1xf32>
    %56 = arith.subf %46, %55 : vector<24x1xf32>
    %57 = math.exp %56 : vector<24x1xf32>
    %58 = arith.mulf %47, %57 : vector<24x1xf32>
    %59 = vector.broadcast %55 : vector<24x1xf32> to vector<24x128xf32>
    %60 = arith.subf %50, %59 : vector<24x128xf32>
    %61 = math.exp %60 : vector<24x128xf32>
    %cst_32 = arith.constant dense<0.000000e+00> : vector<24xf32>
    %62 = vector.multi_reduction <add>, %61, %cst_32 [1] : vector<24x128xf32> to vector<24xf32>
    %63 = vector.shape_cast %62 : vector<24xf32> to vector<24x1xf32>
    %64 = arith.addf %58, %63 : vector<24x1xf32>
    %65 = arith.truncf %50 : vector<24x128xf32> to vector<24x128xbf16>
    %cst_33 = arith.constant dense<0.000000e+00> : vector<24x128xf32>
    %66 = tpu.matmul %65, %52, %cst_33 {dimension_numbers = #tpu.dot_dimension_numbers<[1], [0], [0], [1], [0, 0, 1, 1], [], []>} : vector<24x128xbf16>, vector<128x128xbf16>, vector<24x128xf32> -> vector<24x128xf32>
    %67 = arith.addf %48, %66 : vector<24x128xf32>
    %68 = arith.extf %65 : vector<24x128xbf16> to vector<24x128xf32>
    %69 = arith.subf %50, %68 : vector<24x128xf32>
    %70 = arith.truncf %69 : vector<24x128xf32> to vector<24x128xbf16>
    %cst_34 = arith.constant dense<0.000000e+00> : vector<24x128xf32>
    %71 = tpu.matmul %70, %52, %cst_34 {dimension_numbers = #tpu.dot_dimension_numbers<[1], [0], [0], [1], [0, 0, 1, 1], [], []>} : vector<24x128xbf16>, vector<128x128xbf16>, vector<24x128xf32> -> vector<24x128xf32>
    %72 = arith.addf %67, %71 : vector<24x128xf32>
    %73 = math.log %64 : vector<24x1xf32>
    %74 = arith.addf %55, %73 : vector<24x1xf32>
    %75 = vector.broadcast %74 : vector<24x1xf32> to vector<24x128xf32>
    %76 = arith.subf %72, %75 : vector<24x128xf32>
    %c0_35 = arith.constant 0 : index
    %c1_36 = arith.constant 1 : index
    %c0_37 = arith.constant 0 : index
    %77 = vector.load %arg8[%c0_35, %c1_36, %c0_37] : memref<24x8x128xf32, #tpu.memory_space<vmem>>, vector<24x1x128xf32>
    %78 = vector.shape_cast %77 : vector<24x1x128xf32> to vector<24x128xf32>
    %79 = vector.shape_cast %76 : vector<24x128xf32> to vector<24x1x128xf32>
    tpu.vector_store %arg8[%c0_35, %c1_36, %c0_37], %79 {strides = array<i32>} : memref<24x8x128xf32, #tpu.memory_space<vmem>>, vector<24x1x128xf32>,
    %cst_38 = arith.constant -1.000000e+30 : f32
    %80 = vector.broadcast %cst_38 : f32 to vector<24x1xf32>
    %cst_39 = arith.constant 0.000000e+00 : f32
    %81 = vector.broadcast %cst_39 : f32 to vector<24x1xf32>
    %cst_40 = arith.constant 0.000000e+00 : f32
    %82 = vector.broadcast %cst_40 : f32 to vector<24x128xf32>
    %c2_41 = arith.constant 2 : index
    %c0_42 = arith.constant 0 : index
    %c0_43 = arith.constant 0 : index
    %83 = vector.load %arg2[%c2_41, %c0_42, %c0_43] : memref<8x24x128xf32, #tpu.memory_space<vmem>>, vector<1x24x128xf32>
    %84 = vector.shape_cast %83 : vector<1x24x128xf32> to vector<24x128xf32>
    %c2_44 = arith.constant 2 : index
    %c0_45 = arith.constant 0 : index
    %c0_46 = arith.constant 0 : index
    %85 = vector.load %arg3[%c2_44, %c0_45, %c0_46] : memref<8x128x128xbf16, #tpu.memory_space<vmem>>, vector<1x128x128xbf16>
    %86 = vector.shape_cast %85 : vector<1x128x128xbf16> to vector<128x128xbf16>
    %cst_47 = arith.constant dense<0xFF800000> : vector<24xf32>
    %87 = vector.multi_reduction <maximumf>, %84, %cst_47 [1] : vector<24x128xf32> to vector<24xf32>
    %88 = vector.shape_cast %87 : vector<24xf32> to vector<24x1xf32>
    %89 = arith.maximumf %80, %88 : vector<24x1xf32>
    %90 = arith.subf %80, %89 : vector<24x1xf32>
    %91 = math.exp %90 : vector<24x1xf32>
    %92 = arith.mulf %81, %91 : vector<24x1xf32>
    %93 = vector.broadcast %89 : vector<24x1xf32> to vector<24x128xf32>
    %94 = arith.subf %84, %93 : vector<24x128xf32>
    %95 = math.exp %94 : vector<24x128xf32>
    %cst_48 = arith.constant dense<0.000000e+00> : vector<24xf32>
    %96 = vector.multi_reduction <add>, %95, %cst_48 [1] : vector<24x128xf32> to vector<24xf32>
    %97 = vector.shape_cast %96 : vector<24xf32> to vector<24x1xf32>
    %98 = arith.addf %92, %97 : vector<24x1xf32>
    %99 = arith.truncf %84 : vector<24x128xf32> to vector<24x128xbf16>
    %cst_49 = arith.constant dense<0.000000e+00> : vector<24x128xf32>
    %100 = tpu.matmul %99, %86, %cst_49 {dimension_numbers = #tpu.dot_dimension_numbers<[1], [0], [0], [1], [0, 0, 1, 1], [], []>} : vector<24x128xbf16>, vector<128x128xbf16>, vector<24x128xf32> -> vector<24x128xf32>
    %101 = arith.addf %82, %100 : vector<24x128xf32>
    %102 = arith.extf %99 : vector<24x128xbf16> to vector<24x128xf32>
    %103 = arith.subf %84, %102 : vector<24x128xf32>
    %104 = arith.truncf %103 : vector<24x128xf32> to vector<24x128xbf16>
    %cst_50 = arith.constant dense<0.000000e+00> : vector<24x128xf32>
    %105 = tpu.matmul %104, %86, %cst_50 {dimension_numbers = #tpu.dot_dimension_numbers<[1], [0], [0], [1], [0, 0, 1, 1], [], []>} : vector<24x128xbf16>, vector<128x128xbf16>, vector<24x128xf32> -> vector<24x128xf32>
    %106 = arith.addf %101, %105 : vector<24x128xf32>
    %107 = math.log %98 : vector<24x1xf32>
    %108 = arith.addf %89, %107 : vector<24x1xf32>
    %109 = vector.broadcast %108 : vector<24x1xf32> to vector<24x128xf32>
    %110 = arith.subf %106, %109 : vector<24x128xf32>
    %c0_51 = arith.constant 0 : index
    %c2_52 = arith.constant 2 : index
    %c0_53 = arith.constant 0 : index
    %111 = vector.load %arg8[%c0_51, %c2_52, %c0_53] : memref<24x8x128xf32, #tpu.memory_space<vmem>>, vector<24x1x128xf32>
    %112 = vector.shape_cast %111 : vector<24x1x128xf32> to vector<24x128xf32>
    %113 = vector.shape_cast %110 : vector<24x128xf32> to vector<24x1x128xf32>
    tpu.vector_store %arg8[%c0_51, %c2_52, %c0_53], %113 {strides = array<i32>} : memref<24x8x128xf32, #tpu.memory_space<vmem>>, vector<24x1x128xf32>,
    %cst_54 = arith.constant -1.000000e+30 : f32
    %114 = vector.broadcast %cst_54 : f32 to vector<24x1xf32>
    %cst_55 = arith.constant 0.000000e+00 : f32
    %115 = vector.broadcast %cst_55 : f32 to vector<24x1xf32>
    %cst_56 = arith.constant 0.000000e+00 : f32
    %116 = vector.broadcast %cst_56 : f32 to vector<24x128xf32>
    %c3 = arith.constant 3 : index
    %c0_57 = arith.constant 0 : index
    %c0_58 = arith.constant 0 : index
    %117 = vector.load %arg2[%c3, %c0_57, %c0_58] : memref<8x24x128xf32, #tpu.memory_space<vmem>>, vector<1x24x128xf32>
    %118 = vector.shape_cast %117 : vector<1x24x128xf32> to vector<24x128xf32>
    %c3_59 = arith.constant 3 : index
    %c0_60 = arith.constant 0 : index
    %c0_61 = arith.constant 0 : index
    %119 = vector.load %arg3[%c3_59, %c0_60, %c0_61] : memref<8x128x128xbf16, #tpu.memory_space<vmem>>, vector<1x128x128xbf16>
    %120 = vector.shape_cast %119 : vector<1x128x128xbf16> to vector<128x128xbf16>
    %cst_62 = arith.constant dense<0xFF800000> : vector<24xf32>
    %121 = vector.multi_reduction <maximumf>, %118, %cst_62 [1] : vector<24x128xf32> to vector<24xf32>
    %122 = vector.shape_cast %121 : vector<24xf32> to vector<24x1xf32>
    %123 = arith.maximumf %114, %122 : vector<24x1xf32>
    %124 = arith.subf %114, %123 : vector<24x1xf32>
    %125 = math.exp %124 : vector<24x1xf32>
    %126 = arith.mulf %115, %125 : vector<24x1xf32>
    %127 = vector.broadcast %123 : vector<24x1xf32> to vector<24x128xf32>
    %128 = arith.subf %118, %127 : vector<24x128xf32>
    %129 = math.exp %128 : vector<24x128xf32>
    %cst_63 = arith.constant dense<0.000000e+00> : vector<24xf32>
    %130 = vector.multi_reduction <add>, %129, %cst_63 [1] : vector<24x128xf32> to vector<24xf32>
    %131 = vector.shape_cast %130 : vector<24xf32> to vector<24x1xf32>
    %132 = arith.addf %126, %131 : vector<24x1xf32>
    %133 = arith.truncf %118 : vector<24x128xf32> to vector<24x128xbf16>
    %cst_64 = arith.constant dense<0.000000e+00> : vector<24x128xf32>
    %134 = tpu.matmul %133, %120, %cst_64 {dimension_numbers = #tpu.dot_dimension_numbers<[1], [0], [0], [1], [0, 0, 1, 1], [], []>} : vector<24x128xbf16>, vector<128x128xbf16>, vector<24x128xf32> -> vector<24x128xf32>
    %135 = arith.addf %116, %134 : vector<24x128xf32>
    %136 = arith.extf %133 : vector<24x128xbf16> to vector<24x128xf32>
    %137 = arith.subf %118, %136 : vector<24x128xf32>
    %138 = arith.truncf %137 : vector<24x128xf32> to vector<24x128xbf16>
    %cst_65 = arith.constant dense<0.000000e+00> : vector<24x128xf32>
    %139 = tpu.matmul %138, %120, %cst_65 {dimension_numbers = #tpu.dot_dimension_numbers<[1], [0], [0], [1], [0, 0, 1, 1], [], []>} : vector<24x128xbf16>, vector<128x128xbf16>, vector<24x128xf32> -> vector<24x128xf32>
    %140 = arith.addf %135, %139 : vector<24x128xf32>
    %141 = math.log %132 : vector<24x1xf32>
    %142 = arith.addf %123, %141 : vector<24x1xf32>
    %143 = vector.broadcast %142 : vector<24x1xf32> to vector<24x128xf32>
    %144 = arith.subf %140, %143 : vector<24x128xf32>
    %c0_66 = arith.constant 0 : index
    %c3_67 = arith.constant 3 : index
    %c0_68 = arith.constant 0 : index
    %145 = vector.load %arg8[%c0_66, %c3_67, %c0_68] : memref<24x8x128xf32, #tpu.memory_space<vmem>>, vector<24x1x128xf32>
    %146 = vector.shape_cast %145 : vector<24x1x128xf32> to vector<24x128xf32>
    %147 = vector.shape_cast %144 : vector<24x128xf32> to vector<24x1x128xf32>
    tpu.vector_store %arg8[%c0_66, %c3_67, %c0_68], %147 {strides = array<i32>} : memref<24x8x128xf32, #tpu.memory_space<vmem>>, vector<24x1x128xf32>,
    %cst_69 = arith.constant -1.000000e+30 : f32
    %148 = vector.broadcast %cst_69 : f32 to vector<24x1xf32>
    %cst_70 = arith.constant 0.000000e+00 : f32
    %149 = vector.broadcast %cst_70 : f32 to vector<24x1xf32>
    %cst_71 = arith.constant 0.000000e+00 : f32
    %150 = vector.broadcast %cst_71 : f32 to vector<24x128xf32>
    %c4 = arith.constant 4 : index
    %c0_72 = arith.constant 0 : index
    %c0_73 = arith.constant 0 : index
    %151 = vector.load %arg2[%c4, %c0_72, %c0_73] : memref<8x24x128xf32, #tpu.memory_space<vmem>>, vector<1x24x128xf32>
    %152 = vector.shape_cast %151 : vector<1x24x128xf32> to vector<24x128xf32>
    %c4_74 = arith.constant 4 : index
    %c0_75 = arith.constant 0 : index
    %c0_76 = arith.constant 0 : index
    %153 = vector.load %arg3[%c4_74, %c0_75, %c0_76] : memref<8x128x128xbf16, #tpu.memory_space<vmem>>, vector<1x128x128xbf16>
    %154 = vector.shape_cast %153 : vector<1x128x128xbf16> to vector<128x128xbf16>
    %cst_77 = arith.constant dense<0xFF800000> : vector<24xf32>
    %155 = vector.multi_reduction <maximumf>, %152, %cst_77 [1] : vector<24x128xf32> to vector<24xf32>
    %156 = vector.shape_cast %155 : vector<24xf32> to vector<24x1xf32>
    %157 = arith.maximumf %148, %156 : vector<24x1xf32>
    %158 = arith.subf %148, %157 : vector<24x1xf32>
    %159 = math.exp %158 : vector<24x1xf32>
    %160 = arith.mulf %149, %159 : vector<24x1xf32>
    %161 = vector.broadcast %157 : vector<24x1xf32> to vector<24x128xf32>
    %162 = arith.subf %152, %161 : vector<24x128xf32>
    %163 = math.exp %162 : vector<24x128xf32>
    %cst_78 = arith.constant dense<0.000000e+00> : vector<24xf32>
    %164 = vector.multi_reduction <add>, %163, %cst_78 [1] : vector<24x128xf32> to vector<24xf32>
    %165 = vector.shape_cast %164 : vector<24xf32> to vector<24x1xf32>
    %166 = arith.addf %160, %165 : vector<24x1xf32>
    %167 = arith.truncf %152 : vector<24x128xf32> to vector<24x128xbf16>
    %cst_79 = arith.constant dense<0.000000e+00> : vector<24x128xf32>
    %168 = tpu.matmul %167, %154, %cst_79 {dimension_numbers = #tpu.dot_dimension_numbers<[1], [0], [0], [1], [0, 0, 1, 1], [], []>} : vector<24x128xbf16>, vector<128x128xbf16>, vector<24x128xf32> -> vector<24x128xf32>
    %169 = arith.addf %150, %168 : vector<24x128xf32>
    %170 = arith.extf %167 : vector<24x128xbf16> to vector<24x128xf32>
    %171 = arith.subf %152, %170 : vector<24x128xf32>
    %172 = arith.truncf %171 : vector<24x128xf32> to vector<24x128xbf16>
    %cst_80 = arith.constant dense<0.000000e+00> : vector<24x128xf32>
    %173 = tpu.matmul %172, %154, %cst_80 {dimension_numbers = #tpu.dot_dimension_numbers<[1], [0], [0], [1], [0, 0, 1, 1], [], []>} : vector<24x128xbf16>, vector<128x128xbf16>, vector<24x128xf32> -> vector<24x128xf32>
    %174 = arith.addf %169, %173 : vector<24x128xf32>
    %175 = math.log %166 : vector<24x1xf32>
    %176 = arith.addf %157, %175 : vector<24x1xf32>
    %177 = vector.broadcast %176 : vector<24x1xf32> to vector<24x128xf32>
    %178 = arith.subf %174, %177 : vector<24x128xf32>
    %c0_81 = arith.constant 0 : index
    %c4_82 = arith.constant 4 : index
    %c0_83 = arith.constant 0 : index
    %179 = vector.load %arg8[%c0_81, %c4_82, %c0_83] : memref<24x8x128xf32, #tpu.memory_space<vmem>>, vector<24x1x128xf32>
    %180 = vector.shape_cast %179 : vector<24x1x128xf32> to vector<24x128xf32>
    %181 = vector.shape_cast %178 : vector<24x128xf32> to vector<24x1x128xf32>
    tpu.vector_store %arg8[%c0_81, %c4_82, %c0_83], %181 {strides = array<i32>} : memref<24x8x128xf32, #tpu.memory_space<vmem>>, vector<24x1x128xf32>,
    %cst_84 = arith.constant -1.000000e+30 : f32
    %182 = vector.broadcast %cst_84 : f32 to vector<24x1xf32>
    %cst_85 = arith.constant 0.000000e+00 : f32
    %183 = vector.broadcast %cst_85 : f32 to vector<24x1xf32>
    %cst_86 = arith.constant 0.000000e+00 : f32
    %184 = vector.broadcast %cst_86 : f32 to vector<24x128xf32>
    %c5 = arith.constant 5 : index
    %c0_87 = arith.constant 0 : index
    %c0_88 = arith.constant 0 : index
    %185 = vector.load %arg2[%c5, %c0_87, %c0_88] : memref<8x24x128xf32, #tpu.memory_space<vmem>>, vector<1x24x128xf32>
    %186 = vector.shape_cast %185 : vector<1x24x128xf32> to vector<24x128xf32>
    %c5_89 = arith.constant 5 : index
    %c0_90 = arith.constant 0 : index
    %c0_91 = arith.constant 0 : index
    %187 = vector.load %arg3[%c5_89, %c0_90, %c0_91] : memref<8x128x128xbf16, #tpu.memory_space<vmem>>, vector<1x128x128xbf16>
    %188 = vector.shape_cast %187 : vector<1x128x128xbf16> to vector<128x128xbf16>
    %cst_92 = arith.constant dense<0xFF800000> : vector<24xf32>
    %189 = vector.multi_reduction <maximumf>, %186, %cst_92 [1] : vector<24x128xf32> to vector<24xf32>
    %190 = vector.shape_cast %189 : vector<24xf32> to vector<24x1xf32>
    %191 = arith.maximumf %182, %190 : vector<24x1xf32>
    %192 = arith.subf %182, %191 : vector<24x1xf32>
    %193 = math.exp %192 : vector<24x1xf32>
    %194 = arith.mulf %183, %193 : vector<24x1xf32>
    %195 = vector.broadcast %191 : vector<24x1xf32> to vector<24x128xf32>
    %196 = arith.subf %186, %195 : vector<24x128xf32>
    %197 = math.exp %196 : vector<24x128xf32>
    %cst_93 = arith.constant dense<0.000000e+00> : vector<24xf32>
    %198 = vector.multi_reduction <add>, %197, %cst_93 [1] : vector<24x128xf32> to vector<24xf32>
    %199 = vector.shape_cast %198 : vector<24xf32> to vector<24x1xf32>
    %200 = arith.addf %194, %199 : vector<24x1xf32>
    %201 = arith.truncf %186 : vector<24x128xf32> to vector<24x128xbf16>
    %cst_94 = arith.constant dense<0.000000e+00> : vector<24x128xf32>
    %202 = tpu.matmul %201, %188, %cst_94 {dimension_numbers = #tpu.dot_dimension_numbers<[1], [0], [0], [1], [0, 0, 1, 1], [], []>} : vector<24x128xbf16>, vector<128x128xbf16>, vector<24x128xf32> -> vector<24x128xf32>
    %203 = arith.addf %184, %202 : vector<24x128xf32>
    %204 = arith.extf %201 : vector<24x128xbf16> to vector<24x128xf32>
    %205 = arith.subf %186, %204 : vector<24x128xf32>
    %206 = arith.truncf %205 : vector<24x128xf32> to vector<24x128xbf16>
    %cst_95 = arith.constant dense<0.000000e+00> : vector<24x128xf32>
    %207 = tpu.matmul %206, %188, %cst_95 {dimension_numbers = #tpu.dot_dimension_numbers<[1], [0], [0], [1], [0, 0, 1, 1], [], []>} : vector<24x128xbf16>, vector<128x128xbf16>, vector<24x128xf32> -> vector<24x128xf32>
    %208 = arith.addf %203, %207 : vector<24x128xf32>
    %209 = math.log %200 : vector<24x1xf32>
    %210 = arith.addf %191, %209 : vector<24x1xf32>
    %211 = vector.broadcast %210 : vector<24x1xf32> to vector<24x128xf32>
    %212 = arith.subf %208, %211 : vector<24x128xf32>
    %c0_96 = arith.constant 0 : index
    %c5_97 = arith.constant 5 : index
    %c0_98 = arith.constant 0 : index
    %213 = vector.load %arg8[%c0_96, %c5_97, %c0_98] : memref<24x8x128xf32, #tpu.memory_space<vmem>>, vector<24x1x128xf32>
    %214 = vector.shape_cast %213 : vector<24x1x128xf32> to vector<24x128xf32>
    %215 = vector.shape_cast %212 : vector<24x128xf32> to vector<24x1x128xf32>
    tpu.vector_store %arg8[%c0_96, %c5_97, %c0_98], %215 {strides = array<i32>} : memref<24x8x128xf32, #tpu.memory_space<vmem>>, vector<24x1x128xf32>,
    %cst_99 = arith.constant -1.000000e+30 : f32
    %216 = vector.broadcast %cst_99 : f32 to vector<24x1xf32>
    %cst_100 = arith.constant 0.000000e+00 : f32
    %217 = vector.broadcast %cst_100 : f32 to vector<24x1xf32>
    %cst_101 = arith.constant 0.000000e+00 : f32
    %218 = vector.broadcast %cst_101 : f32 to vector<24x128xf32>
    %c6 = arith.constant 6 : index
    %c0_102 = arith.constant 0 : index
    %c0_103 = arith.constant 0 : index
    %219 = vector.load %arg2[%c6, %c0_102, %c0_103] : memref<8x24x128xf32, #tpu.memory_space<vmem>>, vector<1x24x128xf32>
    %220 = vector.shape_cast %219 : vector<1x24x128xf32> to vector<24x128xf32>
    %c6_104 = arith.constant 6 : index
    %c0_105 = arith.constant 0 : index
    %c0_106 = arith.constant 0 : index
    %221 = vector.load %arg3[%c6_104, %c0_105, %c0_106] : memref<8x128x128xbf16, #tpu.memory_space<vmem>>, vector<1x128x128xbf16>
    %222 = vector.shape_cast %221 : vector<1x128x128xbf16> to vector<128x128xbf16>
    %cst_107 = arith.constant dense<0xFF800000> : vector<24xf32>
    %223 = vector.multi_reduction <maximumf>, %220, %cst_107 [1] : vector<24x128xf32> to vector<24xf32>
    %224 = vector.shape_cast %223 : vector<24xf32> to vector<24x1xf32>
    %225 = arith.maximumf %216, %224 : vector<24x1xf32>
    %226 = arith.subf %216, %225 : vector<24x1xf32>
    %227 = math.exp %226 : vector<24x1xf32>
    %228 = arith.mulf %217, %227 : vector<24x1xf32>
    %229 = vector.broadcast %225 : vector<24x1xf32> to vector<24x128xf32>
    %230 = arith.subf %220, %229 : vector<24x128xf32>
    %231 = math.exp %230 : vector<24x128xf32>
    %cst_108 = arith.constant dense<0.000000e+00> : vector<24xf32>
    %232 = vector.multi_reduction <add>, %231, %cst_108 [1] : vector<24x128xf32> to vector<24xf32>
    %233 = vector.shape_cast %232 : vector<24xf32> to vector<24x1xf32>
    %234 = arith.addf %228, %233 : vector<24x1xf32>
    %235 = arith.truncf %220 : vector<24x128xf32> to vector<24x128xbf16>
    %cst_109 = arith.constant dense<0.000000e+00> : vector<24x128xf32>
    %236 = tpu.matmul %235, %222, %cst_109 {dimension_numbers = #tpu.dot_dimension_numbers<[1], [0], [0], [1], [0, 0, 1, 1], [], []>} : vector<24x128xbf16>, vector<128x128xbf16>, vector<24x128xf32> -> vector<24x128xf32>
    %237 = arith.addf %218, %236 : vector<24x128xf32>
    %238 = arith.extf %235 : vector<24x128xbf16> to vector<24x128xf32>
    %239 = arith.subf %220, %238 : vector<24x128xf32>
    %240 = arith.truncf %239 : vector<24x128xf32> to vector<24x128xbf16>
    %cst_110 = arith.constant dense<0.000000e+00> : vector<24x128xf32>
    %241 = tpu.matmul %240, %222, %cst_110 {dimension_numbers = #tpu.dot_dimension_numbers<[1], [0], [0], [1], [0, 0, 1, 1], [], []>} : vector<24x128xbf16>, vector<128x128xbf16>, vector<24x128xf32> -> vector<24x128xf32>
    %242 = arith.addf %237, %241 : vector<24x128xf32>
    %243 = math.log %234 : vector<24x1xf32>
    %244 = arith.addf %225, %243 : vector<24x1xf32>
    %245 = vector.broadcast %244 : vector<24x1xf32> to vector<24x128xf32>
    %246 = arith.subf %242, %245 : vector<24x128xf32>
    %c0_111 = arith.constant 0 : index
    %c6_112 = arith.constant 6 : index
    %c0_113 = arith.constant 0 : index
    %247 = vector.load %arg8[%c0_111, %c6_112, %c0_113] : memref<24x8x128xf32, #tpu.memory_space<vmem>>, vector<24x1x128xf32>
    %248 = vector.shape_cast %247 : vector<24x1x128xf32> to vector<24x128xf32>
    %249 = vector.shape_cast %246 : vector<24x128xf32> to vector<24x1x128xf32>
    tpu.vector_store %arg8[%c0_111, %c6_112, %c0_113], %249 {strides = array<i32>} : memref<24x8x128xf32, #tpu.memory_space<vmem>>, vector<24x1x128xf32>,
    %cst_114 = arith.constant -1.000000e+30 : f32
    %250 = vector.broadcast %cst_114 : f32 to vector<24x1xf32>
    %cst_115 = arith.constant 0.000000e+00 : f32
    %251 = vector.broadcast %cst_115 : f32 to vector<24x1xf32>
    %cst_116 = arith.constant 0.000000e+00 : f32
    %252 = vector.broadcast %cst_116 : f32 to vector<24x128xf32>
    %c7 = arith.constant 7 : index
    %c0_117 = arith.constant 0 : index
    %c0_118 = arith.constant 0 : index
    %253 = vector.load %arg2[%c7, %c0_117, %c0_118] : memref<8x24x128xf32, #tpu.memory_space<vmem>>, vector<1x24x128xf32>
    %254 = vector.shape_cast %253 : vector<1x24x128xf32> to vector<24x128xf32>
    %c7_119 = arith.constant 7 : index
    %c0_120 = arith.constant 0 : index
    %c0_121 = arith.constant 0 : index
    %255 = vector.load %arg3[%c7_119, %c0_120, %c0_121] : memref<8x128x128xbf16, #tpu.memory_space<vmem>>, vector<1x128x128xbf16>
    %256 = vector.shape_cast %255 : vector<1x128x128xbf16> to vector<128x128xbf16>
    %cst_122 = arith.constant dense<0xFF800000> : vector<24xf32>
    %257 = vector.multi_reduction <maximumf>, %254, %cst_122 [1] : vector<24x128xf32> to vector<24xf32>
    %258 = vector.shape_cast %257 : vector<24xf32> to vector<24x1xf32>
    %259 = arith.maximumf %250, %258 : vector<24x1xf32>
    %260 = arith.subf %250, %259 : vector<24x1xf32>
    %261 = math.exp %260 : vector<24x1xf32>
    %262 = arith.mulf %251, %261 : vector<24x1xf32>
    %263 = vector.broadcast %259 : vector<24x1xf32> to vector<24x128xf32>
    %264 = arith.subf %254, %263 : vector<24x128xf32>
    %265 = math.exp %264 : vector<24x128xf32>
    %cst_123 = arith.constant dense<0.000000e+00> : vector<24xf32>
    %266 = vector.multi_reduction <add>, %265, %cst_123 [1] : vector<24x128xf32> to vector<24xf32>
    %267 = vector.shape_cast %266 : vector<24xf32> to vector<24x1xf32>
    %268 = arith.addf %262, %267 : vector<24x1xf32>
    %269 = arith.truncf %254 : vector<24x128xf32> to vector<24x128xbf16>
    %cst_124 = arith.constant dense<0.000000e+00> : vector<24x128xf32>
    %270 = tpu.matmul %269, %256, %cst_124 {dimension_numbers = #tpu.dot_dimension_numbers<[1], [0], [0], [1], [0, 0, 1, 1], [], []>} : vector<24x128xbf16>, vector<128x128xbf16>, vector<24x128xf32> -> vector<24x128xf32>
    %271 = arith.addf %252, %270 : vector<24x128xf32>
    %272 = arith.extf %269 : vector<24x128xbf16> to vector<24x128xf32>
    %273 = arith.subf %254, %272 : vector<24x128xf32>
    %274 = arith.truncf %273 : vector<24x128xf32> to vector<24x128xbf16>
    %cst_125 = arith.constant dense<0.000000e+00> : vector<24x128xf32>
    %275 = tpu.matmul %274, %256, %cst_125 {dimension_numbers = #tpu.dot_dimension_numbers<[1], [0], [0], [1], [0, 0, 1, 1], [], []>} : vector<24x128xbf16>, vector<128x128xbf16>, vector<24x128xf32> -> vector<24x128xf32>
    %276 = arith.addf %271, %275 : vector<24x128xf32>
    %277 = math.log %268 : vector<24x1xf32>
    %278 = arith.addf %259, %277 : vector<24x1xf32>
    %279 = vector.broadcast %278 : vector<24x1xf32> to vector<24x128xf32>
    %280 = arith.subf %276, %279 : vector<24x128xf32>
    %c0_126 = arith.constant 0 : index
    %c7_127 = arith.constant 7 : index
    %c0_128 = arith.constant 0 : index
    %281 = vector.load %arg8[%c0_126, %c7_127, %c0_128] : memref<24x8x128xf32, #tpu.memory_space<vmem>>, vector<24x1x128xf32>
    %282 = vector.shape_cast %281 : vector<24x1x128xf32> to vector<24x128xf32>
    %283 = vector.shape_cast %280 : vector<24x128xf32> to vector<24x1x128xf32>
    tpu.vector_store %arg8[%c0_126, %c7_127, %c0_128], %283 {strides = array<i32>} : memref<24x8x128xf32, #tpu.memory_space<vmem>>, vector<24x1x128xf32>,
    %284 = tpu.iota {dimensions = array<i32: 0>} : vector<24x8x128xi32>
    %c24_i32 = arith.constant 24 : i32
    %285 = arith.muli %arg1, %c24_i32 : i32
    %286 = vector.broadcast %285 : i32 to vector<24x8x128xi32>
    %287 = arith.addi %284, %286 : vector<24x8x128xi32>
    %c1_i32_129 = arith.constant 1 : i32
    %288 = vector.broadcast %c1_i32_129 : i32 to vector<24x8x128xi32>
    %289 = arith.cmpi sge, %287, %288 : vector<24x8x128xi32>
    %290 = vector.shape_cast %1 : vector<8x1xi32> to vector<1x8x1xi32>
    %291 = vector.broadcast %290 : vector<1x8x1xi32> to vector<24x8x128xi32>
    %292 = arith.cmpi slt, %287, %291 : vector<24x8x128xi32>
    %293 = arith.andi %289, %292 : vector<24x8x128xi1>
    %cst_130 = arith.constant 1.000000e+00 : f32
    %cst_131 = arith.constant 0.000000e+00 : f32
    %294 = vector.broadcast %cst_130 : f32 to vector<24x8x128xf32>
    %295 = vector.broadcast %cst_131 : f32 to vector<24x8x128xf32>
    %296 = arith.select %293, %294, %295 : vector<24x8x128xi1>, vector<24x8x128xf32>
    %c0_132 = arith.constant 0 : index
    %c0_133 = arith.constant 0 : index
    %c0_134 = arith.constant 0 : index
    %297 = vector.load %arg9[%c0_132, %c0_133, %c0_134] : memref<24x8x128xf32, #tpu.memory_space<vmem>>, vector<24x8x128xf32>
    tpu.vector_store %arg9[%c0_132, %c0_133, %c0_134], %296 {strides = array<i32>} : memref<24x8x128xf32, #tpu.memory_space<vmem>>, vector<24x8x128xf32>,
    %c0_i32 = arith.constant 0 : i32
    %298 = arith.cmpi eq, %arg1, %c0_i32 : i32
    %299 = arith.extui %298 : i1 to i32
    %c0_i32_135 = arith.constant 0 : i32
    %300 = arith.cmpi ne, %299, %c0_i32_135 : i32
    scf.if %300 {
      %cst_145 = arith.constant 0.000000e+00 : f32
      %308 = vector.broadcast %cst_145 : f32 to vector<8x1xf32>
      %c0_146 = arith.constant 0 : index
      %c0_147 = arith.constant 0 : index
      %309 = vector.load %arg6[%c0_146, %c0_147] : memref<8x1xf32, #tpu.memory_space<vmem>>, vector<8x1xf32>
      tpu.vector_store %arg6[%c0_146, %c0_147], %308 {strides = array<i32>} : memref<8x1xf32, #tpu.memory_space<vmem>>, vector<8x1xf32>,
      %c2_i32 = arith.constant 2 : i32
      %310 = vector.broadcast %c2_i32 : i32 to vector<8x128xi32>
      %311 = arith.cmpi slt, %5, %310 : vector<8x128xi32>
      %c0_148 = arith.constant 0 : index
      %c0_149 = arith.constant 0 : index
      %c0_150 = arith.constant 0 : index
      %312 = vector.load %arg8[%c0_148, %c0_149, %c0_150] : memref<24x8x128xf32, #tpu.memory_space<vmem>>, vector<1x8x128xf32>
      %313 = vector.shape_cast %312 : vector<1x8x128xf32> to vector<8x128xf32>
      %cst_151 = arith.constant -1.000000e+30 : f32
      %314 = vector.broadcast %cst_151 : f32 to vector<8x128xf32>
      %315 = arith.select %311, %313, %314 : vector<8x128xi1>, vector<8x128xf32>
      %c0_152 = arith.constant 0 : index
      %c0_153 = arith.constant 0 : index
      %316 = vector.load %arg7[%c0_152, %c0_153] : memref<8x128xf32, #tpu.memory_space<vmem>>, vector<8x128xf32>
      tpu.vector_store %arg7[%c0_152, %c0_153], %315 {strides = array<i32>} : memref<8x128xf32, #tpu.memory_space<vmem>>, vector<8x128xf32>,
    } else {
    }
    %c0_136 = arith.constant 0 : index
    %c0_137 = arith.constant 0 : index
    %301 = vector.load %arg7[%c0_136, %c0_137] : memref<8x128xf32, #tpu.memory_space<vmem>>, vector<8x128xf32>
    %c0_i32_138 = arith.constant 0 : i32
    %c3_i32 = arith.constant 3 : i32
    %302 = arith.addi %c0_i32_138, %c3_i32 : i32
    %c1_i32_139 = arith.constant 1 : i32
    %303 = scf.for %arg10 = %c0_i32_138 to %302 step %c1_i32_139 iter_args(%arg11 = %301) -> (vector<8x128xf32>)  : i32 {
      %c8_i32 = arith.constant 8 : i32
      %308 = arith.muli %arg10, %c8_i32 : i32
      %c0_i32_145 = arith.constant 0 : i32
      %309 = arith.addi %308, %c0_i32_145 : i32
      %310 = arith.index_cast %309 : i32 to index
      %c0_146 = arith.constant 0 : index
      %c0_147 = arith.constant 0 : index
      %311 = vector.load %arg8[%310, %c0_146, %c0_147] : memref<24x8x128xf32, #tpu.memory_space<vmem>>, vector<1x8x128xf32>
      %312 = vector.shape_cast %311 : vector<1x8x128xf32> to vector<8x128xf32>
      %313 = arith.index_cast %309 : i32 to index
      %c0_148 = arith.constant 0 : index
      %c0_149 = arith.constant 0 : index
      %314 = vector.load %arg9[%313, %c0_148, %c0_149] : memref<24x8x128xf32, #tpu.memory_space<vmem>>, vector<1x8x128xf32>
      %315 = vector.shape_cast %314 : vector<1x8x128xf32> to vector<8x128xf32>
      %c1_i32_150 = arith.constant 1 : i32
      %316 = tpu.dynamic_rotate %arg11 by %c1_i32_150 dim 1 : vector<8x128xf32>, i32 -> vector<8x128xf32>
      %317 = arith.addf %316, %10 : vector<8x128xf32>
      %c2_i32 = arith.constant 2 : i32
      %318 = tpu.dynamic_rotate %arg11 by %c2_i32 dim 1 : vector<8x128xf32>, i32 -> vector<8x128xf32>
      %319 = arith.addf %318, %11 : vector<8x128xf32>
      %320 = arith.maximumf %arg11, %317 : vector<8x128xf32>
      %321 = arith.maximumf %320, %319 : vector<8x128xf32>
      %322 = arith.subf %arg11, %321 : vector<8x128xf32>
      %323 = math.exp %322 : vector<8x128xf32>
      %324 = arith.subf %317, %321 : vector<8x128xf32>
      %325 = math.exp %324 : vector<8x128xf32>
      %326 = arith.addf %323, %325 : vector<8x128xf32>
      %327 = arith.subf %319, %321 : vector<8x128xf32>
      %328 = math.exp %327 : vector<8x128xf32>
      %329 = arith.addf %326, %328 : vector<8x128xf32>
      %330 = math.log %329 : vector<8x128xf32>
      %331 = arith.addf %321, %330 : vector<8x128xf32>
      %cst_151 = arith.constant 5.000000e-01 : f32
      %332 = vector.broadcast %cst_151 : f32 to vector<8x128xf32>
      %333 = arith.cmpf ogt, %315, %332 : vector<8x128xf32>
      %334 = arith.addf %312, %331 : vector<8x128xf32>
      %335 = arith.select %333, %334, %arg11 : vector<8x128xi1>, vector<8x128xf32>
      %c1_i32_152 = arith.constant 1 : i32
      %336 = arith.addi %308, %c1_i32_152 : i32
      %337 = arith.index_cast %336 : i32 to index
      %c0_153 = arith.constant 0 : index
      %c0_154 = arith.constant 0 : index
      %338 = vector.load %arg8[%337, %c0_153, %c0_154] : memref<24x8x128xf32, #tpu.memory_space<vmem>>, vector<1x8x128xf32>
      %339 = vector.shape_cast %338 : vector<1x8x128xf32> to vector<8x128xf32>
      %340 = arith.index_cast %336 : i32 to index
      %c0_155 = arith.constant 0 : index
      %c0_156 = arith.constant 0 : index
      %341 = vector.load %arg9[%340, %c0_155, %c0_156] : memref<24x8x128xf32, #tpu.memory_space<vmem>>, vector<1x8x128xf32>
      %342 = vector.shape_cast %341 : vector<1x8x128xf32> to vector<8x128xf32>
      %c1_i32_157 = arith.constant 1 : i32
      %343 = tpu.dynamic_rotate %335 by %c1_i32_157 dim 1 : vector<8x128xf32>, i32 -> vector<8x128xf32>
      %344 = arith.addf %343, %10 : vector<8x128xf32>
      %c2_i32_158 = arith.constant 2 : i32
      %345 = tpu.dynamic_rotate %335 by %c2_i32_158 dim 1 : vector<8x128xf32>, i32 -> vector<8x128xf32>
      %346 = arith.addf %345, %11 : vector<8x128xf32>
      %347 = arith.maximumf %335, %344 : vector<8x128xf32>
      %348 = arith.maximumf %347, %346 : vector<8x128xf32>
      %349 = arith.subf %335, %348 : vector<8x128xf32>
      %350 = math.exp %349 : vector<8x128xf32>
      %351 = arith.subf %344, %348 : vector<8x128xf32>
      %352 = math.exp %351 : vector<8x128xf32>
      %353 = arith.addf %350, %352 : vector<8x128xf32>
      %354 = arith.subf %346, %348 : vector<8x128xf32>
      %355 = math.exp %354 : vector<8x128xf32>
      %356 = arith.addf %353, %355 : vector<8x128xf32>
      %357 = math.log %356 : vector<8x128xf32>
      %358 = arith.addf %348, %357 : vector<8x128xf32>
      %cst_159 = arith.constant 5.000000e-01 : f32
      %359 = vector.broadcast %cst_159 : f32 to vector<8x128xf32>
      %360 = arith.cmpf ogt, %342, %359 : vector<8x128xf32>
      %361 = arith.addf %339, %358 : vector<8x128xf32>
      %362 = arith.select %360, %361, %335 : vector<8x128xi1>, vector<8x128xf32>
      %c2_i32_160 = arith.constant 2 : i32
      %363 = arith.addi %308, %c2_i32_160 : i32
      %364 = arith.index_cast %363 : i32 to index
      %c0_161 = arith.constant 0 : index
      %c0_162 = arith.constant 0 : index
      %365 = vector.load %arg8[%364, %c0_161, %c0_162] : memref<24x8x128xf32, #tpu.memory_space<vmem>>, vector<1x8x128xf32>
      %366 = vector.shape_cast %365 : vector<1x8x128xf32> to vector<8x128xf32>
      %367 = arith.index_cast %363 : i32 to index
      %c0_163 = arith.constant 0 : index
      %c0_164 = arith.constant 0 : index
      %368 = vector.load %arg9[%367, %c0_163, %c0_164] : memref<24x8x128xf32, #tpu.memory_space<vmem>>, vector<1x8x128xf32>
      %369 = vector.shape_cast %368 : vector<1x8x128xf32> to vector<8x128xf32>
      %c1_i32_165 = arith.constant 1 : i32
      %370 = tpu.dynamic_rotate %362 by %c1_i32_165 dim 1 : vector<8x128xf32>, i32 -> vector<8x128xf32>
      %371 = arith.addf %370, %10 : vector<8x128xf32>
      %c2_i32_166 = arith.constant 2 : i32
      %372 = tpu.dynamic_rotate %362 by %c2_i32_166 dim 1 : vector<8x128xf32>, i32 -> vector<8x128xf32>
      %373 = arith.addf %372, %11 : vector<8x128xf32>
      %374 = arith.maximumf %362, %371 : vector<8x128xf32>
      %375 = arith.maximumf %374, %373 : vector<8x128xf32>
      %376 = arith.subf %362, %375 : vector<8x128xf32>
      %377 = math.exp %376 : vector<8x128xf32>
      %378 = arith.subf %371, %375 : vector<8x128xf32>
      %379 = math.exp %378 : vector<8x128xf32>
      %380 = arith.addf %377, %379 : vector<8x128xf32>
      %381 = arith.subf %373, %375 : vector<8x128xf32>
      %382 = math.exp %381 : vector<8x128xf32>
      %383 = arith.addf %380, %382 : vector<8x128xf32>
      %384 = math.log %383 : vector<8x128xf32>
      %385 = arith.addf %375, %384 : vector<8x128xf32>
      %cst_167 = arith.constant 5.000000e-01 : f32
      %386 = vector.broadcast %cst_167 : f32 to vector<8x128xf32>
      %387 = arith.cmpf ogt, %369, %386 : vector<8x128xf32>
      %388 = arith.addf %366, %385 : vector<8x128xf32>
      %389 = arith.select %387, %388, %362 : vector<8x128xi1>, vector<8x128xf32>
      %c3_i32_168 = arith.constant 3 : i32
      %390 = arith.addi %308, %c3_i32_168 : i32
      %391 = arith.index_cast %390 : i32 to index
      %c0_169 = arith.constant 0 : index
      %c0_170 = arith.constant 0 : index
      %392 = vector.load %arg8[%391, %c0_169, %c0_170] : memref<24x8x128xf32, #tpu.memory_space<vmem>>, vector<1x8x128xf32>
      %393 = vector.shape_cast %392 : vector<1x8x128xf32> to vector<8x128xf32>
      %394 = arith.index_cast %390 : i32 to index
      %c0_171 = arith.constant 0 : index
      %c0_172 = arith.constant 0 : index
      %395 = vector.load %arg9[%394, %c0_171, %c0_172] : memref<24x8x128xf32, #tpu.memory_space<vmem>>, vector<1x8x128xf32>
      %396 = vector.shape_cast %395 : vector<1x8x128xf32> to vector<8x128xf32>
      %c1_i32_173 = arith.constant 1 : i32
      %397 = tpu.dynamic_rotate %389 by %c1_i32_173 dim 1 : vector<8x128xf32>, i32 -> vector<8x128xf32>
      %398 = arith.addf %397, %10 : vector<8x128xf32>
      %c2_i32_174 = arith.constant 2 : i32
      %399 = tpu.dynamic_rotate %389 by %c2_i32_174 dim 1 : vector<8x128xf32>, i32 -> vector<8x128xf32>
      %400 = arith.addf %399, %11 : vector<8x128xf32>
      %401 = arith.maximumf %389, %398 : vector<8x128xf32>
      %402 = arith.maximumf %401, %400 : vector<8x128xf32>
      %403 = arith.subf %389, %402 : vector<8x128xf32>
      %404 = math.exp %403 : vector<8x128xf32>
      %405 = arith.subf %398, %402 : vector<8x128xf32>
      %406 = math.exp %405 : vector<8x128xf32>
      %407 = arith.addf %404, %406 : vector<8x128xf32>
      %408 = arith.subf %400, %402 : vector<8x128xf32>
      %409 = math.exp %408 : vector<8x128xf32>
      %410 = arith.addf %407, %409 : vector<8x128xf32>
      %411 = math.log %410 : vector<8x128xf32>
      %412 = arith.addf %402, %411 : vector<8x128xf32>
      %cst_175 = arith.constant 5.000000e-01 : f32
      %413 = vector.broadcast %cst_175 : f32 to vector<8x128xf32>
      %414 = arith.cmpf ogt, %396, %413 : vector<8x128xf32>
      %415 = arith.addf %393, %412 : vector<8x128xf32>
      %416 = arith.select %414, %415, %389 : vector<8x128xi1>, vector<8x128xf32>
      %c4_i32 = arith.constant 4 : i32
      %417 = arith.addi %308, %c4_i32 : i32
      %418 = arith.index_cast %417 : i32 to index
      %c0_176 = arith.constant 0 : index
      %c0_177 = arith.constant 0 : index
      %419 = vector.load %arg8[%418, %c0_176, %c0_177] : memref<24x8x128xf32, #tpu.memory_space<vmem>>, vector<1x8x128xf32>
      %420 = vector.shape_cast %419 : vector<1x8x128xf32> to vector<8x128xf32>
      %421 = arith.index_cast %417 : i32 to index
      %c0_178 = arith.constant 0 : index
      %c0_179 = arith.constant 0 : index
      %422 = vector.load %arg9[%421, %c0_178, %c0_179] : memref<24x8x128xf32, #tpu.memory_space<vmem>>, vector<1x8x128xf32>
      %423 = vector.shape_cast %422 : vector<1x8x128xf32> to vector<8x128xf32>
      %c1_i32_180 = arith.constant 1 : i32
      %424 = tpu.dynamic_rotate %416 by %c1_i32_180 dim 1 : vector<8x128xf32>, i32 -> vector<8x128xf32>
      %425 = arith.addf %424, %10 : vector<8x128xf32>
      %c2_i32_181 = arith.constant 2 : i32
      %426 = tpu.dynamic_rotate %416 by %c2_i32_181 dim 1 : vector<8x128xf32>, i32 -> vector<8x128xf32>
      %427 = arith.addf %426, %11 : vector<8x128xf32>
      %428 = arith.maximumf %416, %425 : vector<8x128xf32>
      %429 = arith.maximumf %428, %427 : vector<8x128xf32>
      %430 = arith.subf %416, %429 : vector<8x128xf32>
      %431 = math.exp %430 : vector<8x128xf32>
      %432 = arith.subf %425, %429 : vector<8x128xf32>
      %433 = math.exp %432 : vector<8x128xf32>
      %434 = arith.addf %431, %433 : vector<8x128xf32>
      %435 = arith.subf %427, %429 : vector<8x128xf32>
      %436 = math.exp %435 : vector<8x128xf32>
      %437 = arith.addf %434, %436 : vector<8x128xf32>
      %438 = math.log %437 : vector<8x128xf32>
      %439 = arith.addf %429, %438 : vector<8x128xf32>
      %cst_182 = arith.constant 5.000000e-01 : f32
      %440 = vector.broadcast %cst_182 : f32 to vector<8x128xf32>
      %441 = arith.cmpf ogt, %423, %440 : vector<8x128xf32>
      %442 = arith.addf %420, %439 : vector<8x128xf32>
      %443 = arith.select %441, %442, %416 : vector<8x128xi1>, vector<8x128xf32>
      %c5_i32 = arith.constant 5 : i32
      %444 = arith.addi %308, %c5_i32 : i32
      %445 = arith.index_cast %444 : i32 to index
      %c0_183 = arith.constant 0 : index
      %c0_184 = arith.constant 0 : index
      %446 = vector.load %arg8[%445, %c0_183, %c0_184] : memref<24x8x128xf32, #tpu.memory_space<vmem>>, vector<1x8x128xf32>
      %447 = vector.shape_cast %446 : vector<1x8x128xf32> to vector<8x128xf32>
      %448 = arith.index_cast %444 : i32 to index
      %c0_185 = arith.constant 0 : index
      %c0_186 = arith.constant 0 : index
      %449 = vector.load %arg9[%448, %c0_185, %c0_186] : memref<24x8x128xf32, #tpu.memory_space<vmem>>, vector<1x8x128xf32>
      %450 = vector.shape_cast %449 : vector<1x8x128xf32> to vector<8x128xf32>
      %c1_i32_187 = arith.constant 1 : i32
      %451 = tpu.dynamic_rotate %443 by %c1_i32_187 dim 1 : vector<8x128xf32>, i32 -> vector<8x128xf32>
      %452 = arith.addf %451, %10 : vector<8x128xf32>
      %c2_i32_188 = arith.constant 2 : i32
      %453 = tpu.dynamic_rotate %443 by %c2_i32_188 dim 1 : vector<8x128xf32>, i32 -> vector<8x128xf32>
      %454 = arith.addf %453, %11 : vector<8x128xf32>
      %455 = arith.maximumf %443, %452 : vector<8x128xf32>
      %456 = arith.maximumf %455, %454 : vector<8x128xf32>
      %457 = arith.subf %443, %456 : vector<8x128xf32>
      %458 = math.exp %457 : vector<8x128xf32>
      %459 = arith.subf %452, %456 : vector<8x128xf32>
      %460 = math.exp %459 : vector<8x128xf32>
      %461 = arith.addf %458, %460 : vector<8x128xf32>
      %462 = arith.subf %454, %456 : vector<8x128xf32>
      %463 = math.exp %462 : vector<8x128xf32>
      %464 = arith.addf %461, %463 : vector<8x128xf32>
      %465 = math.log %464 : vector<8x128xf32>
      %466 = arith.addf %456, %465 : vector<8x128xf32>
      %cst_189 = arith.constant 5.000000e-01 : f32
      %467 = vector.broadcast %cst_189 : f32 to vector<8x128xf32>
      %468 = arith.cmpf ogt, %450, %467 : vector<8x128xf32>
      %469 = arith.addf %447, %466 : vector<8x128xf32>
      %470 = arith.select %468, %469, %443 : vector<8x128xi1>, vector<8x128xf32>
      %c6_i32 = arith.constant 6 : i32
      %471 = arith.addi %308, %c6_i32 : i32
      %472 = arith.index_cast %471 : i32 to index
      %c0_190 = arith.constant 0 : index
      %c0_191 = arith.constant 0 : index
      %473 = vector.load %arg8[%472, %c0_190, %c0_191] : memref<24x8x128xf32, #tpu.memory_space<vmem>>, vector<1x8x128xf32>
      %474 = vector.shape_cast %473 : vector<1x8x128xf32> to vector<8x128xf32>
      %475 = arith.index_cast %471 : i32 to index
      %c0_192 = arith.constant 0 : index
      %c0_193 = arith.constant 0 : index
      %476 = vector.load %arg9[%475, %c0_192, %c0_193] : memref<24x8x128xf32, #tpu.memory_space<vmem>>, vector<1x8x128xf32>
      %477 = vector.shape_cast %476 : vector<1x8x128xf32> to vector<8x128xf32>
      %c1_i32_194 = arith.constant 1 : i32
      %478 = tpu.dynamic_rotate %470 by %c1_i32_194 dim 1 : vector<8x128xf32>, i32 -> vector<8x128xf32>
      %479 = arith.addf %478, %10 : vector<8x128xf32>
      %c2_i32_195 = arith.constant 2 : i32
      %480 = tpu.dynamic_rotate %470 by %c2_i32_195 dim 1 : vector<8x128xf32>, i32 -> vector<8x128xf32>
      %481 = arith.addf %480, %11 : vector<8x128xf32>
      %482 = arith.maximumf %470, %479 : vector<8x128xf32>
      %483 = arith.maximumf %482, %481 : vector<8x128xf32>
      %484 = arith.subf %470, %483 : vector<8x128xf32>
      %485 = math.exp %484 : vector<8x128xf32>
      %486 = arith.subf %479, %483 : vector<8x128xf32>
      %487 = math.exp %486 : vector<8x128xf32>
      %488 = arith.addf %485, %487 : vector<8x128xf32>
      %489 = arith.subf %481, %483 : vector<8x128xf32>
      %490 = math.exp %489 : vector<8x128xf32>
      %491 = arith.addf %488, %490 : vector<8x128xf32>
      %492 = math.log %491 : vector<8x128xf32>
      %493 = arith.addf %483, %492 : vector<8x128xf32>
      %cst_196 = arith.constant 5.000000e-01 : f32
      %494 = vector.broadcast %cst_196 : f32 to vector<8x128xf32>
      %495 = arith.cmpf ogt, %477, %494 : vector<8x128xf32>
      %496 = arith.addf %474, %493 : vector<8x128xf32>
      %497 = arith.select %495, %496, %470 : vector<8x128xi1>, vector<8x128xf32>
      %c7_i32 = arith.constant 7 : i32
      %498 = arith.addi %308, %c7_i32 : i32
      %499 = arith.index_cast %498 : i32 to index
      %c0_197 = arith.constant 0 : index
      %c0_198 = arith.constant 0 : index
      %500 = vector.load %arg8[%499, %c0_197, %c0_198] : memref<24x8x128xf32, #tpu.memory_space<vmem>>, vector<1x8x128xf32>
      %501 = vector.shape_cast %500 : vector<1x8x128xf32> to vector<8x128xf32>
      %502 = arith.index_cast %498 : i32 to index
      %c0_199 = arith.constant 0 : index
      %c0_200 = arith.constant 0 : index
      %503 = vector.load %arg9[%502, %c0_199, %c0_200] : memref<24x8x128xf32, #tpu.memory_space<vmem>>, vector<1x8x128xf32>
      %504 = vector.shape_cast %503 : vector<1x8x128xf32> to vector<8x128xf32>
      %c1_i32_201 = arith.constant 1 : i32
      %505 = tpu.dynamic_rotate %497 by %c1_i32_201 dim 1 : vector<8x128xf32>, i32 -> vector<8x128xf32>
      %506 = arith.addf %505, %10 : vector<8x128xf32>
      %c2_i32_202 = arith.constant 2 : i32
      %507 = tpu.dynamic_rotate %497 by %c2_i32_202 dim 1 : vector<8x128xf32>, i32 -> vector<8x128xf32>
      %508 = arith.addf %507, %11 : vector<8x128xf32>
      %509 = arith.maximumf %497, %506 : vector<8x128xf32>
      %510 = arith.maximumf %509, %508 : vector<8x128xf32>
      %511 = arith.subf %497, %510 : vector<8x128xf32>
      %512 = math.exp %511 : vector<8x128xf32>
      %513 = arith.subf %506, %510 : vector<8x128xf32>
      %514 = math.exp %513 : vector<8x128xf32>
      %515 = arith.addf %512, %514 : vector<8x128xf32>
      %516 = arith.subf %508, %510 : vector<8x128xf32>
      %517 = math.exp %516 : vector<8x128xf32>
      %518 = arith.addf %515, %517 : vector<8x128xf32>
      %519 = math.log %518 : vector<8x128xf32>
      %520 = arith.addf %510, %519 : vector<8x128xf32>
      %cst_203 = arith.constant 5.000000e-01 : f32
      %521 = vector.broadcast %cst_203 : f32 to vector<8x128xf32>
      %522 = arith.cmpf ogt, %504, %521 : vector<8x128xf32>
      %523 = arith.addf %501, %520 : vector<8x128xf32>
      %524 = arith.select %522, %523, %497 : vector<8x128xi1>, vector<8x128xf32>
      scf.yield %524 : vector<8x128xf32>
    }
    %c3_i32_140 = arith.constant 3 : i32
    %c0_141 = arith.constant 0 : index
    %c0_142 = arith.constant 0 : index
    %304 = vector.load %arg7[%c0_141, %c0_142] : memref<8x128xf32, #tpu.memory_space<vmem>>, vector<8x128xf32>
    tpu.vector_store %arg7[%c0_141, %c0_142], %303 {strides = array<i32>} : memref<8x128xf32, #tpu.memory_space<vmem>>, vector<8x128xf32>,
    %c0_i32_143 = arith.constant 0 : i32
    %305 = arith.cmpi eq, %arg1, %c0_i32_143 : i32
    %306 = arith.extui %305 : i1 to i32
    %c0_i32_144 = arith.constant 0 : i32
    %307 = arith.cmpi ne, %306, %c0_i32_144 : i32
    scf.if %307 {
      %c1_i32_145 = arith.constant 1 : i32
      %308 = vector.broadcast %c1_i32_145 : i32 to vector<8x1xi32>
      %309 = arith.subi %3, %308 : vector<8x1xi32>
      %310 = vector.broadcast %309 : vector<8x1xi32> to vector<8x128xi32>
      %311 = arith.cmpi eq, %5, %310 : vector<8x128xi32>
      %c2_i32 = arith.constant 2 : i32
      %312 = vector.broadcast %c2_i32 : i32 to vector<8x1xi32>
      %313 = arith.subi %3, %312 : vector<8x1xi32>
      %314 = vector.broadcast %313 : vector<8x1xi32> to vector<8x128xi32>
      %315 = arith.cmpi eq, %5, %314 : vector<8x128xi32>
      %316 = arith.ori %311, %315 : vector<8x128xi1>
      %cst_146 = arith.constant -1.000000e+30 : f32
      %317 = vector.broadcast %cst_146 : f32 to vector<8x128xf32>
      %318 = arith.select %316, %303, %317 : vector<8x128xi1>, vector<8x128xf32>
      %cst_147 = arith.constant dense<0xFF800000> : vector<8xf32>
      %319 = vector.multi_reduction <maximumf>, %318, %cst_147 [1] : vector<8x128xf32> to vector<8xf32>
      %320 = vector.shape_cast %319 : vector<8xf32> to vector<8x1xf32>
      %321 = vector.broadcast %320 : vector<8x1xf32> to vector<8x128xf32>
      %322 = arith.subf %318, %321 : vector<8x128xf32>
      %323 = math.exp %322 : vector<8x128xf32>
      %cst_148 = arith.constant dense<0.000000e+00> : vector<8xf32>
      %324 = vector.multi_reduction <add>, %323, %cst_148 [1] : vector<8x128xf32> to vector<8xf32>
      %325 = vector.shape_cast %324 : vector<8xf32> to vector<8x1xf32>
      %326 = math.log %325 : vector<8x1xf32>
      %327 = arith.addf %320, %326 : vector<8x1xf32>
      %cst_149 = arith.constant 0.000000e+00 : f32
      %328 = vector.broadcast %cst_149 : f32 to vector<8x1xf32>
      %329 = arith.subf %328, %327 : vector<8x1xf32>
      %330 = arith.mulf %329, %4 : vector<8x1xf32>
      %c0_150 = arith.constant 0 : index
      %c0_151 = arith.constant 0 : index
      %331 = vector.load %arg6[%c0_150, %c0_151] : memref<8x1xf32, #tpu.memory_space<vmem>>, vector<8x1xf32>
      tpu.vector_store %arg6[%c0_150, %c0_151], %330 {strides = array<i32>} : memref<8x1xf32, #tpu.memory_space<vmem>>, vector<8x1xf32>,
    } else {
    }
    return
  }
  func.func @transform_0(%arg0: i32, %arg1: i32) -> (i32, i32, i32) {
    %c0_i32 = arith.constant 0 : i32
    %c0_i32_0 = arith.constant 0 : i32
    return %arg0, %arg1, %c0_i32 : i32, i32, i32
  }
  func.func @transform_1(%arg0: i32, %arg1: i32) -> (i32, i32, i32) {
    %c0_i32 = arith.constant 0 : i32
    %c0_i32_0 = arith.constant 0 : i32
    %c0_i32_1 = arith.constant 0 : i32
    return %arg0, %c0_i32, %c0_i32_0 : i32, i32, i32
  }
  func.func @transform_2(%arg0: i32, %arg1: i32) -> (i32, i32) {
    %c0_i32 = arith.constant 0 : i32
    %c0_i32_0 = arith.constant 0 : i32
    return %arg0, %c0_i32 : i32, i32
  }
  func.func @transform_3(%arg0: i32, %arg1: i32) -> (i32, i32) {
    %c0_i32 = arith.constant 0 : i32
    %c0_i32_0 = arith.constant 0 : i32
    return %arg0, %c0_i32 : i32, i32
  }
  func.func @transform_4(%arg0: i32, %arg1: i32) -> (i32, i32) {
    %c0_i32 = arith.constant 0 : i32
    %c0_i32_0 = arith.constant 0 : i32
    return %arg0, %c0_i32 : i32, i32
  }
}

module attributes {stable_mosaic.version = 11 : i64} {
  func.func @_ctc_kernel(%arg0: i32, %arg1: i32, %arg2: memref<8x24x128xf32, #tpu.memory_space<vmem>>, %arg3: memref<8x128x128xbf16, #tpu.memory_space<vmem>>, %arg4: memref<8x128xf32, #tpu.memory_space<vmem>>, %arg5: memref<8x128xf32, #tpu.memory_space<vmem>>, %arg6: memref<8x1xf32, #tpu.memory_space<vmem>>, %arg7: memref<8x128xf32, #tpu.memory_space<vmem>>, %arg8: memref<24x8x128xf32, #tpu.memory_space<vmem>>, %arg9: memref<24x8x128xf32, #tpu.memory_space<vmem>>) attributes {dimension_semantics = [#tpu.dimension_semantics<parallel>, #tpu.dimension_semantics<arbitrary>], iteration_bounds = array<i64: 1, 1>, scalar_prefetch = 0 : i64, scratch_operands = 3 : i64, tpu.core_type = #tpu.core_type<tc>, window_params = [{transform_indices = @transform_0, window_bounds = array<i64: 8, 24, 128>}, {transform_indices = @transform_1, window_bounds = array<i64: 8, 128, 128>}, {transform_indices = @transform_2, window_bounds = array<i64: 8, 128>}, {transform_indices = @transform_3, window_bounds = array<i64: 8, 128>}, {transform_indices = @transform_4, window_bounds = array<i64: 8, 1>}]} {
    %c0 = arith.constant 0 : index
    %c0_0 = arith.constant 0 : index
    %0 = vector.load %arg5[%c0, %c0_0] : memref<8x128xf32, #tpu.memory_space<vmem>>, vector<8x1xf32>
    %1 = arith.fptosi %0 : vector<8x1xf32> to vector<8x1xi32>
    %c0_1 = arith.constant 0 : index
    %c1 = arith.constant 1 : index
    %2 = vector.load %arg5[%c0_1, %c1] : memref<8x128xf32, #tpu.memory_space<vmem>>, vector<8x1xf32>
    %3 = arith.fptosi %2 : vector<8x1xf32> to vector<8x1xi32>
    %c0_2 = arith.constant 0 : index
    %c2 = arith.constant 2 : index
    %4 = vector.load %arg5[%c0_2, %c2] : memref<8x128xf32, #tpu.memory_space<vmem>>, vector<8x1xf32>
    %5 = tpu.iota {dimensions = array<i32: 1>} : vector<8x128xi32>
    %c1_i32 = arith.constant 1 : i32
    %6 = vector.broadcast %c1_i32 : i32 to vector<8x128xi32>
    %7 = arith.cmpi sge, %5, %6 : vector<8x128xi32>
    %cst = arith.constant 0.000000e+00 : f32
    %cst_3 = arith.constant -1.000000e+30 : f32
    %8 = vector.broadcast %cst : f32 to vector<8x128xf32>
    %9 = vector.broadcast %cst_3 : f32 to vector<8x128xf32>
    %10 = arith.select %7, %8, %9 : vector<8x128xi1>, vector<8x128xf32>
    %c0_4 = arith.constant 0 : index
    %c0_5 = arith.constant 0 : index
    %11 = vector.load %arg4[%c0_4, %c0_5] : memref<8x128xf32, #tpu.memory_space<vmem>>, vector<8x128xf32>
    %cst_6 = arith.constant -1.000000e+30 : f32
    %12 = vector.broadcast %cst_6 : f32 to vector<24x1xf32>
    %cst_7 = arith.constant 0.000000e+00 : f32
    %13 = vector.broadcast %cst_7 : f32 to vector<24x1xf32>
    %cst_8 = arith.constant 0.000000e+00 : f32
    %14 = vector.broadcast %cst_8 : f32 to vector<24x128xf32>
    %c0_9 = arith.constant 0 : index
    %c0_10 = arith.constant 0 : index
    %c0_11 = arith.constant 0 : index
    %15 = vector.load %arg2[%c0_9, %c0_10, %c0_11] : memref<8x24x128xf32, #tpu.memory_space<vmem>>, vector<1x24x128xf32>
    %16 = vector.shape_cast %15 : vector<1x24x128xf32> to vector<24x128xf32>
    %c0_12 = arith.constant 0 : index
    %c0_13 = arith.constant 0 : index
    %c0_14 = arith.constant 0 : index
    %17 = vector.load %arg3[%c0_12, %c0_13, %c0_14] : memref<8x128x128xbf16, #tpu.memory_space<vmem>>, vector<1x128x128xbf16>
    %18 = vector.shape_cast %17 : vector<1x128x128xbf16> to vector<128x128xbf16>
    %cst_15 = arith.constant dense<0xFF800000> : vector<24xf32>
    %19 = vector.multi_reduction <maximumf>, %16, %cst_15 [1] : vector<24x128xf32> to vector<24xf32>
    %20 = vector.shape_cast %19 : vector<24xf32> to vector<24x1xf32>
    %21 = arith.maximumf %12, %20 : vector<24x1xf32>
    %22 = arith.subf %12, %21 : vector<24x1xf32>
    %23 = math.exp %22 : vector<24x1xf32>
    %24 = arith.mulf %13, %23 : vector<24x1xf32>
    %25 = vector.broadcast %21 : vector<24x1xf32> to vector<24x128xf32>
    %26 = arith.subf %16, %25 : vector<24x128xf32>
    %27 = math.exp %26 : vector<24x128xf32>
    %cst_16 = arith.constant dense<0.000000e+00> : vector<24xf32>
    %28 = vector.multi_reduction <add>, %27, %cst_16 [1] : vector<24x128xf32> to vector<24xf32>
    %29 = vector.shape_cast %28 : vector<24xf32> to vector<24x1xf32>
    %30 = arith.addf %24, %29 : vector<24x1xf32>
    %31 = arith.truncf %16 : vector<24x128xf32> to vector<24x128xbf16>
    %cst_17 = arith.constant dense<0.000000e+00> : vector<24x128xf32>
    %32 = tpu.matmul %31, %18, %cst_17 {dimension_numbers = #tpu.dot_dimension_numbers<[1], [0], [0], [1], [0, 0, 1, 1], [], []>} : vector<24x128xbf16>, vector<128x128xbf16>, vector<24x128xf32> -> vector<24x128xf32>
    %33 = arith.addf %14, %32 : vector<24x128xf32>
    %34 = arith.extf %31 : vector<24x128xbf16> to vector<24x128xf32>
    %35 = arith.subf %16, %34 : vector<24x128xf32>
    %36 = arith.truncf %35 : vector<24x128xf32> to vector<24x128xbf16>
    %cst_18 = arith.constant dense<0.000000e+00> : vector<24x128xf32>
    %37 = tpu.matmul %36, %18, %cst_18 {dimension_numbers = #tpu.dot_dimension_numbers<[1], [0], [0], [1], [0, 0, 1, 1], [], []>} : vector<24x128xbf16>, vector<128x128xbf16>, vector<24x128xf32> -> vector<24x128xf32>
    %38 = arith.addf %33, %37 : vector<24x128xf32>
    %39 = math.log %30 : vector<24x1xf32>
    %40 = arith.addf %21, %39 : vector<24x1xf32>
    %41 = vector.broadcast %40 : vector<24x1xf32> to vector<24x128xf32>
    %42 = arith.subf %38, %41 : vector<24x128xf32>
    %c0_19 = arith.constant 0 : index
    %c0_20 = arith.constant 0 : index
    %c0_21 = arith.constant 0 : index
    %43 = vector.load %arg8[%c0_19, %c0_20, %c0_21] : memref<24x8x128xf32, #tpu.memory_space<vmem>>, vector<24x1x128xf32>
    %44 = vector.shape_cast %43 : vector<24x1x128xf32> to vector<24x128xf32>
    %45 = vector.shape_cast %42 : vector<24x128xf32> to vector<24x1x128xf32>
    tpu.vector_store %arg8[%c0_19, %c0_20, %c0_21], %45 {strides = array<i32>} : memref<24x8x128xf32, #tpu.memory_space<vmem>>, vector<24x1x128xf32>,
    %cst_22 = arith.constant -1.000000e+30 : f32
    %46 = vector.broadcast %cst_22 : f32 to vector<24x1xf32>
    %cst_23 = arith.constant 0.000000e+00 : f32
    %47 = vector.broadcast %cst_23 : f32 to vector<24x1xf32>
    %cst_24 = arith.constant 0.000000e+00 : f32
    %48 = vector.broadcast %cst_24 : f32 to vector<24x128xf32>
    %c1_25 = arith.constant 1 : index
    %c0_26 = arith.constant 0 : index
    %c0_27 = arith.constant 0 : index
    %49 = vector.load %arg2[%c1_25, %c0_26, %c0_27] : memref<8x24x128xf32, #tpu.memory_space<vmem>>, vector<1x24x128xf32>
    %50 = vector.shape_cast %49 : vector<1x24x128xf32> to vector<24x128xf32>
    %c1_28 = arith.constant 1 : index
    %c0_29 = arith.constant 0 : index
    %c0_30 = arith.constant 0 : index
    %51 = vector.load %arg3[%c1_28, %c0_29, %c0_30] : memref<8x128x128xbf16, #tpu.memory_space<vmem>>, vector<1x128x128xbf16>
    %52 = vector.shape_cast %51 : vector<1x128x128xbf16> to vector<128x128xbf16>
    %cst_31 = arith.constant dense<0xFF800000> : vector<24xf32>
    %53 = vector.multi_reduction <maximumf>, %50, %cst_31 [1] : vector<24x128xf32> to vector<24xf32>
    %54 = vector.shape_cast %53 : vector<24xf32> to vector<24x1xf32>
    %55 = arith.maximumf %46, %54 : vector<24x1xf32>
    %56 = arith.subf %46, %55 : vector<24x1xf32>
    %57 = math.exp %56 : vector<24x1xf32>
    %58 = arith.mulf %47, %57 : vector<24x1xf32>
    %59 = vector.broadcast %55 : vector<24x1xf32> to vector<24x128xf32>
    %60 = arith.subf %50, %59 : vector<24x128xf32>
    %61 = math.exp %60 : vector<24x128xf32>
    %cst_32 = arith.constant dense<0.000000e+00> : vector<24xf32>
    %62 = vector.multi_reduction <add>, %61, %cst_32 [1] : vector<24x128xf32> to vector<24xf32>
    %63 = vector.shape_cast %62 : vector<24xf32> to vector<24x1xf32>
    %64 = arith.addf %58, %63 : vector<24x1xf32>
    %65 = arith.truncf %50 : vector<24x128xf32> to vector<24x128xbf16>
    %cst_33 = arith.constant dense<0.000000e+00> : vector<24x128xf32>
    %66 = tpu.matmul %65, %52, %cst_33 {dimension_numbers = #tpu.dot_dimension_numbers<[1], [0], [0], [1], [0, 0, 1, 1], [], []>} : vector<24x128xbf16>, vector<128x128xbf16>, vector<24x128xf32> -> vector<24x128xf32>
    %67 = arith.addf %48, %66 : vector<24x128xf32>
    %68 = arith.extf %65 : vector<24x128xbf16> to vector<24x128xf32>
    %69 = arith.subf %50, %68 : vector<24x128xf32>
    %70 = arith.truncf %69 : vector<24x128xf32> to vector<24x128xbf16>
    %cst_34 = arith.constant dense<0.000000e+00> : vector<24x128xf32>
    %71 = tpu.matmul %70, %52, %cst_34 {dimension_numbers = #tpu.dot_dimension_numbers<[1], [0], [0], [1], [0, 0, 1, 1], [], []>} : vector<24x128xbf16>, vector<128x128xbf16>, vector<24x128xf32> -> vector<24x128xf32>
    %72 = arith.addf %67, %71 : vector<24x128xf32>
    %73 = math.log %64 : vector<24x1xf32>
    %74 = arith.addf %55, %73 : vector<24x1xf32>
    %75 = vector.broadcast %74 : vector<24x1xf32> to vector<24x128xf32>
    %76 = arith.subf %72, %75 : vector<24x128xf32>
    %c0_35 = arith.constant 0 : index
    %c1_36 = arith.constant 1 : index
    %c0_37 = arith.constant 0 : index
    %77 = vector.load %arg8[%c0_35, %c1_36, %c0_37] : memref<24x8x128xf32, #tpu.memory_space<vmem>>, vector<24x1x128xf32>
    %78 = vector.shape_cast %77 : vector<24x1x128xf32> to vector<24x128xf32>
    %79 = vector.shape_cast %76 : vector<24x128xf32> to vector<24x1x128xf32>
    tpu.vector_store %arg8[%c0_35, %c1_36, %c0_37], %79 {strides = array<i32>} : memref<24x8x128xf32, #tpu.memory_space<vmem>>, vector<24x1x128xf32>,
    %cst_38 = arith.constant -1.000000e+30 : f32
    %80 = vector.broadcast %cst_38 : f32 to vector<24x1xf32>
    %cst_39 = arith.constant 0.000000e+00 : f32
    %81 = vector.broadcast %cst_39 : f32 to vector<24x1xf32>
    %cst_40 = arith.constant 0.000000e+00 : f32
    %82 = vector.broadcast %cst_40 : f32 to vector<24x128xf32>
    %c2_41 = arith.constant 2 : index
    %c0_42 = arith.constant 0 : index
    %c0_43 = arith.constant 0 : index
    %83 = vector.load %arg2[%c2_41, %c0_42, %c0_43] : memref<8x24x128xf32, #tpu.memory_space<vmem>>, vector<1x24x128xf32>
    %84 = vector.shape_cast %83 : vector<1x24x128xf32> to vector<24x128xf32>
    %c2_44 = arith.constant 2 : index
    %c0_45 = arith.constant 0 : index
    %c0_46 = arith.constant 0 : index
    %85 = vector.load %arg3[%c2_44, %c0_45, %c0_46] : memref<8x128x128xbf16, #tpu.memory_space<vmem>>, vector<1x128x128xbf16>
    %86 = vector.shape_cast %85 : vector<1x128x128xbf16> to vector<128x128xbf16>
    %cst_47 = arith.constant dense<0xFF800000> : vector<24xf32>
    %87 = vector.multi_reduction <maximumf>, %84, %cst_47 [1] : vector<24x128xf32> to vector<24xf32>
    %88 = vector.shape_cast %87 : vector<24xf32> to vector<24x1xf32>
    %89 = arith.maximumf %80, %88 : vector<24x1xf32>
    %90 = arith.subf %80, %89 : vector<24x1xf32>
    %91 = math.exp %90 : vector<24x1xf32>
    %92 = arith.mulf %81, %91 : vector<24x1xf32>
    %93 = vector.broadcast %89 : vector<24x1xf32> to vector<24x128xf32>
    %94 = arith.subf %84, %93 : vector<24x128xf32>
    %95 = math.exp %94 : vector<24x128xf32>
    %cst_48 = arith.constant dense<0.000000e+00> : vector<24xf32>
    %96 = vector.multi_reduction <add>, %95, %cst_48 [1] : vector<24x128xf32> to vector<24xf32>
    %97 = vector.shape_cast %96 : vector<24xf32> to vector<24x1xf32>
    %98 = arith.addf %92, %97 : vector<24x1xf32>
    %99 = arith.truncf %84 : vector<24x128xf32> to vector<24x128xbf16>
    %cst_49 = arith.constant dense<0.000000e+00> : vector<24x128xf32>
    %100 = tpu.matmul %99, %86, %cst_49 {dimension_numbers = #tpu.dot_dimension_numbers<[1], [0], [0], [1], [0, 0, 1, 1], [], []>} : vector<24x128xbf16>, vector<128x128xbf16>, vector<24x128xf32> -> vector<24x128xf32>
    %101 = arith.addf %82, %100 : vector<24x128xf32>
    %102 = arith.extf %99 : vector<24x128xbf16> to vector<24x128xf32>
    %103 = arith.subf %84, %102 : vector<24x128xf32>
    %104 = arith.truncf %103 : vector<24x128xf32> to vector<24x128xbf16>
    %cst_50 = arith.constant dense<0.000000e+00> : vector<24x128xf32>
    %105 = tpu.matmul %104, %86, %cst_50 {dimension_numbers = #tpu.dot_dimension_numbers<[1], [0], [0], [1], [0, 0, 1, 1], [], []>} : vector<24x128xbf16>, vector<128x128xbf16>, vector<24x128xf32> -> vector<24x128xf32>
    %106 = arith.addf %101, %105 : vector<24x128xf32>
    %107 = math.log %98 : vector<24x1xf32>
    %108 = arith.addf %89, %107 : vector<24x1xf32>
    %109 = vector.broadcast %108 : vector<24x1xf32> to vector<24x128xf32>
    %110 = arith.subf %106, %109 : vector<24x128xf32>
    %c0_51 = arith.constant 0 : index
    %c2_52 = arith.constant 2 : index
    %c0_53 = arith.constant 0 : index
    %111 = vector.load %arg8[%c0_51, %c2_52, %c0_53] : memref<24x8x128xf32, #tpu.memory_space<vmem>>, vector<24x1x128xf32>
    %112 = vector.shape_cast %111 : vector<24x1x128xf32> to vector<24x128xf32>
    %113 = vector.shape_cast %110 : vector<24x128xf32> to vector<24x1x128xf32>
    tpu.vector_store %arg8[%c0_51, %c2_52, %c0_53], %113 {strides = array<i32>} : memref<24x8x128xf32, #tpu.memory_space<vmem>>, vector<24x1x128xf32>,
    %cst_54 = arith.constant -1.000000e+30 : f32
    %114 = vector.broadcast %cst_54 : f32 to vector<24x1xf32>
    %cst_55 = arith.constant 0.000000e+00 : f32
    %115 = vector.broadcast %cst_55 : f32 to vector<24x1xf32>
    %cst_56 = arith.constant 0.000000e+00 : f32
    %116 = vector.broadcast %cst_56 : f32 to vector<24x128xf32>
    %c3 = arith.constant 3 : index
    %c0_57 = arith.constant 0 : index
    %c0_58 = arith.constant 0 : index
    %117 = vector.load %arg2[%c3, %c0_57, %c0_58] : memref<8x24x128xf32, #tpu.memory_space<vmem>>, vector<1x24x128xf32>
    %118 = vector.shape_cast %117 : vector<1x24x128xf32> to vector<24x128xf32>
    %c3_59 = arith.constant 3 : index
    %c0_60 = arith.constant 0 : index
    %c0_61 = arith.constant 0 : index
    %119 = vector.load %arg3[%c3_59, %c0_60, %c0_61] : memref<8x128x128xbf16, #tpu.memory_space<vmem>>, vector<1x128x128xbf16>
    %120 = vector.shape_cast %119 : vector<1x128x128xbf16> to vector<128x128xbf16>
    %cst_62 = arith.constant dense<0xFF800000> : vector<24xf32>
    %121 = vector.multi_reduction <maximumf>, %118, %cst_62 [1] : vector<24x128xf32> to vector<24xf32>
    %122 = vector.shape_cast %121 : vector<24xf32> to vector<24x1xf32>
    %123 = arith.maximumf %114, %122 : vector<24x1xf32>
    %124 = arith.subf %114, %123 : vector<24x1xf32>
    %125 = math.exp %124 : vector<24x1xf32>
    %126 = arith.mulf %115, %125 : vector<24x1xf32>
    %127 = vector.broadcast %123 : vector<24x1xf32> to vector<24x128xf32>
    %128 = arith.subf %118, %127 : vector<24x128xf32>
    %129 = math.exp %128 : vector<24x128xf32>
    %cst_63 = arith.constant dense<0.000000e+00> : vector<24xf32>
    %130 = vector.multi_reduction <add>, %129, %cst_63 [1] : vector<24x128xf32> to vector<24xf32>
    %131 = vector.shape_cast %130 : vector<24xf32> to vector<24x1xf32>
    %132 = arith.addf %126, %131 : vector<24x1xf32>
    %133 = arith.truncf %118 : vector<24x128xf32> to vector<24x128xbf16>
    %cst_64 = arith.constant dense<0.000000e+00> : vector<24x128xf32>
    %134 = tpu.matmul %133, %120, %cst_64 {dimension_numbers = #tpu.dot_dimension_numbers<[1], [0], [0], [1], [0, 0, 1, 1], [], []>} : vector<24x128xbf16>, vector<128x128xbf16>, vector<24x128xf32> -> vector<24x128xf32>
    %135 = arith.addf %116, %134 : vector<24x128xf32>
    %136 = arith.extf %133 : vector<24x128xbf16> to vector<24x128xf32>
    %137 = arith.subf %118, %136 : vector<24x128xf32>
    %138 = arith.truncf %137 : vector<24x128xf32> to vector<24x128xbf16>
    %cst_65 = arith.constant dense<0.000000e+00> : vector<24x128xf32>
    %139 = tpu.matmul %138, %120, %cst_65 {dimension_numbers = #tpu.dot_dimension_numbers<[1], [0], [0], [1], [0, 0, 1, 1], [], []>} : vector<24x128xbf16>, vector<128x128xbf16>, vector<24x128xf32> -> vector<24x128xf32>
    %140 = arith.addf %135, %139 : vector<24x128xf32>
    %141 = math.log %132 : vector<24x1xf32>
    %142 = arith.addf %123, %141 : vector<24x1xf32>
    %143 = vector.broadcast %142 : vector<24x1xf32> to vector<24x128xf32>
    %144 = arith.subf %140, %143 : vector<24x128xf32>
    %c0_66 = arith.constant 0 : index
    %c3_67 = arith.constant 3 : index
    %c0_68 = arith.constant 0 : index
    %145 = vector.load %arg8[%c0_66, %c3_67, %c0_68] : memref<24x8x128xf32, #tpu.memory_space<vmem>>, vector<24x1x128xf32>
    %146 = vector.shape_cast %145 : vector<24x1x128xf32> to vector<24x128xf32>
    %147 = vector.shape_cast %144 : vector<24x128xf32> to vector<24x1x128xf32>
    tpu.vector_store %arg8[%c0_66, %c3_67, %c0_68], %147 {strides = array<i32>} : memref<24x8x128xf32, #tpu.memory_space<vmem>>, vector<24x1x128xf32>,
    %cst_69 = arith.constant -1.000000e+30 : f32
    %148 = vector.broadcast %cst_69 : f32 to vector<24x1xf32>
    %cst_70 = arith.constant 0.000000e+00 : f32
    %149 = vector.broadcast %cst_70 : f32 to vector<24x1xf32>
    %cst_71 = arith.constant 0.000000e+00 : f32
    %150 = vector.broadcast %cst_71 : f32 to vector<24x128xf32>
    %c4 = arith.constant 4 : index
    %c0_72 = arith.constant 0 : index
    %c0_73 = arith.constant 0 : index
    %151 = vector.load %arg2[%c4, %c0_72, %c0_73] : memref<8x24x128xf32, #tpu.memory_space<vmem>>, vector<1x24x128xf32>
    %152 = vector.shape_cast %151 : vector<1x24x128xf32> to vector<24x128xf32>
    %c4_74 = arith.constant 4 : index
    %c0_75 = arith.constant 0 : index
    %c0_76 = arith.constant 0 : index
    %153 = vector.load %arg3[%c4_74, %c0_75, %c0_76] : memref<8x128x128xbf16, #tpu.memory_space<vmem>>, vector<1x128x128xbf16>
    %154 = vector.shape_cast %153 : vector<1x128x128xbf16> to vector<128x128xbf16>
    %cst_77 = arith.constant dense<0xFF800000> : vector<24xf32>
    %155 = vector.multi_reduction <maximumf>, %152, %cst_77 [1] : vector<24x128xf32> to vector<24xf32>
    %156 = vector.shape_cast %155 : vector<24xf32> to vector<24x1xf32>
    %157 = arith.maximumf %148, %156 : vector<24x1xf32>
    %158 = arith.subf %148, %157 : vector<24x1xf32>
    %159 = math.exp %158 : vector<24x1xf32>
    %160 = arith.mulf %149, %159 : vector<24x1xf32>
    %161 = vector.broadcast %157 : vector<24x1xf32> to vector<24x128xf32>
    %162 = arith.subf %152, %161 : vector<24x128xf32>
    %163 = math.exp %162 : vector<24x128xf32>
    %cst_78 = arith.constant dense<0.000000e+00> : vector<24xf32>
    %164 = vector.multi_reduction <add>, %163, %cst_78 [1] : vector<24x128xf32> to vector<24xf32>
    %165 = vector.shape_cast %164 : vector<24xf32> to vector<24x1xf32>
    %166 = arith.addf %160, %165 : vector<24x1xf32>
    %167 = arith.truncf %152 : vector<24x128xf32> to vector<24x128xbf16>
    %cst_79 = arith.constant dense<0.000000e+00> : vector<24x128xf32>
    %168 = tpu.matmul %167, %154, %cst_79 {dimension_numbers = #tpu.dot_dimension_numbers<[1], [0], [0], [1], [0, 0, 1, 1], [], []>} : vector<24x128xbf16>, vector<128x128xbf16>, vector<24x128xf32> -> vector<24x128xf32>
    %169 = arith.addf %150, %168 : vector<24x128xf32>
    %170 = arith.extf %167 : vector<24x128xbf16> to vector<24x128xf32>
    %171 = arith.subf %152, %170 : vector<24x128xf32>
    %172 = arith.truncf %171 : vector<24x128xf32> to vector<24x128xbf16>
    %cst_80 = arith.constant dense<0.000000e+00> : vector<24x128xf32>
    %173 = tpu.matmul %172, %154, %cst_80 {dimension_numbers = #tpu.dot_dimension_numbers<[1], [0], [0], [1], [0, 0, 1, 1], [], []>} : vector<24x128xbf16>, vector<128x128xbf16>, vector<24x128xf32> -> vector<24x128xf32>
    %174 = arith.addf %169, %173 : vector<24x128xf32>
    %175 = math.log %166 : vector<24x1xf32>
    %176 = arith.addf %157, %175 : vector<24x1xf32>
    %177 = vector.broadcast %176 : vector<24x1xf32> to vector<24x128xf32>
    %178 = arith.subf %174, %177 : vector<24x128xf32>
    %c0_81 = arith.constant 0 : index
    %c4_82 = arith.constant 4 : index
    %c0_83 = arith.constant 0 : index
    %179 = vector.load %arg8[%c0_81, %c4_82, %c0_83] : memref<24x8x128xf32, #tpu.memory_space<vmem>>, vector<24x1x128xf32>
    %180 = vector.shape_cast %179 : vector<24x1x128xf32> to vector<24x128xf32>
    %181 = vector.shape_cast %178 : vector<24x128xf32> to vector<24x1x128xf32>
    tpu.vector_store %arg8[%c0_81, %c4_82, %c0_83], %181 {strides = array<i32>} : memref<24x8x128xf32, #tpu.memory_space<vmem>>, vector<24x1x128xf32>,
    %cst_84 = arith.constant -1.000000e+30 : f32
    %182 = vector.broadcast %cst_84 : f32 to vector<24x1xf32>
    %cst_85 = arith.constant 0.000000e+00 : f32
    %183 = vector.broadcast %cst_85 : f32 to vector<24x1xf32>
    %cst_86 = arith.constant 0.000000e+00 : f32
    %184 = vector.broadcast %cst_86 : f32 to vector<24x128xf32>
    %c5 = arith.constant 5 : index
    %c0_87 = arith.constant 0 : index
    %c0_88 = arith.constant 0 : index
    %185 = vector.load %arg2[%c5, %c0_87, %c0_88] : memref<8x24x128xf32, #tpu.memory_space<vmem>>, vector<1x24x128xf32>
    %186 = vector.shape_cast %185 : vector<1x24x128xf32> to vector<24x128xf32>
    %c5_89 = arith.constant 5 : index
    %c0_90 = arith.constant 0 : index
    %c0_91 = arith.constant 0 : index
    %187 = vector.load %arg3[%c5_89, %c0_90, %c0_91] : memref<8x128x128xbf16, #tpu.memory_space<vmem>>, vector<1x128x128xbf16>
    %188 = vector.shape_cast %187 : vector<1x128x128xbf16> to vector<128x128xbf16>
    %cst_92 = arith.constant dense<0xFF800000> : vector<24xf32>
    %189 = vector.multi_reduction <maximumf>, %186, %cst_92 [1] : vector<24x128xf32> to vector<24xf32>
    %190 = vector.shape_cast %189 : vector<24xf32> to vector<24x1xf32>
    %191 = arith.maximumf %182, %190 : vector<24x1xf32>
    %192 = arith.subf %182, %191 : vector<24x1xf32>
    %193 = math.exp %192 : vector<24x1xf32>
    %194 = arith.mulf %183, %193 : vector<24x1xf32>
    %195 = vector.broadcast %191 : vector<24x1xf32> to vector<24x128xf32>
    %196 = arith.subf %186, %195 : vector<24x128xf32>
    %197 = math.exp %196 : vector<24x128xf32>
    %cst_93 = arith.constant dense<0.000000e+00> : vector<24xf32>
    %198 = vector.multi_reduction <add>, %197, %cst_93 [1] : vector<24x128xf32> to vector<24xf32>
    %199 = vector.shape_cast %198 : vector<24xf32> to vector<24x1xf32>
    %200 = arith.addf %194, %199 : vector<24x1xf32>
    %201 = arith.truncf %186 : vector<24x128xf32> to vector<24x128xbf16>
    %cst_94 = arith.constant dense<0.000000e+00> : vector<24x128xf32>
    %202 = tpu.matmul %201, %188, %cst_94 {dimension_numbers = #tpu.dot_dimension_numbers<[1], [0], [0], [1], [0, 0, 1, 1], [], []>} : vector<24x128xbf16>, vector<128x128xbf16>, vector<24x128xf32> -> vector<24x128xf32>
    %203 = arith.addf %184, %202 : vector<24x128xf32>
    %204 = arith.extf %201 : vector<24x128xbf16> to vector<24x128xf32>
    %205 = arith.subf %186, %204 : vector<24x128xf32>
    %206 = arith.truncf %205 : vector<24x128xf32> to vector<24x128xbf16>
    %cst_95 = arith.constant dense<0.000000e+00> : vector<24x128xf32>
    %207 = tpu.matmul %206, %188, %cst_95 {dimension_numbers = #tpu.dot_dimension_numbers<[1], [0], [0], [1], [0, 0, 1, 1], [], []>} : vector<24x128xbf16>, vector<128x128xbf16>, vector<24x128xf32> -> vector<24x128xf32>
    %208 = arith.addf %203, %207 : vector<24x128xf32>
    %209 = math.log %200 : vector<24x1xf32>
    %210 = arith.addf %191, %209 : vector<24x1xf32>
    %211 = vector.broadcast %210 : vector<24x1xf32> to vector<24x128xf32>
    %212 = arith.subf %208, %211 : vector<24x128xf32>
    %c0_96 = arith.constant 0 : index
    %c5_97 = arith.constant 5 : index
    %c0_98 = arith.constant 0 : index
    %213 = vector.load %arg8[%c0_96, %c5_97, %c0_98] : memref<24x8x128xf32, #tpu.memory_space<vmem>>, vector<24x1x128xf32>
    %214 = vector.shape_cast %213 : vector<24x1x128xf32> to vector<24x128xf32>
    %215 = vector.shape_cast %212 : vector<24x128xf32> to vector<24x1x128xf32>
    tpu.vector_store %arg8[%c0_96, %c5_97, %c0_98], %215 {strides = array<i32>} : memref<24x8x128xf32, #tpu.memory_space<vmem>>, vector<24x1x128xf32>,
    %cst_99 = arith.constant -1.000000e+30 : f32
    %216 = vector.broadcast %cst_99 : f32 to vector<24x1xf32>
    %cst_100 = arith.constant 0.000000e+00 : f32
    %217 = vector.broadcast %cst_100 : f32 to vector<24x1xf32>
    %cst_101 = arith.constant 0.000000e+00 : f32
    %218 = vector.broadcast %cst_101 : f32 to vector<24x128xf32>
    %c6 = arith.constant 6 : index
    %c0_102 = arith.constant 0 : index
    %c0_103 = arith.constant 0 : index
    %219 = vector.load %arg2[%c6, %c0_102, %c0_103] : memref<8x24x128xf32, #tpu.memory_space<vmem>>, vector<1x24x128xf32>
    %220 = vector.shape_cast %219 : vector<1x24x128xf32> to vector<24x128xf32>
    %c6_104 = arith.constant 6 : index
    %c0_105 = arith.constant 0 : index
    %c0_106 = arith.constant 0 : index
    %221 = vector.load %arg3[%c6_104, %c0_105, %c0_106] : memref<8x128x128xbf16, #tpu.memory_space<vmem>>, vector<1x128x128xbf16>
    %222 = vector.shape_cast %221 : vector<1x128x128xbf16> to vector<128x128xbf16>
    %cst_107 = arith.constant dense<0xFF800000> : vector<24xf32>
    %223 = vector.multi_reduction <maximumf>, %220, %cst_107 [1] : vector<24x128xf32> to vector<24xf32>
    %224 = vector.shape_cast %223 : vector<24xf32> to vector<24x1xf32>
    %225 = arith.maximumf %216, %224 : vector<24x1xf32>
    %226 = arith.subf %216, %225 : vector<24x1xf32>
    %227 = math.exp %226 : vector<24x1xf32>
    %228 = arith.mulf %217, %227 : vector<24x1xf32>
    %229 = vector.broadcast %225 : vector<24x1xf32> to vector<24x128xf32>
    %230 = arith.subf %220, %229 : vector<24x128xf32>
    %231 = math.exp %230 : vector<24x128xf32>
    %cst_108 = arith.constant dense<0.000000e+00> : vector<24xf32>
    %232 = vector.multi_reduction <add>, %231, %cst_108 [1] : vector<24x128xf32> to vector<24xf32>
    %233 = vector.shape_cast %232 : vector<24xf32> to vector<24x1xf32>
    %234 = arith.addf %228, %233 : vector<24x1xf32>
    %235 = arith.truncf %220 : vector<24x128xf32> to vector<24x128xbf16>
    %cst_109 = arith.constant dense<0.000000e+00> : vector<24x128xf32>
    %236 = tpu.matmul %235, %222, %cst_109 {dimension_numbers = #tpu.dot_dimension_numbers<[1], [0], [0], [1], [0, 0, 1, 1], [], []>} : vector<24x128xbf16>, vector<128x128xbf16>, vector<24x128xf32> -> vector<24x128xf32>
    %237 = arith.addf %218, %236 : vector<24x128xf32>
    %238 = arith.extf %235 : vector<24x128xbf16> to vector<24x128xf32>
    %239 = arith.subf %220, %238 : vector<24x128xf32>
    %240 = arith.truncf %239 : vector<24x128xf32> to vector<24x128xbf16>
    %cst_110 = arith.constant dense<0.000000e+00> : vector<24x128xf32>
    %241 = tpu.matmul %240, %222, %cst_110 {dimension_numbers = #tpu.dot_dimension_numbers<[1], [0], [0], [1], [0, 0, 1, 1], [], []>} : vector<24x128xbf16>, vector<128x128xbf16>, vector<24x128xf32> -> vector<24x128xf32>
    %242 = arith.addf %237, %241 : vector<24x128xf32>
    %243 = math.log %234 : vector<24x1xf32>
    %244 = arith.addf %225, %243 : vector<24x1xf32>
    %245 = vector.broadcast %244 : vector<24x1xf32> to vector<24x128xf32>
    %246 = arith.subf %242, %245 : vector<24x128xf32>
    %c0_111 = arith.constant 0 : index
    %c6_112 = arith.constant 6 : index
    %c0_113 = arith.constant 0 : index
    %247 = vector.load %arg8[%c0_111, %c6_112, %c0_113] : memref<24x8x128xf32, #tpu.memory_space<vmem>>, vector<24x1x128xf32>
    %248 = vector.shape_cast %247 : vector<24x1x128xf32> to vector<24x128xf32>
    %249 = vector.shape_cast %246 : vector<24x128xf32> to vector<24x1x128xf32>
    tpu.vector_store %arg8[%c0_111, %c6_112, %c0_113], %249 {strides = array<i32>} : memref<24x8x128xf32, #tpu.memory_space<vmem>>, vector<24x1x128xf32>,
    %cst_114 = arith.constant -1.000000e+30 : f32
    %250 = vector.broadcast %cst_114 : f32 to vector<24x1xf32>
    %cst_115 = arith.constant 0.000000e+00 : f32
    %251 = vector.broadcast %cst_115 : f32 to vector<24x1xf32>
    %cst_116 = arith.constant 0.000000e+00 : f32
    %252 = vector.broadcast %cst_116 : f32 to vector<24x128xf32>
    %c7 = arith.constant 7 : index
    %c0_117 = arith.constant 0 : index
    %c0_118 = arith.constant 0 : index
    %253 = vector.load %arg2[%c7, %c0_117, %c0_118] : memref<8x24x128xf32, #tpu.memory_space<vmem>>, vector<1x24x128xf32>
    %254 = vector.shape_cast %253 : vector<1x24x128xf32> to vector<24x128xf32>
    %c7_119 = arith.constant 7 : index
    %c0_120 = arith.constant 0 : index
    %c0_121 = arith.constant 0 : index
    %255 = vector.load %arg3[%c7_119, %c0_120, %c0_121] : memref<8x128x128xbf16, #tpu.memory_space<vmem>>, vector<1x128x128xbf16>
    %256 = vector.shape_cast %255 : vector<1x128x128xbf16> to vector<128x128xbf16>
    %cst_122 = arith.constant dense<0xFF800000> : vector<24xf32>
    %257 = vector.multi_reduction <maximumf>, %254, %cst_122 [1] : vector<24x128xf32> to vector<24xf32>
    %258 = vector.shape_cast %257 : vector<24xf32> to vector<24x1xf32>
    %259 = arith.maximumf %250, %258 : vector<24x1xf32>
    %260 = arith.subf %250, %259 : vector<24x1xf32>
    %261 = math.exp %260 : vector<24x1xf32>
    %262 = arith.mulf %251, %261 : vector<24x1xf32>
    %263 = vector.broadcast %259 : vector<24x1xf32> to vector<24x128xf32>
    %264 = arith.subf %254, %263 : vector<24x128xf32>
    %265 = math.exp %264 : vector<24x128xf32>
    %cst_123 = arith.constant dense<0.000000e+00> : vector<24xf32>
    %266 = vector.multi_reduction <add>, %265, %cst_123 [1] : vector<24x128xf32> to vector<24xf32>
    %267 = vector.shape_cast %266 : vector<24xf32> to vector<24x1xf32>
    %268 = arith.addf %262, %267 : vector<24x1xf32>
    %269 = arith.truncf %254 : vector<24x128xf32> to vector<24x128xbf16>
    %cst_124 = arith.constant dense<0.000000e+00> : vector<24x128xf32>
    %270 = tpu.matmul %269, %256, %cst_124 {dimension_numbers = #tpu.dot_dimension_numbers<[1], [0], [0], [1], [0, 0, 1, 1], [], []>} : vector<24x128xbf16>, vector<128x128xbf16>, vector<24x128xf32> -> vector<24x128xf32>
    %271 = arith.addf %252, %270 : vector<24x128xf32>
    %272 = arith.extf %269 : vector<24x128xbf16> to vector<24x128xf32>
    %273 = arith.subf %254, %272 : vector<24x128xf32>
    %274 = arith.truncf %273 : vector<24x128xf32> to vector<24x128xbf16>
    %cst_125 = arith.constant dense<0.000000e+00> : vector<24x128xf32>
    %275 = tpu.matmul %274, %256, %cst_125 {dimension_numbers = #tpu.dot_dimension_numbers<[1], [0], [0], [1], [0, 0, 1, 1], [], []>} : vector<24x128xbf16>, vector<128x128xbf16>, vector<24x128xf32> -> vector<24x128xf32>
    %276 = arith.addf %271, %275 : vector<24x128xf32>
    %277 = math.log %268 : vector<24x1xf32>
    %278 = arith.addf %259, %277 : vector<24x1xf32>
    %279 = vector.broadcast %278 : vector<24x1xf32> to vector<24x128xf32>
    %280 = arith.subf %276, %279 : vector<24x128xf32>
    %c0_126 = arith.constant 0 : index
    %c7_127 = arith.constant 7 : index
    %c0_128 = arith.constant 0 : index
    %281 = vector.load %arg8[%c0_126, %c7_127, %c0_128] : memref<24x8x128xf32, #tpu.memory_space<vmem>>, vector<24x1x128xf32>
    %282 = vector.shape_cast %281 : vector<24x1x128xf32> to vector<24x128xf32>
    %283 = vector.shape_cast %280 : vector<24x128xf32> to vector<24x1x128xf32>
    tpu.vector_store %arg8[%c0_126, %c7_127, %c0_128], %283 {strides = array<i32>} : memref<24x8x128xf32, #tpu.memory_space<vmem>>, vector<24x1x128xf32>,
    %284 = tpu.iota {dimensions = array<i32: 0>} : vector<24x8x128xi32>
    %c24_i32 = arith.constant 24 : i32
    %285 = arith.muli %arg1, %c24_i32 : i32
    %286 = vector.broadcast %285 : i32 to vector<24x8x128xi32>
    %287 = arith.addi %284, %286 : vector<24x8x128xi32>
    %c1_i32_129 = arith.constant 1 : i32
    %288 = vector.broadcast %c1_i32_129 : i32 to vector<24x8x128xi32>
    %289 = arith.cmpi sge, %287, %288 : vector<24x8x128xi32>
    %290 = vector.shape_cast %1 : vector<8x1xi32> to vector<1x8x1xi32>
    %291 = vector.broadcast %290 : vector<1x8x1xi32> to vector<24x8x128xi32>
    %292 = arith.cmpi slt, %287, %291 : vector<24x8x128xi32>
    %293 = arith.andi %289, %292 : vector<24x8x128xi1>
    %cst_130 = arith.constant 1.000000e+00 : f32
    %cst_131 = arith.constant 0.000000e+00 : f32
    %294 = vector.broadcast %cst_130 : f32 to vector<24x8x128xf32>
    %295 = vector.broadcast %cst_131 : f32 to vector<24x8x128xf32>
    %296 = arith.select %293, %294, %295 : vector<24x8x128xi1>, vector<24x8x128xf32>
    %c0_132 = arith.constant 0 : index
    %c0_133 = arith.constant 0 : index
    %c0_134 = arith.constant 0 : index
    %297 = vector.load %arg9[%c0_132, %c0_133, %c0_134] : memref<24x8x128xf32, #tpu.memory_space<vmem>>, vector<24x8x128xf32>
    tpu.vector_store %arg9[%c0_132, %c0_133, %c0_134], %296 {strides = array<i32>} : memref<24x8x128xf32, #tpu.memory_space<vmem>>, vector<24x8x128xf32>,
    %c0_i32 = arith.constant 0 : i32
    %298 = arith.cmpi eq, %arg1, %c0_i32 : i32
    %299 = arith.extui %298 : i1 to i32
    %c0_i32_135 = arith.constant 0 : i32
    %300 = arith.cmpi ne, %299, %c0_i32_135 : i32
    scf.if %300 {
      %cst_145 = arith.constant 0.000000e+00 : f32
      %308 = vector.broadcast %cst_145 : f32 to vector<8x1xf32>
      %c0_146 = arith.constant 0 : index
      %c0_147 = arith.constant 0 : index
      %309 = vector.load %arg6[%c0_146, %c0_147] : memref<8x1xf32, #tpu.memory_space<vmem>>, vector<8x1xf32>
      tpu.vector_store %arg6[%c0_146, %c0_147], %308 {strides = array<i32>} : memref<8x1xf32, #tpu.memory_space<vmem>>, vector<8x1xf32>,
      %c2_i32 = arith.constant 2 : i32
      %310 = vector.broadcast %c2_i32 : i32 to vector<8x128xi32>
      %311 = arith.cmpi slt, %5, %310 : vector<8x128xi32>
      %c0_148 = arith.constant 0 : index
      %c0_149 = arith.constant 0 : index
      %c0_150 = arith.constant 0 : index
      %312 = vector.load %arg8[%c0_148, %c0_149, %c0_150] : memref<24x8x128xf32, #tpu.memory_space<vmem>>, vector<1x8x128xf32>
      %313 = vector.shape_cast %312 : vector<1x8x128xf32> to vector<8x128xf32>
      %cst_151 = arith.constant -1.000000e+30 : f32
      %314 = vector.broadcast %cst_151 : f32 to vector<8x128xf32>
      %315 = arith.select %311, %313, %314 : vector<8x128xi1>, vector<8x128xf32>
      %c0_152 = arith.constant 0 : index
      %c0_153 = arith.constant 0 : index
      %316 = vector.load %arg7[%c0_152, %c0_153] : memref<8x128xf32, #tpu.memory_space<vmem>>, vector<8x128xf32>
      tpu.vector_store %arg7[%c0_152, %c0_153], %315 {strides = array<i32>} : memref<8x128xf32, #tpu.memory_space<vmem>>, vector<8x128xf32>,
    } else {
    }
    %c0_136 = arith.constant 0 : index
    %c0_137 = arith.constant 0 : index
    %301 = vector.load %arg7[%c0_136, %c0_137] : memref<8x128xf32, #tpu.memory_space<vmem>>, vector<8x128xf32>
    %c0_i32_138 = arith.constant 0 : i32
    %c3_i32 = arith.constant 3 : i32
    %302 = arith.addi %c0_i32_138, %c3_i32 : i32
    %c1_i32_139 = arith.constant 1 : i32
    %303 = scf.for %arg10 = %c0_i32_138 to %302 step %c1_i32_139 iter_args(%arg11 = %301) -> (vector<8x128xf32>)  : i32 {
      %c8_i32 = arith.constant 8 : i32
      %308 = arith.muli %arg10, %c8_i32 : i32
      %c0_i32_145 = arith.constant 0 : i32
      %309 = arith.addi %308, %c0_i32_145 : i32
      %310 = arith.index_cast %309 : i32 to index
      %c0_146 = arith.constant 0 : index
      %c0_147 = arith.constant 0 : index
      %311 = vector.load %arg8[%310, %c0_146, %c0_147] : memref<24x8x128xf32, #tpu.memory_space<vmem>>, vector<1x8x128xf32>
      %312 = vector.shape_cast %311 : vector<1x8x128xf32> to vector<8x128xf32>
      %313 = arith.index_cast %309 : i32 to index
      %c0_148 = arith.constant 0 : index
      %c0_149 = arith.constant 0 : index
      %314 = vector.load %arg9[%313, %c0_148, %c0_149] : memref<24x8x128xf32, #tpu.memory_space<vmem>>, vector<1x8x128xf32>
      %315 = vector.shape_cast %314 : vector<1x8x128xf32> to vector<8x128xf32>
      %c1_i32_150 = arith.constant 1 : i32
      %316 = tpu.dynamic_rotate %arg11 by %c1_i32_150 dim 1 : vector<8x128xf32>, i32 -> vector<8x128xf32>
      %317 = arith.addf %316, %10 : vector<8x128xf32>
      %c2_i32 = arith.constant 2 : i32
      %318 = tpu.dynamic_rotate %arg11 by %c2_i32 dim 1 : vector<8x128xf32>, i32 -> vector<8x128xf32>
      %319 = arith.addf %318, %11 : vector<8x128xf32>
      %320 = arith.maximumf %arg11, %317 : vector<8x128xf32>
      %321 = arith.maximumf %320, %319 : vector<8x128xf32>
      %322 = arith.subf %arg11, %321 : vector<8x128xf32>
      %323 = math.exp %322 : vector<8x128xf32>
      %324 = arith.subf %317, %321 : vector<8x128xf32>
      %325 = math.exp %324 : vector<8x128xf32>
      %326 = arith.addf %323, %325 : vector<8x128xf32>
      %327 = arith.subf %319, %321 : vector<8x128xf32>
      %328 = math.exp %327 : vector<8x128xf32>
      %329 = arith.addf %326, %328 : vector<8x128xf32>
      %330 = math.log %329 : vector<8x128xf32>
      %331 = arith.addf %321, %330 : vector<8x128xf32>
      %cst_151 = arith.constant 5.000000e-01 : f32
      %332 = vector.broadcast %cst_151 : f32 to vector<8x128xf32>
      %333 = arith.cmpf ogt, %315, %332 : vector<8x128xf32>
      %334 = arith.addf %312, %331 : vector<8x128xf32>
      %335 = arith.select %333, %334, %arg11 : vector<8x128xi1>, vector<8x128xf32>
      %c1_i32_152 = arith.constant 1 : i32
      %336 = arith.addi %308, %c1_i32_152 : i32
      %337 = arith.index_cast %336 : i32 to index
      %c0_153 = arith.constant 0 : index
      %c0_154 = arith.constant 0 : index
      %338 = vector.load %arg8[%337, %c0_153, %c0_154] : memref<24x8x128xf32, #tpu.memory_space<vmem>>, vector<1x8x128xf32>
      %339 = vector.shape_cast %338 : vector<1x8x128xf32> to vector<8x128xf32>
      %340 = arith.index_cast %336 : i32 to index
      %c0_155 = arith.constant 0 : index
      %c0_156 = arith.constant 0 : index
      %341 = vector.load %arg9[%340, %c0_155, %c0_156] : memref<24x8x128xf32, #tpu.memory_space<vmem>>, vector<1x8x128xf32>
      %342 = vector.shape_cast %341 : vector<1x8x128xf32> to vector<8x128xf32>
      %c1_i32_157 = arith.constant 1 : i32
      %343 = tpu.dynamic_rotate %335 by %c1_i32_157 dim 1 : vector<8x128xf32>, i32 -> vector<8x128xf32>
      %344 = arith.addf %343, %10 : vector<8x128xf32>
      %c2_i32_158 = arith.constant 2 : i32
      %345 = tpu.dynamic_rotate %335 by %c2_i32_158 dim 1 : vector<8x128xf32>, i32 -> vector<8x128xf32>
      %346 = arith.addf %345, %11 : vector<8x128xf32>
      %347 = arith.maximumf %335, %344 : vector<8x128xf32>
      %348 = arith.maximumf %347, %346 : vector<8x128xf32>
      %349 = arith.subf %335, %348 : vector<8x128xf32>
      %350 = math.exp %349 : vector<8x128xf32>
      %351 = arith.subf %344, %348 : vector<8x128xf32>
      %352 = math.exp %351 : vector<8x128xf32>
      %353 = arith.addf %350, %352 : vector<8x128xf32>
      %354 = arith.subf %346, %348 : vector<8x128xf32>
      %355 = math.exp %354 : vector<8x128xf32>
      %356 = arith.addf %353, %355 : vector<8x128xf32>
      %357 = math.log %356 : vector<8x128xf32>
      %358 = arith.addf %348, %357 : vector<8x128xf32>
      %cst_159 = arith.constant 5.000000e-01 : f32
      %359 = vector.broadcast %cst_159 : f32 to vector<8x128xf32>
      %360 = arith.cmpf ogt, %342, %359 : vector<8x128xf32>
      %361 = arith.addf %339, %358 : vector<8x128xf32>
      %362 = arith.select %360, %361, %335 : vector<8x128xi1>, vector<8x128xf32>
      %c2_i32_160 = arith.constant 2 : i32
      %363 = arith.addi %308, %c2_i32_160 : i32
      %364 = arith.index_cast %363 : i32 to index
      %c0_161 = arith.constant 0 : index
      %c0_162 = arith.constant 0 : index
      %365 = vector.load %arg8[%364, %c0_161, %c0_162] : memref<24x8x128xf32, #tpu.memory_space<vmem>>, vector<1x8x128xf32>
      %366 = vector.shape_cast %365 : vector<1x8x128xf32> to vector<8x128xf32>
      %367 = arith.index_cast %363 : i32 to index
      %c0_163 = arith.constant 0 : index
      %c0_164 = arith.constant 0 : index
      %368 = vector.load %arg9[%367, %c0_163, %c0_164] : memref<24x8x128xf32, #tpu.memory_space<vmem>>, vector<1x8x128xf32>
      %369 = vector.shape_cast %368 : vector<1x8x128xf32> to vector<8x128xf32>
      %c1_i32_165 = arith.constant 1 : i32
      %370 = tpu.dynamic_rotate %362 by %c1_i32_165 dim 1 : vector<8x128xf32>, i32 -> vector<8x128xf32>
      %371 = arith.addf %370, %10 : vector<8x128xf32>
      %c2_i32_166 = arith.constant 2 : i32
      %372 = tpu.dynamic_rotate %362 by %c2_i32_166 dim 1 : vector<8x128xf32>, i32 -> vector<8x128xf32>
      %373 = arith.addf %372, %11 : vector<8x128xf32>
      %374 = arith.maximumf %362, %371 : vector<8x128xf32>
      %375 = arith.maximumf %374, %373 : vector<8x128xf32>
      %376 = arith.subf %362, %375 : vector<8x128xf32>
      %377 = math.exp %376 : vector<8x128xf32>
      %378 = arith.subf %371, %375 : vector<8x128xf32>
      %379 = math.exp %378 : vector<8x128xf32>
      %380 = arith.addf %377, %379 : vector<8x128xf32>
      %381 = arith.subf %373, %375 : vector<8x128xf32>
      %382 = math.exp %381 : vector<8x128xf32>
      %383 = arith.addf %380, %382 : vector<8x128xf32>
      %384 = math.log %383 : vector<8x128xf32>
      %385 = arith.addf %375, %384 : vector<8x128xf32>
      %cst_167 = arith.constant 5.000000e-01 : f32
      %386 = vector.broadcast %cst_167 : f32 to vector<8x128xf32>
      %387 = arith.cmpf ogt, %369, %386 : vector<8x128xf32>
      %388 = arith.addf %366, %385 : vector<8x128xf32>
      %389 = arith.select %387, %388, %362 : vector<8x128xi1>, vector<8x128xf32>
      %c3_i32_168 = arith.constant 3 : i32
      %390 = arith.addi %308, %c3_i32_168 : i32
      %391 = arith.index_cast %390 : i32 to index
      %c0_169 = arith.constant 0 : index
      %c0_170 = arith.constant 0 : index
      %392 = vector.load %arg8[%391, %c0_169, %c0_170] : memref<24x8x128xf32, #tpu.memory_space<vmem>>, vector<1x8x128xf32>
      %393 = vector.shape_cast %392 : vector<1x8x128xf32> to vector<8x128xf32>
      %394 = arith.index_cast %390 : i32 to index
      %c0_171 = arith.constant 0 : index
      %c0_172 = arith.constant 0 : index
      %395 = vector.load %arg9[%394, %c0_171, %c0_172] : memref<24x8x128xf32, #tpu.memory_space<vmem>>, vector<1x8x128xf32>
      %396 = vector.shape_cast %395 : vector<1x8x128xf32> to vector<8x128xf32>
      %c1_i32_173 = arith.constant 1 : i32
      %397 = tpu.dynamic_rotate %389 by %c1_i32_173 dim 1 : vector<8x128xf32>, i32 -> vector<8x128xf32>
      %398 = arith.addf %397, %10 : vector<8x128xf32>
      %c2_i32_174 = arith.constant 2 : i32
      %399 = tpu.dynamic_rotate %389 by %c2_i32_174 dim 1 : vector<8x128xf32>, i32 -> vector<8x128xf32>
      %400 = arith.addf %399, %11 : vector<8x128xf32>
      %401 = arith.maximumf %389, %398 : vector<8x128xf32>
      %402 = arith.maximumf %401, %400 : vector<8x128xf32>
      %403 = arith.subf %389, %402 : vector<8x128xf32>
      %404 = math.exp %403 : vector<8x128xf32>
      %405 = arith.subf %398, %402 : vector<8x128xf32>
      %406 = math.exp %405 : vector<8x128xf32>
      %407 = arith.addf %404, %406 : vector<8x128xf32>
      %408 = arith.subf %400, %402 : vector<8x128xf32>
      %409 = math.exp %408 : vector<8x128xf32>
      %410 = arith.addf %407, %409 : vector<8x128xf32>
      %411 = math.log %410 : vector<8x128xf32>
      %412 = arith.addf %402, %411 : vector<8x128xf32>
      %cst_175 = arith.constant 5.000000e-01 : f32
      %413 = vector.broadcast %cst_175 : f32 to vector<8x128xf32>
      %414 = arith.cmpf ogt, %396, %413 : vector<8x128xf32>
      %415 = arith.addf %393, %412 : vector<8x128xf32>
      %416 = arith.select %414, %415, %389 : vector<8x128xi1>, vector<8x128xf32>
      %c4_i32 = arith.constant 4 : i32
      %417 = arith.addi %308, %c4_i32 : i32
      %418 = arith.index_cast %417 : i32 to index
      %c0_176 = arith.constant 0 : index
      %c0_177 = arith.constant 0 : index
      %419 = vector.load %arg8[%418, %c0_176, %c0_177] : memref<24x8x128xf32, #tpu.memory_space<vmem>>, vector<1x8x128xf32>
      %420 = vector.shape_cast %419 : vector<1x8x128xf32> to vector<8x128xf32>
      %421 = arith.index_cast %417 : i32 to index
      %c0_178 = arith.constant 0 : index
      %c0_179 = arith.constant 0 : index
      %422 = vector.load %arg9[%421, %c0_178, %c0_179] : memref<24x8x128xf32, #tpu.memory_space<vmem>>, vector<1x8x128xf32>
      %423 = vector.shape_cast %422 : vector<1x8x128xf32> to vector<8x128xf32>
      %c1_i32_180 = arith.constant 1 : i32
      %424 = tpu.dynamic_rotate %416 by %c1_i32_180 dim 1 : vector<8x128xf32>, i32 -> vector<8x128xf32>
      %425 = arith.addf %424, %10 : vector<8x128xf32>
      %c2_i32_181 = arith.constant 2 : i32
      %426 = tpu.dynamic_rotate %416 by %c2_i32_181 dim 1 : vector<8x128xf32>, i32 -> vector<8x128xf32>
      %427 = arith.addf %426, %11 : vector<8x128xf32>
      %428 = arith.maximumf %416, %425 : vector<8x128xf32>
      %429 = arith.maximumf %428, %427 : vector<8x128xf32>
      %430 = arith.subf %416, %429 : vector<8x128xf32>
      %431 = math.exp %430 : vector<8x128xf32>
      %432 = arith.subf %425, %429 : vector<8x128xf32>
      %433 = math.exp %432 : vector<8x128xf32>
      %434 = arith.addf %431, %433 : vector<8x128xf32>
      %435 = arith.subf %427, %429 : vector<8x128xf32>
      %436 = math.exp %435 : vector<8x128xf32>
      %437 = arith.addf %434, %436 : vector<8x128xf32>
      %438 = math.log %437 : vector<8x128xf32>
      %439 = arith.addf %429, %438 : vector<8x128xf32>
      %cst_182 = arith.constant 5.000000e-01 : f32
      %440 = vector.broadcast %cst_182 : f32 to vector<8x128xf32>
      %441 = arith.cmpf ogt, %423, %440 : vector<8x128xf32>
      %442 = arith.addf %420, %439 : vector<8x128xf32>
      %443 = arith.select %441, %442, %416 : vector<8x128xi1>, vector<8x128xf32>
      %c5_i32 = arith.constant 5 : i32
      %444 = arith.addi %308, %c5_i32 : i32
      %445 = arith.index_cast %444 : i32 to index
      %c0_183 = arith.constant 0 : index
      %c0_184 = arith.constant 0 : index
      %446 = vector.load %arg8[%445, %c0_183, %c0_184] : memref<24x8x128xf32, #tpu.memory_space<vmem>>, vector<1x8x128xf32>
      %447 = vector.shape_cast %446 : vector<1x8x128xf32> to vector<8x128xf32>
      %448 = arith.index_cast %444 : i32 to index
      %c0_185 = arith.constant 0 : index
      %c0_186 = arith.constant 0 : index
      %449 = vector.load %arg9[%448, %c0_185, %c0_186] : memref<24x8x128xf32, #tpu.memory_space<vmem>>, vector<1x8x128xf32>
      %450 = vector.shape_cast %449 : vector<1x8x128xf32> to vector<8x128xf32>
      %c1_i32_187 = arith.constant 1 : i32
      %451 = tpu.dynamic_rotate %443 by %c1_i32_187 dim 1 : vector<8x128xf32>, i32 -> vector<8x128xf32>
      %452 = arith.addf %451, %10 : vector<8x128xf32>
      %c2_i32_188 = arith.constant 2 : i32
      %453 = tpu.dynamic_rotate %443 by %c2_i32_188 dim 1 : vector<8x128xf32>, i32 -> vector<8x128xf32>
      %454 = arith.addf %453, %11 : vector<8x128xf32>
      %455 = arith.maximumf %443, %452 : vector<8x128xf32>
      %456 = arith.maximumf %455, %454 : vector<8x128xf32>
      %457 = arith.subf %443, %456 : vector<8x128xf32>
      %458 = math.exp %457 : vector<8x128xf32>
      %459 = arith.subf %452, %456 : vector<8x128xf32>
      %460 = math.exp %459 : vector<8x128xf32>
      %461 = arith.addf %458, %460 : vector<8x128xf32>
      %462 = arith.subf %454, %456 : vector<8x128xf32>
      %463 = math.exp %462 : vector<8x128xf32>
      %464 = arith.addf %461, %463 : vector<8x128xf32>
      %465 = math.log %464 : vector<8x128xf32>
      %466 = arith.addf %456, %465 : vector<8x128xf32>
      %cst_189 = arith.constant 5.000000e-01 : f32
      %467 = vector.broadcast %cst_189 : f32 to vector<8x128xf32>
      %468 = arith.cmpf ogt, %450, %467 : vector<8x128xf32>
      %469 = arith.addf %447, %466 : vector<8x128xf32>
      %470 = arith.select %468, %469, %443 : vector<8x128xi1>, vector<8x128xf32>
      %c6_i32 = arith.constant 6 : i32
      %471 = arith.addi %308, %c6_i32 : i32
      %472 = arith.index_cast %471 : i32 to index
      %c0_190 = arith.constant 0 : index
      %c0_191 = arith.constant 0 : index
      %473 = vector.load %arg8[%472, %c0_190, %c0_191] : memref<24x8x128xf32, #tpu.memory_space<vmem>>, vector<1x8x128xf32>
      %474 = vector.shape_cast %473 : vector<1x8x128xf32> to vector<8x128xf32>
      %475 = arith.index_cast %471 : i32 to index
      %c0_192 = arith.constant 0 : index
      %c0_193 = arith.constant 0 : index
      %476 = vector.load %arg9[%475, %c0_192, %c0_193] : memref<24x8x128xf32, #tpu.memory_space<vmem>>, vector<1x8x128xf32>
      %477 = vector.shape_cast %476 : vector<1x8x128xf32> to vector<8x128xf32>
      %c1_i32_194 = arith.constant 1 : i32
      %478 = tpu.dynamic_rotate %470 by %c1_i32_194 dim 1 : vector<8x128xf32>, i32 -> vector<8x128xf32>
      %479 = arith.addf %478, %10 : vector<8x128xf32>
      %c2_i32_195 = arith.constant 2 : i32
      %480 = tpu.dynamic_rotate %470 by %c2_i32_195 dim 1 : vector<8x128xf32>, i32 -> vector<8x128xf32>
      %481 = arith.addf %480, %11 : vector<8x128xf32>
      %482 = arith.maximumf %470, %479 : vector<8x128xf32>
      %483 = arith.maximumf %482, %481 : vector<8x128xf32>
      %484 = arith.subf %470, %483 : vector<8x128xf32>
      %485 = math.exp %484 : vector<8x128xf32>
      %486 = arith.subf %479, %483 : vector<8x128xf32>
      %487 = math.exp %486 : vector<8x128xf32>
      %488 = arith.addf %485, %487 : vector<8x128xf32>
      %489 = arith.subf %481, %483 : vector<8x128xf32>
      %490 = math.exp %489 : vector<8x128xf32>
      %491 = arith.addf %488, %490 : vector<8x128xf32>
      %492 = math.log %491 : vector<8x128xf32>
      %493 = arith.addf %483, %492 : vector<8x128xf32>
      %cst_196 = arith.constant 5.000000e-01 : f32
      %494 = vector.broadcast %cst_196 : f32 to vector<8x128xf32>
      %495 = arith.cmpf ogt, %477, %494 : vector<8x128xf32>
      %496 = arith.addf %474, %493 : vector<8x128xf32>
      %497 = arith.select %495, %496, %470 : vector<8x128xi1>, vector<8x128xf32>
      %c7_i32 = arith.constant 7 : i32
      %498 = arith.addi %308, %c7_i32 : i32
      %499 = arith.index_cast %498 : i32 to index
      %c0_197 = arith.constant 0 : index
      %c0_198 = arith.constant 0 : index
      %500 = vector.load %arg8[%499, %c0_197, %c0_198] : memref<24x8x128xf32, #tpu.memory_space<vmem>>, vector<1x8x128xf32>
      %501 = vector.shape_cast %500 : vector<1x8x128xf32> to vector<8x128xf32>
      %502 = arith.index_cast %498 : i32 to index
      %c0_199 = arith.constant 0 : index
      %c0_200 = arith.constant 0 : index
      %503 = vector.load %arg9[%502, %c0_199, %c0_200] : memref<24x8x128xf32, #tpu.memory_space<vmem>>, vector<1x8x128xf32>
      %504 = vector.shape_cast %503 : vector<1x8x128xf32> to vector<8x128xf32>
      %c1_i32_201 = arith.constant 1 : i32
      %505 = tpu.dynamic_rotate %497 by %c1_i32_201 dim 1 : vector<8x128xf32>, i32 -> vector<8x128xf32>
      %506 = arith.addf %505, %10 : vector<8x128xf32>
      %c2_i32_202 = arith.constant 2 : i32
      %507 = tpu.dynamic_rotate %497 by %c2_i32_202 dim 1 : vector<8x128xf32>, i32 -> vector<8x128xf32>
      %508 = arith.addf %507, %11 : vector<8x128xf32>
      %509 = arith.maximumf %497, %506 : vector<8x128xf32>
      %510 = arith.maximumf %509, %508 : vector<8x128xf32>
      %511 = arith.subf %497, %510 : vector<8x128xf32>
      %512 = math.exp %511 : vector<8x128xf32>
      %513 = arith.subf %506, %510 : vector<8x128xf32>
      %514 = math.exp %513 : vector<8x128xf32>
      %515 = arith.addf %512, %514 : vector<8x128xf32>
      %516 = arith.subf %508, %510 : vector<8x128xf32>
      %517 = math.exp %516 : vector<8x128xf32>
      %518 = arith.addf %515, %517 : vector<8x128xf32>
      %519 = math.log %518 : vector<8x128xf32>
      %520 = arith.addf %510, %519 : vector<8x128xf32>
      %cst_203 = arith.constant 5.000000e-01 : f32
      %521 = vector.broadcast %cst_203 : f32 to vector<8x128xf32>
      %522 = arith.cmpf ogt, %504, %521 : vector<8x128xf32>
      %523 = arith.addf %501, %520 : vector<8x128xf32>
      %524 = arith.select %522, %523, %497 : vector<8x128xi1>, vector<8x128xf32>
      scf.yield %524 : vector<8x128xf32>
    }
    %c3_i32_140 = arith.constant 3 : i32
    %c0_141 = arith.constant 0 : index
    %c0_142 = arith.constant 0 : index
    %304 = vector.load %arg7[%c0_141, %c0_142] : memref<8x128xf32, #tpu.memory_space<vmem>>, vector<8x128xf32>
    tpu.vector_store %arg7[%c0_141, %c0_142], %303 {strides = array<i32>} : memref<8x128xf32, #tpu.memory_space<vmem>>, vector<8x128xf32>,
    %c0_i32_143 = arith.constant 0 : i32
    %305 = arith.cmpi eq, %arg1, %c0_i32_143 : i32
    %306 = arith.extui %305 : i1 to i32
    %c0_i32_144 = arith.constant 0 : i32
    %307 = arith.cmpi ne, %306, %c0_i32_144 : i32
    scf.if %307 {
      %c1_i32_145 = arith.constant 1 : i32
      %308 = vector.broadcast %c1_i32_145 : i32 to vector<8x1xi32>
      %309 = arith.subi %3, %308 : vector<8x1xi32>
      %310 = vector.broadcast %309 : vector<8x1xi32> to vector<8x128xi32>
      %311 = arith.cmpi eq, %5, %310 : vector<8x128xi32>
      %c2_i32 = arith.constant 2 : i32
      %312 = vector.broadcast %c2_i32 : i32 to vector<8x1xi32>
      %313 = arith.subi %3, %312 : vector<8x1xi32>
      %314 = vector.broadcast %313 : vector<8x1xi32> to vector<8x128xi32>
      %315 = arith.cmpi eq, %5, %314 : vector<8x128xi32>
      %316 = arith.ori %311, %315 : vector<8x128xi1>
      %cst_146 = arith.constant -1.000000e+30 : f32
      %317 = vector.broadcast %cst_146 : f32 to vector<8x128xf32>
      %318 = arith.select %316, %303, %317 : vector<8x128xi1>, vector<8x128xf32>
      %cst_147 = arith.constant dense<0xFF800000> : vector<8xf32>
      %319 = vector.multi_reduction <maximumf>, %318, %cst_147 [1] : vector<8x128xf32> to vector<8xf32>
      %320 = vector.shape_cast %319 : vector<8xf32> to vector<8x1xf32>
      %321 = vector.broadcast %320 : vector<8x1xf32> to vector<8x128xf32>
      %322 = arith.subf %318, %321 : vector<8x128xf32>
      %323 = math.exp %322 : vector<8x128xf32>
      %cst_148 = arith.constant dense<0.000000e+00> : vector<8xf32>
      %324 = vector.multi_reduction <add>, %323, %cst_148 [1] : vector<8x128xf32> to vector<8xf32>
      %325 = vector.shape_cast %324 : vector<8xf32> to vector<8x1xf32>
      %326 = math.log %325 : vector<8x1xf32>
      %327 = arith.addf %320, %326 : vector<8x1xf32>
      %cst_149 = arith.constant 0.000000e+00 : f32
      %328 = vector.broadcast %cst_149 : f32 to vector<8x1xf32>
      %329 = arith.subf %328, %327 : vector<8x1xf32>
      %330 = arith.mulf %329, %4 : vector<8x1xf32>
      %c0_150 = arith.constant 0 : index
      %c0_151 = arith.constant 0 : index
      %331 = vector.load %arg6[%c0_150, %c0_151] : memref<8x1xf32, #tpu.memory_space<vmem>>, vector<8x1xf32>
      tpu.vector_store %arg6[%c0_150, %c0_151], %330 {strides = array<i32>} : memref<8x1xf32, #tpu.memory_space<vmem>>, vector<8x1xf32>,
    } else {
    }
    return
  }
  func.func @transform_0(%arg0: i32, %arg1: i32) -> (i32, i32, i32) {
    %c0_i32 = arith.constant 0 : i32
    %c0_i32_0 = arith.constant 0 : i32
    return %arg0, %arg1, %c0_i32 : i32, i32, i32
  }
  func.func @transform_1(%arg0: i32, %arg1: i32) -> (i32, i32, i32) {
    %c0_i32 = arith.constant 0 : i32
    %c0_i32_0 = arith.constant 0 : i32
    %c0_i32_1 = arith.constant 0 : i32
    return %arg0, %c0_i32, %c0_i32_0 : i32, i32, i32
  }
  func.func @transform_2(%arg0: i32, %arg1: i32) -> (i32, i32) {
    %c0_i32 = arith.constant 0 : i32
    %c0_i32_0 = arith.constant 0 : i32
    return %arg0, %c0_i32 : i32, i32
  }
  func.func @transform_3(%arg0: i32, %arg1: i32) -> (i32, i32) {
    %c0_i32 = arith.constant 0 : i32
    %c0_i32_0 = arith.constant 0 : i32
    return %arg0, %c0_i32 : i32, i32
  }
  func.func @transform_4(%arg0: i32, %arg1: i32) -> (i32, i32) {
    %c0_i32 = arith.constant 0 : i32
    %c0_i32_0 = arith.constant 0 : i32
    return %arg0, %c0_i32 : i32, i32
  }
}

</mosaic_0001>

<llo_original>
// kernel: tpu_custom_call.1
$region0: #{tpu_custom_call.1}
  #allocation0 [shape = 'u32[]', space=smem, size = 0x4, offset = 0x4, fixed_abs, tag = 'smem constant byte address 0x4 - core index']
  #allocation1 [shape = 'u32[144,128]{1,0:T(1,128)}', space=vmem, size = 0x12000, scoped, tag = 'internal scratch']
  #allocation2 [shape = 'f32[8,128]{1,0:T(8,128)}', space=vmem, size = 0x1000, scoped, tag = 'scratch operand']
  #allocation3 [shape = 'f32[24,8,128]{2,1,0:T(8,128)}', space=vmem, size = 0x18000, scoped, tag = 'scratch operand']
  #allocation4 [shape = 'f32[24,8,128]{2,1,0:T(8,128)}', space=vmem, size = 0x18000, scoped, tag = 'scratch operand']
  %s0 = inlined_call_operand.hbm [shape: f32[8,24,128], index: 0, kind: input, shape index: {}]
  %s1 = inlined_call_operand.hbm [shape: bf16[8,128,128], index: 1, kind: input, shape index: {}]
  %s2 = inlined_call_operand.hbm [shape: f32[8,128], index: 2, kind: input, shape index: {}]
  %s3 = inlined_call_operand.vmem [shape: f32[8,128], index: 3, kind: input, shape index: {}]
  %s4 = inlined_call_operand.vmem [shape: f32[8,1], index: 4, kind: output, shape index: {}]
  %s5 = sld [smem:[#allocation0]]
  $region53: #{tpu_custom_call.1} parent=0
    _
  %s7 = ssub.s32 1, %s5
  %s8 = scalar_select 0, %s7, %s5
  $region1: #{tpu_custom_call.1} parent=0
    #allocation5 [shape = 'u8[98304]{0}', space=vmem, size = 0x18000, scoped, tag = 'input window, operand 0, single buffered']
    #allocation6 [shape = 's32[1]{0}', space=sflag, size = 0x4, scoped, tag = 'scoped memory for tpu_custom_call.1']
    #allocation7 [shape = 'u8[262144]{0}', space=vmem, size = 0x40000, scoped, tag = 'input window, operand 1, single buffered']
    #allocation8 [shape = 's32[1]{0}', space=sflag, size = 0x4, scoped, tag = 'scoped memory for tpu_custom_call.1']
    #allocation9 [shape = 'u8[4096]{0}', space=vmem, size = 0x1000, scoped, tag = 'input window, operand 2, single buffered']
    %9 = vsyncpa [#allocation6], 0
    %10 = vsyncpa [#allocation8], 0
    // Predicated region
    $region2: #{tpu_custom_call.1} parent=1 // pred_check
      _
    $region3: #{tpu_custom_call.1} parent=1 // pred_check_branch
      %12 = sbr.rel (0) target = $region5
    $region4: #{tpu_custom_call.1} parent=1 // pred_region
      %s14 = ssub.s32 3072, 3072
      %15 = vsyncadd [#allocation6], %s14
      %s16 = sshll.u32 [#allocation5], 4
      %s17 = int_to_ptr.vmem [resolvable:$true] %s16
      %22 = dma.hbm_to_vmem [thread:$0]  %s0, 3072, %s17, [#allocation6], 128, 128, 8
    $region5: #{tpu_custom_call.1} parent=1 // pred_fallthru
      _
    // Predicated region
    $region6: #{tpu_custom_call.1} parent=1 // pred_check
      _
    $region7: #{tpu_custom_call.1} parent=1 // pred_check_branch
      %24 = sbr.rel (0) target = $region9
    $region8: #{tpu_custom_call.1} parent=1 // pred_region
      %s26 = ssub.s32 8192, 8192
      %27 = vsyncadd [#allocation8], %s26
      %s28 = sshll.u32 [#allocation7], 4
      %s29 = int_to_ptr.vmem [resolvable:$true] %s28
      %34 = dma.hbm_to_vmem [thread:$0]  %s1, 8192, %s29, [#allocation8], 64, 64, 4
    $region9: #{tpu_custom_call.1} parent=1 // pred_fallthru
      _
    // Predicated region
    $region10: #{tpu_custom_call.1} parent=1 // pred_check
      _
    $region11: #{tpu_custom_call.1} parent=1 // pred_check_branch
      %36 = sbr.rel (0) target = $region13
    $region12: #{tpu_custom_call.1} parent=1 // pred_region
      %s38 = ssub.s32 128, 128
      %39 = vsyncadd [#allocation8], %s38
      %s41 = sshll.u32 [#allocation9], 4
      %s42 = int_to_ptr.vmem [resolvable:$true] %s41
      %44 = dma.hbm_to_vmem [thread:$0]  %s2, 128, %s42, [#allocation8]
    $region13: #{tpu_custom_call.1} parent=1 // pred_fallthru
      _
    // Predicated region
    $region14: #{tpu_custom_call.1} parent=1 // pred_check
      _
    $region15: #{tpu_custom_call.1} parent=1 // pred_check_branch
      %46 = sbr.rel (0) target = $region17
    $region16: #{tpu_custom_call.1} parent=1 // pred_region
      _
    $region17: #{tpu_custom_call.1} parent=1 // pred_fallthru
      _
    // Predicated region
    $region18: #{tpu_custom_call.1} parent=1 // pred_check
      _
    $region19: #{tpu_custom_call.1} parent=1 // pred_check_branch
      %48 = sbr.rel (0) target = $region21
    $region20: #{tpu_custom_call.1} parent=1 // pred_region
      %49 = dma.done [#allocation6], 3072
    $region21: #{tpu_custom_call.1} parent=1 // pred_fallthru
      _
    // Predicated region
    $region22: #{tpu_custom_call.1} parent=1 // pred_check
      _
    $region23: #{tpu_custom_call.1} parent=1 // pred_check_branch
      %51 = sbr.rel (0) target = $region25
    $region24: #{tpu_custom_call.1} parent=1 // pred_region
      %52 = dma.done [#allocation8], 8192
    $region25: #{tpu_custom_call.1} parent=1 // pred_fallthru
      _
    // Predicated region
    $region26: #{tpu_custom_call.1} parent=1 // pred_check
      _
    $region27: #{tpu_custom_call.1} parent=1 // pred_check_branch
      %54 = sbr.rel (0) target = $region29
    $region28: #{tpu_custom_call.1} parent=1 // pred_region
      %55 = dma.done [#allocation8], 128
    $region29: #{tpu_custom_call.1} parent=1 // pred_fallthru
      _
    %v57 = vld [vmem:[%s3] sm:$0xff]
    %v58 = vcvt.f32.s32.to.zero.pseudo %v57
    %v59 = vlaneseq
    %v60 = vand.u32 %v59, 127
    %vm61 = vcmp.ge.s32.totalorder %v60, 1
    %v62 = vsel %vm61, 0.0, -1e+30
    %v63 = vld [vmem:[#allocation9] sm:$0xff]
    %v64 = vld [vmem:[#allocation5] sm:$0xff]
    %v65 = vld [vmem:[#allocation5 + $0x8] sm:$0xff]
    %v66 = vld [vmem:[#allocation5 + $0x10] sm:$0xff]
    %v67 = vld [vmem:[#allocation7] sm:$0xf]
    %v68 = vld [vmem:[#allocation7 + $0x4] sm:$0xf]
    %v69 = vld [vmem:[#allocation7 + $0x8] sm:$0xf]
    %v70 = vld [vmem:[#allocation7 + $0xc] sm:$0xf]
    %v71 = vld [vmem:[#allocation7 + $0x10] sm:$0xf]
    %v72 = vld [vmem:[#allocation7 + $0x14] sm:$0xf]
    %v73 = vld [vmem:[#allocation7 + $0x18] sm:$0xf]
    %v74 = vld [vmem:[#allocation7 + $0x1c] sm:$0xf]
    %v75 = vld [vmem:[#allocation7 + $0x20] sm:$0xf]
    %v76 = vld [vmem:[#allocation7 + $0x24] sm:$0xf]
    %v77 = vld [vmem:[#allocation7 + $0x28] sm:$0xf]
    %v78 = vld [vmem:[#allocation7 + $0x2c] sm:$0xf]
    %v79 = vld [vmem:[#allocation7 + $0x30] sm:$0xf]
    %v80 = vld [vmem:[#allocation7 + $0x34] sm:$0xf]
    %v81 = vld [vmem:[#allocation7 + $0x38] sm:$0xf]
    %v82 = vld [vmem:[#allocation7 + $0x3c] sm:$0xf]
    %83 = vmax.xlane.f32.xlu0 %v64
    %v84 = vpop.xlane.xlu0 %83
    %85 = vmax.xlane.f32.xlu0 %v65
    %v86 = vpop.xlane.xlu0 %85
    %87 = vmax.xlane.f32.xlu0 %v66
    %v88 = vpop.xlane.xlu0 %87
    %v89 = vmax.f32 %v84, -1e+30
    %v90 = vmax.f32 %v86, -1e+30
    %v91 = vmax.f32 %v88, -1e+30
    %v92 = vsub.f32 -1e+30, %v89
    %v93 = vsub.f32 -1e+30, %v90
    %v94 = vsub.f32 -1e+30, %v91
    %v95 = vmul.f32 %v92, 1.442695
    %v96 = vpow.pop %v95
    %v97 = vmul.f32 %v93, 1.442695
    %v98 = vpow.pop %v97
    %v99 = vmul.f32 %v94, 1.442695
    %v100 = vpow.pop %v99
    %v101 = vmul.f32 %v96, 0.0
    %v102 = vmul.f32 %v98, 0.0
    %v103 = vmul.f32 %v100, 0.0
    %v104 = vsub.f32 %v64, %v89
    %v105 = vsub.f32 %v65, %v90
    %v106 = vsub.f32 %v66, %v91
    %v107 = vmul.f32 %v104, 1.442695
    %v108 = vpow.pop %v107
    %v109 = vmul.f32 %v105, 1.442695
    %v110 = vpow.pop %v109
    %v111 = vmul.f32 %v106, 1.442695
    %v112 = vpow.pop %v111
    %113 = vadd.xlane.f32.xlu0 %v108
    %v114 = vpop.xlane.xlu0 %113
    %115 = vadd.xlane.f32.xlu0 %v110
    %v116 = vpop.xlane.xlu0 %115
    %117 = vadd.xlane.f32.xlu0 %v112
    %v118 = vpop.xlane.xlu0 %117
    %v119 = vadd.f32 %v101, %v114
    %v120 = vadd.f32 %v102, %v116
    %v121 = vadd.f32 %v103, %v118
    %v122 = vpack.c.bf16 %v65, %v64
    %v123 = vpack.c.bf16 %v66, %v66
    %v124 = vunpack.c.l.bf16 %v122
    %v125 = vunpack.c.h.bf16 %v122
    %v126 = vunpack.c.l.bf16 %v123
    %v127 = vsub.f32 %v64, %v124
    %v128 = vsub.f32 %v65, %v125
    %v129 = vsub.f32 %v66, %v126
    %v130 = vpack.c.bf16 %v128, %v127
    %v131 = vpack.c.bf16 %v129, %v129
    %v148 = vunpack.c.l.b16 %v67
    %v149 = vunpack.c.l.b16 %v68
    %v150 = vunpack.c.l.b16 %v69
    %v151 = vunpack.c.l.b16 %v70
    %v152 = vunpack.c.l.b16 %v71
    %v153 = vunpack.c.l.b16 %v72
    %v154 = vunpack.c.l.b16 %v73
    %v155 = vunpack.c.l.b16 %v74
    %v156 = vunpack.c.l.b16 %v75
    %v157 = vunpack.c.l.b16 %v76
    %v158 = vunpack.c.l.b16 %v77
    %v159 = vunpack.c.l.b16 %v78
    %v160 = vunpack.c.l.b16 %v79
    %v161 = vunpack.c.l.b16 %v80
    %v162 = vunpack.c.l.b16 %v81
    %v163 = vunpack.c.l.b16 %v82
    %v164 = vpack.c.b16 %v149, %v148
    %v165 = vpack.c.b16 %v151, %v150
    %v166 = vpack.c.b16 %v153, %v152
    %v167 = vpack.c.b16 %v155, %v154
    %v168 = vpack.c.b16 %v157, %v156
    %v169 = vpack.c.b16 %v159, %v158
    %v170 = vpack.c.b16 %v161, %v160
    %v171 = vpack.c.b16 %v163, %v162
    %180 = vmatprep.subr.bf16.mxu0 0
    %181 = vmatpush1.bf16.msra.mxu0 %v164
    %182 = vmatprep.subr.bf16.mxu0 0
    %183 = vmatpush1.bf16.msra.mxu0 %v165
    %184 = vmatprep.subr.bf16.mxu0 0
    %185 = vmatpush1.bf16.msra.mxu0 %v166
    %186 = vmatprep.subr.bf16.mxu0 0
    %187 = vmatpush1.bf16.msra.mxu0 %v167
    %188 = vmatprep.subr.bf16.mxu0 0
    %189 = vmatpush1.bf16.msra.mxu0 %v168
    %190 = vmatprep.subr.bf16.mxu0 0
    %191 = vmatpush1.bf16.msra.mxu0 %v169
    %192 = vmatprep.subr.bf16.mxu0 0
    %193 = vmatpush1.bf16.msra.mxu0 %v170
    %194 = vmatprep.subr.bf16.mxu0 0
    %195 = vmatpush1.bf16.msra.mxu0 %v171
    %196 = vmatprep.subr.bf16.mxu0 0
    %197 = vmatpush1.bf16.msra.mxu0 0
    %198 = vmatprep.subr.bf16.mxu0 0
    %199 = vmatpush1.bf16.msra.mxu0 0
    %200 = vmatprep.subr.bf16.mxu0 0
    %201 = vmatpush1.bf16.msra.mxu0 0
    %202 = vmatprep.subr.bf16.mxu0 0
    %203 = vmatpush1.bf16.msra.mxu0 0
    %204 = vmatprep.subr.bf16.mxu0 0
    %205 = vmatpush1.bf16.msra.mxu0 0
    %206 = vmatprep.subr.bf16.mxu0 0
    %207 = vmatpush1.bf16.msra.mxu0 0
    %208 = vmatprep.subr.bf16.mxu0 0
    %209 = vmatpush1.bf16.msra.mxu0 0
    %210 = vmatprep.subr.bf16.mxu0 0
    %211 = vmatpush1.bf16.msra.mxu0 0
    %212 = vmatprep.mubr.bf16.mxu0 0
    %213 = vmatmul.mubr.bf16.gmra.mrb[0].mxu0 %v130
    %v214 = vpop.f32.mrb[0].mxu0
    %v215 = vadd.f32 0.0, %v214
    %v216 = vpop.f32.mrb[0].mxu0
    %v217 = vpop.f32.mrb[0].mxu0
    %v218 = vadd.f32 0.0, %v217
    %v219 = vpop.f32.mrb[0].mxu0
    %220 = vmatprep.mubr.bf16.mxu0 0
    %221 = vmatmul.mubr.bf16.gmra.mrb[0].mxu0 %v131
    %v222 = vpop.f32.mrb[0].mxu0
    %v223 = vadd.f32 0.0, %v222
    %v224 = vpop.f32.mrb[0].mxu0
    %v225 = vpop.f32.mrb[0].mxu0
    %v226 = vpop.f32.mrb[0].mxu0
    %227 = vdwg.mxu0
    %228 = vmatprep.subr.bf16.mxu0 0
    %229 = vmatpush1.bf16.msra.mxu0 %v164
    %230 = vmatprep.subr.bf16.mxu0 0
    %231 = vmatpush1.bf16.msra.mxu0 %v165
    %232 = vmatprep.subr.bf16.mxu0 0
    %233 = vmatpush1.bf16.msra.mxu0 %v166
    %234 = vmatprep.subr.bf16.mxu0 0
    %235 = vmatpush1.bf16.msra.mxu0 %v167
    %236 = vmatprep.subr.bf16.mxu0 0
    %237 = vmatpush1.bf16.msra.mxu0 %v168
    %238 = vmatprep.subr.bf16.mxu0 0
    %239 = vmatpush1.bf16.msra.mxu0 %v169
    %240 = vmatprep.subr.bf16.mxu0 0
    %241 = vmatpush1.bf16.msra.mxu0 %v170
    %242 = vmatprep.subr.bf16.mxu0 0
    %243 = vmatpush1.bf16.msra.mxu0 %v171
    %244 = vmatprep.subr.bf16.mxu0 0
    %245 = vmatpush1.bf16.msra.mxu0 0
    %246 = vmatprep.subr.bf16.mxu0 0
    %247 = vmatpush1.bf16.msra.mxu0 0
    %248 = vmatprep.subr.bf16.mxu0 0
    %249 = vmatpush1.bf16.msra.mxu0 0
    %250 = vmatprep.subr.bf16.mxu0 0
    %251 = vmatpush1.bf16.msra.mxu0 0
    %252 = vmatprep.subr.bf16.mxu0 0
    %253 = vmatpush1.bf16.msra.mxu0 0
    %254 = vmatprep.subr.bf16.mxu0 0
    %255 = vmatpush1.bf16.msra.mxu0 0
    %256 = vmatprep.subr.bf16.mxu0 0
    %257 = vmatpush1.bf16.msra.mxu0 0
    %258 = vmatprep.subr.bf16.mxu0 0
    %259 = vmatpush1.bf16.msra.mxu0 0
    %260 = vmatprep.mubr.bf16.mxu0 0
    %261 = vmatmul.mubr.bf16.gmra.mrb[0].mxu0 %v122
    %v262 = vpop.f32.mrb[0].mxu0
    %v263 = vadd.f32 %v215, %v262
    %v264 = vpop.f32.mrb[0].mxu0
    %v265 = vpop.f32.mrb[0].mxu0
    %v266 = vadd.f32 %v218, %v265
    %v267 = vpop.f32.mrb[0].mxu0
    %268 = vmatprep.mubr.bf16.mxu0 0
    %269 = vmatmul.mubr.bf16.gmra.mrb[0].mxu0 %v123
    %v270 = vpop.f32.mrb[0].mxu0
    %v271 = vadd.f32 %v223, %v270
    %v272 = vpop.f32.mrb[0].mxu0
    %v273 = vpop.f32.mrb[0].mxu0
    %v274 = vpop.f32.mrb[0].mxu0
    %275 = vdwg.mxu0
    %v276 = vlog2.pop %v119
    %v277 = vmul.f32 %v276, 0.6931472
    %v278 = vlog2.pop %v120
    %v279 = vmul.f32 %v278, 0.6931472
    %v280 = vlog2.pop %v121
    %v281 = vmul.f32 %v280, 0.6931472
    %v282 = vadd.f32 %v89, %v277
    %v283 = vadd.f32 %v90, %v279
    %v284 = vadd.f32 %v91, %v281
    %v285 = vsub.f32 %v263, %v282
    %v286 = vsub.f32 %v266, %v283
    %v287 = vsub.f32 %v271, %v284
    %v291 = vcombine.high %v285, %v285
    %v293 = vunpack.c.l.s4 1966171168
    %v294 = vunpack.c.0.s8 %v293
    %v295 = vlaneseq
    %v296 = vshrl.u32 %v295, 7
    %v297 = vsub.s32 %v294, %v296
    %v298 = vrot.slane %v285, %v297
    %v300 = vunpack.c.l.s4 1966171168
    %v301 = vunpack.c.0.s8 %v300
    %v302 = vlaneseq
    %v303 = vshrl.u32 %v302, 7
    %v304 = vsub.s32 %v301, %v303
    %v305 = vrot.slane %v291, %v304
    %v306 = vcombine.high %v298, %v298
    %v307 = vcombine.high %v305, %v305
    %v309 = vunpack.c.l.s4 1966171168
    %v310 = vunpack.c.0.s8 %v309
    %v311 = vlaneseq
    %v312 = vshrl.u32 %v311, 7
    %v313 = vsub.s32 %v310, %v312
    %v314 = vrot.slane %v298, %v313
    %v316 = vunpack.c.l.s4 1966171168
    %v317 = vunpack.c.0.s8 %v316
    %v318 = vlaneseq
    %v319 = vshrl.u32 %v318, 7
    %v320 = vsub.s32 %v317, %v319
    %v321 = vrot.slane %v305, %v320
    %v323 = vunpack.c.l.s4 1966171168
    %v324 = vunpack.c.0.s8 %v323
    %v325 = vlaneseq
    %v326 = vshrl.u32 %v325, 7
    %v327 = vsub.s32 %v324, %v326
    %v328 = vrot.slane %v306, %v327
    %v330 = vunpack.c.l.s4 1966171168
    %v331 = vunpack.c.0.s8 %v330
    %v332 = vlaneseq
    %v333 = vshrl.u32 %v332, 7
    %v334 = vsub.s32 %v331, %v333
    %v335 = vrot.slane %v307, %v334
    %v336 = vcombine.high %v314, %v314
    %v337 = vcombine.high %v321, %v321
    %v338 = vcombine.high %v328, %v328
    %v339 = vcombine.high %v335, %v335
    %v340 = vcombine.high %v286, %v286
    %v342 = vunpack.c.l.s4 1966171168
    %v343 = vunpack.c.0.s8 %v342
    %v344 = vlaneseq
    %v345 = vshrl.u32 %v344, 7
    %v346 = vsub.s32 %v343, %v345
    %v347 = vrot.slane %v286, %v346
    %v349 = vunpack.c.l.s4 1966171168
    %v350 = vunpack.c.0.s8 %v349
    %v351 = vlaneseq
    %v352 = vshrl.u32 %v351, 7
    %v353 = vsub.s32 %v350, %v352
    %v354 = vrot.slane %v340, %v353
    %v355 = vcombine.high %v347, %v347
    %v356 = vcombine.high %v354, %v354
    %v358 = vunpack.c.l.s4 1966171168
    %v359 = vunpack.c.0.s8 %v358
    %v360 = vlaneseq
    %v361 = vshrl.u32 %v360, 7
    %v362 = vsub.s32 %v359, %v361
    %v363 = vrot.slane %v347, %v362
    %v365 = vunpack.c.l.s4 1966171168
    %v366 = vunpack.c.0.s8 %v365
    %v367 = vlaneseq
    %v368 = vshrl.u32 %v367, 7
    %v369 = vsub.s32 %v366, %v368
    %v370 = vrot.slane %v354, %v369
    %v372 = vunpack.c.l.s4 1966171168
    %v373 = vunpack.c.0.s8 %v372
    %v374 = vlaneseq
    %v375 = vshrl.u32 %v374, 7
    %v376 = vsub.s32 %v373, %v375
    %v377 = vrot.slane %v355, %v376
    %v379 = vunpack.c.l.s4 1966171168
    %v380 = vunpack.c.0.s8 %v379
    %v381 = vlaneseq
    %v382 = vshrl.u32 %v381, 7
    %v383 = vsub.s32 %v380, %v382
    %v384 = vrot.slane %v356, %v383
    %v385 = vcombine.high %v363, %v363
    %v386 = vcombine.high %v370, %v370
    %v387 = vcombine.high %v377, %v377
    %v388 = vcombine.high %v384, %v384
    %v389 = vcombine.high %v287, %v287
    %v391 = vunpack.c.l.s4 1966171168
    %v392 = vunpack.c.0.s8 %v391
    %v393 = vlaneseq
    %v394 = vshrl.u32 %v393, 7
    %v395 = vsub.s32 %v392, %v394
    %v396 = vrot.slane %v287, %v395
    %v398 = vunpack.c.l.s4 1966171168
    %v399 = vunpack.c.0.s8 %v398
    %v400 = vlaneseq
    %v401 = vshrl.u32 %v400, 7
    %v402 = vsub.s32 %v399, %v401
    %v403 = vrot.slane %v389, %v402
    %v404 = vcombine.high %v396, %v396
    %v405 = vcombine.high %v403, %v403
    %v407 = vunpack.c.l.s4 1966171168
    %v408 = vunpack.c.0.s8 %v407
    %v409 = vlaneseq
    %v410 = vshrl.u32 %v409, 7
    %v411 = vsub.s32 %v408, %v410
    %v412 = vrot.slane %v396, %v411
    %v414 = vunpack.c.l.s4 1966171168
    %v415 = vunpack.c.0.s8 %v414
    %v416 = vlaneseq
    %v417 = vshrl.u32 %v416, 7
    %v418 = vsub.s32 %v415, %v417
    %v419 = vrot.slane %v403, %v418
    %v421 = vunpack.c.l.s4 1966171168
    %v422 = vunpack.c.0.s8 %v421
    %v423 = vlaneseq
    %v424 = vshrl.u32 %v423, 7
    %v425 = vsub.s32 %v422, %v424
    %v426 = vrot.slane %v404, %v425
    %v428 = vunpack.c.l.s4 1966171168
    %v429 = vunpack.c.0.s8 %v428
    %v430 = vlaneseq
    %v431 = vshrl.u32 %v430, 7
    %v432 = vsub.s32 %v429, %v431
    %v433 = vrot.slane %v405, %v432
    %v434 = vcombine.high %v412, %v412
    %v435 = vcombine.high %v419, %v419
    %v436 = vcombine.high %v426, %v426
    %v437 = vcombine.high %v433, %v433
    %462 = vst [vmem:[#allocation3] sm:$0x1] %v314
    %463 = vst [vmem:[#allocation3 + $0x8] sm:$0x1] %v328
    %464 = vst [vmem:[#allocation3 + $0x10] sm:$0x1] %v336
    %465 = vst [vmem:[#allocation3 + $0x18] sm:$0x1] %v338
    %466 = vst [vmem:[#allocation3 + $0x20] sm:$0x1] %v321
    %467 = vst [vmem:[#allocation3 + $0x28] sm:$0x1] %v335
    %468 = vst [vmem:[#allocation3 + $0x30] sm:$0x1] %v337
    %469 = vst [vmem:[#allocation3 + $0x38] sm:$0x1] %v339
    %470 = vst [vmem:[#allocation3 + $0x40] sm:$0x1] %v363
    %471 = vst [vmem:[#allocation3 + $0x48] sm:$0x1] %v377
    %472 = vst [vmem:[#allocation3 + $0x50] sm:$0x1] %v385
    %473 = vst [vmem:[#allocation3 + $0x58] sm:$0x1] %v387
    %474 = vst [vmem:[#allocation3 + $0x60] sm:$0x1] %v370
    %475 = vst [vmem:[#allocation3 + $0x68] sm:$0x1] %v384
    %476 = vst [vmem:[#allocation3 + $0x70] sm:$0x1] %v386
    %477 = vst [vmem:[#allocation3 + $0x78] sm:$0x1] %v388
    %478 = vst [vmem:[#allocation3 + $0x80] sm:$0x1] %v412
    %479 = vst [vmem:[#allocation3 + $0x88] sm:$0x1] %v426
    %480 = vst [vmem:[#allocation3 + $0x90] sm:$0x1] %v434
    %481 = vst [vmem:[#allocation3 + $0x98] sm:$0x1] %v436
    %482 = vst [vmem:[#allocation3 + $0xa0] sm:$0x1] %v419
    %483 = vst [vmem:[#allocation3 + $0xa8] sm:$0x1] %v433
    %484 = vst [vmem:[#allocation3 + $0xb0] sm:$0x1] %v435
    %485 = vst [vmem:[#allocation3 + $0xb8] sm:$0x1] %v437
    %s486 = scalar_lea.vmem [#allocation5], 24
    %v487 = vld [vmem:[%s486] sm:$0xff]
    %v488 = vld [vmem:[%s486 + $0x8] sm:$0xff]
    %v489 = vld [vmem:[%s486 + $0x10] sm:$0xff]
    %s490 = scalar_lea.vmem [#allocation7], 64
    %v491 = vld [vmem:[%s490] sm:$0xf]
    %v492 = vld [vmem:[%s490 + $0x4] sm:$0xf]
    %v493 = vld [vmem:[%s490 + $0x8] sm:$0xf]
    %v494 = vld [vmem:[%s490 + $0xc] sm:$0xf]
    %v495 = vld [vmem:[%s490 + $0x10] sm:$0xf]
    %v496 = vld [vmem:[%s490 + $0x14] sm:$0xf]
    %v497 = vld [vmem:[%s490 + $0x18] sm:$0xf]
    %v498 = vld [vmem:[%s490 + $0x1c] sm:$0xf]
    %v499 = vld [vmem:[%s490 + $0x20] sm:$0xf]
    %v500 = vld [vmem:[%s490 + $0x24] sm:$0xf]
    %v501 = vld [vmem:[%s490 + $0x28] sm:$0xf]
    %v502 = vld [vmem:[%s490 + $0x2c] sm:$0xf]
    %v503 = vld [vmem:[%s490 + $0x30] sm:$0xf]
    %v504 = vld [vmem:[%s490 + $0x34] sm:$0xf]
    %v505 = vld [vmem:[%s490 + $0x38] sm:$0xf]
    %v506 = vld [vmem:[%s490 + $0x3c] sm:$0xf]
    %507 = vmax.xlane.f32.xlu0 %v487
    %v508 = vpop.xlane.xlu0 %507
    %509 = vmax.xlane.f32.xlu0 %v488
    %v510 = vpop.xlane.xlu0 %509
    %511 = vmax.xlane.f32.xlu0 %v489
    %v512 = vpop.xlane.xlu0 %511
    %v513 = vmax.f32 %v508, -1e+30
    %v514 = vmax.f32 %v510, -1e+30
    %v515 = vmax.f32 %v512, -1e+30
    %v516 = vsub.f32 -1e+30, %v513
    %v517 = vsub.f32 -1e+30, %v514
    %v518 = vsub.f32 -1e+30, %v515
    %v519 = vmul.f32 %v516, 1.442695
    %v520 = vpow.pop %v519
    %v521 = vmul.f32 %v517, 1.442695
    %v522 = vpow.pop %v521
    %v523 = vmul.f32 %v518, 1.442695
    %v524 = vpow.pop %v523
    %v525 = vmul.f32 %v520, 0.0
    %v526 = vmul.f32 %v522, 0.0
    %v527 = vmul.f32 %v524, 0.0
    %v528 = vsub.f32 %v487, %v513
    %v529 = vsub.f32 %v488, %v514
    %v530 = vsub.f32 %v489, %v515
    %v531 = vmul.f32 %v528, 1.442695
    %v532 = vpow.pop %v531
    %v533 = vmul.f32 %v529, 1.442695
    %v534 = vpow.pop %v533
    %v535 = vmul.f32 %v530, 1.442695
    %v536 = vpow.pop %v535
    %537 = vadd.xlane.f32.xlu0 %v532
    %v538 = vpop.xlane.xlu0 %537
    %539 = vadd.xlane.f32.xlu0 %v534
    %v540 = vpop.xlane.xlu0 %539
    %541 = vadd.xlane.f32.xlu0 %v536
    %v542 = vpop.xlane.xlu0 %541
    %v543 = vadd.f32 %v525, %v538
    %v544 = vadd.f32 %v526, %v540
    %v545 = vadd.f32 %v527, %v542
    %v546 = vpack.c.bf16 %v488, %v487
    %v547 = vpack.c.bf16 %v489, %v489
    %v548 = vunpack.c.l.bf16 %v546
    %v549 = vunpack.c.h.bf16 %v546
    %v550 = vunpack.c.l.bf16 %v547
    %v551 = vsub.f32 %v487, %v548
    %v552 = vsub.f32 %v488, %v549
    %v553 = vsub.f32 %v489, %v550
    %v554 = vpack.c.bf16 %v552, %v551
    %v555 = vpack.c.bf16 %v553, %v553
    %v572 = vunpack.c.l.b16 %v491
    %v573 = vunpack.c.l.b16 %v492
    %v574 = vunpack.c.l.b16 %v493
    %v575 = vunpack.c.l.b16 %v494
    %v576 = vunpack.c.l.b16 %v495
    %v577 = vunpack.c.l.b16 %v496
    %v578 = vunpack.c.l.b16 %v497
    %v579 = vunpack.c.l.b16 %v498
    %v580 = vunpack.c.l.b16 %v499
    %v581 = vunpack.c.l.b16 %v500
    %v582 = vunpack.c.l.b16 %v501
    %v583 = vunpack.c.l.b16 %v502
    %v584 = vunpack.c.l.b16 %v503
    %v585 = vunpack.c.l.b16 %v504
    %v586 = vunpack.c.l.b16 %v505
    %v587 = vunpack.c.l.b16 %v506
    %v588 = vpack.c.b16 %v573, %v572
    %v589 = vpack.c.b16 %v575, %v574
    %v590 = vpack.c.b16 %v577, %v576
    %v591 = vpack.c.b16 %v579, %v578
    %v592 = vpack.c.b16 %v581, %v580
    %v593 = vpack.c.b16 %v583, %v582
    %v594 = vpack.c.b16 %v585, %v584
    %v595 = vpack.c.b16 %v587, %v586
    %604 = vmatprep.subr.bf16.mxu0 0
    %605 = vmatpush1.bf16.msra.mxu0 %v588
    %606 = vmatprep.subr.bf16.mxu0 0
    %607 = vmatpush1.bf16.msra.mxu0 %v589
    %608 = vmatprep.subr.bf16.mxu0 0
    %609 = vmatpush1.bf16.msra.mxu0 %v590
    %610 = vmatprep.subr.bf16.mxu0 0
    %611 = vmatpush1.bf16.msra.mxu0 %v591
    %612 = vmatprep.subr.bf16.mxu0 0
    %613 = vmatpush1.bf16.msra.mxu0 %v592
    %614 = vmatprep.subr.bf16.mxu0 0
    %615 = vmatpush1.bf16.msra.mxu0 %v593
    %616 = vmatprep.subr.bf16.mxu0 0
    %617 = vmatpush1.bf16.msra.mxu0 %v594
    %618 = vmatprep.subr.bf16.mxu0 0
    %619 = vmatpush1.bf16.msra.mxu0 %v595
    %620 = vmatprep.subr.bf16.mxu0 0
    %621 = vmatpush1.bf16.msra.mxu0 0
    %622 = vmatprep.subr.bf16.mxu0 0
    %623 = vmatpush1.bf16.msra.mxu0 0
    %624 = vmatprep.subr.bf16.mxu0 0
    %625 = vmatpush1.bf16.msra.mxu0 0
    %626 = vmatprep.subr.bf16.mxu0 0
    %627 = vmatpush1.bf16.msra.mxu0 0
    %628 = vmatprep.subr.bf16.mxu0 0
    %629 = vmatpush1.bf16.msra.mxu0 0
    %630 = vmatprep.subr.bf16.mxu0 0
    %631 = vmatpush1.bf16.msra.mxu0 0
    %632 = vmatprep.subr.bf16.mxu0 0
    %633 = vmatpush1.bf16.msra.mxu0 0
    %634 = vmatprep.subr.bf16.mxu0 0
    %635 = vmatpush1.bf16.msra.mxu0 0
    %636 = vmatprep.mubr.bf16.mxu0 0
    %637 = vmatmul.mubr.bf16.gmra.mrb[0].mxu0 %v554
    %v638 = vpop.f32.mrb[0].mxu0
    %v639 = vadd.f32 0.0, %v638
    %v640 = vpop.f32.mrb[0].mxu0
    %v641 = vpop.f32.mrb[0].mxu0
    %v642 = vadd.f32 0.0, %v641
    %v643 = vpop.f32.mrb[0].mxu0
    %644 = vmatprep.mubr.bf16.mxu0 0
    %645 = vmatmul.mubr.bf16.gmra.mrb[0].mxu0 %v555
    %v646 = vpop.f32.mrb[0].mxu0
    %v647 = vadd.f32 0.0, %v646
    %v648 = vpop.f32.mrb[0].mxu0
    %v649 = vpop.f32.mrb[0].mxu0
    %v650 = vpop.f32.mrb[0].mxu0
    %651 = vdwg.mxu0
    %652 = vmatprep.subr.bf16.mxu0 0
    %653 = vmatpush1.bf16.msra.mxu0 %v588
    %654 = vmatprep.subr.bf16.mxu0 0
    %655 = vmatpush1.bf16.msra.mxu0 %v589
    %656 = vmatprep.subr.bf16.mxu0 0
    %657 = vmatpush1.bf16.msra.mxu0 %v590
    %658 = vmatprep.subr.bf16.mxu0 0
    %659 = vmatpush1.bf16.msra.mxu0 %v591
    %660 = vmatprep.subr.bf16.mxu0 0
    %661 = vmatpush1.bf16.msra.mxu0 %v592
    %662 = vmatprep.subr.bf16.mxu0 0
    %663 = vmatpush1.bf16.msra.mxu0 %v593
    %664 = vmatprep.subr.bf16.mxu0 0
    %665 = vmatpush1.bf16.msra.mxu0 %v594
    %666 = vmatprep.subr.bf16.mxu0 0
    %667 = vmatpush1.bf16.msra.mxu0 %v595
    %668 = vmatprep.subr.bf16.mxu0 0
    %669 = vmatpush1.bf16.msra.mxu0 0
    %670 = vmatprep.subr.bf16.mxu0 0
    %671 = vmatpush1.bf16.msra.mxu0 0
    %672 = vmatprep.subr.bf16.mxu0 0
    %673 = vmatpush1.bf16.msra.mxu0 0
    %674 = vmatprep.subr.bf16.mxu0 0
    %675 = vmatpush1.bf16.msra.mxu0 0
    %676 = vmatprep.subr.bf16.mxu0 0
    %677 = vmatpush1.bf16.msra.mxu0 0
    %678 = vmatprep.subr.bf16.mxu0 0
    %679 = vmatpush1.bf16.msra.mxu0 0
    %680 = vmatprep.subr.bf16.mxu0 0
    %681 = vmatpush1.bf16.msra.mxu0 0
    %682 = vmatprep.subr.bf16.mxu0 0
    %683 = vmatpush1.bf16.msra.mxu0 0
    %684 = vmatprep.mubr.bf16.mxu0 0
    %685 = vmatmul.mubr.bf16.gmra.mrb[0].mxu0 %v546
    %v686 = vpop.f32.mrb[0].mxu0
    %v687 = vadd.f32 %v639, %v686
    %v688 = vpop.f32.mrb[0].mxu0
    %v689 = vpop.f32.mrb[0].mxu0
    %v690 = vadd.f32 %v642, %v689
    %v691 = vpop.f32.mrb[0].mxu0
    %692 = vmatprep.mubr.bf16.mxu0 0
    %693 = vmatmul.mubr.bf16.gmra.mrb[0].mxu0 %v547
    %v694 = vpop.f32.mrb[0].mxu0
    %v695 = vadd.f32 %v647, %v694
    %v696 = vpop.f32.mrb[0].mxu0
    %v697 = vpop.f32.mrb[0].mxu0
    %v698 = vpop.f32.mrb[0].mxu0
    %699 = vdwg.mxu0
    %v700 = vlog2.pop %v543
    %v701 = vmul.f32 %v700, 0.6931472
    %v702 = vlog2.pop %v544
    %v703 = vmul.f32 %v702, 0.6931472
    %v704 = vlog2.pop %v545
    %v705 = vmul.f32 %v704, 0.6931472
    %v706 = vadd.f32 %v513, %v701
    %v707 = vadd.f32 %v514, %v703
    %v708 = vadd.f32 %v515, %v705
    %v709 = vsub.f32 %v687, %v706
    %v710 = vsub.f32 %v690, %v707
    %v711 = vsub.f32 %v695, %v708
    %v715 = vcombine.high %v709, %v709
    %v717 = vunpack.c.l.s4 1966171168
    %v718 = vunpack.c.0.s8 %v717
    %v719 = vlaneseq
    %v720 = vshrl.u32 %v719, 7
    %v721 = vsub.s32 %v718, %v720
    %v722 = vrot.slane %v709, %v721
    %v724 = vunpack.c.l.s4 1966171168
    %v725 = vunpack.c.0.s8 %v724
    %v726 = vlaneseq
    %v727 = vshrl.u32 %v726, 7
    %v728 = vsub.s32 %v725, %v727
    %v729 = vrot.slane %v715, %v728
    %v730 = vcombine.high %v722, %v722
    %v731 = vcombine.high %v729, %v729
    %v733 = vunpack.c.l.s4 1966171168
    %v734 = vunpack.c.0.s8 %v733
    %v735 = vlaneseq
    %v736 = vshrl.u32 %v735, 7
    %v737 = vsub.s32 %v734, %v736
    %v738 = vrot.slane %v722, %v737
    %v740 = vunpack.c.l.s4 1966171168
    %v741 = vunpack.c.0.s8 %v740
    %v742 = vlaneseq
    %v743 = vshrl.u32 %v742, 7
    %v744 = vsub.s32 %v741, %v743
    %v745 = vrot.slane %v729, %v744
    %v747 = vunpack.c.l.s4 1966171168
    %v748 = vunpack.c.0.s8 %v747
    %v749 = vlaneseq
    %v750 = vshrl.u32 %v749, 7
    %v751 = vsub.s32 %v748, %v750
    %v752 = vrot.slane %v730, %v751
    %v754 = vunpack.c.l.s4 1966171168
    %v755 = vunpack.c.0.s8 %v754
    %v756 = vlaneseq
    %v757 = vshrl.u32 %v756, 7
    %v758 = vsub.s32 %v755, %v757
    %v759 = vrot.slane %v731, %v758
    %v760 = vcombine.high %v738, %v738
    %v761 = vcombine.high %v745, %v745
    %v762 = vcombine.high %v752, %v752
    %v763 = vcombine.high %v759, %v759
    %v764 = vcombine.high %v710, %v710
    %v766 = vunpack.c.l.s4 1966171168
    %v767 = vunpack.c.0.s8 %v766
    %v768 = vlaneseq
    %v769 = vshrl.u32 %v768, 7
    %v770 = vsub.s32 %v767, %v769
    %v771 = vrot.slane %v710, %v770
    %v773 = vunpack.c.l.s4 1966171168
    %v774 = vunpack.c.0.s8 %v773
    %v775 = vlaneseq
    %v776 = vshrl.u32 %v775, 7
    %v777 = vsub.s32 %v774, %v776
    %v778 = vrot.slane %v764, %v777
    %v779 = vcombine.high %v771, %v771
    %v780 = vcombine.high %v778, %v778
    %v782 = vunpack.c.l.s4 1966171168
    %v783 = vunpack.c.0.s8 %v782
    %v784 = vlaneseq
    %v785 = vshrl.u32 %v784, 7
    %v786 = vsub.s32 %v783, %v785
    %v787 = vrot.slane %v771, %v786
    %v789 = vunpack.c.l.s4 1966171168
    %v790 = vunpack.c.0.s8 %v789
    %v791 = vlaneseq
    %v792 = vshrl.u32 %v791, 7
    %v793 = vsub.s32 %v790, %v792
    %v794 = vrot.slane %v778, %v793
    %v796 = vunpack.c.l.s4 1966171168
    %v797 = vunpack.c.0.s8 %v796
    %v798 = vlaneseq
    %v799 = vshrl.u32 %v798, 7
    %v800 = vsub.s32 %v797, %v799
    %v801 = vrot.slane %v779, %v800
    %v803 = vunpack.c.l.s4 1966171168
    %v804 = vunpack.c.0.s8 %v803
    %v805 = vlaneseq
    %v806 = vshrl.u32 %v805, 7
    %v807 = vsub.s32 %v804, %v806
    %v808 = vrot.slane %v780, %v807
    %v809 = vcombine.high %v787, %v787
    %v810 = vcombine.high %v794, %v794
    %v811 = vcombine.high %v801, %v801
    %v812 = vcombine.high %v808, %v808
    %v813 = vcombine.high %v711, %v711
    %v815 = vunpack.c.l.s4 1966171168
    %v816 = vunpack.c.0.s8 %v815
    %v817 = vlaneseq
    %v818 = vshrl.u32 %v817, 7
    %v819 = vsub.s32 %v816, %v818
    %v820 = vrot.slane %v711, %v819
    %v822 = vunpack.c.l.s4 1966171168
    %v823 = vunpack.c.0.s8 %v822
    %v824 = vlaneseq
    %v825 = vshrl.u32 %v824, 7
    %v826 = vsub.s32 %v823, %v825
    %v827 = vrot.slane %v813, %v826
    %v828 = vcombine.high %v820, %v820
    %v829 = vcombine.high %v827, %v827
    %v831 = vunpack.c.l.s4 1966171168
    %v832 = vunpack.c.0.s8 %v831
    %v833 = vlaneseq
    %v834 = vshrl.u32 %v833, 7
    %v835 = vsub.s32 %v832, %v834
    %v836 = vrot.slane %v820, %v835
    %v838 = vunpack.c.l.s4 1966171168
    %v839 = vunpack.c.0.s8 %v838
    %v840 = vlaneseq
    %v841 = vshrl.u32 %v840, 7
    %v842 = vsub.s32 %v839, %v841
    %v843 = vrot.slane %v827, %v842
    %v845 = vunpack.c.l.s4 1966171168
    %v846 = vunpack.c.0.s8 %v845
    %v847 = vlaneseq
    %v848 = vshrl.u32 %v847, 7
    %v849 = vsub.s32 %v846, %v848
    %v850 = vrot.slane %v828, %v849
    %v852 = vunpack.c.l.s4 1966171168
    %v853 = vunpack.c.0.s8 %v852
    %v854 = vlaneseq
    %v855 = vshrl.u32 %v854, 7
    %v856 = vsub.s32 %v853, %v855
    %v857 = vrot.slane %v829, %v856
    %v858 = vcombine.high %v836, %v836
    %v859 = vcombine.high %v843, %v843
    %v860 = vcombine.high %v850, %v850
    %v861 = vcombine.high %v857, %v857
    %886 = vst [vmem:[#allocation3 + $0x1] sm:$0x1] %v738
    %887 = vst [vmem:[#allocation3 + $0x9] sm:$0x1] %v752
    %888 = vst [vmem:[#allocation3 + $0x11] sm:$0x1] %v760
    %889 = vst [vmem:[#allocation3 + $0x19] sm:$0x1] %v762
    %890 = vst [vmem:[#allocation3 + $0x21] sm:$0x1] %v745
    %891 = vst [vmem:[#allocation3 + $0x29] sm:$0x1] %v759
    %892 = vst [vmem:[#allocation3 + $0x31] sm:$0x1] %v761
    %893 = vst [vmem:[#allocation3 + $0x39] sm:$0x1] %v763
    %894 = vst [vmem:[#allocation3 + $0x41] sm:$0x1] %v787
    %895 = vst [vmem:[#allocation3 + $0x49] sm:$0x1] %v801
    %896 = vst [vmem:[#allocation3 + $0x51] sm:$0x1] %v809
    %897 = vst [vmem:[#allocation3 + $0x59] sm:$0x1] %v811
    %898 = vst [vmem:[#allocation3 + $0x61] sm:$0x1] %v794
    %899 = vst [vmem:[#allocation3 + $0x69] sm:$0x1] %v808
    %900 = vst [vmem:[#allocation3 + $0x71] sm:$0x1] %v810
    %901 = vst [vmem:[#allocation3 + $0x79] sm:$0x1] %v812
    %902 = vst [vmem:[#allocation3 + $0x81] sm:$0x1] %v836
    %903 = vst [vmem:[#allocation3 + $0x89] sm:$0x1] %v850
    %904 = vst [vmem:[#allocation3 + $0x91] sm:$0x1] %v858
    %905 = vst [vmem:[#allocation3 + $0x99] sm:$0x1] %v860
    %906 = vst [vmem:[#allocation3 + $0xa1] sm:$0x1] %v843
    %907 = vst [vmem:[#allocation3 + $0xa9] sm:$0x1] %v857
    %908 = vst [vmem:[#allocation3 + $0xb1] sm:$0x1] %v859
    %909 = vst [vmem:[#allocation3 + $0xb9] sm:$0x1] %v861
    %s910 = scalar_lea.vmem [#allocation5], 48
    %v911 = vld [vmem:[%s910] sm:$0xff]
    %v912 = vld [vmem:[%s910 + $0x8] sm:$0xff]
    %v913 = vld [vmem:[%s910 + $0x10] sm:$0xff]
    %s914 = scalar_lea.vmem [#allocation7], 128
    %v915 = vld [vmem:[%s914] sm:$0xf]
    %v916 = vld [vmem:[%s914 + $0x4] sm:$0xf]
    %v917 = vld [vmem:[%s914 + $0x8] sm:$0xf]
    %v918 = vld [vmem:[%s914 + $0xc] sm:$0xf]
    %v919 = vld [vmem:[%s914 + $0x10] sm:$0xf]
    %v920 = vld [vmem:[%s914 + $0x14] sm:$0xf]
    %v921 = vld [vmem:[%s914 + $0x18] sm:$0xf]
    %v922 = vld [vmem:[%s914 + $0x1c] sm:$0xf]
    %v923 = vld [vmem:[%s914 + $0x20] sm:$0xf]
    %v924 = vld [vmem:[%s914 + $0x24] sm:$0xf]
    %v925 = vld [vmem:[%s914 + $0x28] sm:$0xf]
    %v926 = vld [vmem:[%s914 + $0x2c] sm:$0xf]
    %v927 = vld [vmem:[%s914 + $0x30] sm:$0xf]
    %v928 = vld [vmem:[%s914 + $0x34] sm:$0xf]
    %v929 = vld [vmem:[%s914 + $0x38] sm:$0xf]
    %v930 = vld [vmem:[%s914 + $0x3c] sm:$0xf]
    %931 = vmax.xlane.f32.xlu0 %v911
    %v932 = vpop.xlane.xlu0 %931
    %933 = vmax.xlane.f32.xlu0 %v912
    %v934 = vpop.xlane.xlu0 %933
    %935 = vmax.xlane.f32.xlu0 %v913
    %v936 = vpop.xlane.xlu0 %935
    %v937 = vmax.f32 %v932, -1e+30
    %v938 = vmax.f32 %v934, -1e+30
    %v939 = vmax.f32 %v936, -1e+30
    %v940 = vsub.f32 -1e+30, %v937
    %v941 = vsub.f32 -1e+30, %v938
    %v942 = vsub.f32 -1e+30, %v939
    %v943 = vmul.f32 %v940, 1.442695
    %v944 = vpow.pop %v943
    %v945 = vmul.f32 %v941, 1.442695
    %v946 = vpow.pop %v945
    %v947 = vmul.f32 %v942, 1.442695
    %v948 = vpow.pop %v947
    %v949 = vmul.f32 %v944, 0.0
    %v950 = vmul.f32 %v946, 0.0
    %v951 = vmul.f32 %v948, 0.0
    %v952 = vsub.f32 %v911, %v937
    %v953 = vsub.f32 %v912, %v938
    %v954 = vsub.f32 %v913, %v939
    %v955 = vmul.f32 %v952, 1.442695
    %v956 = vpow.pop %v955
    %v957 = vmul.f32 %v953, 1.442695
    %v958 = vpow.pop %v957
    %v959 = vmul.f32 %v954, 1.442695
    %v960 = vpow.pop %v959
    %961 = vadd.xlane.f32.xlu0 %v956
    %v962 = vpop.xlane.xlu0 %961
    %963 = vadd.xlane.f32.xlu0 %v958
    %v964 = vpop.xlane.xlu0 %963
    %965 = vadd.xlane.f32.xlu0 %v960
    %v966 = vpop.xlane.xlu0 %965
    %v967 = vadd.f32 %v949, %v962
    %v968 = vadd.f32 %v950, %v964
    %v969 = vadd.f32 %v951, %v966
    %v970 = vpack.c.bf16 %v912, %v911
    %v971 = vpack.c.bf16 %v913, %v913
    %v972 = vunpack.c.l.bf16 %v970
    %v973 = vunpack.c.h.bf16 %v970
    %v974 = vunpack.c.l.bf16 %v971
    %v975 = vsub.f32 %v911, %v972
    %v976 = vsub.f32 %v912, %v973
    %v977 = vsub.f32 %v913, %v974
    %v978 = vpack.c.bf16 %v976, %v975
    %v979 = vpack.c.bf16 %v977, %v977
    %v996 = vunpack.c.l.b16 %v915
    %v997 = vunpack.c.l.b16 %v916
    %v998 = vunpack.c.l.b16 %v917
    %v999 = vunpack.c.l.b16 %v918
    %v1000 = vunpack.c.l.b16 %v919
    %v1001 = vunpack.c.l.b16 %v920
    %v1002 = vunpack.c.l.b16 %v921
    %v1003 = vunpack.c.l.b16 %v922
    %v1004 = vunpack.c.l.b16 %v923
    %v1005 = vunpack.c.l.b16 %v924
    %v1006 = vunpack.c.l.b16 %v925
    %v1007 = vunpack.c.l.b16 %v926
    %v1008 = vunpack.c.l.b16 %v927
    %v1009 = vunpack.c.l.b16 %v928
    %v1010 = vunpack.c.l.b16 %v929
    %v1011 = vunpack.c.l.b16 %v930
    %v1012 = vpack.c.b16 %v997, %v996
    %v1013 = vpack.c.b16 %v999, %v998
    %v1014 = vpack.c.b16 %v1001, %v1000
    %v1015 = vpack.c.b16 %v1003, %v1002
    %v1016 = vpack.c.b16 %v1005, %v1004
    %v1017 = vpack.c.b16 %v1007, %v1006
    %v1018 = vpack.c.b16 %v1009, %v1008
    %v1019 = vpack.c.b16 %v1011, %v1010
    %1028 = vmatprep.subr.bf16.mxu0 0
    %1029 = vmatpush1.bf16.msra.mxu0 %v1012
    %1030 = vmatprep.subr.bf16.mxu0 0
    %1031 = vmatpush1.bf16.msra.mxu0 %v1013
    %1032 = vmatprep.subr.bf16.mxu0 0
    %1033 = vmatpush1.bf16.msra.mxu0 %v1014
    %1034 = vmatprep.subr.bf16.mxu0 0
    %1035 = vmatpush1.bf16.msra.mxu0 %v1015
    %1036 = vmatprep.subr.bf16.mxu0 0
    %1037 = vmatpush1.bf16.msra.mxu0 %v1016
    %1038 = vmatprep.subr.bf16.mxu0 0
    %1039 = vmatpush1.bf16.msra.mxu0 %v1017
    %1040 = vmatprep.subr.bf16.mxu0 0
    %1041 = vmatpush1.bf16.msra.mxu0 %v1018
    %1042 = vmatprep.subr.bf16.mxu0 0
    %1043 = vmatpush1.bf16.msra.mxu0 %v1019
    %1044 = vmatprep.subr.bf16.mxu0 0
    %1045 = vmatpush1.bf16.msra.mxu0 0
    %1046 = vmatprep.subr.bf16.mxu0 0
    %1047 = vmatpush1.bf16.msra.mxu0 0
    %1048 = vmatprep.subr.bf16.mxu0 0
    %1049 = vmatpush1.bf16.msra.mxu0 0
    %1050 = vmatprep.subr.bf16.mxu0 0
    %1051 = vmatpush1.bf16.msra.mxu0 0
    %1052 = vmatprep.subr.bf16.mxu0 0
    %1053 = vmatpush1.bf16.msra.mxu0 0
    %1054 = vmatprep.subr.bf16.mxu0 0
    %1055 = vmatpush1.bf16.msra.mxu0 0
    %1056 = vmatprep.subr.bf16.mxu0 0
    %1057 = vmatpush1.bf16.msra.mxu0 0
    %1058 = vmatprep.subr.bf16.mxu0 0
    %1059 = vmatpush1.bf16.msra.mxu0 0
    %1060 = vmatprep.mubr.bf16.mxu0 0
    %1061 = vmatmul.mubr.bf16.gmra.mrb[0].mxu0 %v978
    %v1062 = vpop.f32.mrb[0].mxu0
    %v1063 = vadd.f32 0.0, %v1062
    %v1064 = vpop.f32.mrb[0].mxu0
    %v1065 = vpop.f32.mrb[0].mxu0
    %v1066 = vadd.f32 0.0, %v1065
    %v1067 = vpop.f32.mrb[0].mxu0
    %1068 = vmatprep.mubr.bf16.mxu0 0
    %1069 = vmatmul.mubr.bf16.gmra.mrb[0].mxu0 %v979
    %v1070 = vpop.f32.mrb[0].mxu0
    %v1071 = vadd.f32 0.0, %v1070
    %v1072 = vpop.f32.mrb[0].mxu0
    %v1073 = vpop.f32.mrb[0].mxu0
    %v1074 = vpop.f32.mrb[0].mxu0
    %1075 = vdwg.mxu0
    %1076 = vmatprep.subr.bf16.mxu0 0
    %1077 = vmatpush1.bf16.msra.mxu0 %v1012
    %1078 = vmatprep.subr.bf16.mxu0 0
    %1079 = vmatpush1.bf16.msra.mxu0 %v1013
    %1080 = vmatprep.subr.bf16.mxu0 0
    %1081 = vmatpush1.bf16.msra.mxu0 %v1014
    %1082 = vmatprep.subr.bf16.mxu0 0
    %1083 = vmatpush1.bf16.msra.mxu0 %v1015
    %1084 = vmatprep.subr.bf16.mxu0 0
    %1085 = vmatpush1.bf16.msra.mxu0 %v1016
    %1086 = vmatprep.subr.bf16.mxu0 0
    %1087 = vmatpush1.bf16.msra.mxu0 %v1017
    %1088 = vmatprep.subr.bf16.mxu0 0
    %1089 = vmatpush1.bf16.msra.mxu0 %v1018
    %1090 = vmatprep.subr.bf16.mxu0 0
    %1091 = vmatpush1.bf16.msra.mxu0 %v1019
    %1092 = vmatprep.subr.bf16.mxu0 0
    %1093 = vmatpush1.bf16.msra.mxu0 0
    %1094 = vmatprep.subr.bf16.mxu0 0
    %1095 = vmatpush1.bf16.msra.mxu0 0
    %1096 = vmatprep.subr.bf16.mxu0 0
    %1097 = vmatpush1.bf16.msra.mxu0 0
    %1098 = vmatprep.subr.bf16.mxu0 0
    %1099 = vmatpush1.bf16.msra.mxu0 0
    %1100 = vmatprep.subr.bf16.mxu0 0
    %1101 = vmatpush1.bf16.msra.mxu0 0
    %1102 = vmatprep.subr.bf16.mxu0 0
    %1103 = vmatpush1.bf16.msra.mxu0 0
    %1104 = vmatprep.subr.bf16.mxu0 0
    %1105 = vmatpush1.bf16.msra.mxu0 0
    %1106 = vmatprep.subr.bf16.mxu0 0
    %1107 = vmatpush1.bf16.msra.mxu0 0
    %1108 = vmatprep.mubr.bf16.mxu0 0
    %1109 = vmatmul.mubr.bf16.gmra.mrb[0].mxu0 %v970
    %v1110 = vpop.f32.mrb[0].mxu0
    %v1111 = vadd.f32 %v1063, %v1110
    %v1112 = vpop.f32.mrb[0].mxu0
    %v1113 = vpop.f32.mrb[0].mxu0
    %v1114 = vadd.f32 %v1066, %v1113
    %v1115 = vpop.f32.mrb[0].mxu0
    %1116 = vmatprep.mubr.bf16.mxu0 0
    %1117 = vmatmul.mubr.bf16.gmra.mrb[0].mxu0 %v971
    %v1118 = vpop.f32.mrb[0].mxu0
    %v1119 = vadd.f32 %v1071, %v1118
    %v1120 = vpop.f32.mrb[0].mxu0
    %v1121 = vpop.f32.mrb[0].mxu0
    %v1122 = vpop.f32.mrb[0].mxu0
    %1123 = vdwg.mxu0
    %v1124 = vlog2.pop %v967
    %v1125 = vmul.f32 %v1124, 0.6931472
    %v1126 = vlog2.pop %v968
    %v1127 = vmul.f32 %v1126, 0.6931472
    %v1128 = vlog2.pop %v969
    %v1129 = vmul.f32 %v1128, 0.6931472
    %v1130 = vadd.f32 %v937, %v1125
    %v1131 = vadd.f32 %v938, %v1127
    %v1132 = vadd.f32 %v939, %v1129
    %v1133 = vsub.f32 %v1111, %v1130
    %v1134 = vsub.f32 %v1114, %v1131
    %v1135 = vsub.f32 %v1119, %v1132
    %v1139 = vcombine.high %v1133, %v1133
    %v1141 = vunpack.c.l.s4 1966171168
    %v1142 = vunpack.c.0.s8 %v1141
    %v1143 = vlaneseq
    %v1144 = vshrl.u32 %v1143, 7
    %v1145 = vsub.s32 %v1142, %v1144
    %v1146 = vrot.slane %v1133, %v1145
    %v1148 = vunpack.c.l.s4 1966171168
    %v1149 = vunpack.c.0.s8 %v1148
    %v1150 = vlaneseq
    %v1151 = vshrl.u32 %v1150, 7
    %v1152 = vsub.s32 %v1149, %v1151
    %v1153 = vrot.slane %v1139, %v1152
    %v1154 = vcombine.high %v1146, %v1146
    %v1155 = vcombine.high %v1153, %v1153
    %v1157 = vunpack.c.l.s4 1966171168
    %v1158 = vunpack.c.0.s8 %v1157
    %v1159 = vlaneseq
    %v1160 = vshrl.u32 %v1159, 7
    %v1161 = vsub.s32 %v1158, %v1160
    %v1162 = vrot.slane %v1146, %v1161
    %v1164 = vunpack.c.l.s4 1966171168
    %v1165 = vunpack.c.0.s8 %v1164
    %v1166 = vlaneseq
    %v1167 = vshrl.u32 %v1166, 7
    %v1168 = vsub.s32 %v1165, %v1167
    %v1169 = vrot.slane %v1153, %v1168
    %v1171 = vunpack.c.l.s4 1966171168
    %v1172 = vunpack.c.0.s8 %v1171
    %v1173 = vlaneseq
    %v1174 = vshrl.u32 %v1173, 7
    %v1175 = vsub.s32 %v1172, %v1174
    %v1176 = vrot.slane %v1154, %v1175
    %v1178 = vunpack.c.l.s4 1966171168
    %v1179 = vunpack.c.0.s8 %v1178
    %v1180 = vlaneseq
    %v1181 = vshrl.u32 %v1180, 7
    %v1182 = vsub.s32 %v1179, %v1181
    %v1183 = vrot.slane %v1155, %v1182
    %v1184 = vcombine.high %v1162, %v1162
    %v1185 = vcombine.high %v1169, %v1169
    %v1186 = vcombine.high %v1176, %v1176
    %v1187 = vcombine.high %v1183, %v1183
    %v1188 = vcombine.high %v1134, %v1134
    %v1190 = vunpack.c.l.s4 1966171168
    %v1191 = vunpack.c.0.s8 %v1190
    %v1192 = vlaneseq
    %v1193 = vshrl.u32 %v1192, 7
    %v1194 = vsub.s32 %v1191, %v1193
    %v1195 = vrot.slane %v1134, %v1194
    %v1197 = vunpack.c.l.s4 1966171168
    %v1198 = vunpack.c.0.s8 %v1197
    %v1199 = vlaneseq
    %v1200 = vshrl.u32 %v1199, 7
    %v1201 = vsub.s32 %v1198, %v1200
    %v1202 = vrot.slane %v1188, %v1201
    %v1203 = vcombine.high %v1195, %v1195
    %v1204 = vcombine.high %v1202, %v1202
    %v1206 = vunpack.c.l.s4 1966171168
    %v1207 = vunpack.c.0.s8 %v1206
    %v1208 = vlaneseq
    %v1209 = vshrl.u32 %v1208, 7
    %v1210 = vsub.s32 %v1207, %v1209
    %v1211 = vrot.slane %v1195, %v1210
    %v1213 = vunpack.c.l.s4 1966171168
    %v1214 = vunpack.c.0.s8 %v1213
    %v1215 = vlaneseq
    %v1216 = vshrl.u32 %v1215, 7
    %v1217 = vsub.s32 %v1214, %v1216
    %v1218 = vrot.slane %v1202, %v1217
    %v1220 = vunpack.c.l.s4 1966171168
    %v1221 = vunpack.c.0.s8 %v1220
    %v1222 = vlaneseq
    %v1223 = vshrl.u32 %v1222, 7
    %v1224 = vsub.s32 %v1221, %v1223
    %v1225 = vrot.slane %v1203, %v1224
    %v1227 = vunpack.c.l.s4 1966171168
    %v1228 = vunpack.c.0.s8 %v1227
    %v1229 = vlaneseq
    %v1230 = vshrl.u32 %v1229, 7
    %v1231 = vsub.s32 %v1228, %v1230
    %v1232 = vrot.slane %v1204, %v1231
    %v1233 = vcombine.high %v1211, %v1211
    %v1234 = vcombine.high %v1218, %v1218
    %v1235 = vcombine.high %v1225, %v1225
    %v1236 = vcombine.high %v1232, %v1232
    %v1237 = vcombine.high %v1135, %v1135
    %v1239 = vunpack.c.l.s4 1966171168
    %v1240 = vunpack.c.0.s8 %v1239
    %v1241 = vlaneseq
    %v1242 = vshrl.u32 %v1241, 7
    %v1243 = vsub.s32 %v1240, %v1242
    %v1244 = vrot.slane %v1135, %v1243
    %v1246 = vunpack.c.l.s4 1966171168
    %v1247 = vunpack.c.0.s8 %v1246
    %v1248 = vlaneseq
    %v1249 = vshrl.u32 %v1248, 7
    %v1250 = vsub.s32 %v1247, %v1249
    %v1251 = vrot.slane %v1237, %v1250
    %v1252 = vcombine.high %v1244, %v1244
    %v1253 = vcombine.high %v1251, %v1251
    %v1255 = vunpack.c.l.s4 1966171168
    %v1256 = vunpack.c.0.s8 %v1255
    %v1257 = vlaneseq
    %v1258 = vshrl.u32 %v1257, 7
    %v1259 = vsub.s32 %v1256, %v1258
    %v1260 = vrot.slane %v1244, %v1259
    %v1262 = vunpack.c.l.s4 1966171168
    %v1263 = vunpack.c.0.s8 %v1262
    %v1264 = vlaneseq
    %v1265 = vshrl.u32 %v1264, 7
    %v1266 = vsub.s32 %v1263, %v1265
    %v1267 = vrot.slane %v1251, %v1266
    %v1269 = vunpack.c.l.s4 1966171168
    %v1270 = vunpack.c.0.s8 %v1269
    %v1271 = vlaneseq
    %v1272 = vshrl.u32 %v1271, 7
    %v1273 = vsub.s32 %v1270, %v1272
    %v1274 = vrot.slane %v1252, %v1273
    %v1276 = vunpack.c.l.s4 1966171168
    %v1277 = vunpack.c.0.s8 %v1276
    %v1278 = vlaneseq
    %v1279 = vshrl.u32 %v1278, 7
    %v1280 = vsub.s32 %v1277, %v1279
    %v1281 = vrot.slane %v1253, %v1280
    %v1282 = vcombine.high %v1260, %v1260
    %v1283 = vcombine.high %v1267, %v1267
    %v1284 = vcombine.high %v1274, %v1274
    %v1285 = vcombine.high %v1281, %v1281
    %1310 = vst [vmem:[#allocation3 + $0x2] sm:$0x1] %v1162
    %1311 = vst [vmem:[#allocation3 + $0xa] sm:$0x1] %v1176
    %1312 = vst [vmem:[#allocation3 + $0x12] sm:$0x1] %v1184
    %1313 = vst [vmem:[#allocation3 + $0x1a] sm:$0x1] %v1186
    %1314 = vst [vmem:[#allocation3 + $0x22] sm:$0x1] %v1169
    %1315 = vst [vmem:[#allocation3 + $0x2a] sm:$0x1] %v1183
    %1316 = vst [vmem:[#allocation3 + $0x32] sm:$0x1] %v1185
    %1317 = vst [vmem:[#allocation3 + $0x3a] sm:$0x1] %v1187
    %1318 = vst [vmem:[#allocation3 + $0x42] sm:$0x1] %v1211
    %1319 = vst [vmem:[#allocation3 + $0x4a] sm:$0x1] %v1225
    %1320 = vst [vmem:[#allocation3 + $0x52] sm:$0x1] %v1233
    %1321 = vst [vmem:[#allocation3 + $0x5a] sm:$0x1] %v1235
    %1322 = vst [vmem:[#allocation3 + $0x62] sm:$0x1] %v1218
    %1323 = vst [vmem:[#allocation3 + $0x6a] sm:$0x1] %v1232
    %1324 = vst [vmem:[#allocation3 + $0x72] sm:$0x1] %v1234
    %1325 = vst [vmem:[#allocation3 + $0x7a] sm:$0x1] %v1236
    %1326 = vst [vmem:[#allocation3 + $0x82] sm:$0x1] %v1260
    %1327 = vst [vmem:[#allocation3 + $0x8a] sm:$0x1] %v1274
    %1328 = vst [vmem:[#allocation3 + $0x92] sm:$0x1] %v1282
    %1329 = vst [vmem:[#allocation3 + $0x9a] sm:$0x1] %v1284
    %1330 = vst [vmem:[#allocation3 + $0xa2] sm:$0x1] %v1267
    %1331 = vst [vmem:[#allocation3 + $0xaa] sm:$0x1] %v1281
    %1332 = vst [vmem:[#allocation3 + $0xb2] sm:$0x1] %v1283
    %1333 = vst [vmem:[#allocation3 + $0xba] sm:$0x1] %v1285
    %s1334 = scalar_lea.vmem [#allocation5], 72
    %v1335 = vld [vmem:[%s1334] sm:$0xff]
    %v1336 = vld [vmem:[%s1334 + $0x8] sm:$0xff]
    %v1337 = vld [vmem:[%s1334 + $0x10] sm:$0xff]
    %s1338 = scalar_lea.vmem [#allocation7], 192
    %v1339 = vld [vmem:[%s1338] sm:$0xf]
    %v1340 = vld [vmem:[%s1338 + $0x4] sm:$0xf]
    %v1341 = vld [vmem:[%s1338 + $0x8] sm:$0xf]
    %v1342 = vld [vmem:[%s1338 + $0xc] sm:$0xf]
    %v1343 = vld [vmem:[%s1338 + $0x10] sm:$0xf]
    %v1344 = vld [vmem:[%s1338 + $0x14] sm:$0xf]
    %v1345 = vld [vmem:[%s1338 + $0x18] sm:$0xf]
    %v1346 = vld [vmem:[%s1338 + $0x1c] sm:$0xf]
    %v1347 = vld [vmem:[%s1338 + $0x20] sm:$0xf]
    %v1348 = vld [vmem:[%s1338 + $0x24] sm:$0xf]
    %v1349 = vld [vmem:[%s1338 + $0x28] sm:$0xf]
    %v1350 = vld [vmem:[%s1338 + $0x2c] sm:$0xf]
    %v1351 = vld [vmem:[%s1338 + $0x30] sm:$0xf]
    %v1352 = vld [vmem:[%s1338 + $0x34] sm:$0xf]
    %v1353 = vld [vmem:[%s1338 + $0x38] sm:$0xf]
    %v1354 = vld [vmem:[%s1338 + $0x3c] sm:$0xf]
    %1355 = vmax.xlane.f32.xlu0 %v1335
    %v1356 = vpop.xlane.xlu0 %1355
    %1357 = vmax.xlane.f32.xlu0 %v1336
    %v1358 = vpop.xlane.xlu0 %1357
    %1359 = vmax.xlane.f32.xlu0 %v1337
    %v1360 = vpop.xlane.xlu0 %1359
    %v1361 = vmax.f32 %v1356, -1e+30
    %v1362 = vmax.f32 %v1358, -1e+30
    %v1363 = vmax.f32 %v1360, -1e+30
    %v1364 = vsub.f32 -1e+30, %v1361
    %v1365 = vsub.f32 -1e+30, %v1362
    %v1366 = vsub.f32 -1e+30, %v1363
    %v1367 = vmul.f32 %v1364, 1.442695
    %v1368 = vpow.pop %v1367
    %v1369 = vmul.f32 %v1365, 1.442695
    %v1370 = vpow.pop %v1369
    %v1371 = vmul.f32 %v1366, 1.442695
    %v1372 = vpow.pop %v1371
    %v1373 = vmul.f32 %v1368, 0.0
    %v1374 = vmul.f32 %v1370, 0.0
    %v1375 = vmul.f32 %v1372, 0.0
    %v1376 = vsub.f32 %v1335, %v1361
    %v1377 = vsub.f32 %v1336, %v1362
    %v1378 = vsub.f32 %v1337, %v1363
    %v1379 = vmul.f32 %v1376, 1.442695
    %v1380 = vpow.pop %v1379
    %v1381 = vmul.f32 %v1377, 1.442695
    %v1382 = vpow.pop %v1381
    %v1383 = vmul.f32 %v1378, 1.442695
    %v1384 = vpow.pop %v1383
    %1385 = vadd.xlane.f32.xlu0 %v1380
    %v1386 = vpop.xlane.xlu0 %1385
    %1387 = vadd.xlane.f32.xlu0 %v1382
    %v1388 = vpop.xlane.xlu0 %1387
    %1389 = vadd.xlane.f32.xlu0 %v1384
    %v1390 = vpop.xlane.xlu0 %1389
    %v1391 = vadd.f32 %v1373, %v1386
    %v1392 = vadd.f32 %v1374, %v1388
    %v1393 = vadd.f32 %v1375, %v1390
    %v1394 = vpack.c.bf16 %v1336, %v1335
    %v1395 = vpack.c.bf16 %v1337, %v1337
    %v1396 = vunpack.c.l.bf16 %v1394
    %v1397 = vunpack.c.h.bf16 %v1394
    %v1398 = vunpack.c.l.bf16 %v1395
    %v1399 = vsub.f32 %v1335, %v1396
    %v1400 = vsub.f32 %v1336, %v1397
    %v1401 = vsub.f32 %v1337, %v1398
    %v1402 = vpack.c.bf16 %v1400, %v1399
    %v1403 = vpack.c.bf16 %v1401, %v1401
    %v1420 = vunpack.c.l.b16 %v1339
    %v1421 = vunpack.c.l.b16 %v1340
    %v1422 = vunpack.c.l.b16 %v1341
    %v1423 = vunpack.c.l.b16 %v1342
    %v1424 = vunpack.c.l.b16 %v1343
    %v1425 = vunpack.c.l.b16 %v1344
    %v1426 = vunpack.c.l.b16 %v1345
    %v1427 = vunpack.c.l.b16 %v1346
    %v1428 = vunpack.c.l.b16 %v1347
    %v1429 = vunpack.c.l.b16 %v1348
    %v1430 = vunpack.c.l.b16 %v1349
    %v1431 = vunpack.c.l.b16 %v1350
    %v1432 = vunpack.c.l.b16 %v1351
    %v1433 = vunpack.c.l.b16 %v1352
    %v1434 = vunpack.c.l.b16 %v1353
    %v1435 = vunpack.c.l.b16 %v1354
    %v1436 = vpack.c.b16 %v1421, %v1420
    %v1437 = vpack.c.b16 %v1423, %v1422
    %v1438 = vpack.c.b16 %v1425, %v1424
    %v1439 = vpack.c.b16 %v1427, %v1426
    %v1440 = vpack.c.b16 %v1429, %v1428
    %v1441 = vpack.c.b16 %v1431, %v1430
    %v1442 = vpack.c.b16 %v1433, %v1432
    %v1443 = vpack.c.b16 %v1435, %v1434
    %1452 = vmatprep.subr.bf16.mxu0 0
    %1453 = vmatpush1.bf16.msra.mxu0 %v1436
    %1454 = vmatprep.subr.bf16.mxu0 0
    %1455 = vmatpush1.bf16.msra.mxu0 %v1437
    %1456 = vmatprep.subr.bf16.mxu0 0
    %1457 = vmatpush1.bf16.msra.mxu0 %v1438
    %1458 = vmatprep.subr.bf16.mxu0 0
    %1459 = vmatpush1.bf16.msra.mxu0 %v1439
    %1460 = vmatprep.subr.bf16.mxu0 0
    %1461 = vmatpush1.bf16.msra.mxu0 %v1440
    %1462 = vmatprep.subr.bf16.mxu0 0
    %1463 = vmatpush1.bf16.msra.mxu0 %v1441
    %1464 = vmatprep.subr.bf16.mxu0 0
    %1465 = vmatpush1.bf16.msra.mxu0 %v1442
    %1466 = vmatprep.subr.bf16.mxu0 0
    %1467 = vmatpush1.bf16.msra.mxu0 %v1443
    %1468 = vmatprep.subr.bf16.mxu0 0
    %1469 = vmatpush1.bf16.msra.mxu0 0
    %1470 = vmatprep.subr.bf16.mxu0 0
    %1471 = vmatpush1.bf16.msra.mxu0 0
    %1472 = vmatprep.subr.bf16.mxu0 0
    %1473 = vmatpush1.bf16.msra.mxu0 0
    %1474 = vmatprep.subr.bf16.mxu0 0
    %1475 = vmatpush1.bf16.msra.mxu0 0
    %1476 = vmatprep.subr.bf16.mxu0 0
    %1477 = vmatpush1.bf16.msra.mxu0 0
    %1478 = vmatprep.subr.bf16.mxu0 0
    %1479 = vmatpush1.bf16.msra.mxu0 0
    %1480 = vmatprep.subr.bf16.mxu0 0
    %1481 = vmatpush1.bf16.msra.mxu0 0
    %1482 = vmatprep.subr.bf16.mxu0 0
    %1483 = vmatpush1.bf16.msra.mxu0 0
    %1484 = vmatprep.mubr.bf16.mxu0 0
    %1485 = vmatmul.mubr.bf16.gmra.mrb[0].mxu0 %v1402
    %v1486 = vpop.f32.mrb[0].mxu0
    %v1487 = vadd.f32 0.0, %v1486
    %v1488 = vpop.f32.mrb[0].mxu0
    %v1489 = vpop.f32.mrb[0].mxu0
    %v1490 = vadd.f32 0.0, %v1489
    %v1491 = vpop.f32.mrb[0].mxu0
    %1492 = vmatprep.mubr.bf16.mxu0 0
    %1493 = vmatmul.mubr.bf16.gmra.mrb[0].mxu0 %v1403
    %v1494 = vpop.f32.mrb[0].mxu0
    %v1495 = vadd.f32 0.0, %v1494
    %v1496 = vpop.f32.mrb[0].mxu0
    %v1497 = vpop.f32.mrb[0].mxu0
    %v1498 = vpop.f32.mrb[0].mxu0
    %1499 = vdwg.mxu0
    %1500 = vmatprep.subr.bf16.mxu0 0
    %1501 = vmatpush1.bf16.msra.mxu0 %v1436
    %1502 = vmatprep.subr.bf16.mxu0 0
    %1503 = vmatpush1.bf16.msra.mxu0 %v1437
    %1504 = vmatprep.subr.bf16.mxu0 0
    %1505 = vmatpush1.bf16.msra.mxu0 %v1438
    %1506 = vmatprep.subr.bf16.mxu0 0
    %1507 = vmatpush1.bf16.msra.mxu0 %v1439
    %1508 = vmatprep.subr.bf16.mxu0 0
    %1509 = vmatpush1.bf16.msra.mxu0 %v1440
    %1510 = vmatprep.subr.bf16.mxu0 0
    %1511 = vmatpush1.bf16.msra.mxu0 %v1441
    %1512 = vmatprep.subr.bf16.mxu0 0
    %1513 = vmatpush1.bf16.msra.mxu0 %v1442
    %1514 = vmatprep.subr.bf16.mxu0 0
    %1515 = vmatpush1.bf16.msra.mxu0 %v1443
    %1516 = vmatprep.subr.bf16.mxu0 0
    %1517 = vmatpush1.bf16.msra.mxu0 0
    %1518 = vmatprep.subr.bf16.mxu0 0
    %1519 = vmatpush1.bf16.msra.mxu0 0
    %1520 = vmatprep.subr.bf16.mxu0 0
    %1521 = vmatpush1.bf16.msra.mxu0 0
    %1522 = vmatprep.subr.bf16.mxu0 0
    %1523 = vmatpush1.bf16.msra.mxu0 0
    %1524 = vmatprep.subr.bf16.mxu0 0
    %1525 = vmatpush1.bf16.msra.mxu0 0
    %1526 = vmatprep.subr.bf16.mxu0 0
    %1527 = vmatpush1.bf16.msra.mxu0 0
    %1528 = vmatprep.subr.bf16.mxu0 0
    %1529 = vmatpush1.bf16.msra.mxu0 0
    %1530 = vmatprep.subr.bf16.mxu0 0
    %1531 = vmatpush1.bf16.msra.mxu0 0
    %1532 = vmatprep.mubr.bf16.mxu0 0
    %1533 = vmatmul.mubr.bf16.gmra.mrb[0].mxu0 %v1394
    %v1534 = vpop.f32.mrb[0].mxu0
    %v1535 = vadd.f32 %v1487, %v1534
    %v1536 = vpop.f32.mrb[0].mxu0
    %v1537 = vpop.f32.mrb[0].mxu0
    %v1538 = vadd.f32 %v1490, %v1537
    %v1539 = vpop.f32.mrb[0].mxu0
    %1540 = vmatprep.mubr.bf16.mxu0 0
    %1541 = vmatmul.mubr.bf16.gmra.mrb[0].mxu0 %v1395
    %v1542 = vpop.f32.mrb[0].mxu0
    %v1543 = vadd.f32 %v1495, %v1542
    %v1544 = vpop.f32.mrb[0].mxu0
    %v1545 = vpop.f32.mrb[0].mxu0
    %v1546 = vpop.f32.mrb[0].mxu0
    %1547 = vdwg.mxu0
    %v1548 = vlog2.pop %v1391
    %v1549 = vmul.f32 %v1548, 0.6931472
    %v1550 = vlog2.pop %v1392
    %v1551 = vmul.f32 %v1550, 0.6931472
    %v1552 = vlog2.pop %v1393
    %v1553 = vmul.f32 %v1552, 0.6931472
    %v1554 = vadd.f32 %v1361, %v1549
    %v1555 = vadd.f32 %v1362, %v1551
    %v1556 = vadd.f32 %v1363, %v1553
    %v1557 = vsub.f32 %v1535, %v1554
    %v1558 = vsub.f32 %v1538, %v1555
    %v1559 = vsub.f32 %v1543, %v1556
    %v1563 = vcombine.high %v1557, %v1557
    %v1565 = vunpack.c.l.s4 1966171168
    %v1566 = vunpack.c.0.s8 %v1565
    %v1567 = vlaneseq
    %v1568 = vshrl.u32 %v1567, 7
    %v1569 = vsub.s32 %v1566, %v1568
    %v1570 = vrot.slane %v1557, %v1569
    %v1572 = vunpack.c.l.s4 1966171168
    %v1573 = vunpack.c.0.s8 %v1572
    %v1574 = vlaneseq
    %v1575 = vshrl.u32 %v1574, 7
    %v1576 = vsub.s32 %v1573, %v1575
    %v1577 = vrot.slane %v1563, %v1576
    %v1578 = vcombine.high %v1570, %v1570
    %v1579 = vcombine.high %v1577, %v1577
    %v1581 = vunpack.c.l.s4 1966171168
    %v1582 = vunpack.c.0.s8 %v1581
    %v1583 = vlaneseq
    %v1584 = vshrl.u32 %v1583, 7
    %v1585 = vsub.s32 %v1582, %v1584
    %v1586 = vrot.slane %v1570, %v1585
    %v1588 = vunpack.c.l.s4 1966171168
    %v1589 = vunpack.c.0.s8 %v1588
    %v1590 = vlaneseq
    %v1591 = vshrl.u32 %v1590, 7
    %v1592 = vsub.s32 %v1589, %v1591
    %v1593 = vrot.slane %v1577, %v1592
    %v1595 = vunpack.c.l.s4 1966171168
    %v1596 = vunpack.c.0.s8 %v1595
    %v1597 = vlaneseq
    %v1598 = vshrl.u32 %v1597, 7
    %v1599 = vsub.s32 %v1596, %v1598
    %v1600 = vrot.slane %v1578, %v1599
    %v1602 = vunpack.c.l.s4 1966171168
    %v1603 = vunpack.c.0.s8 %v1602
    %v1604 = vlaneseq
    %v1605 = vshrl.u32 %v1604, 7
    %v1606 = vsub.s32 %v1603, %v1605
    %v1607 = vrot.slane %v1579, %v1606
    %v1608 = vcombine.high %v1586, %v1586
    %v1609 = vcombine.high %v1593, %v1593
    %v1610 = vcombine.high %v1600, %v1600
    %v1611 = vcombine.high %v1607, %v1607
    %v1612 = vcombine.high %v1558, %v1558
    %v1614 = vunpack.c.l.s4 1966171168
    %v1615 = vunpack.c.0.s8 %v1614
    %v1616 = vlaneseq
    %v1617 = vshrl.u32 %v1616, 7
    %v1618 = vsub.s32 %v1615, %v1617
    %v1619 = vrot.slane %v1558, %v1618
    %v1621 = vunpack.c.l.s4 1966171168
    %v1622 = vunpack.c.0.s8 %v1621
    %v1623 = vlaneseq
    %v1624 = vshrl.u32 %v1623, 7
    %v1625 = vsub.s32 %v1622, %v1624
    %v1626 = vrot.slane %v1612, %v1625
    %v1627 = vcombine.high %v1619, %v1619
    %v1628 = vcombine.high %v1626, %v1626
    %v1630 = vunpack.c.l.s4 1966171168
    %v1631 = vunpack.c.0.s8 %v1630
    %v1632 = vlaneseq
    %v1633 = vshrl.u32 %v1632, 7
    %v1634 = vsub.s32 %v1631, %v1633
    %v1635 = vrot.slane %v1619, %v1634
    %v1637 = vunpack.c.l.s4 1966171168
    %v1638 = vunpack.c.0.s8 %v1637
    %v1639 = vlaneseq
    %v1640 = vshrl.u32 %v1639, 7
    %v1641 = vsub.s32 %v1638, %v1640
    %v1642 = vrot.slane %v1626, %v1641
    %v1644 = vunpack.c.l.s4 1966171168
    %v1645 = vunpack.c.0.s8 %v1644
    %v1646 = vlaneseq
    %v1647 = vshrl.u32 %v1646, 7
    %v1648 = vsub.s32 %v1645, %v1647
    %v1649 = vrot.slane %v1627, %v1648
    %v1651 = vunpack.c.l.s4 1966171168
    %v1652 = vunpack.c.0.s8 %v1651
    %v1653 = vlaneseq
    %v1654 = vshrl.u32 %v1653, 7
    %v1655 = vsub.s32 %v1652, %v1654
    %v1656 = vrot.slane %v1628, %v1655
    %v1657 = vcombine.high %v1635, %v1635
    %v1658 = vcombine.high %v1642, %v1642
    %v1659 = vcombine.high %v1649, %v1649
    %v1660 = vcombine.high %v1656, %v1656
    %v1661 = vcombine.high %v1559, %v1559
    %v1663 = vunpack.c.l.s4 1966171168
    %v1664 = vunpack.c.0.s8 %v1663
    %v1665 = vlaneseq
    %v1666 = vshrl.u32 %v1665, 7
    %v1667 = vsub.s32 %v1664, %v1666
    %v1668 = vrot.slane %v1559, %v1667
    %v1670 = vunpack.c.l.s4 1966171168
    %v1671 = vunpack.c.0.s8 %v1670
    %v1672 = vlaneseq
    %v1673 = vshrl.u32 %v1672, 7
    %v1674 = vsub.s32 %v1671, %v1673
    %v1675 = vrot.slane %v1661, %v1674
    %v1676 = vcombine.high %v1668, %v1668
    %v1677 = vcombine.high %v1675, %v1675
    %v1679 = vunpack.c.l.s4 1966171168
    %v1680 = vunpack.c.0.s8 %v1679
    %v1681 = vlaneseq
    %v1682 = vshrl.u32 %v1681, 7
    %v1683 = vsub.s32 %v1680, %v1682
    %v1684 = vrot.slane %v1668, %v1683
    %v1686 = vunpack.c.l.s4 1966171168
    %v1687 = vunpack.c.0.s8 %v1686
    %v1688 = vlaneseq
    %v1689 = vshrl.u32 %v1688, 7
    %v1690 = vsub.s32 %v1687, %v1689
    %v1691 = vrot.slane %v1675, %v1690
    %v1693 = vunpack.c.l.s4 1966171168
    %v1694 = vunpack.c.0.s8 %v1693
    %v1695 = vlaneseq
    %v1696 = vshrl.u32 %v1695, 7
    %v1697 = vsub.s32 %v1694, %v1696
    %v1698 = vrot.slane %v1676, %v1697
    %v1700 = vunpack.c.l.s4 1966171168
    %v1701 = vunpack.c.0.s8 %v1700
    %v1702 = vlaneseq
    %v1703 = vshrl.u32 %v1702, 7
    %v1704 = vsub.s32 %v1701, %v1703
    %v1705 = vrot.slane %v1677, %v1704
    %v1706 = vcombine.high %v1684, %v1684
    %v1707 = vcombine.high %v1691, %v1691
    %v1708 = vcombine.high %v1698, %v1698
    %v1709 = vcombine.high %v1705, %v1705
    %1734 = vst [vmem:[#allocation3 + $0x3] sm:$0x1] %v1586
    %1735 = vst [vmem:[#allocation3 + $0xb] sm:$0x1] %v1600
    %1736 = vst [vmem:[#allocation3 + $0x13] sm:$0x1] %v1608
    %1737 = vst [vmem:[#allocation3 + $0x1b] sm:$0x1] %v1610
    %1738 = vst [vmem:[#allocation3 + $0x23] sm:$0x1] %v1593
    %1739 = vst [vmem:[#allocation3 + $0x2b] sm:$0x1] %v1607
    %1740 = vst [vmem:[#allocation3 + $0x33] sm:$0x1] %v1609
    %1741 = vst [vmem:[#allocation3 + $0x3b] sm:$0x1] %v1611
    %1742 = vst [vmem:[#allocation3 + $0x43] sm:$0x1] %v1635
    %1743 = vst [vmem:[#allocation3 + $0x4b] sm:$0x1] %v1649
    %1744 = vst [vmem:[#allocation3 + $0x53] sm:$0x1] %v1657
    %1745 = vst [vmem:[#allocation3 + $0x5b] sm:$0x1] %v1659
    %1746 = vst [vmem:[#allocation3 + $0x63] sm:$0x1] %v1642
    %1747 = vst [vmem:[#allocation3 + $0x6b] sm:$0x1] %v1656
    %1748 = vst [vmem:[#allocation3 + $0x73] sm:$0x1] %v1658
    %1749 = vst [vmem:[#allocation3 + $0x7b] sm:$0x1] %v1660
    %1750 = vst [vmem:[#allocation3 + $0x83] sm:$0x1] %v1684
    %1751 = vst [vmem:[#allocation3 + $0x8b] sm:$0x1] %v1698
    %1752 = vst [vmem:[#allocation3 + $0x93] sm:$0x1] %v1706
    %1753 = vst [vmem:[#allocation3 + $0x9b] sm:$0x1] %v1708
    %1754 = vst [vmem:[#allocation3 + $0xa3] sm:$0x1] %v1691
    %1755 = vst [vmem:[#allocation3 + $0xab] sm:$0x1] %v1705
    %1756 = vst [vmem:[#allocation3 + $0xb3] sm:$0x1] %v1707
    %1757 = vst [vmem:[#allocation3 + $0xbb] sm:$0x1] %v1709
    %s1758 = scalar_lea.vmem [#allocation5], 96
    %v1759 = vld [vmem:[%s1758] sm:$0xff]
    %v1760 = vld [vmem:[%s1758 + $0x8] sm:$0xff]
    %v1761 = vld [vmem:[%s1758 + $0x10] sm:$0xff]
    %s1762 = scalar_lea.vmem [#allocation7], 256
    %v1763 = vld [vmem:[%s1762] sm:$0xf]
    %v1764 = vld [vmem:[%s1762 + $0x4] sm:$0xf]
    %v1765 = vld [vmem:[%s1762 + $0x8] sm:$0xf]
    %v1766 = vld [vmem:[%s1762 + $0xc] sm:$0xf]
    %v1767 = vld [vmem:[%s1762 + $0x10] sm:$0xf]
    %v1768 = vld [vmem:[%s1762 + $0x14] sm:$0xf]
    %v1769 = vld [vmem:[%s1762 + $0x18] sm:$0xf]
    %v1770 = vld [vmem:[%s1762 + $0x1c] sm:$0xf]
    %v1771 = vld [vmem:[%s1762 + $0x20] sm:$0xf]
    %v1772 = vld [vmem:[%s1762 + $0x24] sm:$0xf]
    %v1773 = vld [vmem:[%s1762 + $0x28] sm:$0xf]
    %v1774 = vld [vmem:[%s1762 + $0x2c] sm:$0xf]
    %v1775 = vld [vmem:[%s1762 + $0x30] sm:$0xf]
    %v1776 = vld [vmem:[%s1762 + $0x34] sm:$0xf]
    %v1777 = vld [vmem:[%s1762 + $0x38] sm:$0xf]
    %v1778 = vld [vmem:[%s1762 + $0x3c] sm:$0xf]
    %1779 = vmax.xlane.f32.xlu0 %v1759
    %v1780 = vpop.xlane.xlu0 %1779
    %1781 = vmax.xlane.f32.xlu0 %v1760
    %v1782 = vpop.xlane.xlu0 %1781
    %1783 = vmax.xlane.f32.xlu0 %v1761
    %v1784 = vpop.xlane.xlu0 %1783
    %v1785 = vmax.f32 %v1780, -1e+30
    %v1786 = vmax.f32 %v1782, -1e+30
    %v1787 = vmax.f32 %v1784, -1e+30
    %v1788 = vsub.f32 -1e+30, %v1785
    %v1789 = vsub.f32 -1e+30, %v1786
    %v1790 = vsub.f32 -1e+30, %v1787
    %v1791 = vmul.f32 %v1788, 1.442695
    %v1792 = vpow.pop %v1791
    %v1793 = vmul.f32 %v1789, 1.442695
    %v1794 = vpow.pop %v1793
    %v1795 = vmul.f32 %v1790, 1.442695
    %v1796 = vpow.pop %v1795
    %v1797 = vmul.f32 %v1792, 0.0
    %v1798 = vmul.f32 %v1794, 0.0
    %v1799 = vmul.f32 %v1796, 0.0
    %v1800 = vsub.f32 %v1759, %v1785
    %v1801 = vsub.f32 %v1760, %v1786
    %v1802 = vsub.f32 %v1761, %v1787
    %v1803 = vmul.f32 %v1800, 1.442695
    %v1804 = vpow.pop %v1803
    %v1805 = vmul.f32 %v1801, 1.442695
    %v1806 = vpow.pop %v1805
    %v1807 = vmul.f32 %v1802, 1.442695
    %v1808 = vpow.pop %v1807
    %1809 = vadd.xlane.f32.xlu0 %v1804
    %v1810 = vpop.xlane.xlu0 %1809
    %1811 = vadd.xlane.f32.xlu0 %v1806
    %v1812 = vpop.xlane.xlu0 %1811
    %1813 = vadd.xlane.f32.xlu0 %v1808
    %v1814 = vpop.xlane.xlu0 %1813
    %v1815 = vadd.f32 %v1797, %v1810
    %v1816 = vadd.f32 %v1798, %v1812
    %v1817 = vadd.f32 %v1799, %v1814
    %v1818 = vpack.c.bf16 %v1760, %v1759
    %v1819 = vpack.c.bf16 %v1761, %v1761
    %v1820 = vunpack.c.l.bf16 %v1818
    %v1821 = vunpack.c.h.bf16 %v1818
    %v1822 = vunpack.c.l.bf16 %v1819
    %v1823 = vsub.f32 %v1759, %v1820
    %v1824 = vsub.f32 %v1760, %v1821
    %v1825 = vsub.f32 %v1761, %v1822
    %v1826 = vpack.c.bf16 %v1824, %v1823
    %v1827 = vpack.c.bf16 %v1825, %v1825
    %v1844 = vunpack.c.l.b16 %v1763
    %v1845 = vunpack.c.l.b16 %v1764
    %v1846 = vunpack.c.l.b16 %v1765
    %v1847 = vunpack.c.l.b16 %v1766
    %v1848 = vunpack.c.l.b16 %v1767
    %v1849 = vunpack.c.l.b16 %v1768
    %v1850 = vunpack.c.l.b16 %v1769
    %v1851 = vunpack.c.l.b16 %v1770
    %v1852 = vunpack.c.l.b16 %v1771
    %v1853 = vunpack.c.l.b16 %v1772
    %v1854 = vunpack.c.l.b16 %v1773
    %v1855 = vunpack.c.l.b16 %v1774
    %v1856 = vunpack.c.l.b16 %v1775
    %v1857 = vunpack.c.l.b16 %v1776
    %v1858 = vunpack.c.l.b16 %v1777
    %v1859 = vunpack.c.l.b16 %v1778
    %v1860 = vpack.c.b16 %v1845, %v1844
    %v1861 = vpack.c.b16 %v1847, %v1846
    %v1862 = vpack.c.b16 %v1849, %v1848
    %v1863 = vpack.c.b16 %v1851, %v1850
    %v1864 = vpack.c.b16 %v1853, %v1852
    %v1865 = vpack.c.b16 %v1855, %v1854
    %v1866 = vpack.c.b16 %v1857, %v1856
    %v1867 = vpack.c.b16 %v1859, %v1858
    %1876 = vmatprep.subr.bf16.mxu0 0
    %1877 = vmatpush1.bf16.msra.mxu0 %v1860
    %1878 = vmatprep.subr.bf16.mxu0 0
    %1879 = vmatpush1.bf16.msra.mxu0 %v1861
    %1880 = vmatprep.subr.bf16.mxu0 0
    %1881 = vmatpush1.bf16.msra.mxu0 %v1862
    %1882 = vmatprep.subr.bf16.mxu0 0
    %1883 = vmatpush1.bf16.msra.mxu0 %v1863
    %1884 = vmatprep.subr.bf16.mxu0 0
    %1885 = vmatpush1.bf16.msra.mxu0 %v1864
    %1886 = vmatprep.subr.bf16.mxu0 0
    %1887 = vmatpush1.bf16.msra.mxu0 %v1865
    %1888 = vmatprep.subr.bf16.mxu0 0
    %1889 = vmatpush1.bf16.msra.mxu0 %v1866
    %1890 = vmatprep.subr.bf16.mxu0 0
    %1891 = vmatpush1.bf16.msra.mxu0 %v1867
    %1892 = vmatprep.subr.bf16.mxu0 0
    %1893 = vmatpush1.bf16.msra.mxu0 0
    %1894 = vmatprep.subr.bf16.mxu0 0
    %1895 = vmatpush1.bf16.msra.mxu0 0
    %1896 = vmatprep.subr.bf16.mxu0 0
    %1897 = vmatpush1.bf16.msra.mxu0 0
    %1898 = vmatprep.subr.bf16.mxu0 0
    %1899 = vmatpush1.bf16.msra.mxu0 0
    %1900 = vmatprep.subr.bf16.mxu0 0
    %1901 = vmatpush1.bf16.msra.mxu0 0
    %1902 = vmatprep.subr.bf16.mxu0 0
    %1903 = vmatpush1.bf16.msra.mxu0 0
    %1904 = vmatprep.subr.bf16.mxu0 0
    %1905 = vmatpush1.bf16.msra.mxu0 0
    %1906 = vmatprep.subr.bf16.mxu0 0
    %1907 = vmatpush1.bf16.msra.mxu0 0
    %1908 = vmatprep.mubr.bf16.mxu0 0
    %1909 = vmatmul.mubr.bf16.gmra.mrb[0].mxu0 %v1826
    %v1910 = vpop.f32.mrb[0].mxu0
    %v1911 = vadd.f32 0.0, %v1910
    %v1912 = vpop.f32.mrb[0].mxu0
    %v1913 = vpop.f32.mrb[0].mxu0
    %v1914 = vadd.f32 0.0, %v1913
    %v1915 = vpop.f32.mrb[0].mxu0
    %1916 = vmatprep.mubr.bf16.mxu0 0
    %1917 = vmatmul.mubr.bf16.gmra.mrb[0].mxu0 %v1827
    %v1918 = vpop.f32.mrb[0].mxu0
    %v1919 = vadd.f32 0.0, %v1918
    %v1920 = vpop.f32.mrb[0].mxu0
    %v1921 = vpop.f32.mrb[0].mxu0
    %v1922 = vpop.f32.mrb[0].mxu0
    %1923 = vdwg.mxu0
    %1924 = vmatprep.subr.bf16.mxu0 0
    %1925 = vmatpush1.bf16.msra.mxu0 %v1860
    %1926 = vmatprep.subr.bf16.mxu0 0
    %1927 = vmatpush1.bf16.msra.mxu0 %v1861
    %1928 = vmatprep.subr.bf16.mxu0 0
    %1929 = vmatpush1.bf16.msra.mxu0 %v1862
    %1930 = vmatprep.subr.bf16.mxu0 0
    %1931 = vmatpush1.bf16.msra.mxu0 %v1863
    %1932 = vmatprep.subr.bf16.mxu0 0
    %1933 = vmatpush1.bf16.msra.mxu0 %v1864
    %1934 = vmatprep.subr.bf16.mxu0 0
    %1935 = vmatpush1.bf16.msra.mxu0 %v1865
    %1936 = vmatprep.subr.bf16.mxu0 0
    %1937 = vmatpush1.bf16.msra.mxu0 %v1866
    %1938 = vmatprep.subr.bf16.mxu0 0
    %1939 = vmatpush1.bf16.msra.mxu0 %v1867
    %1940 = vmatprep.subr.bf16.mxu0 0
    %1941 = vmatpush1.bf16.msra.mxu0 0
    %1942 = vmatprep.subr.bf16.mxu0 0
    %1943 = vmatpush1.bf16.msra.mxu0 0
    %1944 = vmatprep.subr.bf16.mxu0 0
    %1945 = vmatpush1.bf16.msra.mxu0 0
    %1946 = vmatprep.subr.bf16.mxu0 0
    %1947 = vmatpush1.bf16.msra.mxu0 0
    %1948 = vmatprep.subr.bf16.mxu0 0
    %1949 = vmatpush1.bf16.msra.mxu0 0
    %1950 = vmatprep.subr.bf16.mxu0 0
    %1951 = vmatpush1.bf16.msra.mxu0 0
    %1952 = vmatprep.subr.bf16.mxu0 0
    %1953 = vmatpush1.bf16.msra.mxu0 0
    %1954 = vmatprep.subr.bf16.mxu0 0
    %1955 = vmatpush1.bf16.msra.mxu0 0
    %1956 = vmatprep.mubr.bf16.mxu0 0
    %1957 = vmatmul.mubr.bf16.gmra.mrb[0].mxu0 %v1818
    %v1958 = vpop.f32.mrb[0].mxu0
    %v1959 = vadd.f32 %v1911, %v1958
    %v1960 = vpop.f32.mrb[0].mxu0
    %v1961 = vpop.f32.mrb[0].mxu0
    %v1962 = vadd.f32 %v1914, %v1961
    %v1963 = vpop.f32.mrb[0].mxu0
    %1964 = vmatprep.mubr.bf16.mxu0 0
    %1965 = vmatmul.mubr.bf16.gmra.mrb[0].mxu0 %v1819
    %v1966 = vpop.f32.mrb[0].mxu0
    %v1967 = vadd.f32 %v1919, %v1966
    %v1968 = vpop.f32.mrb[0].mxu0
    %v1969 = vpop.f32.mrb[0].mxu0
    %v1970 = vpop.f32.mrb[0].mxu0
    %1971 = vdwg.mxu0
    %v1972 = vlog2.pop %v1815
    %v1973 = vmul.f32 %v1972, 0.6931472
    %v1974 = vlog2.pop %v1816
    %v1975 = vmul.f32 %v1974, 0.6931472
    %v1976 = vlog2.pop %v1817
    %v1977 = vmul.f32 %v1976, 0.6931472
    %v1978 = vadd.f32 %v1785, %v1973
    %v1979 = vadd.f32 %v1786, %v1975
    %v1980 = vadd.f32 %v1787, %v1977
    %v1981 = vsub.f32 %v1959, %v1978
    %v1982 = vsub.f32 %v1962, %v1979
    %v1983 = vsub.f32 %v1967, %v1980
    %v1987 = vcombine.high %v1981, %v1981
    %v1989 = vunpack.c.l.s4 1966171168
    %v1990 = vunpack.c.0.s8 %v1989
    %v1991 = vlaneseq
    %v1992 = vshrl.u32 %v1991, 7
    %v1993 = vsub.s32 %v1990, %v1992
    %v1994 = vrot.slane %v1981, %v1993
    %v1996 = vunpack.c.l.s4 1966171168
    %v1997 = vunpack.c.0.s8 %v1996
    %v1998 = vlaneseq
    %v1999 = vshrl.u32 %v1998, 7
    %v2000 = vsub.s32 %v1997, %v1999
    %v2001 = vrot.slane %v1987, %v2000
    %v2002 = vcombine.high %v1994, %v1994
    %v2003 = vcombine.high %v2001, %v2001
    %v2005 = vunpack.c.l.s4 1966171168
    %v2006 = vunpack.c.0.s8 %v2005
    %v2007 = vlaneseq
    %v2008 = vshrl.u32 %v2007, 7
    %v2009 = vsub.s32 %v2006, %v2008
    %v2010 = vrot.slane %v1994, %v2009
    %v2012 = vunpack.c.l.s4 1966171168
    %v2013 = vunpack.c.0.s8 %v2012
    %v2014 = vlaneseq
    %v2015 = vshrl.u32 %v2014, 7
    %v2016 = vsub.s32 %v2013, %v2015
    %v2017 = vrot.slane %v2001, %v2016
    %v2019 = vunpack.c.l.s4 1966171168
    %v2020 = vunpack.c.0.s8 %v2019
    %v2021 = vlaneseq
    %v2022 = vshrl.u32 %v2021, 7
    %v2023 = vsub.s32 %v2020, %v2022
    %v2024 = vrot.slane %v2002, %v2023
    %v2026 = vunpack.c.l.s4 1966171168
    %v2027 = vunpack.c.0.s8 %v2026
    %v2028 = vlaneseq
    %v2029 = vshrl.u32 %v2028, 7
    %v2030 = vsub.s32 %v2027, %v2029
    %v2031 = vrot.slane %v2003, %v2030
    %v2032 = vcombine.high %v2010, %v2010
    %v2033 = vcombine.high %v2017, %v2017
    %v2034 = vcombine.high %v2024, %v2024
    %v2035 = vcombine.high %v2031, %v2031
    %v2036 = vcombine.high %v1982, %v1982
    %v2038 = vunpack.c.l.s4 1966171168
    %v2039 = vunpack.c.0.s8 %v2038
    %v2040 = vlaneseq
    %v2041 = vshrl.u32 %v2040, 7
    %v2042 = vsub.s32 %v2039, %v2041
    %v2043 = vrot.slane %v1982, %v2042
    %v2045 = vunpack.c.l.s4 1966171168
    %v2046 = vunpack.c.0.s8 %v2045
    %v2047 = vlaneseq
    %v2048 = vshrl.u32 %v2047, 7
    %v2049 = vsub.s32 %v2046, %v2048
    %v2050 = vrot.slane %v2036, %v2049
    %v2051 = vcombine.high %v2043, %v2043
    %v2052 = vcombine.high %v2050, %v2050
    %v2054 = vunpack.c.l.s4 1966171168
    %v2055 = vunpack.c.0.s8 %v2054
    %v2056 = vlaneseq
    %v2057 = vshrl.u32 %v2056, 7
    %v2058 = vsub.s32 %v2055, %v2057
    %v2059 = vrot.slane %v2043, %v2058
    %v2061 = vunpack.c.l.s4 1966171168
    %v2062 = vunpack.c.0.s8 %v2061
    %v2063 = vlaneseq
    %v2064 = vshrl.u32 %v2063, 7
    %v2065 = vsub.s32 %v2062, %v2064
    %v2066 = vrot.slane %v2050, %v2065
    %v2068 = vunpack.c.l.s4 1966171168
    %v2069 = vunpack.c.0.s8 %v2068
    %v2070 = vlaneseq
    %v2071 = vshrl.u32 %v2070, 7
    %v2072 = vsub.s32 %v2069, %v2071
    %v2073 = vrot.slane %v2051, %v2072
    %v2075 = vunpack.c.l.s4 1966171168
    %v2076 = vunpack.c.0.s8 %v2075
    %v2077 = vlaneseq
    %v2078 = vshrl.u32 %v2077, 7
    %v2079 = vsub.s32 %v2076, %v2078
    %v2080 = vrot.slane %v2052, %v2079
    %v2081 = vcombine.high %v2059, %v2059
    %v2082 = vcombine.high %v2066, %v2066
    %v2083 = vcombine.high %v2073, %v2073
    %v2084 = vcombine.high %v2080, %v2080
    %v2085 = vcombine.high %v1983, %v1983
    %v2087 = vunpack.c.l.s4 1966171168
    %v2088 = vunpack.c.0.s8 %v2087
    %v2089 = vlaneseq
    %v2090 = vshrl.u32 %v2089, 7
    %v2091 = vsub.s32 %v2088, %v2090
    %v2092 = vrot.slane %v1983, %v2091
    %v2094 = vunpack.c.l.s4 1966171168
    %v2095 = vunpack.c.0.s8 %v2094
    %v2096 = vlaneseq
    %v2097 = vshrl.u32 %v2096, 7
    %v2098 = vsub.s32 %v2095, %v2097
    %v2099 = vrot.slane %v2085, %v2098
    %v2100 = vcombine.high %v2092, %v2092
    %v2101 = vcombine.high %v2099, %v2099
    %v2103 = vunpack.c.l.s4 1966171168
    %v2104 = vunpack.c.0.s8 %v2103
    %v2105 = vlaneseq
    %v2106 = vshrl.u32 %v2105, 7
    %v2107 = vsub.s32 %v2104, %v2106
    %v2108 = vrot.slane %v2092, %v2107
    %v2110 = vunpack.c.l.s4 1966171168
    %v2111 = vunpack.c.0.s8 %v2110
    %v2112 = vlaneseq
    %v2113 = vshrl.u32 %v2112, 7
    %v2114 = vsub.s32 %v2111, %v2113
    %v2115 = vrot.slane %v2099, %v2114
    %v2117 = vunpack.c.l.s4 1966171168
    %v2118 = vunpack.c.0.s8 %v2117
    %v2119 = vlaneseq
    %v2120 = vshrl.u32 %v2119, 7
    %v2121 = vsub.s32 %v2118, %v2120
    %v2122 = vrot.slane %v2100, %v2121
    %v2124 = vunpack.c.l.s4 1966171168
    %v2125 = vunpack.c.0.s8 %v2124
    %v2126 = vlaneseq
    %v2127 = vshrl.u32 %v2126, 7
    %v2128 = vsub.s32 %v2125, %v2127
    %v2129 = vrot.slane %v2101, %v2128
    %v2130 = vcombine.high %v2108, %v2108
    %v2131 = vcombine.high %v2115, %v2115
    %v2132 = vcombine.high %v2122, %v2122
    %v2133 = vcombine.high %v2129, %v2129
    %2158 = vst [vmem:[#allocation3 + $0x4] sm:$0x1] %v2010
    %2159 = vst [vmem:[#allocation3 + $0xc] sm:$0x1] %v2024
    %2160 = vst [vmem:[#allocation3 + $0x14] sm:$0x1] %v2032
    %2161 = vst [vmem:[#allocation3 + $0x1c] sm:$0x1] %v2034
    %2162 = vst [vmem:[#allocation3 + $0x24] sm:$0x1] %v2017
    %2163 = vst [vmem:[#allocation3 + $0x2c] sm:$0x1] %v2031
    %2164 = vst [vmem:[#allocation3 + $0x34] sm:$0x1] %v2033
    %2165 = vst [vmem:[#allocation3 + $0x3c] sm:$0x1] %v2035
    %2166 = vst [vmem:[#allocation3 + $0x44] sm:$0x1] %v2059
    %2167 = vst [vmem:[#allocation3 + $0x4c] sm:$0x1] %v2073
    %2168 = vst [vmem:[#allocation3 + $0x54] sm:$0x1] %v2081
    %2169 = vst [vmem:[#allocation3 + $0x5c] sm:$0x1] %v2083
    %2170 = vst [vmem:[#allocation3 + $0x64] sm:$0x1] %v2066
    %2171 = vst [vmem:[#allocation3 + $0x6c] sm:$0x1] %v2080
    %2172 = vst [vmem:[#allocation3 + $0x74] sm:$0x1] %v2082
    %2173 = vst [vmem:[#allocation3 + $0x7c] sm:$0x1] %v2084
    %2174 = vst [vmem:[#allocation3 + $0x84] sm:$0x1] %v2108
    %2175 = vst [vmem:[#allocation3 + $0x8c] sm:$0x1] %v2122
    %2176 = vst [vmem:[#allocation3 + $0x94] sm:$0x1] %v2130
    %2177 = vst [vmem:[#allocation3 + $0x9c] sm:$0x1] %v2132
    %2178 = vst [vmem:[#allocation3 + $0xa4] sm:$0x1] %v2115
    %2179 = vst [vmem:[#allocation3 + $0xac] sm:$0x1] %v2129
    %2180 = vst [vmem:[#allocation3 + $0xb4] sm:$0x1] %v2131
    %2181 = vst [vmem:[#allocation3 + $0xbc] sm:$0x1] %v2133
    %s2182 = scalar_lea.vmem [#allocation5], 120
    %v2183 = vld [vmem:[%s2182] sm:$0xff]
    %v2184 = vld [vmem:[%s2182 + $0x8] sm:$0xff]
    %v2185 = vld [vmem:[%s2182 + $0x10] sm:$0xff]
    %s2186 = scalar_lea.vmem [#allocation7], 320
    %v2187 = vld [vmem:[%s2186] sm:$0xf]
    %v2188 = vld [vmem:[%s2186 + $0x4] sm:$0xf]
    %v2189 = vld [vmem:[%s2186 + $0x8] sm:$0xf]
    %v2190 = vld [vmem:[%s2186 + $0xc] sm:$0xf]
    %v2191 = vld [vmem:[%s2186 + $0x10] sm:$0xf]
    %v2192 = vld [vmem:[%s2186 + $0x14] sm:$0xf]
    %v2193 = vld [vmem:[%s2186 + $0x18] sm:$0xf]
    %v2194 = vld [vmem:[%s2186 + $0x1c] sm:$0xf]
    %v2195 = vld [vmem:[%s2186 + $0x20] sm:$0xf]
    %v2196 = vld [vmem:[%s2186 + $0x24] sm:$0xf]
    %v2197 = vld [vmem:[%s2186 + $0x28] sm:$0xf]
    %v2198 = vld [vmem:[%s2186 + $0x2c] sm:$0xf]
    %v2199 = vld [vmem:[%s2186 + $0x30] sm:$0xf]
    %v2200 = vld [vmem:[%s2186 + $0x34] sm:$0xf]
    %v2201 = vld [vmem:[%s2186 + $0x38] sm:$0xf]
    %v2202 = vld [vmem:[%s2186 + $0x3c] sm:$0xf]
    %2203 = vmax.xlane.f32.xlu0 %v2183
    %v2204 = vpop.xlane.xlu0 %2203
    %2205 = vmax.xlane.f32.xlu0 %v2184
    %v2206 = vpop.xlane.xlu0 %2205
    %2207 = vmax.xlane.f32.xlu0 %v2185
    %v2208 = vpop.xlane.xlu0 %2207
    %v2209 = vmax.f32 %v2204, -1e+30
    %v2210 = vmax.f32 %v2206, -1e+30
    %v2211 = vmax.f32 %v2208, -1e+30
    %v2212 = vsub.f32 -1e+30, %v2209
    %v2213 = vsub.f32 -1e+30, %v2210
    %v2214 = vsub.f32 -1e+30, %v2211
    %v2215 = vmul.f32 %v2212, 1.442695
    %v2216 = vpow.pop %v2215
    %v2217 = vmul.f32 %v2213, 1.442695
    %v2218 = vpow.pop %v2217
    %v2219 = vmul.f32 %v2214, 1.442695
    %v2220 = vpow.pop %v2219
    %v2221 = vmul.f32 %v2216, 0.0
    %v2222 = vmul.f32 %v2218, 0.0
    %v2223 = vmul.f32 %v2220, 0.0
    %v2224 = vsub.f32 %v2183, %v2209
    %v2225 = vsub.f32 %v2184, %v2210
    %v2226 = vsub.f32 %v2185, %v2211
    %v2227 = vmul.f32 %v2224, 1.442695
    %v2228 = vpow.pop %v2227
    %v2229 = vmul.f32 %v2225, 1.442695
    %v2230 = vpow.pop %v2229
    %v2231 = vmul.f32 %v2226, 1.442695
    %v2232 = vpow.pop %v2231
    %2233 = vadd.xlane.f32.xlu0 %v2228
    %v2234 = vpop.xlane.xlu0 %2233
    %2235 = vadd.xlane.f32.xlu0 %v2230
    %v2236 = vpop.xlane.xlu0 %2235
    %2237 = vadd.xlane.f32.xlu0 %v2232
    %v2238 = vpop.xlane.xlu0 %2237
    %v2239 = vadd.f32 %v2221, %v2234
    %v2240 = vadd.f32 %v2222, %v2236
    %v2241 = vadd.f32 %v2223, %v2238
    %v2242 = vpack.c.bf16 %v2184, %v2183
    %v2243 = vpack.c.bf16 %v2185, %v2185
    %v2244 = vunpack.c.l.bf16 %v2242
    %v2245 = vunpack.c.h.bf16 %v2242
    %v2246 = vunpack.c.l.bf16 %v2243
    %v2247 = vsub.f32 %v2183, %v2244
    %v2248 = vsub.f32 %v2184, %v2245
    %v2249 = vsub.f32 %v2185, %v2246
    %v2250 = vpack.c.bf16 %v2248, %v2247
    %v2251 = vpack.c.bf16 %v2249, %v2249
    %v2268 = vunpack.c.l.b16 %v2187
    %v2269 = vunpack.c.l.b16 %v2188
    %v2270 = vunpack.c.l.b16 %v2189
    %v2271 = vunpack.c.l.b16 %v2190
    %v2272 = vunpack.c.l.b16 %v2191
    %v2273 = vunpack.c.l.b16 %v2192
    %v2274 = vunpack.c.l.b16 %v2193
    %v2275 = vunpack.c.l.b16 %v2194
    %v2276 = vunpack.c.l.b16 %v2195
    %v2277 = vunpack.c.l.b16 %v2196
    %v2278 = vunpack.c.l.b16 %v2197
    %v2279 = vunpack.c.l.b16 %v2198
    %v2280 = vunpack.c.l.b16 %v2199
    %v2281 = vunpack.c.l.b16 %v2200
    %v2282 = vunpack.c.l.b16 %v2201
    %v2283 = vunpack.c.l.b16 %v2202
    %v2284 = vpack.c.b16 %v2269, %v2268
    %v2285 = vpack.c.b16 %v2271, %v2270
    %v2286 = vpack.c.b16 %v2273, %v2272
    %v2287 = vpack.c.b16 %v2275, %v2274
    %v2288 = vpack.c.b16 %v2277, %v2276
    %v2289 = vpack.c.b16 %v2279, %v2278
    %v2290 = vpack.c.b16 %v2281, %v2280
    %v2291 = vpack.c.b16 %v2283, %v2282
    %2300 = vmatprep.subr.bf16.mxu0 0
    %2301 = vmatpush1.bf16.msra.mxu0 %v2284
    %2302 = vmatprep.subr.bf16.mxu0 0
    %2303 = vmatpush1.bf16.msra.mxu0 %v2285
    %2304 = vmatprep.subr.bf16.mxu0 0
    %2305 = vmatpush1.bf16.msra.mxu0 %v2286
    %2306 = vmatprep.subr.bf16.mxu0 0
    %2307 = vmatpush1.bf16.msra.mxu0 %v2287
    %2308 = vmatprep.subr.bf16.mxu0 0
    %2309 = vmatpush1.bf16.msra.mxu0 %v2288
    %2310 = vmatprep.subr.bf16.mxu0 0
    %2311 = vmatpush1.bf16.msra.mxu0 %v2289
    %2312 = vmatprep.subr.bf16.mxu0 0
    %2313 = vmatpush1.bf16.msra.mxu0 %v2290
    %2314 = vmatprep.subr.bf16.mxu0 0
    %2315 = vmatpush1.bf16.msra.mxu0 %v2291
    %2316 = vmatprep.subr.bf16.mxu0 0
    %2317 = vmatpush1.bf16.msra.mxu0 0
    %2318 = vmatprep.subr.bf16.mxu0 0
    %2319 = vmatpush1.bf16.msra.mxu0 0
    %2320 = vmatprep.subr.bf16.mxu0 0
    %2321 = vmatpush1.bf16.msra.mxu0 0
    %2322 = vmatprep.subr.bf16.mxu0 0
    %2323 = vmatpush1.bf16.msra.mxu0 0
    %2324 = vmatprep.subr.bf16.mxu0 0
    %2325 = vmatpush1.bf16.msra.mxu0 0
    %2326 = vmatprep.subr.bf16.mxu0 0
    %2327 = vmatpush1.bf16.msra.mxu0 0
    %2328 = vmatprep.subr.bf16.mxu0 0
    %2329 = vmatpush1.bf16.msra.mxu0 0
    %2330 = vmatprep.subr.bf16.mxu0 0
    %2331 = vmatpush1.bf16.msra.mxu0 0
    %2332 = vmatprep.mubr.bf16.mxu0 0
    %2333 = vmatmul.mubr.bf16.gmra.mrb[0].mxu0 %v2250
    %v2334 = vpop.f32.mrb[0].mxu0
    %v2335 = vadd.f32 0.0, %v2334
    %v2336 = vpop.f32.mrb[0].mxu0
    %v2337 = vpop.f32.mrb[0].mxu0
    %v2338 = vadd.f32 0.0, %v2337
    %v2339 = vpop.f32.mrb[0].mxu0
    %2340 = vmatprep.mubr.bf16.mxu0 0
    %2341 = vmatmul.mubr.bf16.gmra.mrb[0].mxu0 %v2251
    %v2342 = vpop.f32.mrb[0].mxu0
    %v2343 = vadd.f32 0.0, %v2342
    %v2344 = vpop.f32.mrb[0].mxu0
    %v2345 = vpop.f32.mrb[0].mxu0
    %v2346 = vpop.f32.mrb[0].mxu0
    %2347 = vdwg.mxu0
    %2348 = vmatprep.subr.bf16.mxu0 0
    %2349 = vmatpush1.bf16.msra.mxu0 %v2284
    %2350 = vmatprep.subr.bf16.mxu0 0
    %2351 = vmatpush1.bf16.msra.mxu0 %v2285
    %2352 = vmatprep.subr.bf16.mxu0 0
    %2353 = vmatpush1.bf16.msra.mxu0 %v2286
    %2354 = vmatprep.subr.bf16.mxu0 0
    %2355 = vmatpush1.bf16.msra.mxu0 %v2287
    %2356 = vmatprep.subr.bf16.mxu0 0
    %2357 = vmatpush1.bf16.msra.mxu0 %v2288
    %2358 = vmatprep.subr.bf16.mxu0 0
    %2359 = vmatpush1.bf16.msra.mxu0 %v2289
    %2360 = vmatprep.subr.bf16.mxu0 0
    %2361 = vmatpush1.bf16.msra.mxu0 %v2290
    %2362 = vmatprep.subr.bf16.mxu0 0
    %2363 = vmatpush1.bf16.msra.mxu0 %v2291
    %2364 = vmatprep.subr.bf16.mxu0 0
    %2365 = vmatpush1.bf16.msra.mxu0 0
    %2366 = vmatprep.subr.bf16.mxu0 0
    %2367 = vmatpush1.bf16.msra.mxu0 0
    %2368 = vmatprep.subr.bf16.mxu0 0
    %2369 = vmatpush1.bf16.msra.mxu0 0
    %2370 = vmatprep.subr.bf16.mxu0 0
    %2371 = vmatpush1.bf16.msra.mxu0 0
    %2372 = vmatprep.subr.bf16.mxu0 0
    %2373 = vmatpush1.bf16.msra.mxu0 0
    %2374 = vmatprep.subr.bf16.mxu0 0
    %2375 = vmatpush1.bf16.msra.mxu0 0
    %2376 = vmatprep.subr.bf16.mxu0 0
    %2377 = vmatpush1.bf16.msra.mxu0 0
    %2378 = vmatprep.subr.bf16.mxu0 0
    %2379 = vmatpush1.bf16.msra.mxu0 0
    %2380 = vmatprep.mubr.bf16.mxu0 0
    %2381 = vmatmul.mubr.bf16.gmra.mrb[0].mxu0 %v2242
    %v2382 = vpop.f32.mrb[0].mxu0
    %v2383 = vadd.f32 %v2335, %v2382
    %v2384 = vpop.f32.mrb[0].mxu0
    %v2385 = vpop.f32.mrb[0].mxu0
    %v2386 = vadd.f32 %v2338, %v2385
    %v2387 = vpop.f32.mrb[0].mxu0
    %2388 = vmatprep.mubr.bf16.mxu0 0
    %2389 = vmatmul.mubr.bf16.gmra.mrb[0].mxu0 %v2243
    %v2390 = vpop.f32.mrb[0].mxu0
    %v2391 = vadd.f32 %v2343, %v2390
    %v2392 = vpop.f32.mrb[0].mxu0
    %v2393 = vpop.f32.mrb[0].mxu0
    %v2394 = vpop.f32.mrb[0].mxu0
    %2395 = vdwg.mxu0
    %v2396 = vlog2.pop %v2239
    %v2397 = vmul.f32 %v2396, 0.6931472
    %v2398 = vlog2.pop %v2240
    %v2399 = vmul.f32 %v2398, 0.6931472
    %v2400 = vlog2.pop %v2241
    %v2401 = vmul.f32 %v2400, 0.6931472
    %v2402 = vadd.f32 %v2209, %v2397
    %v2403 = vadd.f32 %v2210, %v2399
    %v2404 = vadd.f32 %v2211, %v2401
    %v2405 = vsub.f32 %v2383, %v2402
    %v2406 = vsub.f32 %v2386, %v2403
    %v2407 = vsub.f32 %v2391, %v2404
    %v2411 = vcombine.high %v2405, %v2405
    %v2413 = vunpack.c.l.s4 1966171168
    %v2414 = vunpack.c.0.s8 %v2413
    %v2415 = vlaneseq
    %v2416 = vshrl.u32 %v2415, 7
    %v2417 = vsub.s32 %v2414, %v2416
    %v2418 = vrot.slane %v2405, %v2417
    %v2420 = vunpack.c.l.s4 1966171168
    %v2421 = vunpack.c.0.s8 %v2420
    %v2422 = vlaneseq
    %v2423 = vshrl.u32 %v2422, 7
    %v2424 = vsub.s32 %v2421, %v2423
    %v2425 = vrot.slane %v2411, %v2424
    %v2426 = vcombine.high %v2418, %v2418
    %v2427 = vcombine.high %v2425, %v2425
    %v2429 = vunpack.c.l.s4 1966171168
    %v2430 = vunpack.c.0.s8 %v2429
    %v2431 = vlaneseq
    %v2432 = vshrl.u32 %v2431, 7
    %v2433 = vsub.s32 %v2430, %v2432
    %v2434 = vrot.slane %v2418, %v2433
    %v2436 = vunpack.c.l.s4 1966171168
    %v2437 = vunpack.c.0.s8 %v2436
    %v2438 = vlaneseq
    %v2439 = vshrl.u32 %v2438, 7
    %v2440 = vsub.s32 %v2437, %v2439
    %v2441 = vrot.slane %v2425, %v2440
    %v2443 = vunpack.c.l.s4 1966171168
    %v2444 = vunpack.c.0.s8 %v2443
    %v2445 = vlaneseq
    %v2446 = vshrl.u32 %v2445, 7
    %v2447 = vsub.s32 %v2444, %v2446
    %v2448 = vrot.slane %v2426, %v2447
    %v2450 = vunpack.c.l.s4 1966171168
    %v2451 = vunpack.c.0.s8 %v2450
    %v2452 = vlaneseq
    %v2453 = vshrl.u32 %v2452, 7
    %v2454 = vsub.s32 %v2451, %v2453
    %v2455 = vrot.slane %v2427, %v2454
    %v2456 = vcombine.high %v2434, %v2434
    %v2457 = vcombine.high %v2441, %v2441
    %v2458 = vcombine.high %v2448, %v2448
    %v2459 = vcombine.high %v2455, %v2455
    %v2460 = vcombine.high %v2406, %v2406
    %v2462 = vunpack.c.l.s4 1966171168
    %v2463 = vunpack.c.0.s8 %v2462
    %v2464 = vlaneseq
    %v2465 = vshrl.u32 %v2464, 7
    %v2466 = vsub.s32 %v2463, %v2465
    %v2467 = vrot.slane %v2406, %v2466
    %v2469 = vunpack.c.l.s4 1966171168
    %v2470 = vunpack.c.0.s8 %v2469
    %v2471 = vlaneseq
    %v2472 = vshrl.u32 %v2471, 7
    %v2473 = vsub.s32 %v2470, %v2472
    %v2474 = vrot.slane %v2460, %v2473
    %v2475 = vcombine.high %v2467, %v2467
    %v2476 = vcombine.high %v2474, %v2474
    %v2478 = vunpack.c.l.s4 1966171168
    %v2479 = vunpack.c.0.s8 %v2478
    %v2480 = vlaneseq
    %v2481 = vshrl.u32 %v2480, 7
    %v2482 = vsub.s32 %v2479, %v2481
    %v2483 = vrot.slane %v2467, %v2482
    %v2485 = vunpack.c.l.s4 1966171168
    %v2486 = vunpack.c.0.s8 %v2485
    %v2487 = vlaneseq
    %v2488 = vshrl.u32 %v2487, 7
    %v2489 = vsub.s32 %v2486, %v2488
    %v2490 = vrot.slane %v2474, %v2489
    %v2492 = vunpack.c.l.s4 1966171168
    %v2493 = vunpack.c.0.s8 %v2492
    %v2494 = vlaneseq
    %v2495 = vshrl.u32 %v2494, 7
    %v2496 = vsub.s32 %v2493, %v2495
    %v2497 = vrot.slane %v2475, %v2496
    %v2499 = vunpack.c.l.s4 1966171168
    %v2500 = vunpack.c.0.s8 %v2499
    %v2501 = vlaneseq
    %v2502 = vshrl.u32 %v2501, 7
    %v2503 = vsub.s32 %v2500, %v2502
    %v2504 = vrot.slane %v2476, %v2503
    %v2505 = vcombine.high %v2483, %v2483
    %v2506 = vcombine.high %v2490, %v2490
    %v2507 = vcombine.high %v2497, %v2497
    %v2508 = vcombine.high %v2504, %v2504
    %v2509 = vcombine.high %v2407, %v2407
    %v2511 = vunpack.c.l.s4 1966171168
    %v2512 = vunpack.c.0.s8 %v2511
    %v2513 = vlaneseq
    %v2514 = vshrl.u32 %v2513, 7
    %v2515 = vsub.s32 %v2512, %v2514
    %v2516 = vrot.slane %v2407, %v2515
    %v2518 = vunpack.c.l.s4 1966171168
    %v2519 = vunpack.c.0.s8 %v2518
    %v2520 = vlaneseq
    %v2521 = vshrl.u32 %v2520, 7
    %v2522 = vsub.s32 %v2519, %v2521
    %v2523 = vrot.slane %v2509, %v2522
    %v2524 = vcombine.high %v2516, %v2516
    %v2525 = vcombine.high %v2523, %v2523
    %v2527 = vunpack.c.l.s4 1966171168
    %v2528 = vunpack.c.0.s8 %v2527
    %v2529 = vlaneseq
    %v2530 = vshrl.u32 %v2529, 7
    %v2531 = vsub.s32 %v2528, %v2530
    %v2532 = vrot.slane %v2516, %v2531
    %v2534 = vunpack.c.l.s4 1966171168
    %v2535 = vunpack.c.0.s8 %v2534
    %v2536 = vlaneseq
    %v2537 = vshrl.u32 %v2536, 7
    %v2538 = vsub.s32 %v2535, %v2537
    %v2539 = vrot.slane %v2523, %v2538
    %v2541 = vunpack.c.l.s4 1966171168
    %v2542 = vunpack.c.0.s8 %v2541
    %v2543 = vlaneseq
    %v2544 = vshrl.u32 %v2543, 7
    %v2545 = vsub.s32 %v2542, %v2544
    %v2546 = vrot.slane %v2524, %v2545
    %v2548 = vunpack.c.l.s4 1966171168
    %v2549 = vunpack.c.0.s8 %v2548
    %v2550 = vlaneseq
    %v2551 = vshrl.u32 %v2550, 7
    %v2552 = vsub.s32 %v2549, %v2551
    %v2553 = vrot.slane %v2525, %v2552
    %v2554 = vcombine.high %v2532, %v2532
    %v2555 = vcombine.high %v2539, %v2539
    %v2556 = vcombine.high %v2546, %v2546
    %v2557 = vcombine.high %v2553, %v2553
    %2582 = vst [vmem:[#allocation3 + $0x5] sm:$0x1] %v2434
    %2583 = vst [vmem:[#allocation3 + $0xd] sm:$0x1] %v2448
    %2584 = vst [vmem:[#allocation3 + $0x15] sm:$0x1] %v2456
    %2585 = vst [vmem:[#allocation3 + $0x1d] sm:$0x1] %v2458
    %2586 = vst [vmem:[#allocation3 + $0x25] sm:$0x1] %v2441
    %2587 = vst [vmem:[#allocation3 + $0x2d] sm:$0x1] %v2455
    %2588 = vst [vmem:[#allocation3 + $0x35] sm:$0x1] %v2457
    %2589 = vst [vmem:[#allocation3 + $0x3d] sm:$0x1] %v2459
    %2590 = vst [vmem:[#allocation3 + $0x45] sm:$0x1] %v2483
    %2591 = vst [vmem:[#allocation3 + $0x4d] sm:$0x1] %v2497
    %2592 = vst [vmem:[#allocation3 + $0x55] sm:$0x1] %v2505
    %2593 = vst [vmem:[#allocation3 + $0x5d] sm:$0x1] %v2507
    %2594 = vst [vmem:[#allocation3 + $0x65] sm:$0x1] %v2490
    %2595 = vst [vmem:[#allocation3 + $0x6d] sm:$0x1] %v2504
    %2596 = vst [vmem:[#allocation3 + $0x75] sm:$0x1] %v2506
    %2597 = vst [vmem:[#allocation3 + $0x7d] sm:$0x1] %v2508
    %2598 = vst [vmem:[#allocation3 + $0x85] sm:$0x1] %v2532
    %2599 = vst [vmem:[#allocation3 + $0x8d] sm:$0x1] %v2546
    %2600 = vst [vmem:[#allocation3 + $0x95] sm:$0x1] %v2554
    %2601 = vst [vmem:[#allocation3 + $0x9d] sm:$0x1] %v2556
    %2602 = vst [vmem:[#allocation3 + $0xa5] sm:$0x1] %v2539
    %2603 = vst [vmem:[#allocation3 + $0xad] sm:$0x1] %v2553
    %2604 = vst [vmem:[#allocation3 + $0xb5] sm:$0x1] %v2555
    %2605 = vst [vmem:[#allocation3 + $0xbd] sm:$0x1] %v2557
    %s2606 = scalar_lea.vmem [#allocation5], 144
    %v2607 = vld [vmem:[%s2606] sm:$0xff]
    %v2608 = vld [vmem:[%s2606 + $0x8] sm:$0xff]
    %v2609 = vld [vmem:[%s2606 + $0x10] sm:$0xff]
    %s2610 = scalar_lea.vmem [#allocation7], 384
    %v2611 = vld [vmem:[%s2610] sm:$0xf]
    %v2612 = vld [vmem:[%s2610 + $0x4] sm:$0xf]
    %v2613 = vld [vmem:[%s2610 + $0x8] sm:$0xf]
    %v2614 = vld [vmem:[%s2610 + $0xc] sm:$0xf]
    %v2615 = vld [vmem:[%s2610 + $0x10] sm:$0xf]
    %v2616 = vld [vmem:[%s2610 + $0x14] sm:$0xf]
    %v2617 = vld [vmem:[%s2610 + $0x18] sm:$0xf]
    %v2618 = vld [vmem:[%s2610 + $0x1c] sm:$0xf]
    %v2619 = vld [vmem:[%s2610 + $0x20] sm:$0xf]
    %v2620 = vld [vmem:[%s2610 + $0x24] sm:$0xf]
    %v2621 = vld [vmem:[%s2610 + $0x28] sm:$0xf]
    %v2622 = vld [vmem:[%s2610 + $0x2c] sm:$0xf]
    %v2623 = vld [vmem:[%s2610 + $0x30] sm:$0xf]
    %v2624 = vld [vmem:[%s2610 + $0x34] sm:$0xf]
    %v2625 = vld [vmem:[%s2610 + $0x38] sm:$0xf]
    %v2626 = vld [vmem:[%s2610 + $0x3c] sm:$0xf]
    %2627 = vmax.xlane.f32.xlu0 %v2607
    %v2628 = vpop.xlane.xlu0 %2627
    %2629 = vmax.xlane.f32.xlu0 %v2608
    %v2630 = vpop.xlane.xlu0 %2629
    %2631 = vmax.xlane.f32.xlu0 %v2609
    %v2632 = vpop.xlane.xlu0 %2631
    %v2633 = vmax.f32 %v2628, -1e+30
    %v2634 = vmax.f32 %v2630, -1e+30
    %v2635 = vmax.f32 %v2632, -1e+30
    %v2636 = vsub.f32 -1e+30, %v2633
    %v2637 = vsub.f32 -1e+30, %v2634
    %v2638 = vsub.f32 -1e+30, %v2635
    %v2639 = vmul.f32 %v2636, 1.442695
    %v2640 = vpow.pop %v2639
    %v2641 = vmul.f32 %v2637, 1.442695
    %v2642 = vpow.pop %v2641
    %v2643 = vmul.f32 %v2638, 1.442695
    %v2644 = vpow.pop %v2643
    %v2645 = vmul.f32 %v2640, 0.0
    %v2646 = vmul.f32 %v2642, 0.0
    %v2647 = vmul.f32 %v2644, 0.0
    %v2648 = vsub.f32 %v2607, %v2633
    %v2649 = vsub.f32 %v2608, %v2634
    %v2650 = vsub.f32 %v2609, %v2635
    %v2651 = vmul.f32 %v2648, 1.442695
    %v2652 = vpow.pop %v2651
    %v2653 = vmul.f32 %v2649, 1.442695
    %v2654 = vpow.pop %v2653
    %v2655 = vmul.f32 %v2650, 1.442695
    %v2656 = vpow.pop %v2655
    %2657 = vadd.xlane.f32.xlu0 %v2652
    %v2658 = vpop.xlane.xlu0 %2657
    %2659 = vadd.xlane.f32.xlu0 %v2654
    %v2660 = vpop.xlane.xlu0 %2659
    %2661 = vadd.xlane.f32.xlu0 %v2656
    %v2662 = vpop.xlane.xlu0 %2661
    %v2663 = vadd.f32 %v2645, %v2658
    %v2664 = vadd.f32 %v2646, %v2660
    %v2665 = vadd.f32 %v2647, %v2662
    %v2666 = vpack.c.bf16 %v2608, %v2607
    %v2667 = vpack.c.bf16 %v2609, %v2609
    %v2668 = vunpack.c.l.bf16 %v2666
    %v2669 = vunpack.c.h.bf16 %v2666
    %v2670 = vunpack.c.l.bf16 %v2667
    %v2671 = vsub.f32 %v2607, %v2668
    %v2672 = vsub.f32 %v2608, %v2669
    %v2673 = vsub.f32 %v2609, %v2670
    %v2674 = vpack.c.bf16 %v2672, %v2671
    %v2675 = vpack.c.bf16 %v2673, %v2673
    %v2692 = vunpack.c.l.b16 %v2611
    %v2693 = vunpack.c.l.b16 %v2612
    %v2694 = vunpack.c.l.b16 %v2613
    %v2695 = vunpack.c.l.b16 %v2614
    %v2696 = vunpack.c.l.b16 %v2615
    %v2697 = vunpack.c.l.b16 %v2616
    %v2698 = vunpack.c.l.b16 %v2617
    %v2699 = vunpack.c.l.b16 %v2618
    %v2700 = vunpack.c.l.b16 %v2619
    %v2701 = vunpack.c.l.b16 %v2620
    %v2702 = vunpack.c.l.b16 %v2621
    %v2703 = vunpack.c.l.b16 %v2622
    %v2704 = vunpack.c.l.b16 %v2623
    %v2705 = vunpack.c.l.b16 %v2624
    %v2706 = vunpack.c.l.b16 %v2625
    %v2707 = vunpack.c.l.b16 %v2626
    %v2708 = vpack.c.b16 %v2693, %v2692
    %v2709 = vpack.c.b16 %v2695, %v2694
    %v2710 = vpack.c.b16 %v2697, %v2696
    %v2711 = vpack.c.b16 %v2699, %v2698
    %v2712 = vpack.c.b16 %v2701, %v2700
    %v2713 = vpack.c.b16 %v2703, %v2702
    %v2714 = vpack.c.b16 %v2705, %v2704
    %v2715 = vpack.c.b16 %v2707, %v2706
    %2724 = vmatprep.subr.bf16.mxu0 0
    %2725 = vmatpush1.bf16.msra.mxu0 %v2708
    %2726 = vmatprep.subr.bf16.mxu0 0
    %2727 = vmatpush1.bf16.msra.mxu0 %v2709
    %2728 = vmatprep.subr.bf16.mxu0 0
    %2729 = vmatpush1.bf16.msra.mxu0 %v2710
    %2730 = vmatprep.subr.bf16.mxu0 0
    %2731 = vmatpush1.bf16.msra.mxu0 %v2711
    %2732 = vmatprep.subr.bf16.mxu0 0
    %2733 = vmatpush1.bf16.msra.mxu0 %v2712
    %2734 = vmatprep.subr.bf16.mxu0 0
    %2735 = vmatpush1.bf16.msra.mxu0 %v2713
    %2736 = vmatprep.subr.bf16.mxu0 0
    %2737 = vmatpush1.bf16.msra.mxu0 %v2714
    %2738 = vmatprep.subr.bf16.mxu0 0
    %2739 = vmatpush1.bf16.msra.mxu0 %v2715
    %2740 = vmatprep.subr.bf16.mxu0 0
    %2741 = vmatpush1.bf16.msra.mxu0 0
    %2742 = vmatprep.subr.bf16.mxu0 0
    %2743 = vmatpush1.bf16.msra.mxu0 0
    %2744 = vmatprep.subr.bf16.mxu0 0
    %2745 = vmatpush1.bf16.msra.mxu0 0
    %2746 = vmatprep.subr.bf16.mxu0 0
    %2747 = vmatpush1.bf16.msra.mxu0 0
    %2748 = vmatprep.subr.bf16.mxu0 0
    %2749 = vmatpush1.bf16.msra.mxu0 0
    %2750 = vmatprep.subr.bf16.mxu0 0
    %2751 = vmatpush1.bf16.msra.mxu0 0
    %2752 = vmatprep.subr.bf16.mxu0 0
    %2753 = vmatpush1.bf16.msra.mxu0 0
    %2754 = vmatprep.subr.bf16.mxu0 0
    %2755 = vmatpush1.bf16.msra.mxu0 0
    %2756 = vmatprep.mubr.bf16.mxu0 0
    %2757 = vmatmul.mubr.bf16.gmra.mrb[0].mxu0 %v2674
    %v2758 = vpop.f32.mrb[0].mxu0
    %v2759 = vadd.f32 0.0, %v2758
    %v2760 = vpop.f32.mrb[0].mxu0
    %v2761 = vpop.f32.mrb[0].mxu0
    %v2762 = vadd.f32 0.0, %v2761
    %v2763 = vpop.f32.mrb[0].mxu0
    %2764 = vmatprep.mubr.bf16.mxu0 0
    %2765 = vmatmul.mubr.bf16.gmra.mrb[0].mxu0 %v2675
    %v2766 = vpop.f32.mrb[0].mxu0
    %v2767 = vadd.f32 0.0, %v2766
    %v2768 = vpop.f32.mrb[0].mxu0
    %v2769 = vpop.f32.mrb[0].mxu0
    %v2770 = vpop.f32.mrb[0].mxu0
    %2771 = vdwg.mxu0
    %2772 = vmatprep.subr.bf16.mxu0 0
    %2773 = vmatpush1.bf16.msra.mxu0 %v2708
    %2774 = vmatprep.subr.bf16.mxu0 0
    %2775 = vmatpush1.bf16.msra.mxu0 %v2709
    %2776 = vmatprep.subr.bf16.mxu0 0
    %2777 = vmatpush1.bf16.msra.mxu0 %v2710
    %2778 = vmatprep.subr.bf16.mxu0 0
    %2779 = vmatpush1.bf16.msra.mxu0 %v2711
    %2780 = vmatprep.subr.bf16.mxu0 0
    %2781 = vmatpush1.bf16.msra.mxu0 %v2712
    %2782 = vmatprep.subr.bf16.mxu0 0
    %2783 = vmatpush1.bf16.msra.mxu0 %v2713
    %2784 = vmatprep.subr.bf16.mxu0 0
    %2785 = vmatpush1.bf16.msra.mxu0 %v2714
    %2786 = vmatprep.subr.bf16.mxu0 0
    %2787 = vmatpush1.bf16.msra.mxu0 %v2715
    %2788 = vmatprep.subr.bf16.mxu0 0
    %2789 = vmatpush1.bf16.msra.mxu0 0
    %2790 = vmatprep.subr.bf16.mxu0 0
    %2791 = vmatpush1.bf16.msra.mxu0 0
    %2792 = vmatprep.subr.bf16.mxu0 0
    %2793 = vmatpush1.bf16.msra.mxu0 0
    %2794 = vmatprep.subr.bf16.mxu0 0
    %2795 = vmatpush1.bf16.msra.mxu0 0
    %2796 = vmatprep.subr.bf16.mxu0 0
    %2797 = vmatpush1.bf16.msra.mxu0 0
    %2798 = vmatprep.subr.bf16.mxu0 0
    %2799 = vmatpush1.bf16.msra.mxu0 0
    %2800 = vmatprep.subr.bf16.mxu0 0
    %2801 = vmatpush1.bf16.msra.mxu0 0
    %2802 = vmatprep.subr.bf16.mxu0 0
    %2803 = vmatpush1.bf16.msra.mxu0 0
    %2804 = vmatprep.mubr.bf16.mxu0 0
    %2805 = vmatmul.mubr.bf16.gmra.mrb[0].mxu0 %v2666
    %v2806 = vpop.f32.mrb[0].mxu0
    %v2807 = vadd.f32 %v2759, %v2806
    %v2808 = vpop.f32.mrb[0].mxu0
    %v2809 = vpop.f32.mrb[0].mxu0
    %v2810 = vadd.f32 %v2762, %v2809
    %v2811 = vpop.f32.mrb[0].mxu0
    %2812 = vmatprep.mubr.bf16.mxu0 0
    %2813 = vmatmul.mubr.bf16.gmra.mrb[0].mxu0 %v2667
    %v2814 = vpop.f32.mrb[0].mxu0
    %v2815 = vadd.f32 %v2767, %v2814
    %v2816 = vpop.f32.mrb[0].mxu0
    %v2817 = vpop.f32.mrb[0].mxu0
    %v2818 = vpop.f32.mrb[0].mxu0
    %2819 = vdwg.mxu0
    %v2820 = vlog2.pop %v2663
    %v2821 = vmul.f32 %v2820, 0.6931472
    %v2822 = vlog2.pop %v2664
    %v2823 = vmul.f32 %v2822, 0.6931472
    %v2824 = vlog2.pop %v2665
    %v2825 = vmul.f32 %v2824, 0.6931472
    %v2826 = vadd.f32 %v2633, %v2821
    %v2827 = vadd.f32 %v2634, %v2823
    %v2828 = vadd.f32 %v2635, %v2825
    %v2829 = vsub.f32 %v2807, %v2826
    %v2830 = vsub.f32 %v2810, %v2827
    %v2831 = vsub.f32 %v2815, %v2828
    %v2835 = vcombine.high %v2829, %v2829
    %v2837 = vunpack.c.l.s4 1966171168
    %v2838 = vunpack.c.0.s8 %v2837
    %v2839 = vlaneseq
    %v2840 = vshrl.u32 %v2839, 7
    %v2841 = vsub.s32 %v2838, %v2840
    %v2842 = vrot.slane %v2829, %v2841
    %v2844 = vunpack.c.l.s4 1966171168
    %v2845 = vunpack.c.0.s8 %v2844
    %v2846 = vlaneseq
    %v2847 = vshrl.u32 %v2846, 7
    %v2848 = vsub.s32 %v2845, %v2847
    %v2849 = vrot.slane %v2835, %v2848
    %v2850 = vcombine.high %v2842, %v2842
    %v2851 = vcombine.high %v2849, %v2849
    %v2853 = vunpack.c.l.s4 1966171168
    %v2854 = vunpack.c.0.s8 %v2853
    %v2855 = vlaneseq
    %v2856 = vshrl.u32 %v2855, 7
    %v2857 = vsub.s32 %v2854, %v2856
    %v2858 = vrot.slane %v2842, %v2857
    %v2860 = vunpack.c.l.s4 1966171168
    %v2861 = vunpack.c.0.s8 %v2860
    %v2862 = vlaneseq
    %v2863 = vshrl.u32 %v2862, 7
    %v2864 = vsub.s32 %v2861, %v2863
    %v2865 = vrot.slane %v2849, %v2864
    %v2867 = vunpack.c.l.s4 1966171168
    %v2868 = vunpack.c.0.s8 %v2867
    %v2869 = vlaneseq
    %v2870 = vshrl.u32 %v2869, 7
    %v2871 = vsub.s32 %v2868, %v2870
    %v2872 = vrot.slane %v2850, %v2871
    %v2874 = vunpack.c.l.s4 1966171168
    %v2875 = vunpack.c.0.s8 %v2874
    %v2876 = vlaneseq
    %v2877 = vshrl.u32 %v2876, 7
    %v2878 = vsub.s32 %v2875, %v2877
    %v2879 = vrot.slane %v2851, %v2878
    %v2880 = vcombine.high %v2858, %v2858
    %v2881 = vcombine.high %v2865, %v2865
    %v2882 = vcombine.high %v2872, %v2872
    %v2883 = vcombine.high %v2879, %v2879
    %v2884 = vcombine.high %v2830, %v2830
    %v2886 = vunpack.c.l.s4 1966171168
    %v2887 = vunpack.c.0.s8 %v2886
    %v2888 = vlaneseq
    %v2889 = vshrl.u32 %v2888, 7
    %v2890 = vsub.s32 %v2887, %v2889
    %v2891 = vrot.slane %v2830, %v2890
    %v2893 = vunpack.c.l.s4 1966171168
    %v2894 = vunpack.c.0.s8 %v2893
    %v2895 = vlaneseq
    %v2896 = vshrl.u32 %v2895, 7
    %v2897 = vsub.s32 %v2894, %v2896
    %v2898 = vrot.slane %v2884, %v2897
    %v2899 = vcombine.high %v2891, %v2891
    %v2900 = vcombine.high %v2898, %v2898
    %v2902 = vunpack.c.l.s4 1966171168
    %v2903 = vunpack.c.0.s8 %v2902
    %v2904 = vlaneseq
    %v2905 = vshrl.u32 %v2904, 7
    %v2906 = vsub.s32 %v2903, %v2905
    %v2907 = vrot.slane %v2891, %v2906
    %v2909 = vunpack.c.l.s4 1966171168
    %v2910 = vunpack.c.0.s8 %v2909
    %v2911 = vlaneseq
    %v2912 = vshrl.u32 %v2911, 7
    %v2913 = vsub.s32 %v2910, %v2912
    %v2914 = vrot.slane %v2898, %v2913
    %v2916 = vunpack.c.l.s4 1966171168
    %v2917 = vunpack.c.0.s8 %v2916
    %v2918 = vlaneseq
    %v2919 = vshrl.u32 %v2918, 7
    %v2920 = vsub.s32 %v2917, %v2919
    %v2921 = vrot.slane %v2899, %v2920
    %v2923 = vunpack.c.l.s4 1966171168
    %v2924 = vunpack.c.0.s8 %v2923
    %v2925 = vlaneseq
    %v2926 = vshrl.u32 %v2925, 7
    %v2927 = vsub.s32 %v2924, %v2926
    %v2928 = vrot.slane %v2900, %v2927
    %v2929 = vcombine.high %v2907, %v2907
    %v2930 = vcombine.high %v2914, %v2914
    %v2931 = vcombine.high %v2921, %v2921
    %v2932 = vcombine.high %v2928, %v2928
    %v2933 = vcombine.high %v2831, %v2831
    %v2935 = vunpack.c.l.s4 1966171168
    %v2936 = vunpack.c.0.s8 %v2935
    %v2937 = vlaneseq
    %v2938 = vshrl.u32 %v2937, 7
    %v2939 = vsub.s32 %v2936, %v2938
    %v2940 = vrot.slane %v2831, %v2939
    %v2942 = vunpack.c.l.s4 1966171168
    %v2943 = vunpack.c.0.s8 %v2942
    %v2944 = vlaneseq
    %v2945 = vshrl.u32 %v2944, 7
    %v2946 = vsub.s32 %v2943, %v2945
    %v2947 = vrot.slane %v2933, %v2946
    %v2948 = vcombine.high %v2940, %v2940
    %v2949 = vcombine.high %v2947, %v2947
    %v2951 = vunpack.c.l.s4 1966171168
    %v2952 = vunpack.c.0.s8 %v2951
    %v2953 = vlaneseq
    %v2954 = vshrl.u32 %v2953, 7
    %v2955 = vsub.s32 %v2952, %v2954
    %v2956 = vrot.slane %v2940, %v2955
    %v2958 = vunpack.c.l.s4 1966171168
    %v2959 = vunpack.c.0.s8 %v2958
    %v2960 = vlaneseq
    %v2961 = vshrl.u32 %v2960, 7
    %v2962 = vsub.s32 %v2959, %v2961
    %v2963 = vrot.slane %v2947, %v2962
    %v2965 = vunpack.c.l.s4 1966171168
    %v2966 = vunpack.c.0.s8 %v2965
    %v2967 = vlaneseq
    %v2968 = vshrl.u32 %v2967, 7
    %v2969 = vsub.s32 %v2966, %v2968
    %v2970 = vrot.slane %v2948, %v2969
    %v2972 = vunpack.c.l.s4 1966171168
    %v2973 = vunpack.c.0.s8 %v2972
    %v2974 = vlaneseq
    %v2975 = vshrl.u32 %v2974, 7
    %v2976 = vsub.s32 %v2973, %v2975
    %v2977 = vrot.slane %v2949, %v2976
    %v2978 = vcombine.high %v2956, %v2956
    %v2979 = vcombine.high %v2963, %v2963
    %v2980 = vcombine.high %v2970, %v2970
    %v2981 = vcombine.high %v2977, %v2977
    %3006 = vst [vmem:[#allocation3 + $0x6] sm:$0x1] %v2858
    %3007 = vst [vmem:[#allocation3 + $0xe] sm:$0x1] %v2872
    %3008 = vst [vmem:[#allocation3 + $0x16] sm:$0x1] %v2880
    %3009 = vst [vmem:[#allocation3 + $0x1e] sm:$0x1] %v2882
    %3010 = vst [vmem:[#allocation3 + $0x26] sm:$0x1] %v2865
    %3011 = vst [vmem:[#allocation3 + $0x2e] sm:$0x1] %v2879
    %3012 = vst [vmem:[#allocation3 + $0x36] sm:$0x1] %v2881
    %3013 = vst [vmem:[#allocation3 + $0x3e] sm:$0x1] %v2883
    %3014 = vst [vmem:[#allocation3 + $0x46] sm:$0x1] %v2907
    %3015 = vst [vmem:[#allocation3 + $0x4e] sm:$0x1] %v2921
    %3016 = vst [vmem:[#allocation3 + $0x56] sm:$0x1] %v2929
    %3017 = vst [vmem:[#allocation3 + $0x5e] sm:$0x1] %v2931
    %3018 = vst [vmem:[#allocation3 + $0x66] sm:$0x1] %v2914
    %3019 = vst [vmem:[#allocation3 + $0x6e] sm:$0x1] %v2928
    %3020 = vst [vmem:[#allocation3 + $0x76] sm:$0x1] %v2930
    %3021 = vst [vmem:[#allocation3 + $0x7e] sm:$0x1] %v2932
    %3022 = vst [vmem:[#allocation3 + $0x86] sm:$0x1] %v2956
    %3023 = vst [vmem:[#allocation3 + $0x8e] sm:$0x1] %v2970
    %3024 = vst [vmem:[#allocation3 + $0x96] sm:$0x1] %v2978
    %3025 = vst [vmem:[#allocation3 + $0x9e] sm:$0x1] %v2980
    %3026 = vst [vmem:[#allocation3 + $0xa6] sm:$0x1] %v2963
    %3027 = vst [vmem:[#allocation3 + $0xae] sm:$0x1] %v2977
    %3028 = vst [vmem:[#allocation3 + $0xb6] sm:$0x1] %v2979
    %3029 = vst [vmem:[#allocation3 + $0xbe] sm:$0x1] %v2981
    %s3030 = scalar_lea.vmem [#allocation5], 168
    %v3031 = vld [vmem:[%s3030] sm:$0xff]
    %v3032 = vld [vmem:[%s3030 + $0x8] sm:$0xff]
    %v3033 = vld [vmem:[%s3030 + $0x10] sm:$0xff]
    %s3034 = scalar_lea.vmem [#allocation7], 448
    %v3035 = vld [vmem:[%s3034] sm:$0xf]
    %v3036 = vld [vmem:[%s3034 + $0x4] sm:$0xf]
    %v3037 = vld [vmem:[%s3034 + $0x8] sm:$0xf]
    %v3038 = vld [vmem:[%s3034 + $0xc] sm:$0xf]
    %v3039 = vld [vmem:[%s3034 + $0x10] sm:$0xf]
    %v3040 = vld [vmem:[%s3034 + $0x14] sm:$0xf]
    %v3041 = vld [vmem:[%s3034 + $0x18] sm:$0xf]
    %v3042 = vld [vmem:[%s3034 + $0x1c] sm:$0xf]
    %v3043 = vld [vmem:[%s3034 + $0x20] sm:$0xf]
    %v3044 = vld [vmem:[%s3034 + $0x24] sm:$0xf]
    %v3045 = vld [vmem:[%s3034 + $0x28] sm:$0xf]
    %v3046 = vld [vmem:[%s3034 + $0x2c] sm:$0xf]
    %v3047 = vld [vmem:[%s3034 + $0x30] sm:$0xf]
    %v3048 = vld [vmem:[%s3034 + $0x34] sm:$0xf]
    %v3049 = vld [vmem:[%s3034 + $0x38] sm:$0xf]
    %v3050 = vld [vmem:[%s3034 + $0x3c] sm:$0xf]
    %3051 = vmax.xlane.f32.xlu0 %v3031
    %v3052 = vpop.xlane.xlu0 %3051
    %3053 = vmax.xlane.f32.xlu0 %v3032
    %v3054 = vpop.xlane.xlu0 %3053
    %3055 = vmax.xlane.f32.xlu0 %v3033
    %v3056 = vpop.xlane.xlu0 %3055
    %v3057 = vmax.f32 %v3052, -1e+30
    %v3058 = vmax.f32 %v3054, -1e+30
    %v3059 = vmax.f32 %v3056, -1e+30
    %v3060 = vsub.f32 -1e+30, %v3057
    %v3061 = vsub.f32 -1e+30, %v3058
    %v3062 = vsub.f32 -1e+30, %v3059
    %v3063 = vmul.f32 %v3060, 1.442695
    %v3064 = vpow.pop %v3063
    %v3065 = vmul.f32 %v3061, 1.442695
    %v3066 = vpow.pop %v3065
    %v3067 = vmul.f32 %v3062, 1.442695
    %v3068 = vpow.pop %v3067
    %v3069 = vmul.f32 %v3064, 0.0
    %v3070 = vmul.f32 %v3066, 0.0
    %v3071 = vmul.f32 %v3068, 0.0
    %v3072 = vsub.f32 %v3031, %v3057
    %v3073 = vsub.f32 %v3032, %v3058
    %v3074 = vsub.f32 %v3033, %v3059
    %v3075 = vmul.f32 %v3072, 1.442695
    %v3076 = vpow.pop %v3075
    %v3077 = vmul.f32 %v3073, 1.442695
    %v3078 = vpow.pop %v3077
    %v3079 = vmul.f32 %v3074, 1.442695
    %v3080 = vpow.pop %v3079
    %3081 = vadd.xlane.f32.xlu0 %v3076
    %v3082 = vpop.xlane.xlu0 %3081
    %3083 = vadd.xlane.f32.xlu0 %v3078
    %v3084 = vpop.xlane.xlu0 %3083
    %3085 = vadd.xlane.f32.xlu0 %v3080
    %v3086 = vpop.xlane.xlu0 %3085
    %v3087 = vadd.f32 %v3069, %v3082
    %v3088 = vadd.f32 %v3070, %v3084
    %v3089 = vadd.f32 %v3071, %v3086
    %v3090 = vpack.c.bf16 %v3032, %v3031
    %v3091 = vpack.c.bf16 %v3033, %v3033
    %v3092 = vunpack.c.l.bf16 %v3090
    %v3093 = vunpack.c.h.bf16 %v3090
    %v3094 = vunpack.c.l.bf16 %v3091
    %v3095 = vsub.f32 %v3031, %v3092
    %v3096 = vsub.f32 %v3032, %v3093
    %v3097 = vsub.f32 %v3033, %v3094
    %v3098 = vpack.c.bf16 %v3096, %v3095
    %v3099 = vpack.c.bf16 %v3097, %v3097
    %v3116 = vunpack.c.l.b16 %v3035
    %v3117 = vunpack.c.l.b16 %v3036
    %v3118 = vunpack.c.l.b16 %v3037
    %v3119 = vunpack.c.l.b16 %v3038
    %v3120 = vunpack.c.l.b16 %v3039
    %v3121 = vunpack.c.l.b16 %v3040
    %v3122 = vunpack.c.l.b16 %v3041
    %v3123 = vunpack.c.l.b16 %v3042
    %v3124 = vunpack.c.l.b16 %v3043
    %v3125 = vunpack.c.l.b16 %v3044
    %v3126 = vunpack.c.l.b16 %v3045
    %v3127 = vunpack.c.l.b16 %v3046
    %v3128 = vunpack.c.l.b16 %v3047
    %v3129 = vunpack.c.l.b16 %v3048
    %v3130 = vunpack.c.l.b16 %v3049
    %v3131 = vunpack.c.l.b16 %v3050
    %v3132 = vpack.c.b16 %v3117, %v3116
    %v3133 = vpack.c.b16 %v3119, %v3118
    %v3134 = vpack.c.b16 %v3121, %v3120
    %v3135 = vpack.c.b16 %v3123, %v3122
    %v3136 = vpack.c.b16 %v3125, %v3124
    %v3137 = vpack.c.b16 %v3127, %v3126
    %v3138 = vpack.c.b16 %v3129, %v3128
    %v3139 = vpack.c.b16 %v3131, %v3130
    %3148 = vmatprep.subr.bf16.mxu0 0
    %3149 = vmatpush1.bf16.msra.mxu0 %v3132
    %3150 = vmatprep.subr.bf16.mxu0 0
    %3151 = vmatpush1.bf16.msra.mxu0 %v3133
    %3152 = vmatprep.subr.bf16.mxu0 0
    %3153 = vmatpush1.bf16.msra.mxu0 %v3134
    %3154 = vmatprep.subr.bf16.mxu0 0
    %3155 = vmatpush1.bf16.msra.mxu0 %v3135
    %3156 = vmatprep.subr.bf16.mxu0 0
    %3157 = vmatpush1.bf16.msra.mxu0 %v3136
    %3158 = vmatprep.subr.bf16.mxu0 0
    %3159 = vmatpush1.bf16.msra.mxu0 %v3137
    %3160 = vmatprep.subr.bf16.mxu0 0
    %3161 = vmatpush1.bf16.msra.mxu0 %v3138
    %3162 = vmatprep.subr.bf16.mxu0 0
    %3163 = vmatpush1.bf16.msra.mxu0 %v3139
    %3164 = vmatprep.subr.bf16.mxu0 0
    %3165 = vmatpush1.bf16.msra.mxu0 0
    %3166 = vmatprep.subr.bf16.mxu0 0
    %3167 = vmatpush1.bf16.msra.mxu0 0
    %3168 = vmatprep.subr.bf16.mxu0 0
    %3169 = vmatpush1.bf16.msra.mxu0 0
    %3170 = vmatprep.subr.bf16.mxu0 0
    %3171 = vmatpush1.bf16.msra.mxu0 0
    %3172 = vmatprep.subr.bf16.mxu0 0
    %3173 = vmatpush1.bf16.msra.mxu0 0
    %3174 = vmatprep.subr.bf16.mxu0 0
    %3175 = vmatpush1.bf16.msra.mxu0 0
    %3176 = vmatprep.subr.bf16.mxu0 0
    %3177 = vmatpush1.bf16.msra.mxu0 0
    %3178 = vmatprep.subr.bf16.mxu0 0
    %3179 = vmatpush1.bf16.msra.mxu0 0
    %3180 = vmatprep.mubr.bf16.mxu0 0
    %3181 = vmatmul.mubr.bf16.gmra.mrb[0].mxu0 %v3098
    %v3182 = vpop.f32.mrb[0].mxu0
    %v3183 = vadd.f32 0.0, %v3182
    %v3184 = vpop.f32.mrb[0].mxu0
    %v3185 = vpop.f32.mrb[0].mxu0
    %v3186 = vadd.f32 0.0, %v3185
    %v3187 = vpop.f32.mrb[0].mxu0
    %3188 = vmatprep.mubr.bf16.mxu0 0
    %3189 = vmatmul.mubr.bf16.gmra.mrb[0].mxu0 %v3099
    %v3190 = vpop.f32.mrb[0].mxu0
    %v3191 = vadd.f32 0.0, %v3190
    %v3192 = vpop.f32.mrb[0].mxu0
    %v3193 = vpop.f32.mrb[0].mxu0
    %v3194 = vpop.f32.mrb[0].mxu0
    %3195 = vdwg.mxu0
    %3196 = vmatprep.subr.bf16.mxu0 0
    %3197 = vmatpush1.bf16.msra.mxu0 %v3132
    %3198 = vmatprep.subr.bf16.mxu0 0
    %3199 = vmatpush1.bf16.msra.mxu0 %v3133
    %3200 = vmatprep.subr.bf16.mxu0 0
    %3201 = vmatpush1.bf16.msra.mxu0 %v3134
    %3202 = vmatprep.subr.bf16.mxu0 0
    %3203 = vmatpush1.bf16.msra.mxu0 %v3135
    %3204 = vmatprep.subr.bf16.mxu0 0
    %3205 = vmatpush1.bf16.msra.mxu0 %v3136
    %3206 = vmatprep.subr.bf16.mxu0 0
    %3207 = vmatpush1.bf16.msra.mxu0 %v3137
    %3208 = vmatprep.subr.bf16.mxu0 0
    %3209 = vmatpush1.bf16.msra.mxu0 %v3138
    %3210 = vmatprep.subr.bf16.mxu0 0
    %3211 = vmatpush1.bf16.msra.mxu0 %v3139
    %3212 = vmatprep.subr.bf16.mxu0 0
    %3213 = vmatpush1.bf16.msra.mxu0 0
    %3214 = vmatprep.subr.bf16.mxu0 0
    %3215 = vmatpush1.bf16.msra.mxu0 0
    %3216 = vmatprep.subr.bf16.mxu0 0
    %3217 = vmatpush1.bf16.msra.mxu0 0
    %3218 = vmatprep.subr.bf16.mxu0 0
    %3219 = vmatpush1.bf16.msra.mxu0 0
    %3220 = vmatprep.subr.bf16.mxu0 0
    %3221 = vmatpush1.bf16.msra.mxu0 0
    %3222 = vmatprep.subr.bf16.mxu0 0
    %3223 = vmatpush1.bf16.msra.mxu0 0
    %3224 = vmatprep.subr.bf16.mxu0 0
    %3225 = vmatpush1.bf16.msra.mxu0 0
    %3226 = vmatprep.subr.bf16.mxu0 0
    %3227 = vmatpush1.bf16.msra.mxu0 0
    %3228 = vmatprep.mubr.bf16.mxu0 0
    %3229 = vmatmul.mubr.bf16.gmra.mrb[0].mxu0 %v3090
    %v3230 = vpop.f32.mrb[0].mxu0
    %v3231 = vadd.f32 %v3183, %v3230
    %v3232 = vpop.f32.mrb[0].mxu0
    %v3233 = vpop.f32.mrb[0].mxu0
    %v3234 = vadd.f32 %v3186, %v3233
    %v3235 = vpop.f32.mrb[0].mxu0
    %3236 = vmatprep.mubr.bf16.mxu0 0
    %3237 = vmatmul.mubr.bf16.gmra.mrb[0].mxu0 %v3091
    %v3238 = vpop.f32.mrb[0].mxu0
    %v3239 = vadd.f32 %v3191, %v3238
    %v3240 = vpop.f32.mrb[0].mxu0
    %v3241 = vpop.f32.mrb[0].mxu0
    %v3242 = vpop.f32.mrb[0].mxu0
    %3243 = vdwg.mxu0
    %v3244 = vlog2.pop %v3087
    %v3245 = vmul.f32 %v3244, 0.6931472
    %v3246 = vlog2.pop %v3088
    %v3247 = vmul.f32 %v3246, 0.6931472
    %v3248 = vlog2.pop %v3089
    %v3249 = vmul.f32 %v3248, 0.6931472
    %v3250 = vadd.f32 %v3057, %v3245
    %v3251 = vadd.f32 %v3058, %v3247
    %v3252 = vadd.f32 %v3059, %v3249
    %v3253 = vsub.f32 %v3231, %v3250
    %v3254 = vsub.f32 %v3234, %v3251
    %v3255 = vsub.f32 %v3239, %v3252
    %v3259 = vcombine.high %v3253, %v3253
    %v3261 = vunpack.c.l.s4 1966171168
    %v3262 = vunpack.c.0.s8 %v3261
    %v3263 = vlaneseq
    %v3264 = vshrl.u32 %v3263, 7
    %v3265 = vsub.s32 %v3262, %v3264
    %v3266 = vrot.slane %v3253, %v3265
    %v3268 = vunpack.c.l.s4 1966171168
    %v3269 = vunpack.c.0.s8 %v3268
    %v3270 = vlaneseq
    %v3271 = vshrl.u32 %v3270, 7
    %v3272 = vsub.s32 %v3269, %v3271
    %v3273 = vrot.slane %v3259, %v3272
    %v3274 = vcombine.high %v3266, %v3266
    %v3275 = vcombine.high %v3273, %v3273
    %v3277 = vunpack.c.l.s4 1966171168
    %v3278 = vunpack.c.0.s8 %v3277
    %v3279 = vlaneseq
    %v3280 = vshrl.u32 %v3279, 7
    %v3281 = vsub.s32 %v3278, %v3280
    %v3282 = vrot.slane %v3266, %v3281
    %v3284 = vunpack.c.l.s4 1966171168
    %v3285 = vunpack.c.0.s8 %v3284
    %v3286 = vlaneseq
    %v3287 = vshrl.u32 %v3286, 7
    %v3288 = vsub.s32 %v3285, %v3287
    %v3289 = vrot.slane %v3273, %v3288
    %v3291 = vunpack.c.l.s4 1966171168
    %v3292 = vunpack.c.0.s8 %v3291
    %v3293 = vlaneseq
    %v3294 = vshrl.u32 %v3293, 7
    %v3295 = vsub.s32 %v3292, %v3294
    %v3296 = vrot.slane %v3274, %v3295
    %v3298 = vunpack.c.l.s4 1966171168
    %v3299 = vunpack.c.0.s8 %v3298
    %v3300 = vlaneseq
    %v3301 = vshrl.u32 %v3300, 7
    %v3302 = vsub.s32 %v3299, %v3301
    %v3303 = vrot.slane %v3275, %v3302
    %v3304 = vcombine.high %v3282, %v3282
    %v3305 = vcombine.high %v3289, %v3289
    %v3306 = vcombine.high %v3296, %v3296
    %v3307 = vcombine.high %v3303, %v3303
    %v3308 = vcombine.high %v3254, %v3254
    %v3310 = vunpack.c.l.s4 1966171168
    %v3311 = vunpack.c.0.s8 %v3310
    %v3312 = vlaneseq
    %v3313 = vshrl.u32 %v3312, 7
    %v3314 = vsub.s32 %v3311, %v3313
    %v3315 = vrot.slane %v3254, %v3314
    %v3317 = vunpack.c.l.s4 1966171168
    %v3318 = vunpack.c.0.s8 %v3317
    %v3319 = vlaneseq
    %v3320 = vshrl.u32 %v3319, 7
    %v3321 = vsub.s32 %v3318, %v3320
    %v3322 = vrot.slane %v3308, %v3321
    %v3323 = vcombine.high %v3315, %v3315
    %v3324 = vcombine.high %v3322, %v3322
    %v3326 = vunpack.c.l.s4 1966171168
    %v3327 = vunpack.c.0.s8 %v3326
    %v3328 = vlaneseq
    %v3329 = vshrl.u32 %v3328, 7
    %v3330 = vsub.s32 %v3327, %v3329
    %v3331 = vrot.slane %v3315, %v3330
    %v3333 = vunpack.c.l.s4 1966171168
    %v3334 = vunpack.c.0.s8 %v3333
    %v3335 = vlaneseq
    %v3336 = vshrl.u32 %v3335, 7
    %v3337 = vsub.s32 %v3334, %v3336
    %v3338 = vrot.slane %v3322, %v3337
    %v3340 = vunpack.c.l.s4 1966171168
    %v3341 = vunpack.c.0.s8 %v3340
    %v3342 = vlaneseq
    %v3343 = vshrl.u32 %v3342, 7
    %v3344 = vsub.s32 %v3341, %v3343
    %v3345 = vrot.slane %v3323, %v3344
    %v3347 = vunpack.c.l.s4 1966171168
    %v3348 = vunpack.c.0.s8 %v3347
    %v3349 = vlaneseq
    %v3350 = vshrl.u32 %v3349, 7
    %v3351 = vsub.s32 %v3348, %v3350
    %v3352 = vrot.slane %v3324, %v3351
    %v3353 = vcombine.high %v3331, %v3331
    %v3354 = vcombine.high %v3338, %v3338
    %v3355 = vcombine.high %v3345, %v3345
    %v3356 = vcombine.high %v3352, %v3352
    %v3357 = vcombine.high %v3255, %v3255
    %v3359 = vunpack.c.l.s4 1966171168
    %v3360 = vunpack.c.0.s8 %v3359
    %v3361 = vlaneseq
    %v3362 = vshrl.u32 %v3361, 7
    %v3363 = vsub.s32 %v3360, %v3362
    %v3364 = vrot.slane %v3255, %v3363
    %v3366 = vunpack.c.l.s4 1966171168
    %v3367 = vunpack.c.0.s8 %v3366
    %v3368 = vlaneseq
    %v3369 = vshrl.u32 %v3368, 7
    %v3370 = vsub.s32 %v3367, %v3369
    %v3371 = vrot.slane %v3357, %v3370
    %v3372 = vcombine.high %v3364, %v3364
    %v3373 = vcombine.high %v3371, %v3371
    %v3375 = vunpack.c.l.s4 1966171168
    %v3376 = vunpack.c.0.s8 %v3375
    %v3377 = vlaneseq
    %v3378 = vshrl.u32 %v3377, 7
    %v3379 = vsub.s32 %v3376, %v3378
    %v3380 = vrot.slane %v3364, %v3379
    %v3382 = vunpack.c.l.s4 1966171168
    %v3383 = vunpack.c.0.s8 %v3382
    %v3384 = vlaneseq
    %v3385 = vshrl.u32 %v3384, 7
    %v3386 = vsub.s32 %v3383, %v3385
    %v3387 = vrot.slane %v3371, %v3386
    %v3389 = vunpack.c.l.s4 1966171168
    %v3390 = vunpack.c.0.s8 %v3389
    %v3391 = vlaneseq
    %v3392 = vshrl.u32 %v3391, 7
    %v3393 = vsub.s32 %v3390, %v3392
    %v3394 = vrot.slane %v3372, %v3393
    %v3396 = vunpack.c.l.s4 1966171168
    %v3397 = vunpack.c.0.s8 %v3396
    %v3398 = vlaneseq
    %v3399 = vshrl.u32 %v3398, 7
    %v3400 = vsub.s32 %v3397, %v3399
    %v3401 = vrot.slane %v3373, %v3400
    %v3402 = vcombine.high %v3380, %v3380
    %v3403 = vcombine.high %v3387, %v3387
    %v3404 = vcombine.high %v3394, %v3394
    %v3405 = vcombine.high %v3401, %v3401
    %3430 = vst [vmem:[#allocation3 + $0x7] sm:$0x1] %v3282
    %3431 = vst [vmem:[#allocation3 + $0xf] sm:$0x1] %v3296
    %3432 = vst [vmem:[#allocation3 + $0x17] sm:$0x1] %v3304
    %3433 = vst [vmem:[#allocation3 + $0x1f] sm:$0x1] %v3306
    %3434 = vst [vmem:[#allocation3 + $0x27] sm:$0x1] %v3289
    %3435 = vst [vmem:[#allocation3 + $0x2f] sm:$0x1] %v3303
    %3436 = vst [vmem:[#allocation3 + $0x37] sm:$0x1] %v3305
    %3437 = vst [vmem:[#allocation3 + $0x3f] sm:$0x1] %v3307
    %3438 = vst [vmem:[#allocation3 + $0x47] sm:$0x1] %v3331
    %3439 = vst [vmem:[#allocation3 + $0x4f] sm:$0x1] %v3345
    %3440 = vst [vmem:[#allocation3 + $0x57] sm:$0x1] %v3353
    %3441 = vst [vmem:[#allocation3 + $0x5f] sm:$0x1] %v3355
    %3442 = vst [vmem:[#allocation3 + $0x67] sm:$0x1] %v3338
    %3443 = vst [vmem:[#allocation3 + $0x6f] sm:$0x1] %v3352
    %3444 = vst [vmem:[#allocation3 + $0x77] sm:$0x1] %v3354
    %3445 = vst [vmem:[#allocation3 + $0x7f] sm:$0x1] %v3356
    %3446 = vst [vmem:[#allocation3 + $0x87] sm:$0x1] %v3380
    %3447 = vst [vmem:[#allocation3 + $0x8f] sm:$0x1] %v3394
    %3448 = vst [vmem:[#allocation3 + $0x97] sm:$0x1] %v3402
    %3449 = vst [vmem:[#allocation3 + $0x9f] sm:$0x1] %v3404
    %3450 = vst [vmem:[#allocation3 + $0xa7] sm:$0x1] %v3387
    %3451 = vst [vmem:[#allocation3 + $0xaf] sm:$0x1] %v3401
    %3452 = vst [vmem:[#allocation3 + $0xb7] sm:$0x1] %v3403
    %3453 = vst [vmem:[#allocation3 + $0xbf] sm:$0x1] %v3405
    %s3454 = smul.u32 0, 24
    %v3455 = vstv %s3454
    %v3456 = vadd.s32 %v3455, 1
    %v3457 = vadd.s32 %v3455, 2
    %v3458 = vadd.s32 %v3455, 3
    %v3459 = vadd.s32 %v3455, 4
    %v3460 = vadd.s32 %v3455, 5
    %v3461 = vadd.s32 %v3455, 6
    %v3462 = vadd.s32 %v3455, 7
    %v3463 = vadd.s32 %v3455, 8
    %v3464 = vadd.s32 %v3455, 9
    %v3465 = vadd.s32 %v3455, 10
    %v3466 = vadd.s32 %v3455, 11
    %v3467 = vadd.s32 %v3455, 12
    %v3468 = vadd.s32 %v3455, 13
    %v3469 = vadd.s32 %v3455, 14
    %v3470 = vadd.s32 %v3455, 15
    %v3471 = vadd.s32 %v3455, 16
    %v3472 = vadd.s32 %v3455, 17
    %v3473 = vadd.s32 %v3455, 18
    %v3474 = vadd.s32 %v3455, 19
    %v3475 = vadd.s32 %v3455, 20
    %v3476 = vadd.s32 %v3455, 21
    %v3477 = vadd.s32 %v3455, 22
    %v3478 = vadd.s32 %v3455, 23
    %vm3479 = vcmp.ge.s32.totalorder %v3455, 1
    %vm3480 = vcmp.ge.s32.totalorder %v3456, 1
    %vm3481 = vcmp.ge.s32.totalorder %v3457, 1
    %vm3482 = vcmp.ge.s32.totalorder %v3458, 1
    %vm3483 = vcmp.ge.s32.totalorder %v3459, 1
    %vm3484 = vcmp.ge.s32.totalorder %v3460, 1
    %vm3485 = vcmp.ge.s32.totalorder %v3461, 1
    %vm3486 = vcmp.ge.s32.totalorder %v3462, 1
    %vm3487 = vcmp.ge.s32.totalorder %v3463, 1
    %vm3488 = vcmp.ge.s32.totalorder %v3464, 1
    %vm3489 = vcmp.ge.s32.totalorder %v3465, 1
    %vm3490 = vcmp.ge.s32.totalorder %v3466, 1
    %vm3491 = vcmp.ge.s32.totalorder %v3467, 1
    %vm3492 = vcmp.ge.s32.totalorder %v3468, 1
    %vm3493 = vcmp.ge.s32.totalorder %v3469, 1
    %vm3494 = vcmp.ge.s32.totalorder %v3470, 1
    %vm3495 = vcmp.ge.s32.totalorder %v3471, 1
    %vm3496 = vcmp.ge.s32.totalorder %v3472, 1
    %vm3497 = vcmp.ge.s32.totalorder %v3473, 1
    %vm3498 = vcmp.ge.s32.totalorder %v3474, 1
    %vm3499 = vcmp.ge.s32.totalorder %v3475, 1
    %vm3500 = vcmp.ge.s32.totalorder %v3476, 1
    %vm3501 = vcmp.ge.s32.totalorder %v3477, 1
    %vm3502 = vcmp.ge.s32.totalorder %v3478, 1
    %3503 = vset.pattern.permute.xlu0 0
    %3504 = vperm.xlu0 %3503, %v58
    %v3505 = vpop.permute.xlu0 %3504
    %vm3506 = vcmp.lt.s32.totalorder %v3455, %v3505
    %vm3507 = vcmp.lt.s32.totalorder %v3456, %v3505
    %vm3508 = vcmp.lt.s32.totalorder %v3457, %v3505
    %vm3509 = vcmp.lt.s32.totalorder %v3458, %v3505
    %vm3510 = vcmp.lt.s32.totalorder %v3459, %v3505
    %vm3511 = vcmp.lt.s32.totalorder %v3460, %v3505
    %vm3512 = vcmp.lt.s32.totalorder %v3461, %v3505
    %vm3513 = vcmp.lt.s32.totalorder %v3462, %v3505
    %vm3514 = vcmp.lt.s32.totalorder %v3463, %v3505
    %vm3515 = vcmp.lt.s32.totalorder %v3464, %v3505
    %vm3516 = vcmp.lt.s32.totalorder %v3465, %v3505
    %vm3517 = vcmp.lt.s32.totalorder %v3466, %v3505
    %vm3518 = vcmp.lt.s32.totalorder %v3467, %v3505
    %vm3519 = vcmp.lt.s32.totalorder %v3468, %v3505
    %vm3520 = vcmp.lt.s32.totalorder %v3469, %v3505
    %vm3521 = vcmp.lt.s32.totalorder %v3470, %v3505
    %vm3522 = vcmp.lt.s32.totalorder %v3471, %v3505
    %vm3523 = vcmp.lt.s32.totalorder %v3472, %v3505
    %vm3524 = vcmp.lt.s32.totalorder %v3473, %v3505
    %vm3525 = vcmp.lt.s32.totalorder %v3474, %v3505
    %vm3526 = vcmp.lt.s32.totalorder %v3475, %v3505
    %vm3527 = vcmp.lt.s32.totalorder %v3476, %v3505
    %vm3528 = vcmp.lt.s32.totalorder %v3477, %v3505
    %vm3529 = vcmp.lt.s32.totalorder %v3478, %v3505
    %vm3530 = vmand %vm3479, %vm3506
    %vm3531 = vmand %vm3480, %vm3507
    %vm3532 = vmand %vm3481, %vm3508
    %vm3533 = vmand %vm3482, %vm3509
    %vm3534 = vmand %vm3483, %vm3510
    %vm3535 = vmand %vm3484, %vm3511
    %vm3536 = vmand %vm3485, %vm3512
    %vm3537 = vmand %vm3486, %vm3513
    %vm3538 = vmand %vm3487, %vm3514
    %vm3539 = vmand %vm3488, %vm3515
    %vm3540 = vmand %vm3489, %vm3516
    %vm3541 = vmand %vm3490, %vm3517
    %vm3542 = vmand %vm3491, %vm3518
    %vm3543 = vmand %vm3492, %vm3519
    %vm3544 = vmand %vm3493, %vm3520
    %vm3545 = vmand %vm3494, %vm3521
    %vm3546 = vmand %vm3495, %vm3522
    %vm3547 = vmand %vm3496, %vm3523
    %vm3548 = vmand %vm3497, %vm3524
    %vm3549 = vmand %vm3498, %vm3525
    %vm3550 = vmand %vm3499, %vm3526
    %vm3551 = vmand %vm3500, %vm3527
    %vm3552 = vmand %vm3501, %vm3528
    %vm3553 = vmand %vm3502, %vm3529
    %v3554 = vsel %vm3530, 1.0, 0.0
    %v3555 = vsel %vm3531, 1.0, 0.0
    %v3556 = vsel %vm3532, 1.0, 0.0
    %v3557 = vsel %vm3533, 1.0, 0.0
    %v3558 = vsel %vm3534, 1.0, 0.0
    %v3559 = vsel %vm3535, 1.0, 0.0
    %v3560 = vsel %vm3536, 1.0, 0.0
    %v3561 = vsel %vm3537, 1.0, 0.0
    %v3562 = vsel %vm3538, 1.0, 0.0
    %v3563 = vsel %vm3539, 1.0, 0.0
    %v3564 = vsel %vm3540, 1.0, 0.0
    %v3565 = vsel %vm3541, 1.0, 0.0
    %v3566 = vsel %vm3542, 1.0, 0.0
    %v3567 = vsel %vm3543, 1.0, 0.0
    %v3568 = vsel %vm3544, 1.0, 0.0
    %v3569 = vsel %vm3545, 1.0, 0.0
    %v3570 = vsel %vm3546, 1.0, 0.0
    %v3571 = vsel %vm3547, 1.0, 0.0
    %v3572 = vsel %vm3548, 1.0, 0.0
    %v3573 = vsel %vm3549, 1.0, 0.0
    %v3574 = vsel %vm3550, 1.0, 0.0
    %v3575 = vsel %vm3551, 1.0, 0.0
    %v3576 = vsel %vm3552, 1.0, 0.0
    %v3577 = vsel %vm3553, 1.0, 0.0
    %3578 = vst [vmem:[#allocation4] sm:$0xff] %v3554
    %3579 = vst [vmem:[#allocation4 + $0x8] sm:$0xff] %v3555
    %3580 = vst [vmem:[#allocation4 + $0x10] sm:$0xff] %v3556
    %3581 = vst [vmem:[#allocation4 + $0x18] sm:$0xff] %v3557
    %3582 = vst [vmem:[#allocation4 + $0x20] sm:$0xff] %v3558
    %3583 = vst [vmem:[#allocation4 + $0x28] sm:$0xff] %v3559
    %3584 = vst [vmem:[#allocation4 + $0x30] sm:$0xff] %v3560
    %3585 = vst [vmem:[#allocation4 + $0x38] sm:$0xff] %v3561
    %3586 = vst [vmem:[#allocation4 + $0x40] sm:$0xff] %v3562
    %3587 = vst [vmem:[#allocation4 + $0x48] sm:$0xff] %v3563
    %3588 = vst [vmem:[#allocation4 + $0x50] sm:$0xff] %v3564
    %3589 = vst [vmem:[#allocation4 + $0x58] sm:$0xff] %v3565
    %3590 = vst [vmem:[#allocation4 + $0x60] sm:$0xff] %v3566
    %3591 = vst [vmem:[#allocation4 + $0x68] sm:$0xff] %v3567
    %3592 = vst [vmem:[#allocation4 + $0x70] sm:$0xff] %v3568
    %3593 = vst [vmem:[#allocation4 + $0x78] sm:$0xff] %v3569
    %3594 = vst [vmem:[#allocation4 + $0x80] sm:$0xff] %v3570
    %3595 = vst [vmem:[#allocation4 + $0x88] sm:$0xff] %v3571
    %3596 = vst [vmem:[#allocation4 + $0x90] sm:$0xff] %v3572
    %3597 = vst [vmem:[#allocation4 + $0x98] sm:$0xff] %v3573
    %3598 = vst [vmem:[#allocation4 + $0xa0] sm:$0xff] %v3574
    %3599 = vst [vmem:[#allocation4 + $0xa8] sm:$0xff] %v3575
    %3600 = vst [vmem:[#allocation4 + $0xb0] sm:$0xff] %v3576
    %3601 = vst [vmem:[#allocation4 + $0xb8] sm:$0xff] %v3577
    %p3602 = scmp.eq.s32.totalorder 0, 0
    // Predicated region
    $region30: #{tpu_custom_call.1} parent=1 // pred_check
      %p3603 = pneg %p3602
    $region31: #{tpu_custom_call.1} parent=1 // pred_check_branch
      %3605 = sbr.rel (%p3603) target = $region33
    $region32: #{tpu_custom_call.1} parent=1 // pred_region
      %vm3606 = vcmask 7168
      %3607 = vst.msk [vmem:[%s4] sm:$0xff] %vm3606, 0.0
      %vm3608 = vcmp.lt.s32.totalorder %v60, 2
      %v3609 = vld [vmem:[#allocation3] sm:$0xff]
      %v3610 = vsel %vm3608, %v3609, -1e+30
      %3611 = vst [vmem:[#allocation2] sm:$0xff] %v3610
    $region33: #{tpu_custom_call.1} parent=1 // pred_fallthru
      _
    %v3612 = vld [vmem:[#allocation2] sm:$0xff]
    loop: start=0, step=1, limit=3
    $region34: #{tpu_custom_call.1} parent=1 // loop_pre_header
      _
    $region35: #{tpu_custom_call.1} parent=1 // loop_header
      %s3614 = sphi 0, %s3618
      %p3615 = scmp.ge.s32.totalorder %s3614, 3
      %v3619 = vphi %v3612, %v3867
    $region36: #{tpu_custom_call.1} parent=1 // loop_header_branch
      %3617 = sbr.rel (%p3615) target = $region40
    $region37: #{tpu_custom_call.1} parent=1 // loop_body
      %s3620 = smul.u32 %s3614, 8
      %s3621 = smul.u32 %s3620, 8
      %s3622 = scalar_lea.vmem [#allocation3], %s3621
      %v3623 = vld [vmem:[%s3622] sm:$0xff]
      %s3624 = scalar_lea.vmem [#allocation4], %s3621
      %v3625 = vld [vmem:[%s3624] sm:$0xff]
      %3626 = vrot.lane.b32.xlu0 %v3619, 1
      %v3627 = vpop.permute.xlu0 %3626
      %v3628 = vadd.f32 %v3627, %v62
      %3629 = vrot.lane.b32.xlu0 %v3619, 2
      %v3630 = vpop.permute.xlu0 %3629
      %v3631 = vadd.f32 %v3630, %v63
      %v3632 = vmax.f32 %v3619, %v3628
      %v3633 = vmax.f32 %v3632, %v3631
      %v3634 = vsub.f32 %v3619, %v3633
      %v3635 = vmul.f32 %v3634, 1.442695
      %v3636 = vpow.pop %v3635
      %v3637 = vsub.f32 %v3628, %v3633
      %v3638 = vmul.f32 %v3637, 1.442695
      %v3639 = vpow.pop %v3638
      %v3640 = vadd.f32 %v3636, %v3639
      %v3641 = vsub.f32 %v3631, %v3633
      %v3642 = vmul.f32 %v3641, 1.442695
      %v3643 = vpow.pop %v3642
      %v3644 = vadd.f32 %v3640, %v3643
      %v3645 = vlog2.pop %v3644
      %v3646 = vmul.f32 %v3645, 0.6931472
      %v3647 = vadd.f32 %v3633, %v3646
      %vm3648 = vcmp.gt.f32.partialorder %v3625, 0.5
      %v3649 = vadd.f32 %v3623, %v3647
      %v3650 = vsel %vm3648, %v3649, %v3619
      %s3651 = sadd.s32 %s3620, 1
      %s3652 = smul.u32 %s3651, 8
      %s3653 = scalar_lea.vmem [#allocation3], %s3652
      %v3654 = vld [vmem:[%s3653] sm:$0xff]
      %s3655 = scalar_lea.vmem [#allocation4], %s3652
      %v3656 = vld [vmem:[%s3655] sm:$0xff]
      %3657 = vrot.lane.b32.xlu0 %v3650, 1
      %v3658 = vpop.permute.xlu0 %3657
      %v3659 = vadd.f32 %v3658, %v62
      %3660 = vrot.lane.b32.xlu0 %v3650, 2
      %v3661 = vpop.permute.xlu0 %3660
      %v3662 = vadd.f32 %v3661, %v63
      %v3663 = vmax.f32 %v3650, %v3659
      %v3664 = vmax.f32 %v3663, %v3662
      %v3665 = vsub.f32 %v3650, %v3664
      %v3666 = vmul.f32 %v3665, 1.442695
      %v3667 = vpow.pop %v3666
      %v3668 = vsub.f32 %v3659, %v3664
      %v3669 = vmul.f32 %v3668, 1.442695
      %v3670 = vpow.pop %v3669
      %v3671 = vadd.f32 %v3667, %v3670
      %v3672 = vsub.f32 %v3662, %v3664
      %v3673 = vmul.f32 %v3672, 1.442695
      %v3674 = vpow.pop %v3673
      %v3675 = vadd.f32 %v3671, %v3674
      %v3676 = vlog2.pop %v3675
      %v3677 = vmul.f32 %v3676, 0.6931472
      %v3678 = vadd.f32 %v3664, %v3677
      %vm3679 = vcmp.gt.f32.partialorder %v3656, 0.5
      %v3680 = vadd.f32 %v3654, %v3678
      %v3681 = vsel %vm3679, %v3680, %v3650
      %s3682 = sadd.s32 %s3620, 2
      %s3683 = smul.u32 %s3682, 8
      %s3684 = scalar_lea.vmem [#allocation3], %s3683
      %v3685 = vld [vmem:[%s3684] sm:$0xff]
      %s3686 = scalar_lea.vmem [#allocation4], %s3683
      %v3687 = vld [vmem:[%s3686] sm:$0xff]
      %3688 = vrot.lane.b32.xlu0 %v3681, 1
      %v3689 = vpop.permute.xlu0 %3688
      %v3690 = vadd.f32 %v3689, %v62
      %3691 = vrot.lane.b32.xlu0 %v3681, 2
      %v3692 = vpop.permute.xlu0 %3691
      %v3693 = vadd.f32 %v3692, %v63
      %v3694 = vmax.f32 %v3681, %v3690
      %v3695 = vmax.f32 %v3694, %v3693
      %v3696 = vsub.f32 %v3681, %v3695
      %v3697 = vmul.f32 %v3696, 1.442695
      %v3698 = vpow.pop %v3697
      %v3699 = vsub.f32 %v3690, %v3695
      %v3700 = vmul.f32 %v3699, 1.442695
      %v3701 = vpow.pop %v3700
      %v3702 = vadd.f32 %v3698, %v3701
      %v3703 = vsub.f32 %v3693, %v3695
      %v3704 = vmul.f32 %v3703, 1.442695
      %v3705 = vpow.pop %v3704
      %v3706 = vadd.f32 %v3702, %v3705
      %v3707 = vlog2.pop %v3706
      %v3708 = vmul.f32 %v3707, 0.6931472
      %v3709 = vadd.f32 %v3695, %v3708
      %vm3710 = vcmp.gt.f32.partialorder %v3687, 0.5
      %v3711 = vadd.f32 %v3685, %v3709
      %v3712 = vsel %vm3710, %v3711, %v3681
      %s3713 = sadd.s32 %s3620, 3
      %s3714 = smul.u32 %s3713, 8
      %s3715 = scalar_lea.vmem [#allocation3], %s3714
      %v3716 = vld [vmem:[%s3715] sm:$0xff]
      %s3717 = scalar_lea.vmem [#allocation4], %s3714
      %v3718 = vld [vmem:[%s3717] sm:$0xff]
      %3719 = vrot.lane.b32.xlu0 %v3712, 1
      %v3720 = vpop.permute.xlu0 %3719
      %v3721 = vadd.f32 %v3720, %v62
      %3722 = vrot.lane.b32.xlu0 %v3712, 2
      %v3723 = vpop.permute.xlu0 %3722
      %v3724 = vadd.f32 %v3723, %v63
      %v3725 = vmax.f32 %v3712, %v3721
      %v3726 = vmax.f32 %v3725, %v3724
      %v3727 = vsub.f32 %v3712, %v3726
      %v3728 = vmul.f32 %v3727, 1.442695
      %v3729 = vpow.pop %v3728
      %v3730 = vsub.f32 %v3721, %v3726
      %v3731 = vmul.f32 %v3730, 1.442695
      %v3732 = vpow.pop %v3731
      %v3733 = vadd.f32 %v3729, %v3732
      %v3734 = vsub.f32 %v3724, %v3726
      %v3735 = vmul.f32 %v3734, 1.442695
      %v3736 = vpow.pop %v3735
      %v3737 = vadd.f32 %v3733, %v3736
      %v3738 = vlog2.pop %v3737
      %v3739 = vmul.f32 %v3738, 0.6931472
      %v3740 = vadd.f32 %v3726, %v3739
      %vm3741 = vcmp.gt.f32.partialorder %v3718, 0.5
      %v3742 = vadd.f32 %v3716, %v3740
      %v3743 = vsel %vm3741, %v3742, %v3712
      %s3744 = sadd.s32 %s3620, 4
      %s3745 = smul.u32 %s3744, 8
      %s3746 = scalar_lea.vmem [#allocation3], %s3745
      %v3747 = vld [vmem:[%s3746] sm:$0xff]
      %s3748 = scalar_lea.vmem [#allocation4], %s3745
      %v3749 = vld [vmem:[%s3748] sm:$0xff]
      %3750 = vrot.lane.b32.xlu0 %v3743, 1
      %v3751 = vpop.permute.xlu0 %3750
      %v3752 = vadd.f32 %v3751, %v62
      %3753 = vrot.lane.b32.xlu0 %v3743, 2
      %v3754 = vpop.permute.xlu0 %3753
      %v3755 = vadd.f32 %v3754, %v63
      %v3756 = vmax.f32 %v3743, %v3752
      %v3757 = vmax.f32 %v3756, %v3755
      %v3758 = vsub.f32 %v3743, %v3757
      %v3759 = vmul.f32 %v3758, 1.442695
      %v3760 = vpow.pop %v3759
      %v3761 = vsub.f32 %v3752, %v3757
      %v3762 = vmul.f32 %v3761, 1.442695
      %v3763 = vpow.pop %v3762
      %v3764 = vadd.f32 %v3760, %v3763
      %v3765 = vsub.f32 %v3755, %v3757
      %v3766 = vmul.f32 %v3765, 1.442695
      %v3767 = vpow.pop %v3766
      %v3768 = vadd.f32 %v3764, %v3767
      %v3769 = vlog2.pop %v3768
      %v3770 = vmul.f32 %v3769, 0.6931472
      %v3771 = vadd.f32 %v3757, %v3770
      %vm3772 = vcmp.gt.f32.partialorder %v3749, 0.5
      %v3773 = vadd.f32 %v3747, %v3771
      %v3774 = vsel %vm3772, %v3773, %v3743
      %s3775 = sadd.s32 %s3620, 5
      %s3776 = smul.u32 %s3775, 8
      %s3777 = scalar_lea.vmem [#allocation3], %s3776
      %v3778 = vld [vmem:[%s3777] sm:$0xff]
      %s3779 = scalar_lea.vmem [#allocation4], %s3776
      %v3780 = vld [vmem:[%s3779] sm:$0xff]
      %3781 = vrot.lane.b32.xlu0 %v3774, 1
      %v3782 = vpop.permute.xlu0 %3781
      %v3783 = vadd.f32 %v3782, %v62
      %3784 = vrot.lane.b32.xlu0 %v3774, 2
      %v3785 = vpop.permute.xlu0 %3784
      %v3786 = vadd.f32 %v3785, %v63
      %v3787 = vmax.f32 %v3774, %v3783
      %v3788 = vmax.f32 %v3787, %v3786
      %v3789 = vsub.f32 %v3774, %v3788
      %v3790 = vmul.f32 %v3789, 1.442695
      %v3791 = vpow.pop %v3790
      %v3792 = vsub.f32 %v3783, %v3788
      %v3793 = vmul.f32 %v3792, 1.442695
      %v3794 = vpow.pop %v3793
      %v3795 = vadd.f32 %v3791, %v3794
      %v3796 = vsub.f32 %v3786, %v3788
      %v3797 = vmul.f32 %v3796, 1.442695
      %v3798 = vpow.pop %v3797
      %v3799 = vadd.f32 %v3795, %v3798
      %v3800 = vlog2.pop %v3799
      %v3801 = vmul.f32 %v3800, 0.6931472
      %v3802 = vadd.f32 %v3788, %v3801
      %vm3803 = vcmp.gt.f32.partialorder %v3780, 0.5
      %v3804 = vadd.f32 %v3778, %v3802
      %v3805 = vsel %vm3803, %v3804, %v3774
      %s3806 = sadd.s32 %s3620, 6
      %s3807 = smul.u32 %s3806, 8
      %s3808 = scalar_lea.vmem [#allocation3], %s3807
      %v3809 = vld [vmem:[%s3808] sm:$0xff]
      %s3810 = scalar_lea.vmem [#allocation4], %s3807
      %v3811 = vld [vmem:[%s3810] sm:$0xff]
      %3812 = vrot.lane.b32.xlu0 %v3805, 1
      %v3813 = vpop.permute.xlu0 %3812
      %v3814 = vadd.f32 %v3813, %v62
      %3815 = vrot.lane.b32.xlu0 %v3805, 2
      %v3816 = vpop.permute.xlu0 %3815
      %v3817 = vadd.f32 %v3816, %v63
      %v3818 = vmax.f32 %v3805, %v3814
      %v3819 = vmax.f32 %v3818, %v3817
      %v3820 = vsub.f32 %v3805, %v3819
      %v3821 = vmul.f32 %v3820, 1.442695
      %v3822 = vpow.pop %v3821
      %v3823 = vsub.f32 %v3814, %v3819
      %v3824 = vmul.f32 %v3823, 1.442695
      %v3825 = vpow.pop %v3824
      %v3826 = vadd.f32 %v3822, %v3825
      %v3827 = vsub.f32 %v3817, %v3819
      %v3828 = vmul.f32 %v3827, 1.442695
      %v3829 = vpow.pop %v3828
      %v3830 = vadd.f32 %v3826, %v3829
      %v3831 = vlog2.pop %v3830
      %v3832 = vmul.f32 %v3831, 0.6931472
      %v3833 = vadd.f32 %v3819, %v3832
      %vm3834 = vcmp.gt.f32.partialorder %v3811, 0.5
      %v3835 = vadd.f32 %v3809, %v3833
      %v3836 = vsel %vm3834, %v3835, %v3805
      %s3837 = sadd.s32 %s3620, 7
      %s3838 = smul.u32 %s3837, 8
      %s3839 = scalar_lea.vmem [#allocation3], %s3838
      %v3840 = vld [vmem:[%s3839] sm:$0xff]
      %s3841 = scalar_lea.vmem [#allocation4], %s3838
      %v3842 = vld [vmem:[%s3841] sm:$0xff]
      %3843 = vrot.lane.b32.xlu0 %v3836, 1
      %v3844 = vpop.permute.xlu0 %3843
      %v3845 = vadd.f32 %v3844, %v62
      %3846 = vrot.lane.b32.xlu0 %v3836, 2
      %v3847 = vpop.permute.xlu0 %3846
      %v3848 = vadd.f32 %v3847, %v63
      %v3849 = vmax.f32 %v3836, %v3845
      %v3850 = vmax.f32 %v3849, %v3848
      %v3851 = vsub.f32 %v3836, %v3850
      %v3852 = vmul.f32 %v3851, 1.442695
      %v3853 = vpow.pop %v3852
      %v3854 = vsub.f32 %v3845, %v3850
      %v3855 = vmul.f32 %v3854, 1.442695
      %v3856 = vpow.pop %v3855
      %v3857 = vadd.f32 %v3853, %v3856
      %v3858 = vsub.f32 %v3848, %v3850
      %v3859 = vmul.f32 %v3858, 1.442695
      %v3860 = vpow.pop %v3859
      %v3861 = vadd.f32 %v3857, %v3860
      %v3862 = vlog2.pop %v3861
      %v3863 = vmul.f32 %v3862, 0.6931472
      %v3864 = vadd.f32 %v3850, %v3863
      %vm3865 = vcmp.gt.f32.partialorder %v3842, 0.5
      %v3866 = vadd.f32 %v3840, %v3864
      %v3867 = vsel %vm3865, %v3866, %v3836
    $region38: #{tpu_custom_call.1} parent=1 // loop_footer
      %s3618 = sadd.s32 1, %s3614
    $region39: #{tpu_custom_call.1} parent=1 // loop_footer_branch
      %3613 = sbr.rel target = $region35
    $region40: #{tpu_custom_call.1} parent=1 // loop_exit
      _
    %3868 = vst [vmem:[#allocation2] sm:$0xff] %v3619
    // Predicated region
    $region41: #{tpu_custom_call.1} parent=1 // pred_check
      %p3869 = pneg %p3602
    $region42: #{tpu_custom_call.1} parent=1 // pred_check_branch
      %3871 = sbr.rel (%p3869) target = $region44
    $region43: #{tpu_custom_call.1} parent=1 // pred_region
      %v3872 = vsub.s32 %v58, 1
      %3873 = vset.pattern.permute.xlu0 1
      %3874 = vperm.xlu0 %3873, %v3872
      %v3875 = vpop.permute.xlu0 %3874
      %vm3876 = vcmp.eq.s32.totalorder %v60, %v3875
      %v3877 = vsub.s32 %v58, 2
      %3878 = vset.pattern.permute.xlu0 1
      %3879 = vperm.xlu0 %3878, %v3877
      %v3880 = vpop.permute.xlu0 %3879
      %vm3881 = vcmp.eq.s32.totalorder %v60, %v3880
      %vm3882 = vmor %vm3876, %vm3881
      %v3883 = vsel %vm3882, %v3619, -1e+30
      %3884 = vmax.xlane.f32.xlu0 %v3883
      %v3885 = vpop.xlane.xlu0 %3884
      %v3886 = vsub.f32 %v3883, %v3885
      %v3887 = vmul.f32 %v3886, 1.442695
      %v3888 = vpow.pop %v3887
      %3889 = vadd.xlane.f32.xlu0 %v3888
      %v3890 = vpop.xlane.xlu0 %3889
      %v3891 = vlog2.pop %v3890
      %v3892 = vmul.f32 %v3891, 0.6931472
      %v3893 = vadd.f32 %v3885, %v3892
      %v3894 = vsub.f32 0.0, %v3893
      %v3895 = vmul.f32 %v3894, %v57
      %3897 = vrot.lane.b32.xlu0 %v3895, 126
      %v3898 = vpop.permute.xlu0 %3897
      %vm3900 = vcmask 7168
      %3901 = vst.msk [vmem:[%s4] sm:$0xff] %vm3900, %v3898
    $region44: #{tpu_custom_call.1} parent=1 // pred_fallthru
      _
    // Predicated region
    $region45: #{tpu_custom_call.1} parent=1 // pred_check
      _
    $region46: #{tpu_custom_call.1} parent=1 // pred_check_branch
      %3903 = sbr.rel (0) target = $region48
    $region47: #{tpu_custom_call.1} parent=1 // pred_region
      _
    $region48: #{tpu_custom_call.1} parent=1 // pred_fallthru
      _
    // Predicated region
    $region49: #{tpu_custom_call.1} parent=1 // pred_check
      _
    $region50: #{tpu_custom_call.1} parent=1 // pred_check_branch
      %3905 = sbr.rel (0) target = $region52
    $region51: #{tpu_custom_call.1} parent=1 // pred_region
      _
    $region52: #{tpu_custom_call.1} parent=1 // pred_fallthru
      _
    %3906 = vsyncpa [#allocation6], 1
    %3907 = vsyncpa [#allocation8], 1

// kernel: tpu_custom_call.1
$region0: #{tpu_custom_call.1}
  #allocation0 [shape = 'u32[]', space=smem, size = 0x4, offset = 0x4, fixed_abs, tag = 'smem constant byte address 0x4 - core index']
  #allocation1 [shape = 'u32[144,128]{1,0:T(1,128)}', space=vmem, size = 0x12000, scoped, tag = 'internal scratch']
  #allocation2 [shape = 'f32[8,128]{1,0:T(8,128)}', space=vmem, size = 0x1000, scoped, tag = 'scratch operand']
  #allocation3 [shape = 'f32[24,8,128]{2,1,0:T(8,128)}', space=vmem, size = 0x18000, scoped, tag = 'scratch operand']
  #allocation4 [shape = 'f32[24,8,128]{2,1,0:T(8,128)}', space=vmem, size = 0x18000, scoped, tag = 'scratch operand']
  %s0 = inlined_call_operand.hbm [shape: f32[8,24,128], index: 0, kind: input, shape index: {}]
  %s1 = inlined_call_operand.hbm [shape: bf16[8,128,128], index: 1, kind: input, shape index: {}]
  %s2 = inlined_call_operand.hbm [shape: f32[8,128], index: 2, kind: input, shape index: {}]
  %s3 = inlined_call_operand.vmem [shape: f32[8,128], index: 3, kind: input, shape index: {}]
  %s4 = inlined_call_operand.vmem [shape: f32[8,1], index: 4, kind: output, shape index: {}]
  %s5 = sld [smem:[#allocation0]]
  $region53: #{tpu_custom_call.1} parent=0
    _
  %s7 = ssub.s32 1, %s5
  %s8 = scalar_select 0, %s7, %s5
  $region1: #{tpu_custom_call.1} parent=0
    #allocation5 [shape = 'u8[98304]{0}', space=vmem, size = 0x18000, scoped, tag = 'input window, operand 0, single buffered']
    #allocation6 [shape = 's32[1]{0}', space=sflag, size = 0x4, scoped, tag = 'scoped memory for tpu_custom_call.1']
    #allocation7 [shape = 'u8[262144]{0}', space=vmem, size = 0x40000, scoped, tag = 'input window, operand 1, single buffered']
    #allocation8 [shape = 's32[1]{0}', space=sflag, size = 0x4, scoped, tag = 'scoped memory for tpu_custom_call.1']
    #allocation9 [shape = 'u8[4096]{0}', space=vmem, size = 0x1000, scoped, tag = 'input window, operand 2, single buffered']
    %9 = vsyncpa [#allocation6], 0
    %10 = vsyncpa [#allocation8], 0
    // Predicated region
    $region2: #{tpu_custom_call.1} parent=1 // pred_check
      _
    $region3: #{tpu_custom_call.1} parent=1 // pred_check_branch
      %12 = sbr.rel (0) target = $region5
    $region4: #{tpu_custom_call.1} parent=1 // pred_region
      %s14 = ssub.s32 3072, 3072
      %15 = vsyncadd [#allocation6], %s14
      %s16 = sshll.u32 [#allocation5], 4
      %s17 = int_to_ptr.vmem [resolvable:$true] %s16
      %22 = dma.hbm_to_vmem [thread:$0]  %s0, 3072, %s17, [#allocation6], 128, 128, 8
    $region5: #{tpu_custom_call.1} parent=1 // pred_fallthru
      _
    // Predicated region
    $region6: #{tpu_custom_call.1} parent=1 // pred_check
      _
    $region7: #{tpu_custom_call.1} parent=1 // pred_check_branch
      %24 = sbr.rel (0) target = $region9
    $region8: #{tpu_custom_call.1} parent=1 // pred_region
      %s26 = ssub.s32 8192, 8192
      %27 = vsyncadd [#allocation8], %s26
      %s28 = sshll.u32 [#allocation7], 4
      %s29 = int_to_ptr.vmem [resolvable:$true] %s28
      %34 = dma.hbm_to_vmem [thread:$0]  %s1, 8192, %s29, [#allocation8], 64, 64, 4
    $region9: #{tpu_custom_call.1} parent=1 // pred_fallthru
      _
    // Predicated region
    $region10: #{tpu_custom_call.1} parent=1 // pred_check
      _
    $region11: #{tpu_custom_call.1} parent=1 // pred_check_branch
      %36 = sbr.rel (0) target = $region13
    $region12: #{tpu_custom_call.1} parent=1 // pred_region
      %s38 = ssub.s32 128, 128
      %39 = vsyncadd [#allocation8], %s38
      %s41 = sshll.u32 [#allocation9], 4
      %s42 = int_to_ptr.vmem [resolvable:$true] %s41
      %44 = dma.hbm_to_vmem [thread:$0]  %s2, 128, %s42, [#allocation8]
    $region13: #{tpu_custom_call.1} parent=1 // pred_fallthru
      _
    // Predicated region
    $region14: #{tpu_custom_call.1} parent=1 // pred_check
      _
    $region15: #{tpu_custom_call.1} parent=1 // pred_check_branch
      %46 = sbr.rel (0) target = $region17
    $region16: #{tpu_custom_call.1} parent=1 // pred_region
      _
    $region17: #{tpu_custom_call.1} parent=1 // pred_fallthru
      _
    // Predicated region
    $region18: #{tpu_custom_call.1} parent=1 // pred_check
      _
    $region19: #{tpu_custom_call.1} parent=1 // pred_check_branch
      %48 = sbr.rel (0) target = $region21
    $region20: #{tpu_custom_call.1} parent=1 // pred_region
      %49 = dma.done [#allocation6], 3072
    $region21: #{tpu_custom_call.1} parent=1 // pred_fallthru
      _
    // Predicated region
    $region22: #{tpu_custom_call.1} parent=1 // pred_check
      _
    $region23: #{tpu_custom_call.1} parent=1 // pred_check_branch
      %51 = sbr.rel (0) target = $region25
    $region24: #{tpu_custom_call.1} parent=1 // pred_region
      %52 = dma.done [#allocation8], 8192
    $region25: #{tpu_custom_call.1} parent=1 // pred_fallthru
      _
    // Predicated region
    $region26: #{tpu_custom_call.1} parent=1 // pred_check
      _
    $region27: #{tpu_custom_call.1} parent=1 // pred_check_branch
      %54 = sbr.rel (0) target = $region29
    $region28: #{tpu_custom_call.1} parent=1 // pred_region
      %55 = dma.done [#allocation8], 128
    $region29: #{tpu_custom_call.1} parent=1 // pred_fallthru
      _
    %v57 = vld [vmem:[%s3] sm:$0xff]
    %v58 = vcvt.f32.s32.to.zero.pseudo %v57
    %v59 = vlaneseq
    %v60 = vand.u32 %v59, 127
    %vm61 = vcmp.ge.s32.totalorder %v60, 1
    %v62 = vsel %vm61, 0.0, -1e+30
    %v63 = vld [vmem:[#allocation9] sm:$0xff]
    %v64 = vld [vmem:[#allocation5] sm:$0xff]
    %v65 = vld [vmem:[#allocation5 + $0x8] sm:$0xff]
    %v66 = vld [vmem:[#allocation5 + $0x10] sm:$0xff]
    %v67 = vld [vmem:[#allocation7] sm:$0xf]
    %v68 = vld [vmem:[#allocation7 + $0x4] sm:$0xf]
    %v69 = vld [vmem:[#allocation7 + $0x8] sm:$0xf]
    %v70 = vld [vmem:[#allocation7 + $0xc] sm:$0xf]
    %v71 = vld [vmem:[#allocation7 + $0x10] sm:$0xf]
    %v72 = vld [vmem:[#allocation7 + $0x14] sm:$0xf]
    %v73 = vld [vmem:[#allocation7 + $0x18] sm:$0xf]
    %v74 = vld [vmem:[#allocation7 + $0x1c] sm:$0xf]
    %v75 = vld [vmem:[#allocation7 + $0x20] sm:$0xf]
    %v76 = vld [vmem:[#allocation7 + $0x24] sm:$0xf]
    %v77 = vld [vmem:[#allocation7 + $0x28] sm:$0xf]
    %v78 = vld [vmem:[#allocation7 + $0x2c] sm:$0xf]
    %v79 = vld [vmem:[#allocation7 + $0x30] sm:$0xf]
    %v80 = vld [vmem:[#allocation7 + $0x34] sm:$0xf]
    %v81 = vld [vmem:[#allocation7 + $0x38] sm:$0xf]
    %v82 = vld [vmem:[#allocation7 + $0x3c] sm:$0xf]
    %83 = vmax.xlane.f32.xlu0 %v64
    %v84 = vpop.xlane.xlu0 %83
    %85 = vmax.xlane.f32.xlu0 %v65
    %v86 = vpop.xlane.xlu0 %85
    %87 = vmax.xlane.f32.xlu0 %v66
    %v88 = vpop.xlane.xlu0 %87
    %v89 = vmax.f32 %v84, -1e+30
    %v90 = vmax.f32 %v86, -1e+30
    %v91 = vmax.f32 %v88, -1e+30
    %v92 = vsub.f32 -1e+30, %v89
    %v93 = vsub.f32 -1e+30, %v90
    %v94 = vsub.f32 -1e+30, %v91
    %v95 = vmul.f32 %v92, 1.442695
    %v96 = vpow.pop %v95
    %v97 = vmul.f32 %v93, 1.442695
    %v98 = vpow.pop %v97
    %v99 = vmul.f32 %v94, 1.442695
    %v100 = vpow.pop %v99
    %v101 = vmul.f32 %v96, 0.0
    %v102 = vmul.f32 %v98, 0.0
    %v103 = vmul.f32 %v100, 0.0
    %v104 = vsub.f32 %v64, %v89
    %v105 = vsub.f32 %v65, %v90
    %v106 = vsub.f32 %v66, %v91
    %v107 = vmul.f32 %v104, 1.442695
    %v108 = vpow.pop %v107
    %v109 = vmul.f32 %v105, 1.442695
    %v110 = vpow.pop %v109
    %v111 = vmul.f32 %v106, 1.442695
    %v112 = vpow.pop %v111
    %113 = vadd.xlane.f32.xlu0 %v108
    %v114 = vpop.xlane.xlu0 %113
    %115 = vadd.xlane.f32.xlu0 %v110
    %v116 = vpop.xlane.xlu0 %115
    %117 = vadd.xlane.f32.xlu0 %v112
    %v118 = vpop.xlane.xlu0 %117
    %v119 = vadd.f32 %v101, %v114
    %v120 = vadd.f32 %v102, %v116
    %v121 = vadd.f32 %v103, %v118
    %v122 = vpack.c.bf16 %v65, %v64
    %v123 = vpack.c.bf16 %v66, %v66
    %v124 = vunpack.c.l.bf16 %v122
    %v125 = vunpack.c.h.bf16 %v122
    %v126 = vunpack.c.l.bf16 %v123
    %v127 = vsub.f32 %v64, %v124
    %v128 = vsub.f32 %v65, %v125
    %v129 = vsub.f32 %v66, %v126
    %v130 = vpack.c.bf16 %v128, %v127
    %v131 = vpack.c.bf16 %v129, %v129
    %v148 = vunpack.c.l.b16 %v67
    %v149 = vunpack.c.l.b16 %v68
    %v150 = vunpack.c.l.b16 %v69
    %v151 = vunpack.c.l.b16 %v70
    %v152 = vunpack.c.l.b16 %v71
    %v153 = vunpack.c.l.b16 %v72
    %v154 = vunpack.c.l.b16 %v73
    %v155 = vunpack.c.l.b16 %v74
    %v156 = vunpack.c.l.b16 %v75
    %v157 = vunpack.c.l.b16 %v76
    %v158 = vunpack.c.l.b16 %v77
    %v159 = vunpack.c.l.b16 %v78
    %v160 = vunpack.c.l.b16 %v79
    %v161 = vunpack.c.l.b16 %v80
    %v162 = vunpack.c.l.b16 %v81
    %v163 = vunpack.c.l.b16 %v82
    %v164 = vpack.c.b16 %v149, %v148
    %v165 = vpack.c.b16 %v151, %v150
    %v166 = vpack.c.b16 %v153, %v152
    %v167 = vpack.c.b16 %v155, %v154
    %v168 = vpack.c.b16 %v157, %v156
    %v169 = vpack.c.b16 %v159, %v158
    %v170 = vpack.c.b16 %v161, %v160
    %v171 = vpack.c.b16 %v163, %v162
    %180 = vmatprep.subr.bf16.mxu0 0
    %181 = vmatpush1.bf16.msra.mxu0 %v164
    %182 = vmatprep.subr.bf16.mxu0 0
    %183 = vmatpush1.bf16.msra.mxu0 %v165
    %184 = vmatprep.subr.bf16.mxu0 0
    %185 = vmatpush1.bf16.msra.mxu0 %v166
    %186 = vmatprep.subr.bf16.mxu0 0
    %187 = vmatpush1.bf16.msra.mxu0 %v167
    %188 = vmatprep.subr.bf16.mxu0 0
    %189 = vmatpush1.bf16.msra.mxu0 %v168
    %190 = vmatprep.subr.bf16.mxu0 0
    %191 = vmatpush1.bf16.msra.mxu0 %v169
    %192 = vmatprep.subr.bf16.mxu0 0
    %193 = vmatpush1.bf16.msra.mxu0 %v170
    %194 = vmatprep.subr.bf16.mxu0 0
    %195 = vmatpush1.bf16.msra.mxu0 %v171
    %196 = vmatprep.subr.bf16.mxu0 0
    %197 = vmatpush1.bf16.msra.mxu0 0
    %198 = vmatprep.subr.bf16.mxu0 0
    %199 = vmatpush1.bf16.msra.mxu0 0
    %200 = vmatprep.subr.bf16.mxu0 0
    %201 = vmatpush1.bf16.msra.mxu0 0
    %202 = vmatprep.subr.bf16.mxu0 0
    %203 = vmatpush1.bf16.msra.mxu0 0
    %204 = vmatprep.subr.bf16.mxu0 0
    %205 = vmatpush1.bf16.msra.mxu0 0
    %206 = vmatprep.subr.bf16.mxu0 0
    %207 = vmatpush1.bf16.msra.mxu0 0
    %208 = vmatprep.subr.bf16.mxu0 0
    %209 = vmatpush1.bf16.msra.mxu0 0
    %210 = vmatprep.subr.bf16.mxu0 0
    %211 = vmatpush1.bf16.msra.mxu0 0
    %212 = vmatprep.mubr.bf16.mxu0 0
    %213 = vmatmul.mubr.bf16.gmra.mrb[0].mxu0 %v130
    %v214 = vpop.f32.mrb[0].mxu0
    %v215 = vadd.f32 0.0, %v214
    %v216 = vpop.f32.mrb[0].mxu0
    %v217 = vpop.f32.mrb[0].mxu0
    %v218 = vadd.f32 0.0, %v217
    %v219 = vpop.f32.mrb[0].mxu0
    %220 = vmatprep.mubr.bf16.mxu0 0
    %221 = vmatmul.mubr.bf16.gmra.mrb[0].mxu0 %v131
    %v222 = vpop.f32.mrb[0].mxu0
    %v223 = vadd.f32 0.0, %v222
    %v224 = vpop.f32.mrb[0].mxu0
    %v225 = vpop.f32.mrb[0].mxu0
    %v226 = vpop.f32.mrb[0].mxu0
    %227 = vdwg.mxu0
    %228 = vmatprep.subr.bf16.mxu0 0
    %229 = vmatpush1.bf16.msra.mxu0 %v164
    %230 = vmatprep.subr.bf16.mxu0 0
    %231 = vmatpush1.bf16.msra.mxu0 %v165
    %232 = vmatprep.subr.bf16.mxu0 0
    %233 = vmatpush1.bf16.msra.mxu0 %v166
    %234 = vmatprep.subr.bf16.mxu0 0
    %235 = vmatpush1.bf16.msra.mxu0 %v167
    %236 = vmatprep.subr.bf16.mxu0 0
    %237 = vmatpush1.bf16.msra.mxu0 %v168
    %238 = vmatprep.subr.bf16.mxu0 0
    %239 = vmatpush1.bf16.msra.mxu0 %v169
    %240 = vmatprep.subr.bf16.mxu0 0
    %241 = vmatpush1.bf16.msra.mxu0 %v170
    %242 = vmatprep.subr.bf16.mxu0 0
    %243 = vmatpush1.bf16.msra.mxu0 %v171
    %244 = vmatprep.subr.bf16.mxu0 0
    %245 = vmatpush1.bf16.msra.mxu0 0
    %246 = vmatprep.subr.bf16.mxu0 0
    %247 = vmatpush1.bf16.msra.mxu0 0
    %248 = vmatprep.subr.bf16.mxu0 0
    %249 = vmatpush1.bf16.msra.mxu0 0
    %250 = vmatprep.subr.bf16.mxu0 0
    %251 = vmatpush1.bf16.msra.mxu0 0
    %252 = vmatprep.subr.bf16.mxu0 0
    %253 = vmatpush1.bf16.msra.mxu0 0
    %254 = vmatprep.subr.bf16.mxu0 0
    %255 = vmatpush1.bf16.msra.mxu0 0
    %256 = vmatprep.subr.bf16.mxu0 0
    %257 = vmatpush1.bf16.msra.mxu0 0
    %258 = vmatprep.subr.bf16.mxu0 0
    %259 = vmatpush1.bf16.msra.mxu0 0
    %260 = vmatprep.mubr.bf16.mxu0 0
    %261 = vmatmul.mubr.bf16.gmra.mrb[0].mxu0 %v122
    %v262 = vpop.f32.mrb[0].mxu0
    %v263 = vadd.f32 %v215, %v262
    %v264 = vpop.f32.mrb[0].mxu0
    %v265 = vpop.f32.mrb[0].mxu0
    %v266 = vadd.f32 %v218, %v265
    %v267 = vpop.f32.mrb[0].mxu0
    %268 = vmatprep.mubr.bf16.mxu0 0
    %269 = vmatmul.mubr.bf16.gmra.mrb[0].mxu0 %v123
    %v270 = vpop.f32.mrb[0].mxu0
    %v271 = vadd.f32 %v223, %v270
    %v272 = vpop.f32.mrb[0].mxu0
    %v273 = vpop.f32.mrb[0].mxu0
    %v274 = vpop.f32.mrb[0].mxu0
    %275 = vdwg.mxu0
    %v276 = vlog2.pop %v119
    %v277 = vmul.f32 %v276, 0.6931472
    %v278 = vlog2.pop %v120
    %v279 = vmul.f32 %v278, 0.6931472
    %v280 = vlog2.pop %v121
    %v281 = vmul.f32 %v280, 0.6931472
    %v282 = vadd.f32 %v89, %v277
    %v283 = vadd.f32 %v90, %v279
    %v284 = vadd.f32 %v91, %v281
    %v285 = vsub.f32 %v263, %v282
    %v286 = vsub.f32 %v266, %v283
    %v287 = vsub.f32 %v271, %v284
    %v291 = vcombine.high %v285, %v285
    %v293 = vunpack.c.l.s4 1966171168
    %v294 = vunpack.c.0.s8 %v293
    %v295 = vlaneseq
    %v296 = vshrl.u32 %v295, 7
    %v297 = vsub.s32 %v294, %v296
    %v298 = vrot.slane %v285, %v297
    %v300 = vunpack.c.l.s4 1966171168
    %v301 = vunpack.c.0.s8 %v300
    %v302 = vlaneseq
    %v303 = vshrl.u32 %v302, 7
    %v304 = vsub.s32 %v301, %v303
    %v305 = vrot.slane %v291, %v304
    %v306 = vcombine.high %v298, %v298
    %v307 = vcombine.high %v305, %v305
    %v309 = vunpack.c.l.s4 1966171168
    %v310 = vunpack.c.0.s8 %v309
    %v311 = vlaneseq
    %v312 = vshrl.u32 %v311, 7
    %v313 = vsub.s32 %v310, %v312
    %v314 = vrot.slane %v298, %v313
    %v316 = vunpack.c.l.s4 1966171168
    %v317 = vunpack.c.0.s8 %v316
    %v318 = vlaneseq
    %v319 = vshrl.u32 %v318, 7
    %v320 = vsub.s32 %v317, %v319
    %v321 = vrot.slane %v305, %v320
    %v323 = vunpack.c.l.s4 1966171168
    %v324 = vunpack.c.0.s8 %v323
    %v325 = vlaneseq
    %v326 = vshrl.u32 %v325, 7
    %v327 = vsub.s32 %v324, %v326
    %v328 = vrot.slane %v306, %v327
    %v330 = vunpack.c.l.s4 1966171168
    %v331 = vunpack.c.0.s8 %v330
    %v332 = vlaneseq
    %v333 = vshrl.u32 %v332, 7
    %v334 = vsub.s32 %v331, %v333
    %v335 = vrot.slane %v307, %v334
    %v336 = vcombine.high %v314, %v314
    %v337 = vcombine.high %v321, %v321
    %v338 = vcombine.high %v328, %v328
    %v339 = vcombine.high %v335, %v335
    %v340 = vcombine.high %v286, %v286
    %v342 = vunpack.c.l.s4 1966171168
    %v343 = vunpack.c.0.s8 %v342
    %v344 = vlaneseq
    %v345 = vshrl.u32 %v344, 7
    %v346 = vsub.s32 %v343, %v345
    %v347 = vrot.slane %v286, %v346
    %v349 = vunpack.c.l.s4 1966171168
    %v350 = vunpack.c.0.s8 %v349
    %v351 = vlaneseq
    %v352 = vshrl.u32 %v351, 7
    %v353 = vsub.s32 %v350, %v352
    %v354 = vrot.slane %v340, %v353
    %v355 = vcombine.high %v347, %v347
    %v356 = vcombine.high %v354, %v354
    %v358 = vunpack.c.l.s4 1966171168
    %v359 = vunpack.c.0.s8 %v358
    %v360 = vlaneseq
    %v361 = vshrl.u32 %v360, 7
    %v362 = vsub.s32 %v359, %v361
    %v363 = vrot.slane %v347, %v362
    %v365 = vunpack.c.l.s4 1966171168
    %v366 = vunpack.c.0.s8 %v365
    %v367 = vlaneseq
    %v368 = vshrl.u32 %v367, 7
    %v369 = vsub.s32 %v366, %v368
    %v370 = vrot.slane %v354, %v369
    %v372 = vunpack.c.l.s4 1966171168
    %v373 = vunpack.c.0.s8 %v372
    %v374 = vlaneseq
    %v375 = vshrl.u32 %v374, 7
    %v376 = vsub.s32 %v373, %v375
    %v377 = vrot.slane %v355, %v376
    %v379 = vunpack.c.l.s4 1966171168
    %v380 = vunpack.c.0.s8 %v379
    %v381 = vlaneseq
    %v382 = vshrl.u32 %v381, 7
    %v383 = vsub.s32 %v380, %v382
    %v384 = vrot.slane %v356, %v383
    %v385 = vcombine.high %v363, %v363
    %v386 = vcombine.high %v370, %v370
    %v387 = vcombine.high %v377, %v377
    %v388 = vcombine.high %v384, %v384
    %v389 = vcombine.high %v287, %v287
    %v391 = vunpack.c.l.s4 1966171168
    %v392 = vunpack.c.0.s8 %v391
    %v393 = vlaneseq
    %v394 = vshrl.u32 %v393, 7
    %v395 = vsub.s32 %v392, %v394
    %v396 = vrot.slane %v287, %v395
    %v398 = vunpack.c.l.s4 1966171168
    %v399 = vunpack.c.0.s8 %v398
    %v400 = vlaneseq
    %v401 = vshrl.u32 %v400, 7
    %v402 = vsub.s32 %v399, %v401
    %v403 = vrot.slane %v389, %v402
    %v404 = vcombine.high %v396, %v396
    %v405 = vcombine.high %v403, %v403
    %v407 = vunpack.c.l.s4 1966171168
    %v408 = vunpack.c.0.s8 %v407
    %v409 = vlaneseq
    %v410 = vshrl.u32 %v409, 7
    %v411 = vsub.s32 %v408, %v410
    %v412 = vrot.slane %v396, %v411
    %v414 = vunpack.c.l.s4 1966171168
    %v415 = vunpack.c.0.s8 %v414
    %v416 = vlaneseq
    %v417 = vshrl.u32 %v416, 7
    %v418 = vsub.s32 %v415, %v417
    %v419 = vrot.slane %v403, %v418
    %v421 = vunpack.c.l.s4 1966171168
    %v422 = vunpack.c.0.s8 %v421
    %v423 = vlaneseq
    %v424 = vshrl.u32 %v423, 7
    %v425 = vsub.s32 %v422, %v424
    %v426 = vrot.slane %v404, %v425
    %v428 = vunpack.c.l.s4 1966171168
    %v429 = vunpack.c.0.s8 %v428
    %v430 = vlaneseq
    %v431 = vshrl.u32 %v430, 7
    %v432 = vsub.s32 %v429, %v431
    %v433 = vrot.slane %v405, %v432
    %v434 = vcombine.high %v412, %v412
    %v435 = vcombine.high %v419, %v419
    %v436 = vcombine.high %v426, %v426
    %v437 = vcombine.high %v433, %v433
    %462 = vst [vmem:[#allocation3] sm:$0x1] %v314
    %463 = vst [vmem:[#allocation3 + $0x8] sm:$0x1] %v328
    %464 = vst [vmem:[#allocation3 + $0x10] sm:$0x1] %v336
    %465 = vst [vmem:[#allocation3 + $0x18] sm:$0x1] %v338
    %466 = vst [vmem:[#allocation3 + $0x20] sm:$0x1] %v321
    %467 = vst [vmem:[#allocation3 + $0x28] sm:$0x1] %v335
    %468 = vst [vmem:[#allocation3 + $0x30] sm:$0x1] %v337
    %469 = vst [vmem:[#allocation3 + $0x38] sm:$0x1] %v339
    %470 = vst [vmem:[#allocation3 + $0x40] sm:$0x1] %v363
    %471 = vst [vmem:[#allocation3 + $0x48] sm:$0x1] %v377
    %472 = vst [vmem:[#allocation3 + $0x50] sm:$0x1] %v385
    %473 = vst [vmem:[#allocation3 + $0x58] sm:$0x1] %v387
    %474 = vst [vmem:[#allocation3 + $0x60] sm:$0x1] %v370
    %475 = vst [vmem:[#allocation3 + $0x68] sm:$0x1] %v384
    %476 = vst [vmem:[#allocation3 + $0x70] sm:$0x1] %v386
    %477 = vst [vmem:[#allocation3 + $0x78] sm:$0x1] %v388
    %478 = vst [vmem:[#allocation3 + $0x80] sm:$0x1] %v412
    %479 = vst [vmem:[#allocation3 + $0x88] sm:$0x1] %v426
    %480 = vst [vmem:[#allocation3 + $0x90] sm:$0x1] %v434
    %481 = vst [vmem:[#allocation3 + $0x98] sm:$0x1] %v436
    %482 = vst [vmem:[#allocation3 + $0xa0] sm:$0x1] %v419
    %483 = vst [vmem:[#allocation3 + $0xa8] sm:$0x1] %v433
    %484 = vst [vmem:[#allocation3 + $0xb0] sm:$0x1] %v435
    %485 = vst [vmem:[#allocation3 + $0xb8] sm:$0x1] %v437
    %s486 = scalar_lea.vmem [#allocation5], 24
    %v487 = vld [vmem:[%s486] sm:$0xff]
    %v488 = vld [vmem:[%s486 + $0x8] sm:$0xff]
    %v489 = vld [vmem:[%s486 + $0x10] sm:$0xff]
    %s490 = scalar_lea.vmem [#allocation7], 64
    %v491 = vld [vmem:[%s490] sm:$0xf]
    %v492 = vld [vmem:[%s490 + $0x4] sm:$0xf]
    %v493 = vld [vmem:[%s490 + $0x8] sm:$0xf]
    %v494 = vld [vmem:[%s490 + $0xc] sm:$0xf]
    %v495 = vld [vmem:[%s490 + $0x10] sm:$0xf]
    %v496 = vld [vmem:[%s490 + $0x14] sm:$0xf]
    %v497 = vld [vmem:[%s490 + $0x18] sm:$0xf]
    %v498 = vld [vmem:[%s490 + $0x1c] sm:$0xf]
    %v499 = vld [vmem:[%s490 + $0x20] sm:$0xf]
    %v500 = vld [vmem:[%s490 + $0x24] sm:$0xf]
    %v501 = vld [vmem:[%s490 + $0x28] sm:$0xf]
    %v502 = vld [vmem:[%s490 + $0x2c] sm:$0xf]
    %v503 = vld [vmem:[%s490 + $0x30] sm:$0xf]
    %v504 = vld [vmem:[%s490 + $0x34] sm:$0xf]
    %v505 = vld [vmem:[%s490 + $0x38] sm:$0xf]
    %v506 = vld [vmem:[%s490 + $0x3c] sm:$0xf]
    %507 = vmax.xlane.f32.xlu0 %v487
    %v508 = vpop.xlane.xlu0 %507
    %509 = vmax.xlane.f32.xlu0 %v488
    %v510 = vpop.xlane.xlu0 %509
    %511 = vmax.xlane.f32.xlu0 %v489
    %v512 = vpop.xlane.xlu0 %511
    %v513 = vmax.f32 %v508, -1e+30
    %v514 = vmax.f32 %v510, -1e+30
    %v515 = vmax.f32 %v512, -1e+30
    %v516 = vsub.f32 -1e+30, %v513
    %v517 = vsub.f32 -1e+30, %v514
    %v518 = vsub.f32 -1e+30, %v515
    %v519 = vmul.f32 %v516, 1.442695
    %v520 = vpow.pop %v519
    %v521 = vmul.f32 %v517, 1.442695
    %v522 = vpow.pop %v521
    %v523 = vmul.f32 %v518, 1.442695
    %v524 = vpow.pop %v523
    %v525 = vmul.f32 %v520, 0.0
    %v526 = vmul.f32 %v522, 0.0
    %v527 = vmul.f32 %v524, 0.0
    %v528 = vsub.f32 %v487, %v513
    %v529 = vsub.f32 %v488, %v514
    %v530 = vsub.f32 %v489, %v515
    %v531 = vmul.f32 %v528, 1.442695
    %v532 = vpow.pop %v531
    %v533 = vmul.f32 %v529, 1.442695
    %v534 = vpow.pop %v533
    %v535 = vmul.f32 %v530, 1.442695
    %v536 = vpow.pop %v535
    %537 = vadd.xlane.f32.xlu0 %v532
    %v538 = vpop.xlane.xlu0 %537
    %539 = vadd.xlane.f32.xlu0 %v534
    %v540 = vpop.xlane.xlu0 %539
    %541 = vadd.xlane.f32.xlu0 %v536
    %v542 = vpop.xlane.xlu0 %541
    %v543 = vadd.f32 %v525, %v538
    %v544 = vadd.f32 %v526, %v540
    %v545 = vadd.f32 %v527, %v542
    %v546 = vpack.c.bf16 %v488, %v487
    %v547 = vpack.c.bf16 %v489, %v489
    %v548 = vunpack.c.l.bf16 %v546
    %v549 = vunpack.c.h.bf16 %v546
    %v550 = vunpack.c.l.bf16 %v547
    %v551 = vsub.f32 %v487, %v548
    %v552 = vsub.f32 %v488, %v549
    %v553 = vsub.f32 %v489, %v550
    %v554 = vpack.c.bf16 %v552, %v551
    %v555 = vpack.c.bf16 %v553, %v553
    %v572 = vunpack.c.l.b16 %v491
    %v573 = vunpack.c.l.b16 %v492
    %v574 = vunpack.c.l.b16 %v493
    %v575 = vunpack.c.l.b16 %v494
    %v576 = vunpack.c.l.b16 %v495
    %v577 = vunpack.c.l.b16 %v496
    %v578 = vunpack.c.l.b16 %v497
    %v579 = vunpack.c.l.b16 %v498
    %v580 = vunpack.c.l.b16 %v499
    %v581 = vunpack.c.l.b16 %v500
    %v582 = vunpack.c.l.b16 %v501
    %v583 = vunpack.c.l.b16 %v502
    %v584 = vunpack.c.l.b16 %v503
    %v585 = vunpack.c.l.b16 %v504
    %v586 = vunpack.c.l.b16 %v505
    %v587 = vunpack.c.l.b16 %v506
    %v588 = vpack.c.b16 %v573, %v572
    %v589 = vpack.c.b16 %v575, %v574
    %v590 = vpack.c.b16 %v577, %v576
    %v591 = vpack.c.b16 %v579, %v578
    %v592 = vpack.c.b16 %v581, %v580
    %v593 = vpack.c.b16 %v583, %v582
    %v594 = vpack.c.b16 %v585, %v584
    %v595 = vpack.c.b16 %v587, %v586
    %604 = vmatprep.subr.bf16.mxu0 0
    %605 = vmatpush1.bf16.msra.mxu0 %v588
    %606 = vmatprep.subr.bf16.mxu0 0
    %607 = vmatpush1.bf16.msra.mxu0 %v589
    %608 = vmatprep.subr.bf16.mxu0 0
    %609 = vmatpush1.bf16.msra.mxu0 %v590
    %610 = vmatprep.subr.bf16.mxu0 0
    %611 = vmatpush1.bf16.msra.mxu0 %v591
    %612 = vmatprep.subr.bf16.mxu0 0
    %613 = vmatpush1.bf16.msra.mxu0 %v592
    %614 = vmatprep.subr.bf16.mxu0 0
    %615 = vmatpush1.bf16.msra.mxu0 %v593
    %616 = vmatprep.subr.bf16.mxu0 0
    %617 = vmatpush1.bf16.msra.mxu0 %v594
    %618 = vmatprep.subr.bf16.mxu0 0
    %619 = vmatpush1.bf16.msra.mxu0 %v595
    %620 = vmatprep.subr.bf16.mxu0 0
    %621 = vmatpush1.bf16.msra.mxu0 0
    %622 = vmatprep.subr.bf16.mxu0 0
    %623 = vmatpush1.bf16.msra.mxu0 0
    %624 = vmatprep.subr.bf16.mxu0 0
    %625 = vmatpush1.bf16.msra.mxu0 0
    %626 = vmatprep.subr.bf16.mxu0 0
    %627 = vmatpush1.bf16.msra.mxu0 0
    %628 = vmatprep.subr.bf16.mxu0 0
    %629 = vmatpush1.bf16.msra.mxu0 0
    %630 = vmatprep.subr.bf16.mxu0 0
    %631 = vmatpush1.bf16.msra.mxu0 0
    %632 = vmatprep.subr.bf16.mxu0 0
    %633 = vmatpush1.bf16.msra.mxu0 0
    %634 = vmatprep.subr.bf16.mxu0 0
    %635 = vmatpush1.bf16.msra.mxu0 0
    %636 = vmatprep.mubr.bf16.mxu0 0
    %637 = vmatmul.mubr.bf16.gmra.mrb[0].mxu0 %v554
    %v638 = vpop.f32.mrb[0].mxu0
    %v639 = vadd.f32 0.0, %v638
    %v640 = vpop.f32.mrb[0].mxu0
    %v641 = vpop.f32.mrb[0].mxu0
    %v642 = vadd.f32 0.0, %v641
    %v643 = vpop.f32.mrb[0].mxu0
    %644 = vmatprep.mubr.bf16.mxu0 0
    %645 = vmatmul.mubr.bf16.gmra.mrb[0].mxu0 %v555
    %v646 = vpop.f32.mrb[0].mxu0
    %v647 = vadd.f32 0.0, %v646
    %v648 = vpop.f32.mrb[0].mxu0
    %v649 = vpop.f32.mrb[0].mxu0
    %v650 = vpop.f32.mrb[0].mxu0
    %651 = vdwg.mxu0
    %652 = vmatprep.subr.bf16.mxu0 0
    %653 = vmatpush1.bf16.msra.mxu0 %v588
    %654 = vmatprep.subr.bf16.mxu0 0
    %655 = vmatpush1.bf16.msra.mxu0 %v589
    %656 = vmatprep.subr.bf16.mxu0 0
    %657 = vmatpush1.bf16.msra.mxu0 %v590
    %658 = vmatprep.subr.bf16.mxu0 0
    %659 = vmatpush1.bf16.msra.mxu0 %v591
    %660 = vmatprep.subr.bf16.mxu0 0
    %661 = vmatpush1.bf16.msra.mxu0 %v592
    %662 = vmatprep.subr.bf16.mxu0 0
    %663 = vmatpush1.bf16.msra.mxu0 %v593
    %664 = vmatprep.subr.bf16.mxu0 0
    %665 = vmatpush1.bf16.msra.mxu0 %v594
    %666 = vmatprep.subr.bf16.mxu0 0
    %667 = vmatpush1.bf16.msra.mxu0 %v595
    %668 = vmatprep.subr.bf16.mxu0 0
    %669 = vmatpush1.bf16.msra.mxu0 0
    %670 = vmatprep.subr.bf16.mxu0 0
    %671 = vmatpush1.bf16.msra.mxu0 0
    %672 = vmatprep.subr.bf16.mxu0 0
    %673 = vmatpush1.bf16.msra.mxu0 0
    %674 = vmatprep.subr.bf16.mxu0 0
    %675 = vmatpush1.bf16.msra.mxu0 0
    %676 = vmatprep.subr.bf16.mxu0 0
    %677 = vmatpush1.bf16.msra.mxu0 0
    %678 = vmatprep.subr.bf16.mxu0 0
    %679 = vmatpush1.bf16.msra.mxu0 0
    %680 = vmatprep.subr.bf16.mxu0 0
    %681 = vmatpush1.bf16.msra.mxu0 0
    %682 = vmatprep.subr.bf16.mxu0 0
    %683 = vmatpush1.bf16.msra.mxu0 0
    %684 = vmatprep.mubr.bf16.mxu0 0
    %685 = vmatmul.mubr.bf16.gmra.mrb[0].mxu0 %v546
    %v686 = vpop.f32.mrb[0].mxu0
    %v687 = vadd.f32 %v639, %v686
    %v688 = vpop.f32.mrb[0].mxu0
    %v689 = vpop.f32.mrb[0].mxu0
    %v690 = vadd.f32 %v642, %v689
    %v691 = vpop.f32.mrb[0].mxu0
    %692 = vmatprep.mubr.bf16.mxu0 0
    %693 = vmatmul.mubr.bf16.gmra.mrb[0].mxu0 %v547
    %v694 = vpop.f32.mrb[0].mxu0
    %v695 = vadd.f32 %v647, %v694
    %v696 = vpop.f32.mrb[0].mxu0
    %v697 = vpop.f32.mrb[0].mxu0
    %v698 = vpop.f32.mrb[0].mxu0
    %699 = vdwg.mxu0
    %v700 = vlog2.pop %v543
    %v701 = vmul.f32 %v700, 0.6931472
    %v702 = vlog2.pop %v544
    %v703 = vmul.f32 %v702, 0.6931472
    %v704 = vlog2.pop %v545
    %v705 = vmul.f32 %v704, 0.6931472
    %v706 = vadd.f32 %v513, %v701
    %v707 = vadd.f32 %v514, %v703
    %v708 = vadd.f32 %v515, %v705
    %v709 = vsub.f32 %v687, %v706
    %v710 = vsub.f32 %v690, %v707
    %v711 = vsub.f32 %v695, %v708
    %v715 = vcombine.high %v709, %v709
    %v717 = vunpack.c.l.s4 1966171168
    %v718 = vunpack.c.0.s8 %v717
    %v719 = vlaneseq
    %v720 = vshrl.u32 %v719, 7
    %v721 = vsub.s32 %v718, %v720
    %v722 = vrot.slane %v709, %v721
    %v724 = vunpack.c.l.s4 1966171168
    %v725 = vunpack.c.0.s8 %v724
    %v726 = vlaneseq
    %v727 = vshrl.u32 %v726, 7
    %v728 = vsub.s32 %v725, %v727
    %v729 = vrot.slane %v715, %v728
    %v730 = vcombine.high %v722, %v722
    %v731 = vcombine.high %v729, %v729
    %v733 = vunpack.c.l.s4 1966171168
    %v734 = vunpack.c.0.s8 %v733
    %v735 = vlaneseq
    %v736 = vshrl.u32 %v735, 7
    %v737 = vsub.s32 %v734, %v736
    %v738 = vrot.slane %v722, %v737
    %v740 = vunpack.c.l.s4 1966171168
    %v741 = vunpack.c.0.s8 %v740
    %v742 = vlaneseq
    %v743 = vshrl.u32 %v742, 7
    %v744 = vsub.s32 %v741, %v743
    %v745 = vrot.slane %v729, %v744
    %v747 = vunpack.c.l.s4 1966171168
    %v748 = vunpack.c.0.s8 %v747
    %v749 = vlaneseq
    %v750 = vshrl.u32 %v749, 7
    %v751 = vsub.s32 %v748, %v750
    %v752 = vrot.slane %v730, %v751
    %v754 = vunpack.c.l.s4 1966171168
    %v755 = vunpack.c.0.s8 %v754
    %v756 = vlaneseq
    %v757 = vshrl.u32 %v756, 7
    %v758 = vsub.s32 %v755, %v757
    %v759 = vrot.slane %v731, %v758
    %v760 = vcombine.high %v738, %v738
    %v761 = vcombine.high %v745, %v745
    %v762 = vcombine.high %v752, %v752
    %v763 = vcombine.high %v759, %v759
    %v764 = vcombine.high %v710, %v710
    %v766 = vunpack.c.l.s4 1966171168
    %v767 = vunpack.c.0.s8 %v766
    %v768 = vlaneseq
    %v769 = vshrl.u32 %v768, 7
    %v770 = vsub.s32 %v767, %v769
    %v771 = vrot.slane %v710, %v770
    %v773 = vunpack.c.l.s4 1966171168
    %v774 = vunpack.c.0.s8 %v773
    %v775 = vlaneseq
    %v776 = vshrl.u32 %v775, 7
    %v777 = vsub.s32 %v774, %v776
    %v778 = vrot.slane %v764, %v777
    %v779 = vcombine.high %v771, %v771
    %v780 = vcombine.high %v778, %v778
    %v782 = vunpack.c.l.s4 1966171168
    %v783 = vunpack.c.0.s8 %v782
    %v784 = vlaneseq
    %v785 = vshrl.u32 %v784, 7
    %v786 = vsub.s32 %v783, %v785
    %v787 = vrot.slane %v771, %v786
    %v789 = vunpack.c.l.s4 1966171168
    %v790 = vunpack.c.0.s8 %v789
    %v791 = vlaneseq
    %v792 = vshrl.u32 %v791, 7
    %v793 = vsub.s32 %v790, %v792
    %v794 = vrot.slane %v778, %v793
    %v796 = vunpack.c.l.s4 1966171168
    %v797 = vunpack.c.0.s8 %v796
    %v798 = vlaneseq
    %v799 = vshrl.u32 %v798, 7
    %v800 = vsub.s32 %v797, %v799
    %v801 = vrot.slane %v779, %v800
    %v803 = vunpack.c.l.s4 1966171168
    %v804 = vunpack.c.0.s8 %v803
    %v805 = vlaneseq
    %v806 = vshrl.u32 %v805, 7
    %v807 = vsub.s32 %v804, %v806
    %v808 = vrot.slane %v780, %v807
    %v809 = vcombine.high %v787, %v787
    %v810 = vcombine.high %v794, %v794
    %v811 = vcombine.high %v801, %v801
    %v812 = vcombine.high %v808, %v808
    %v813 = vcombine.high %v711, %v711
    %v815 = vunpack.c.l.s4 1966171168
    %v816 = vunpack.c.0.s8 %v815
    %v817 = vlaneseq
    %v818 = vshrl.u32 %v817, 7
    %v819 = vsub.s32 %v816, %v818
    %v820 = vrot.slane %v711, %v819
    %v822 = vunpack.c.l.s4 1966171168
    %v823 = vunpack.c.0.s8 %v822
    %v824 = vlaneseq
    %v825 = vshrl.u32 %v824, 7
    %v826 = vsub.s32 %v823, %v825
    %v827 = vrot.slane %v813, %v826
    %v828 = vcombine.high %v820, %v820
    %v829 = vcombine.high %v827, %v827
    %v831 = vunpack.c.l.s4 1966171168
    %v832 = vunpack.c.0.s8 %v831
    %v833 = vlaneseq
    %v834 = vshrl.u32 %v833, 7
    %v835 = vsub.s32 %v832, %v834
    %v836 = vrot.slane %v820, %v835
    %v838 = vunpack.c.l.s4 1966171168
    %v839 = vunpack.c.0.s8 %v838
    %v840 = vlaneseq
    %v841 = vshrl.u32 %v840, 7
    %v842 = vsub.s32 %v839, %v841
    %v843 = vrot.slane %v827, %v842
    %v845 = vunpack.c.l.s4 1966171168
    %v846 = vunpack.c.0.s8 %v845
    %v847 = vlaneseq
    %v848 = vshrl.u32 %v847, 7
    %v849 = vsub.s32 %v846, %v848
    %v850 = vrot.slane %v828, %v849
    %v852 = vunpack.c.l.s4 1966171168
    %v853 = vunpack.c.0.s8 %v852
    %v854 = vlaneseq
    %v855 = vshrl.u32 %v854, 7
    %v856 = vsub.s32 %v853, %v855
    %v857 = vrot.slane %v829, %v856
    %v858 = vcombine.high %v836, %v836
    %v859 = vcombine.high %v843, %v843
    %v860 = vcombine.high %v850, %v850
    %v861 = vcombine.high %v857, %v857
    %886 = vst [vmem:[#allocation3 + $0x1] sm:$0x1] %v738
    %887 = vst [vmem:[#allocation3 + $0x9] sm:$0x1] %v752
    %888 = vst [vmem:[#allocation3 + $0x11] sm:$0x1] %v760
    %889 = vst [vmem:[#allocation3 + $0x19] sm:$0x1] %v762
    %890 = vst [vmem:[#allocation3 + $0x21] sm:$0x1] %v745
    %891 = vst [vmem:[#allocation3 + $0x29] sm:$0x1] %v759
    %892 = vst [vmem:[#allocation3 + $0x31] sm:$0x1] %v761
    %893 = vst [vmem:[#allocation3 + $0x39] sm:$0x1] %v763
    %894 = vst [vmem:[#allocation3 + $0x41] sm:$0x1] %v787
    %895 = vst [vmem:[#allocation3 + $0x49] sm:$0x1] %v801
    %896 = vst [vmem:[#allocation3 + $0x51] sm:$0x1] %v809
    %897 = vst [vmem:[#allocation3 + $0x59] sm:$0x1] %v811
    %898 = vst [vmem:[#allocation3 + $0x61] sm:$0x1] %v794
    %899 = vst [vmem:[#allocation3 + $0x69] sm:$0x1] %v808
    %900 = vst [vmem:[#allocation3 + $0x71] sm:$0x1] %v810
    %901 = vst [vmem:[#allocation3 + $0x79] sm:$0x1] %v812
    %902 = vst [vmem:[#allocation3 + $0x81] sm:$0x1] %v836
    %903 = vst [vmem:[#allocation3 + $0x89] sm:$0x1] %v850
    %904 = vst [vmem:[#allocation3 + $0x91] sm:$0x1] %v858
    %905 = vst [vmem:[#allocation3 + $0x99] sm:$0x1] %v860
    %906 = vst [vmem:[#allocation3 + $0xa1] sm:$0x1] %v843
    %907 = vst [vmem:[#allocation3 + $0xa9] sm:$0x1] %v857
    %908 = vst [vmem:[#allocation3 + $0xb1] sm:$0x1] %v859
    %909 = vst [vmem:[#allocation3 + $0xb9] sm:$0x1] %v861
    %s910 = scalar_lea.vmem [#allocation5], 48
    %v911 = vld [vmem:[%s910] sm:$0xff]
    %v912 = vld [vmem:[%s910 + $0x8] sm:$0xff]
    %v913 = vld [vmem:[%s910 + $0x10] sm:$0xff]
    %s914 = scalar_lea.vmem [#allocation7], 128
    %v915 = vld [vmem:[%s914] sm:$0xf]
    %v916 = vld [vmem:[%s914 + $0x4] sm:$0xf]
    %v917 = vld [vmem:[%s914 + $0x8] sm:$0xf]
    %v918 = vld [vmem:[%s914 + $0xc] sm:$0xf]
    %v919 = vld [vmem:[%s914 + $0x10] sm:$0xf]
    %v920 = vld [vmem:[%s914 + $0x14] sm:$0xf]
    %v921 = vld [vmem:[%s914 + $0x18] sm:$0xf]
    %v922 = vld [vmem:[%s914 + $0x1c] sm:$0xf]
    %v923 = vld [vmem:[%s914 + $0x20] sm:$0xf]
    %v924 = vld [vmem:[%s914 + $0x24] sm:$0xf]
    %v925 = vld [vmem:[%s914 + $0x28] sm:$0xf]
    %v926 = vld [vmem:[%s914 + $0x2c] sm:$0xf]
    %v927 = vld [vmem:[%s914 + $0x30] sm:$0xf]
    %v928 = vld [vmem:[%s914 + $0x34] sm:$0xf]
    %v929 = vld [vmem:[%s914 + $0x38] sm:$0xf]
    %v930 = vld [vmem:[%s914 + $0x3c] sm:$0xf]
    %931 = vmax.xlane.f32.xlu0 %v911
    %v932 = vpop.xlane.xlu0 %931
    %933 = vmax.xlane.f32.xlu0 %v912
    %v934 = vpop.xlane.xlu0 %933
    %935 = vmax.xlane.f32.xlu0 %v913
    %v936 = vpop.xlane.xlu0 %935
    %v937 = vmax.f32 %v932, -1e+30
    %v938 = vmax.f32 %v934, -1e+30
    %v939 = vmax.f32 %v936, -1e+30
    %v940 = vsub.f32 -1e+30, %v937
    %v941 = vsub.f32 -1e+30, %v938
    %v942 = vsub.f32 -1e+30, %v939
    %v943 = vmul.f32 %v940, 1.442695
    %v944 = vpow.pop %v943
    %v945 = vmul.f32 %v941, 1.442695
    %v946 = vpow.pop %v945
    %v947 = vmul.f32 %v942, 1.442695
    %v948 = vpow.pop %v947
    %v949 = vmul.f32 %v944, 0.0
    %v950 = vmul.f32 %v946, 0.0
    %v951 = vmul.f32 %v948, 0.0
    %v952 = vsub.f32 %v911, %v937
    %v953 = vsub.f32 %v912, %v938
    %v954 = vsub.f32 %v913, %v939
    %v955 = vmul.f32 %v952, 1.442695
    %v956 = vpow.pop %v955
    %v957 = vmul.f32 %v953, 1.442695
    %v958 = vpow.pop %v957
    %v959 = vmul.f32 %v954, 1.442695
    %v960 = vpow.pop %v959
    %961 = vadd.xlane.f32.xlu0 %v956
    %v962 = vpop.xlane.xlu0 %961
    %963 = vadd.xlane.f32.xlu0 %v958
    %v964 = vpop.xlane.xlu0 %963
    %965 = vadd.xlane.f32.xlu0 %v960
    %v966 = vpop.xlane.xlu0 %965
    %v967 = vadd.f32 %v949, %v962
    %v968 = vadd.f32 %v950, %v964
    %v969 = vadd.f32 %v951, %v966
    %v970 = vpack.c.bf16 %v912, %v911
    %v971 = vpack.c.bf16 %v913, %v913
    %v972 = vunpack.c.l.bf16 %v970
    %v973 = vunpack.c.h.bf16 %v970
    %v974 = vunpack.c.l.bf16 %v971
    %v975 = vsub.f32 %v911, %v972
    %v976 = vsub.f32 %v912, %v973
    %v977 = vsub.f32 %v913, %v974
    %v978 = vpack.c.bf16 %v976, %v975
    %v979 = vpack.c.bf16 %v977, %v977
    %v996 = vunpack.c.l.b16 %v915
    %v997 = vunpack.c.l.b16 %v916
    %v998 = vunpack.c.l.b16 %v917
    %v999 = vunpack.c.l.b16 %v918
    %v1000 = vunpack.c.l.b16 %v919
    %v1001 = vunpack.c.l.b16 %v920
    %v1002 = vunpack.c.l.b16 %v921
    %v1003 = vunpack.c.l.b16 %v922
    %v1004 = vunpack.c.l.b16 %v923
    %v1005 = vunpack.c.l.b16 %v924
    %v1006 = vunpack.c.l.b16 %v925
    %v1007 = vunpack.c.l.b16 %v926
    %v1008 = vunpack.c.l.b16 %v927
    %v1009 = vunpack.c.l.b16 %v928
    %v1010 = vunpack.c.l.b16 %v929
    %v1011 = vunpack.c.l.b16 %v930
    %v1012 = vpack.c.b16 %v997, %v996
    %v1013 = vpack.c.b16 %v999, %v998
    %v1014 = vpack.c.b16 %v1001, %v1000
    %v1015 = vpack.c.b16 %v1003, %v1002
    %v1016 = vpack.c.b16 %v1005, %v1004
    %v1017 = vpack.c.b16 %v1007, %v1006
    %v1018 = vpack.c.b16 %v1009, %v1008
    %v1019 = vpack.c.b16 %v1011, %v1010
    %1028 = vmatprep.subr.bf16.mxu0 0
    %1029 = vmatpush1.bf16.msra.mxu0 %v1012
    %1030 = vmatprep.subr.bf16.mxu0 0
    %1031 = vmatpush1.bf16.msra.mxu0 %v1013
    %1032 = vmatprep.subr.bf16.mxu0 0
    %1033 = vmatpush1.bf16.msra.mxu0 %v1014
    %1034 = vmatprep.subr.bf16.mxu0 0
    %1035 = vmatpush1.bf16.msra.mxu0 %v1015
    %1036 = vmatprep.subr.bf16.mxu0 0
    %1037 = vmatpush1.bf16.msra.mxu0 %v1016
    %1038 = vmatprep.subr.bf16.mxu0 0
    %1039 = vmatpush1.bf16.msra.mxu0 %v1017
    %1040 = vmatprep.subr.bf16.mxu0 0
    %1041 = vmatpush1.bf16.msra.mxu0 %v1018
    %1042 = vmatprep.subr.bf16.mxu0 0
    %1043 = vmatpush1.bf16.msra.mxu0 %v1019
    %1044 = vmatprep.subr.bf16.mxu0 0
    %1045 = vmatpush1.bf16.msra.mxu0 0
    %1046 = vmatprep.subr.bf16.mxu0 0
    %1047 = vmatpush1.bf16.msra.mxu0 0
    %1048 = vmatprep.subr.bf16.mxu0 0
    %1049 = vmatpush1.bf16.msra.mxu0 0
    %1050 = vmatprep.subr.bf16.mxu0 0
    %1051 = vmatpush1.bf16.msra.mxu0 0
    %1052 = vmatprep.subr.bf16.mxu0 0
    %1053 = vmatpush1.bf16.msra.mxu0 0
    %1054 = vmatprep.subr.bf16.mxu0 0
    %1055 = vmatpush1.bf16.msra.mxu0 0
    %1056 = vmatprep.subr.bf16.mxu0 0
    %1057 = vmatpush1.bf16.msra.mxu0 0
    %1058 = vmatprep.subr.bf16.mxu0 0
    %1059 = vmatpush1.bf16.msra.mxu0 0
    %1060 = vmatprep.mubr.bf16.mxu0 0
    %1061 = vmatmul.mubr.bf16.gmra.mrb[0].mxu0 %v978
    %v1062 = vpop.f32.mrb[0].mxu0
    %v1063 = vadd.f32 0.0, %v1062
    %v1064 = vpop.f32.mrb[0].mxu0
    %v1065 = vpop.f32.mrb[0].mxu0
    %v1066 = vadd.f32 0.0, %v1065
    %v1067 = vpop.f32.mrb[0].mxu0
    %1068 = vmatprep.mubr.bf16.mxu0 0
    %1069 = vmatmul.mubr.bf16.gmra.mrb[0].mxu0 %v979
    %v1070 = vpop.f32.mrb[0].mxu0
    %v1071 = vadd.f32 0.0, %v1070
    %v1072 = vpop.f32.mrb[0].mxu0
    %v1073 = vpop.f32.mrb[0].mxu0
    %v1074 = vpop.f32.mrb[0].mxu0
    %1075 = vdwg.mxu0
    %1076 = vmatprep.subr.bf16.mxu0 0
    %1077 = vmatpush1.bf16.msra.mxu0 %v1012
    %1078 = vmatprep.subr.bf16.mxu0 0
    %1079 = vmatpush1.bf16.msra.mxu0 %v1013
    %1080 = vmatprep.subr.bf16.mxu0 0
    %1081 = vmatpush1.bf16.msra.mxu0 %v1014
    %1082 = vmatprep.subr.bf16.mxu0 0
    %1083 = vmatpush1.bf16.msra.mxu0 %v1015
    %1084 = vmatprep.subr.bf16.mxu0 0
    %1085 = vmatpush1.bf16.msra.mxu0 %v1016
    %1086 = vmatprep.subr.bf16.mxu0 0
    %1087 = vmatpush1.bf16.msra.mxu0 %v1017
    %1088 = vmatprep.subr.bf16.mxu0 0
    %1089 = vmatpush1.bf16.msra.mxu0 %v1018
    %1090 = vmatprep.subr.bf16.mxu0 0
    %1091 = vmatpush1.bf16.msra.mxu0 %v1019
    %1092 = vmatprep.subr.bf16.mxu0 0
    %1093 = vmatpush1.bf16.msra.mxu0 0
    %1094 = vmatprep.subr.bf16.mxu0 0
    %1095 = vmatpush1.bf16.msra.mxu0 0
    %1096 = vmatprep.subr.bf16.mxu0 0
    %1097 = vmatpush1.bf16.msra.mxu0 0
    %1098 = vmatprep.subr.bf16.mxu0 0
    %1099 = vmatpush1.bf16.msra.mxu0 0
    %1100 = vmatprep.subr.bf16.mxu0 0
    %1101 = vmatpush1.bf16.msra.mxu0 0
    %1102 = vmatprep.subr.bf16.mxu0 0
    %1103 = vmatpush1.bf16.msra.mxu0 0
    %1104 = vmatprep.subr.bf16.mxu0 0
    %1105 = vmatpush1.bf16.msra.mxu0 0
    %1106 = vmatprep.subr.bf16.mxu0 0
    %1107 = vmatpush1.bf16.msra.mxu0 0
    %1108 = vmatprep.mubr.bf16.mxu0 0
    %1109 = vmatmul.mubr.bf16.gmra.mrb[0].mxu0 %v970
    %v1110 = vpop.f32.mrb[0].mxu0
    %v1111 = vadd.f32 %v1063, %v1110
    %v1112 = vpop.f32.mrb[0].mxu0
    %v1113 = vpop.f32.mrb[0].mxu0
    %v1114 = vadd.f32 %v1066, %v1113
    %v1115 = vpop.f32.mrb[0].mxu0
    %1116 = vmatprep.mubr.bf16.mxu0 0
    %1117 = vmatmul.mubr.bf16.gmra.mrb[0].mxu0 %v971
    %v1118 = vpop.f32.mrb[0].mxu0
    %v1119 = vadd.f32 %v1071, %v1118
    %v1120 = vpop.f32.mrb[0].mxu0
    %v1121 = vpop.f32.mrb[0].mxu0
    %v1122 = vpop.f32.mrb[0].mxu0
    %1123 = vdwg.mxu0
    %v1124 = vlog2.pop %v967
    %v1125 = vmul.f32 %v1124, 0.6931472
    %v1126 = vlog2.pop %v968
    %v1127 = vmul.f32 %v1126, 0.6931472
    %v1128 = vlog2.pop %v969
    %v1129 = vmul.f32 %v1128, 0.6931472
    %v1130 = vadd.f32 %v937, %v1125
    %v1131 = vadd.f32 %v938, %v1127
    %v1132 = vadd.f32 %v939, %v1129
    %v1133 = vsub.f32 %v1111, %v1130
    %v1134 = vsub.f32 %v1114, %v1131
    %v1135 = vsub.f32 %v1119, %v1132
    %v1139 = vcombine.high %v1133, %v1133
    %v1141 = vunpack.c.l.s4 1966171168
    %v1142 = vunpack.c.0.s8 %v1141
    %v1143 = vlaneseq
    %v1144 = vshrl.u32 %v1143, 7
    %v1145 = vsub.s32 %v1142, %v1144
    %v1146 = vrot.slane %v1133, %v1145
    %v1148 = vunpack.c.l.s4 1966171168
    %v1149 = vunpack.c.0.s8 %v1148
    %v1150 = vlaneseq
    %v1151 = vshrl.u32 %v1150, 7
    %v1152 = vsub.s32 %v1149, %v1151
    %v1153 = vrot.slane %v1139, %v1152
    %v1154 = vcombine.high %v1146, %v1146
    %v1155 = vcombine.high %v1153, %v1153
    %v1157 = vunpack.c.l.s4 1966171168
    %v1158 = vunpack.c.0.s8 %v1157
    %v1159 = vlaneseq
    %v1160 = vshrl.u32 %v1159, 7
    %v1161 = vsub.s32 %v1158, %v1160
    %v1162 = vrot.slane %v1146, %v1161
    %v1164 = vunpack.c.l.s4 1966171168
    %v1165 = vunpack.c.0.s8 %v1164
    %v1166 = vlaneseq
    %v1167 = vshrl.u32 %v1166, 7
    %v1168 = vsub.s32 %v1165, %v1167
    %v1169 = vrot.slane %v1153, %v1168
    %v1171 = vunpack.c.l.s4 1966171168
    %v1172 = vunpack.c.0.s8 %v1171
    %v1173 = vlaneseq
    %v1174 = vshrl.u32 %v1173, 7
    %v1175 = vsub.s32 %v1172, %v1174
    %v1176 = vrot.slane %v1154, %v1175
    %v1178 = vunpack.c.l.s4 1966171168
    %v1179 = vunpack.c.0.s8 %v1178
    %v1180 = vlaneseq
    %v1181 = vshrl.u32 %v1180, 7
    %v1182 = vsub.s32 %v1179, %v1181
    %v1183 = vrot.slane %v1155, %v1182
    %v1184 = vcombine.high %v1162, %v1162
    %v1185 = vcombine.high %v1169, %v1169
    %v1186 = vcombine.high %v1176, %v1176
    %v1187 = vcombine.high %v1183, %v1183
    %v1188 = vcombine.high %v1134, %v1134
    %v1190 = vunpack.c.l.s4 1966171168
    %v1191 = vunpack.c.0.s8 %v1190
    %v1192 = vlaneseq
    %v1193 = vshrl.u32 %v1192, 7
    %v1194 = vsub.s32 %v1191, %v1193
    %v1195 = vrot.slane %v1134, %v1194
    %v1197 = vunpack.c.l.s4 1966171168
    %v1198 = vunpack.c.0.s8 %v1197
    %v1199 = vlaneseq
    %v1200 = vshrl.u32 %v1199, 7
    %v1201 = vsub.s32 %v1198, %v1200
    %v1202 = vrot.slane %v1188, %v1201
    %v1203 = vcombine.high %v1195, %v1195
    %v1204 = vcombine.high %v1202, %v1202
    %v1206 = vunpack.c.l.s4 1966171168
    %v1207 = vunpack.c.0.s8 %v1206
    %v1208 = vlaneseq
    %v1209 = vshrl.u32 %v1208, 7
    %v1210 = vsub.s32 %v1207, %v1209
    %v1211 = vrot.slane %v1195, %v1210
    %v1213 = vunpack.c.l.s4 1966171168
    %v1214 = vunpack.c.0.s8 %v1213
    %v1215 = vlaneseq
    %v1216 = vshrl.u32 %v1215, 7
    %v1217 = vsub.s32 %v1214, %v1216
    %v1218 = vrot.slane %v1202, %v1217
    %v1220 = vunpack.c.l.s4 1966171168
    %v1221 = vunpack.c.0.s8 %v1220
    %v1222 = vlaneseq
    %v1223 = vshrl.u32 %v1222, 7
    %v1224 = vsub.s32 %v1221, %v1223
    %v1225 = vrot.slane %v1203, %v1224
    %v1227 = vunpack.c.l.s4 1966171168
    %v1228 = vunpack.c.0.s8 %v1227
    %v1229 = vlaneseq
    %v1230 = vshrl.u32 %v1229, 7
    %v1231 = vsub.s32 %v1228, %v1230
    %v1232 = vrot.slane %v1204, %v1231
    %v1233 = vcombine.high %v1211, %v1211
    %v1234 = vcombine.high %v1218, %v1218
    %v1235 = vcombine.high %v1225, %v1225
    %v1236 = vcombine.high %v1232, %v1232
    %v1237 = vcombine.high %v1135, %v1135
    %v1239 = vunpack.c.l.s4 1966171168
    %v1240 = vunpack.c.0.s8 %v1239
    %v1241 = vlaneseq
    %v1242 = vshrl.u32 %v1241, 7
    %v1243 = vsub.s32 %v1240, %v1242
    %v1244 = vrot.slane %v1135, %v1243
    %v1246 = vunpack.c.l.s4 1966171168
    %v1247 = vunpack.c.0.s8 %v1246
    %v1248 = vlaneseq
    %v1249 = vshrl.u32 %v1248, 7
    %v1250 = vsub.s32 %v1247, %v1249
    %v1251 = vrot.slane %v1237, %v1250
    %v1252 = vcombine.high %v1244, %v1244
    %v1253 = vcombine.high %v1251, %v1251
    %v1255 = vunpack.c.l.s4 1966171168
    %v1256 = vunpack.c.0.s8 %v1255
    %v1257 = vlaneseq
    %v1258 = vshrl.u32 %v1257, 7
    %v1259 = vsub.s32 %v1256, %v1258
    %v1260 = vrot.slane %v1244, %v1259
    %v1262 = vunpack.c.l.s4 1966171168
    %v1263 = vunpack.c.0.s8 %v1262
    %v1264 = vlaneseq
    %v1265 = vshrl.u32 %v1264, 7
    %v1266 = vsub.s32 %v1263, %v1265
    %v1267 = vrot.slane %v1251, %v1266
    %v1269 = vunpack.c.l.s4 1966171168
    %v1270 = vunpack.c.0.s8 %v1269
    %v1271 = vlaneseq
    %v1272 = vshrl.u32 %v1271, 7
    %v1273 = vsub.s32 %v1270, %v1272
    %v1274 = vrot.slane %v1252, %v1273
    %v1276 = vunpack.c.l.s4 1966171168
    %v1277 = vunpack.c.0.s8 %v1276
    %v1278 = vlaneseq
    %v1279 = vshrl.u32 %v1278, 7
    %v1280 = vsub.s32 %v1277, %v1279
    %v1281 = vrot.slane %v1253, %v1280
    %v1282 = vcombine.high %v1260, %v1260
    %v1283 = vcombine.high %v1267, %v1267
    %v1284 = vcombine.high %v1274, %v1274
    %v1285 = vcombine.high %v1281, %v1281
    %1310 = vst [vmem:[#allocation3 + $0x2] sm:$0x1] %v1162
    %1311 = vst [vmem:[#allocation3 + $0xa] sm:$0x1] %v1176
    %1312 = vst [vmem:[#allocation3 + $0x12] sm:$0x1] %v1184
    %1313 = vst [vmem:[#allocation3 + $0x1a] sm:$0x1] %v1186
    %1314 = vst [vmem:[#allocation3 + $0x22] sm:$0x1] %v1169
    %1315 = vst [vmem:[#allocation3 + $0x2a] sm:$0x1] %v1183
    %1316 = vst [vmem:[#allocation3 + $0x32] sm:$0x1] %v1185
    %1317 = vst [vmem:[#allocation3 + $0x3a] sm:$0x1] %v1187
    %1318 = vst [vmem:[#allocation3 + $0x42] sm:$0x1] %v1211
    %1319 = vst [vmem:[#allocation3 + $0x4a] sm:$0x1] %v1225
    %1320 = vst [vmem:[#allocation3 + $0x52] sm:$0x1] %v1233
    %1321 = vst [vmem:[#allocation3 + $0x5a] sm:$0x1] %v1235
    %1322 = vst [vmem:[#allocation3 + $0x62] sm:$0x1] %v1218
    %1323 = vst [vmem:[#allocation3 + $0x6a] sm:$0x1] %v1232
    %1324 = vst [vmem:[#allocation3 + $0x72] sm:$0x1] %v1234
    %1325 = vst [vmem:[#allocation3 + $0x7a] sm:$0x1] %v1236
    %1326 = vst [vmem:[#allocation3 + $0x82] sm:$0x1] %v1260
    %1327 = vst [vmem:[#allocation3 + $0x8a] sm:$0x1] %v1274
    %1328 = vst [vmem:[#allocation3 + $0x92] sm:$0x1] %v1282
    %1329 = vst [vmem:[#allocation3 + $0x9a] sm:$0x1] %v1284
    %1330 = vst [vmem:[#allocation3 + $0xa2] sm:$0x1] %v1267
    %1331 = vst [vmem:[#allocation3 + $0xaa] sm:$0x1] %v1281
    %1332 = vst [vmem:[#allocation3 + $0xb2] sm:$0x1] %v1283
    %1333 = vst [vmem:[#allocation3 + $0xba] sm:$0x1] %v1285
    %s1334 = scalar_lea.vmem [#allocation5], 72
    %v1335 = vld [vmem:[%s1334] sm:$0xff]
    %v1336 = vld [vmem:[%s1334 + $0x8] sm:$0xff]
    %v1337 = vld [vmem:[%s1334 + $0x10] sm:$0xff]
    %s1338 = scalar_lea.vmem [#allocation7], 192
    %v1339 = vld [vmem:[%s1338] sm:$0xf]
    %v1340 = vld [vmem:[%s1338 + $0x4] sm:$0xf]
    %v1341 = vld [vmem:[%s1338 + $0x8] sm:$0xf]
    %v1342 = vld [vmem:[%s1338 + $0xc] sm:$0xf]
    %v1343 = vld [vmem:[%s1338 + $0x10] sm:$0xf]
    %v1344 = vld [vmem:[%s1338 + $0x14] sm:$0xf]
    %v1345 = vld [vmem:[%s1338 + $0x18] sm:$0xf]
    %v1346 = vld [vmem:[%s1338 + $0x1c] sm:$0xf]
    %v1347 = vld [vmem:[%s1338 + $0x20] sm:$0xf]
    %v1348 = vld [vmem:[%s1338 + $0x24] sm:$0xf]
    %v1349 = vld [vmem:[%s1338 + $0x28] sm:$0xf]
    %v1350 = vld [vmem:[%s1338 + $0x2c] sm:$0xf]
    %v1351 = vld [vmem:[%s1338 + $0x30] sm:$0xf]
    %v1352 = vld [vmem:[%s1338 + $0x34] sm:$0xf]
    %v1353 = vld [vmem:[%s1338 + $0x38] sm:$0xf]
    %v1354 = vld [vmem:[%s1338 + $0x3c] sm:$0xf]
    %1355 = vmax.xlane.f32.xlu0 %v1335
    %v1356 = vpop.xlane.xlu0 %1355
    %1357 = vmax.xlane.f32.xlu0 %v1336
    %v1358 = vpop.xlane.xlu0 %1357
    %1359 = vmax.xlane.f32.xlu0 %v1337
    %v1360 = vpop.xlane.xlu0 %1359
    %v1361 = vmax.f32 %v1356, -1e+30
    %v1362 = vmax.f32 %v1358, -1e+30
    %v1363 = vmax.f32 %v1360, -1e+30
    %v1364 = vsub.f32 -1e+30, %v1361
    %v1365 = vsub.f32 -1e+30, %v1362
    %v1366 = vsub.f32 -1e+30, %v1363
    %v1367 = vmul.f32 %v1364, 1.442695
    %v1368 = vpow.pop %v1367
    %v1369 = vmul.f32 %v1365, 1.442695
    %v1370 = vpow.pop %v1369
    %v1371 = vmul.f32 %v1366, 1.442695
    %v1372 = vpow.pop %v1371
    %v1373 = vmul.f32 %v1368, 0.0
    %v1374 = vmul.f32 %v1370, 0.0
    %v1375 = vmul.f32 %v1372, 0.0
    %v1376 = vsub.f32 %v1335, %v1361
    %v1377 = vsub.f32 %v1336, %v1362
    %v1378 = vsub.f32 %v1337, %v1363
    %v1379 = vmul.f32 %v1376, 1.442695
    %v1380 = vpow.pop %v1379
    %v1381 = vmul.f32 %v1377, 1.442695
    %v1382 = vpow.pop %v1381
    %v1383 = vmul.f32 %v1378, 1.442695
    %v1384 = vpow.pop %v1383
    %1385 = vadd.xlane.f32.xlu0 %v1380
    %v1386 = vpop.xlane.xlu0 %1385
    %1387 = vadd.xlane.f32.xlu0 %v1382
    %v1388 = vpop.xlane.xlu0 %1387
    %1389 = vadd.xlane.f32.xlu0 %v1384
    %v1390 = vpop.xlane.xlu0 %1389
    %v1391 = vadd.f32 %v1373, %v1386
    %v1392 = vadd.f32 %v1374, %v1388
    %v1393 = vadd.f32 %v1375, %v1390
    %v1394 = vpack.c.bf16 %v1336, %v1335
    %v1395 = vpack.c.bf16 %v1337, %v1337
    %v1396 = vunpack.c.l.bf16 %v1394
    %v1397 = vunpack.c.h.bf16 %v1394
    %v1398 = vunpack.c.l.bf16 %v1395
    %v1399 = vsub.f32 %v1335, %v1396
    %v1400 = vsub.f32 %v1336, %v1397
    %v1401 = vsub.f32 %v1337, %v1398
    %v1402 = vpack.c.bf16 %v1400, %v1399
    %v1403 = vpack.c.bf16 %v1401, %v1401
    %v1420 = vunpack.c.l.b16 %v1339
    %v1421 = vunpack.c.l.b16 %v1340
    %v1422 = vunpack.c.l.b16 %v1341
    %v1423 = vunpack.c.l.b16 %v1342
    %v1424 = vunpack.c.l.b16 %v1343
    %v1425 = vunpack.c.l.b16 %v1344
    %v1426 = vunpack.c.l.b16 %v1345
    %v1427 = vunpack.c.l.b16 %v1346
    %v1428 = vunpack.c.l.b16 %v1347
    %v1429 = vunpack.c.l.b16 %v1348
    %v1430 = vunpack.c.l.b16 %v1349
    %v1431 = vunpack.c.l.b16 %v1350
    %v1432 = vunpack.c.l.b16 %v1351
    %v1433 = vunpack.c.l.b16 %v1352
    %v1434 = vunpack.c.l.b16 %v1353
    %v1435 = vunpack.c.l.b16 %v1354
    %v1436 = vpack.c.b16 %v1421, %v1420
    %v1437 = vpack.c.b16 %v1423, %v1422
    %v1438 = vpack.c.b16 %v1425, %v1424
    %v1439 = vpack.c.b16 %v1427, %v1426
    %v1440 = vpack.c.b16 %v1429, %v1428
    %v1441 = vpack.c.b16 %v1431, %v1430
    %v1442 = vpack.c.b16 %v1433, %v1432
    %v1443 = vpack.c.b16 %v1435, %v1434
    %1452 = vmatprep.subr.bf16.mxu0 0
    %1453 = vmatpush1.bf16.msra.mxu0 %v1436
    %1454 = vmatprep.subr.bf16.mxu0 0
    %1455 = vmatpush1.bf16.msra.mxu0 %v1437
    %1456 = vmatprep.subr.bf16.mxu0 0
    %1457 = vmatpush1.bf16.msra.mxu0 %v1438
    %1458 = vmatprep.subr.bf16.mxu0 0
    %1459 = vmatpush1.bf16.msra.mxu0 %v1439
    %1460 = vmatprep.subr.bf16.mxu0 0
    %1461 = vmatpush1.bf16.msra.mxu0 %v1440
    %1462 = vmatprep.subr.bf16.mxu0 0
    %1463 = vmatpush1.bf16.msra.mxu0 %v1441
    %1464 = vmatprep.subr.bf16.mxu0 0
    %1465 = vmatpush1.bf16.msra.mxu0 %v1442
    %1466 = vmatprep.subr.bf16.mxu0 0
    %1467 = vmatpush1.bf16.msra.mxu0 %v1443
    %1468 = vmatprep.subr.bf16.mxu0 0
    %1469 = vmatpush1.bf16.msra.mxu0 0
    %1470 = vmatprep.subr.bf16.mxu0 0
    %1471 = vmatpush1.bf16.msra.mxu0 0
    %1472 = vmatprep.subr.bf16.mxu0 0
    %1473 = vmatpush1.bf16.msra.mxu0 0
    %1474 = vmatprep.subr.bf16.mxu0 0
    %1475 = vmatpush1.bf16.msra.mxu0 0
    %1476 = vmatprep.subr.bf16.mxu0 0
    %1477 = vmatpush1.bf16.msra.mxu0 0
    %1478 = vmatprep.subr.bf16.mxu0 0
    %1479 = vmatpush1.bf16.msra.mxu0 0
    %1480 = vmatprep.subr.bf16.mxu0 0
    %1481 = vmatpush1.bf16.msra.mxu0 0
    %1482 = vmatprep.subr.bf16.mxu0 0
    %1483 = vmatpush1.bf16.msra.mxu0 0
    %1484 = vmatprep.mubr.bf16.mxu0 0
    %1485 = vmatmul.mubr.bf16.gmra.mrb[0].mxu0 %v1402
    %v1486 = vpop.f32.mrb[0].mxu0
    %v1487 = vadd.f32 0.0, %v1486
    %v1488 = vpop.f32.mrb[0].mxu0
    %v1489 = vpop.f32.mrb[0].mxu0
    %v1490 = vadd.f32 0.0, %v1489
    %v1491 = vpop.f32.mrb[0].mxu0
    %1492 = vmatprep.mubr.bf16.mxu0 0
    %1493 = vmatmul.mubr.bf16.gmra.mrb[0].mxu0 %v1403
    %v1494 = vpop.f32.mrb[0].mxu0
    %v1495 = vadd.f32 0.0, %v1494
    %v1496 = vpop.f32.mrb[0].mxu0
    %v1497 = vpop.f32.mrb[0].mxu0
    %v1498 = vpop.f32.mrb[0].mxu0
    %1499 = vdwg.mxu0
    %1500 = vmatprep.subr.bf16.mxu0 0
    %1501 = vmatpush1.bf16.msra.mxu0 %v1436
    %1502 = vmatprep.subr.bf16.mxu0 0
    %1503 = vmatpush1.bf16.msra.mxu0 %v1437
    %1504 = vmatprep.subr.bf16.mxu0 0
    %1505 = vmatpush1.bf16.msra.mxu0 %v1438
    %1506 = vmatprep.subr.bf16.mxu0 0
    %1507 = vmatpush1.bf16.msra.mxu0 %v1439
    %1508 = vmatprep.subr.bf16.mxu0 0
    %1509 = vmatpush1.bf16.msra.mxu0 %v1440
    %1510 = vmatprep.subr.bf16.mxu0 0
    %1511 = vmatpush1.bf16.msra.mxu0 %v1441
    %1512 = vmatprep.subr.bf16.mxu0 0
    %1513 = vmatpush1.bf16.msra.mxu0 %v1442
    %1514 = vmatprep.subr.bf16.mxu0 0
    %1515 = vmatpush1.bf16.msra.mxu0 %v1443
    %1516 = vmatprep.subr.bf16.mxu0 0
    %1517 = vmatpush1.bf16.msra.mxu0 0
    %1518 = vmatprep.subr.bf16.mxu0 0
    %1519 = vmatpush1.bf16.msra.mxu0 0
    %1520 = vmatprep.subr.bf16.mxu0 0
    %1521 = vmatpush1.bf16.msra.mxu0 0
    %1522 = vmatprep.subr.bf16.mxu0 0
    %1523 = vmatpush1.bf16.msra.mxu0 0
    %1524 = vmatprep.subr.bf16.mxu0 0
    %1525 = vmatpush1.bf16.msra.mxu0 0
    %1526 = vmatprep.subr.bf16.mxu0 0
    %1527 = vmatpush1.bf16.msra.mxu0 0
    %1528 = vmatprep.subr.bf16.mxu0 0
    %1529 = vmatpush1.bf16.msra.mxu0 0
    %1530 = vmatprep.subr.bf16.mxu0 0
    %1531 = vmatpush1.bf16.msra.mxu0 0
    %1532 = vmatprep.mubr.bf16.mxu0 0
    %1533 = vmatmul.mubr.bf16.gmra.mrb[0].mxu0 %v1394
    %v1534 = vpop.f32.mrb[0].mxu0
    %v1535 = vadd.f32 %v1487, %v1534
    %v1536 = vpop.f32.mrb[0].mxu0
    %v1537 = vpop.f32.mrb[0].mxu0
    %v1538 = vadd.f32 %v1490, %v1537
    %v1539 = vpop.f32.mrb[0].mxu0
    %1540 = vmatprep.mubr.bf16.mxu0 0
    %1541 = vmatmul.mubr.bf16.gmra.mrb[0].mxu0 %v1395
    %v1542 = vpop.f32.mrb[0].mxu0
    %v1543 = vadd.f32 %v1495, %v1542
    %v1544 = vpop.f32.mrb[0].mxu0
    %v1545 = vpop.f32.mrb[0].mxu0
    %v1546 = vpop.f32.mrb[0].mxu0
    %1547 = vdwg.mxu0
    %v1548 = vlog2.pop %v1391
    %v1549 = vmul.f32 %v1548, 0.6931472
    %v1550 = vlog2.pop %v1392
    %v1551 = vmul.f32 %v1550, 0.6931472
    %v1552 = vlog2.pop %v1393
    %v1553 = vmul.f32 %v1552, 0.6931472
    %v1554 = vadd.f32 %v1361, %v1549
    %v1555 = vadd.f32 %v1362, %v1551
    %v1556 = vadd.f32 %v1363, %v1553
    %v1557 = vsub.f32 %v1535, %v1554
    %v1558 = vsub.f32 %v1538, %v1555
    %v1559 = vsub.f32 %v1543, %v1556
    %v1563 = vcombine.high %v1557, %v1557
    %v1565 = vunpack.c.l.s4 1966171168
    %v1566 = vunpack.c.0.s8 %v1565
    %v1567 = vlaneseq
    %v1568 = vshrl.u32 %v1567, 7
    %v1569 = vsub.s32 %v1566, %v1568
    %v1570 = vrot.slane %v1557, %v1569
    %v1572 = vunpack.c.l.s4 1966171168
    %v1573 = vunpack.c.0.s8 %v1572
    %v1574 = vlaneseq
    %v1575 = vshrl.u32 %v1574, 7
    %v1576 = vsub.s32 %v1573, %v1575
    %v1577 = vrot.slane %v1563, %v1576
    %v1578 = vcombine.high %v1570, %v1570
    %v1579 = vcombine.high %v1577, %v1577
    %v1581 = vunpack.c.l.s4 1966171168
    %v1582 = vunpack.c.0.s8 %v1581
    %v1583 = vlaneseq
    %v1584 = vshrl.u32 %v1583, 7
    %v1585 = vsub.s32 %v1582, %v1584
    %v1586 = vrot.slane %v1570, %v1585
    %v1588 = vunpack.c.l.s4 1966171168
    %v1589 = vunpack.c.0.s8 %v1588
    %v1590 = vlaneseq
    %v1591 = vshrl.u32 %v1590, 7
    %v1592 = vsub.s32 %v1589, %v1591
    %v1593 = vrot.slane %v1577, %v1592
    %v1595 = vunpack.c.l.s4 1966171168
    %v1596 = vunpack.c.0.s8 %v1595
    %v1597 = vlaneseq
    %v1598 = vshrl.u32 %v1597, 7
    %v1599 = vsub.s32 %v1596, %v1598
    %v1600 = vrot.slane %v1578, %v1599
    %v1602 = vunpack.c.l.s4 1966171168
    %v1603 = vunpack.c.0.s8 %v1602
    %v1604 = vlaneseq
    %v1605 = vshrl.u32 %v1604, 7
    %v1606 = vsub.s32 %v1603, %v1605
    %v1607 = vrot.slane %v1579, %v1606
    %v1608 = vcombine.high %v1586, %v1586
    %v1609 = vcombine.high %v1593, %v1593
    %v1610 = vcombine.high %v1600, %v1600
    %v1611 = vcombine.high %v1607, %v1607
    %v1612 = vcombine.high %v1558, %v1558
    %v1614 = vunpack.c.l.s4 1966171168
    %v1615 = vunpack.c.0.s8 %v1614
    %v1616 = vlaneseq
    %v1617 = vshrl.u32 %v1616, 7
    %v1618 = vsub.s32 %v1615, %v1617
    %v1619 = vrot.slane %v1558, %v1618
    %v1621 = vunpack.c.l.s4 1966171168
    %v1622 = vunpack.c.0.s8 %v1621
    %v1623 = vlaneseq
    %v1624 = vshrl.u32 %v1623, 7
    %v1625 = vsub.s32 %v1622, %v1624
    %v1626 = vrot.slane %v1612, %v1625
    %v1627 = vcombine.high %v1619, %v1619
    %v1628 = vcombine.high %v1626, %v1626
    %v1630 = vunpack.c.l.s4 1966171168
    %v1631 = vunpack.c.0.s8 %v1630
    %v1632 = vlaneseq
    %v1633 = vshrl.u32 %v1632, 7
    %v1634 = vsub.s32 %v1631, %v1633
    %v1635 = vrot.slane %v1619, %v1634
    %v1637 = vunpack.c.l.s4 1966171168
    %v1638 = vunpack.c.0.s8 %v1637
    %v1639 = vlaneseq
    %v1640 = vshrl.u32 %v1639, 7
    %v1641 = vsub.s32 %v1638, %v1640
    %v1642 = vrot.slane %v1626, %v1641
    %v1644 = vunpack.c.l.s4 1966171168
    %v1645 = vunpack.c.0.s8 %v1644
    %v1646 = vlaneseq
    %v1647 = vshrl.u32 %v1646, 7
    %v1648 = vsub.s32 %v1645, %v1647
    %v1649 = vrot.slane %v1627, %v1648
    %v1651 = vunpack.c.l.s4 1966171168
    %v1652 = vunpack.c.0.s8 %v1651
    %v1653 = vlaneseq
    %v1654 = vshrl.u32 %v1653, 7
    %v1655 = vsub.s32 %v1652, %v1654
    %v1656 = vrot.slane %v1628, %v1655
    %v1657 = vcombine.high %v1635, %v1635
    %v1658 = vcombine.high %v1642, %v1642
    %v1659 = vcombine.high %v1649, %v1649
    %v1660 = vcombine.high %v1656, %v1656
    %v1661 = vcombine.high %v1559, %v1559
    %v1663 = vunpack.c.l.s4 1966171168
    %v1664 = vunpack.c.0.s8 %v1663
    %v1665 = vlaneseq
    %v1666 = vshrl.u32 %v1665, 7
    %v1667 = vsub.s32 %v1664, %v1666
    %v1668 = vrot.slane %v1559, %v1667
    %v1670 = vunpack.c.l.s4 1966171168
    %v1671 = vunpack.c.0.s8 %v1670
    %v1672 = vlaneseq
    %v1673 = vshrl.u32 %v1672, 7
    %v1674 = vsub.s32 %v1671, %v1673
    %v1675 = vrot.slane %v1661, %v1674
    %v1676 = vcombine.high %v1668, %v1668
    %v1677 = vcombine.high %v1675, %v1675
    %v1679 = vunpack.c.l.s4 1966171168
    %v1680 = vunpack.c.0.s8 %v1679
    %v1681 = vlaneseq
    %v1682 = vshrl.u32 %v1681, 7
    %v1683 = vsub.s32 %v1680, %v1682
    %v1684 = vrot.slane %v1668, %v1683
    %v1686 = vunpack.c.l.s4 1966171168
    %v1687 = vunpack.c.0.s8 %v1686
    %v1688 = vlaneseq
    %v1689 = vshrl.u32 %v1688, 7
    %v1690 = vsub.s32 %v1687, %v1689
    %v1691 = vrot.slane %v1675, %v1690
    %v1693 = vunpack.c.l.s4 1966171168
    %v1694 = vunpack.c.0.s8 %v1693
    %v1695 = vlaneseq
    %v1696 = vshrl.u32 %v1695, 7
    %v1697 = vsub.s32 %v1694, %v1696
    %v1698 = vrot.slane %v1676, %v1697
    %v1700 = vunpack.c.l.s4 1966171168
    %v1701 = vunpack.c.0.s8 %v1700
    %v1702 = vlaneseq
    %v1703 = vshrl.u32 %v1702, 7
    %v1704 = vsub.s32 %v1701, %v1703
    %v1705 = vrot.slane %v1677, %v1704
    %v1706 = vcombine.high %v1684, %v1684
    %v1707 = vcombine.high %v1691, %v1691
    %v1708 = vcombine.high %v1698, %v1698
    %v1709 = vcombine.high %v1705, %v1705
    %1734 = vst [vmem:[#allocation3 + $0x3] sm:$0x1] %v1586
    %1735 = vst [vmem:[#allocation3 + $0xb] sm:$0x1] %v1600
    %1736 = vst [vmem:[#allocation3 + $0x13] sm:$0x1] %v1608
    %1737 = vst [vmem:[#allocation3 + $0x1b] sm:$0x1] %v1610
    %1738 = vst [vmem:[#allocation3 + $0x23] sm:$0x1] %v1593
    %1739 = vst [vmem:[#allocation3 + $0x2b] sm:$0x1] %v1607
    %1740 = vst [vmem:[#allocation3 + $0x33] sm:$0x1] %v1609
    %1741 = vst [vmem:[#allocation3 + $0x3b] sm:$0x1] %v1611
    %1742 = vst [vmem:[#allocation3 + $0x43] sm:$0x1] %v1635
    %1743 = vst [vmem:[#allocation3 + $0x4b] sm:$0x1] %v1649
    %1744 = vst [vmem:[#allocation3 + $0x53] sm:$0x1] %v1657
    %1745 = vst [vmem:[#allocation3 + $0x5b] sm:$0x1] %v1659
    %1746 = vst [vmem:[#allocation3 + $0x63] sm:$0x1] %v1642
    %1747 = vst [vmem:[#allocation3 + $0x6b] sm:$0x1] %v1656
    %1748 = vst [vmem:[#allocation3 + $0x73] sm:$0x1] %v1658
    %1749 = vst [vmem:[#allocation3 + $0x7b] sm:$0x1] %v1660
    %1750 = vst [vmem:[#allocation3 + $0x83] sm:$0x1] %v1684
    %1751 = vst [vmem:[#allocation3 + $0x8b] sm:$0x1] %v1698
    %1752 = vst [vmem:[#allocation3 + $0x93] sm:$0x1] %v1706
    %1753 = vst [vmem:[#allocation3 + $0x9b] sm:$0x1] %v1708
    %1754 = vst [vmem:[#allocation3 + $0xa3] sm:$0x1] %v1691
    %1755 = vst [vmem:[#allocation3 + $0xab] sm:$0x1] %v1705
    %1756 = vst [vmem:[#allocation3 + $0xb3] sm:$0x1] %v1707
    %1757 = vst [vmem:[#allocation3 + $0xbb] sm:$0x1] %v1709
    %s1758 = scalar_lea.vmem [#allocation5], 96
    %v1759 = vld [vmem:[%s1758] sm:$0xff]
    %v1760 = vld [vmem:[%s1758 + $0x8] sm:$0xff]
    %v1761 = vld [vmem:[%s1758 + $0x10] sm:$0xff]
    %s1762 = scalar_lea.vmem [#allocation7], 256
    %v1763 = vld [vmem:[%s1762] sm:$0xf]
    %v1764 = vld [vmem:[%s1762 + $0x4] sm:$0xf]
    %v1765 = vld [vmem:[%s1762 + $0x8] sm:$0xf]
    %v1766 = vld [vmem:[%s1762 + $0xc] sm:$0xf]
    %v1767 = vld [vmem:[%s1762 + $0x10] sm:$0xf]
    %v1768 = vld [vmem:[%s1762 + $0x14] sm:$0xf]
    %v1769 = vld [vmem:[%s1762 + $0x18] sm:$0xf]
    %v1770 = vld [vmem:[%s1762 + $0x1c] sm:$0xf]
    %v1771 = vld [vmem:[%s1762 + $0x20] sm:$0xf]
    %v1772 = vld [vmem:[%s1762 + $0x24] sm:$0xf]
    %v1773 = vld [vmem:[%s1762 + $0x28] sm:$0xf]
    %v1774 = vld [vmem:[%s1762 + $0x2c] sm:$0xf]
    %v1775 = vld [vmem:[%s1762 + $0x30] sm:$0xf]
    %v1776 = vld [vmem:[%s1762 + $0x34] sm:$0xf]
    %v1777 = vld [vmem:[%s1762 + $0x38] sm:$0xf]
    %v1778 = vld [vmem:[%s1762 + $0x3c] sm:$0xf]
    %1779 = vmax.xlane.f32.xlu0 %v1759
    %v1780 = vpop.xlane.xlu0 %1779
    %1781 = vmax.xlane.f32.xlu0 %v1760
    %v1782 = vpop.xlane.xlu0 %1781
    %1783 = vmax.xlane.f32.xlu0 %v1761
    %v1784 = vpop.xlane.xlu0 %1783
    %v1785 = vmax.f32 %v1780, -1e+30
    %v1786 = vmax.f32 %v1782, -1e+30
    %v1787 = vmax.f32 %v1784, -1e+30
    %v1788 = vsub.f32 -1e+30, %v1785
    %v1789 = vsub.f32 -1e+30, %v1786
    %v1790 = vsub.f32 -1e+30, %v1787
    %v1791 = vmul.f32 %v1788, 1.442695
    %v1792 = vpow.pop %v1791
    %v1793 = vmul.f32 %v1789, 1.442695
    %v1794 = vpow.pop %v1793
    %v1795 = vmul.f32 %v1790, 1.442695
    %v1796 = vpow.pop %v1795
    %v1797 = vmul.f32 %v1792, 0.0
    %v1798 = vmul.f32 %v1794, 0.0
    %v1799 = vmul.f32 %v1796, 0.0
    %v1800 = vsub.f32 %v1759, %v1785
    %v1801 = vsub.f32 %v1760, %v1786
    %v1802 = vsub.f32 %v1761, %v1787
    %v1803 = vmul.f32 %v1800, 1.442695
    %v1804 = vpow.pop %v1803
    %v1805 = vmul.f32 %v1801, 1.442695
    %v1806 = vpow.pop %v1805
    %v1807 = vmul.f32 %v1802, 1.442695
    %v1808 = vpow.pop %v1807
    %1809 = vadd.xlane.f32.xlu0 %v1804
    %v1810 = vpop.xlane.xlu0 %1809
    %1811 = vadd.xlane.f32.xlu0 %v1806
    %v1812 = vpop.xlane.xlu0 %1811
    %1813 = vadd.xlane.f32.xlu0 %v1808
    %v1814 = vpop.xlane.xlu0 %1813
    %v1815 = vadd.f32 %v1797, %v1810
    %v1816 = vadd.f32 %v1798, %v1812
    %v1817 = vadd.f32 %v1799, %v1814
    %v1818 = vpack.c.bf16 %v1760, %v1759
    %v1819 = vpack.c.bf16 %v1761, %v1761
    %v1820 = vunpack.c.l.bf16 %v1818
    %v1821 = vunpack.c.h.bf16 %v1818
    %v1822 = vunpack.c.l.bf16 %v1819
    %v1823 = vsub.f32 %v1759, %v1820
    %v1824 = vsub.f32 %v1760, %v1821
    %v1825 = vsub.f32 %v1761, %v1822
    %v1826 = vpack.c.bf16 %v1824, %v1823
    %v1827 = vpack.c.bf16 %v1825, %v1825
    %v1844 = vunpack.c.l.b16 %v1763
    %v1845 = vunpack.c.l.b16 %v1764
    %v1846 = vunpack.c.l.b16 %v1765
    %v1847 = vunpack.c.l.b16 %v1766
    %v1848 = vunpack.c.l.b16 %v1767
    %v1849 = vunpack.c.l.b16 %v1768
    %v1850 = vunpack.c.l.b16 %v1769
    %v1851 = vunpack.c.l.b16 %v1770
    %v1852 = vunpack.c.l.b16 %v1771
    %v1853 = vunpack.c.l.b16 %v1772
    %v1854 = vunpack.c.l.b16 %v1773
    %v1855 = vunpack.c.l.b16 %v1774
    %v1856 = vunpack.c.l.b16 %v1775
    %v1857 = vunpack.c.l.b16 %v1776
    %v1858 = vunpack.c.l.b16 %v1777
    %v1859 = vunpack.c.l.b16 %v1778
    %v1860 = vpack.c.b16 %v1845, %v1844
    %v1861 = vpack.c.b16 %v1847, %v1846
    %v1862 = vpack.c.b16 %v1849, %v1848
    %v1863 = vpack.c.b16 %v1851, %v1850
    %v1864 = vpack.c.b16 %v1853, %v1852
    %v1865 = vpack.c.b16 %v1855, %v1854
    %v1866 = vpack.c.b16 %v1857, %v1856
    %v1867 = vpack.c.b16 %v1859, %v1858
    %1876 = vmatprep.subr.bf16.mxu0 0
    %1877 = vmatpush1.bf16.msra.mxu0 %v1860
    %1878 = vmatprep.subr.bf16.mxu0 0
    %1879 = vmatpush1.bf16.msra.mxu0 %v1861
    %1880 = vmatprep.subr.bf16.mxu0 0
    %1881 = vmatpush1.bf16.msra.mxu0 %v1862
    %1882 = vmatprep.subr.bf16.mxu0 0
    %1883 = vmatpush1.bf16.msra.mxu0 %v1863
    %1884 = vmatprep.subr.bf16.mxu0 0
    %1885 = vmatpush1.bf16.msra.mxu0 %v1864
    %1886 = vmatprep.subr.bf16.mxu0 0
    %1887 = vmatpush1.bf16.msra.mxu0 %v1865
    %1888 = vmatprep.subr.bf16.mxu0 0
    %1889 = vmatpush1.bf16.msra.mxu0 %v1866
    %1890 = vmatprep.subr.bf16.mxu0 0
    %1891 = vmatpush1.bf16.msra.mxu0 %v1867
    %1892 = vmatprep.subr.bf16.mxu0 0
    %1893 = vmatpush1.bf16.msra.mxu0 0
    %1894 = vmatprep.subr.bf16.mxu0 0
    %1895 = vmatpush1.bf16.msra.mxu0 0
    %1896 = vmatprep.subr.bf16.mxu0 0
    %1897 = vmatpush1.bf16.msra.mxu0 0
    %1898 = vmatprep.subr.bf16.mxu0 0
    %1899 = vmatpush1.bf16.msra.mxu0 0
    %1900 = vmatprep.subr.bf16.mxu0 0
    %1901 = vmatpush1.bf16.msra.mxu0 0
    %1902 = vmatprep.subr.bf16.mxu0 0
    %1903 = vmatpush1.bf16.msra.mxu0 0
    %1904 = vmatprep.subr.bf16.mxu0 0
    %1905 = vmatpush1.bf16.msra.mxu0 0
    %1906 = vmatprep.subr.bf16.mxu0 0
    %1907 = vmatpush1.bf16.msra.mxu0 0
    %1908 = vmatprep.mubr.bf16.mxu0 0
    %1909 = vmatmul.mubr.bf16.gmra.mrb[0].mxu0 %v1826
    %v1910 = vpop.f32.mrb[0].mxu0
    %v1911 = vadd.f32 0.0, %v1910
    %v1912 = vpop.f32.mrb[0].mxu0
    %v1913 = vpop.f32.mrb[0].mxu0
    %v1914 = vadd.f32 0.0, %v1913
    %v1915 = vpop.f32.mrb[0].mxu0
    %1916 = vmatprep.mubr.bf16.mxu0 0
    %1917 = vmatmul.mubr.bf16.gmra.mrb[0].mxu0 %v1827
    %v1918 = vpop.f32.mrb[0].mxu0
    %v1919 = vadd.f32 0.0, %v1918
    %v1920 = vpop.f32.mrb[0].mxu0
    %v1921 = vpop.f32.mrb[0].mxu0
    %v1922 = vpop.f32.mrb[0].mxu0
    %1923 = vdwg.mxu0
    %1924 = vmatprep.subr.bf16.mxu0 0
    %1925 = vmatpush1.bf16.msra.mxu0 %v1860
    %1926 = vmatprep.subr.bf16.mxu0 0
    %1927 = vmatpush1.bf16.msra.mxu0 %v1861
    %1928 = vmatprep.subr.bf16.mxu0 0
    %1929 = vmatpush1.bf16.msra.mxu0 %v1862
    %1930 = vmatprep.subr.bf16.mxu0 0
    %1931 = vmatpush1.bf16.msra.mxu0 %v1863
    %1932 = vmatprep.subr.bf16.mxu0 0
    %1933 = vmatpush1.bf16.msra.mxu0 %v1864
    %1934 = vmatprep.subr.bf16.mxu0 0
    %1935 = vmatpush1.bf16.msra.mxu0 %v1865
    %1936 = vmatprep.subr.bf16.mxu0 0
    %1937 = vmatpush1.bf16.msra.mxu0 %v1866
    %1938 = vmatprep.subr.bf16.mxu0 0
    %1939 = vmatpush1.bf16.msra.mxu0 %v1867
    %1940 = vmatprep.subr.bf16.mxu0 0
    %1941 = vmatpush1.bf16.msra.mxu0 0
    %1942 = vmatprep.subr.bf16.mxu0 0
    %1943 = vmatpush1.bf16.msra.mxu0 0
    %1944 = vmatprep.subr.bf16.mxu0 0
    %1945 = vmatpush1.bf16.msra.mxu0 0
    %1946 = vmatprep.subr.bf16.mxu0 0
    %1947 = vmatpush1.bf16.msra.mxu0 0
    %1948 = vmatprep.subr.bf16.mxu0 0
    %1949 = vmatpush1.bf16.msra.mxu0 0
    %1950 = vmatprep.subr.bf16.mxu0 0
    %1951 = vmatpush1.bf16.msra.mxu0 0
    %1952 = vmatprep.subr.bf16.mxu0 0
    %1953 = vmatpush1.bf16.msra.mxu0 0
    %1954 = vmatprep.subr.bf16.mxu0 0
    %1955 = vmatpush1.bf16.msra.mxu0 0
    %1956 = vmatprep.mubr.bf16.mxu0 0
    %1957 = vmatmul.mubr.bf16.gmra.mrb[0].mxu0 %v1818
    %v1958 = vpop.f32.mrb[0].mxu0
    %v1959 = vadd.f32 %v1911, %v1958
    %v1960 = vpop.f32.mrb[0].mxu0
    %v1961 = vpop.f32.mrb[0].mxu0
    %v1962 = vadd.f32 %v1914, %v1961
    %v1963 = vpop.f32.mrb[0].mxu0
    %1964 = vmatprep.mubr.bf16.mxu0 0
    %1965 = vmatmul.mubr.bf16.gmra.mrb[0].mxu0 %v1819
    %v1966 = vpop.f32.mrb[0].mxu0
    %v1967 = vadd.f32 %v1919, %v1966
    %v1968 = vpop.f32.mrb[0].mxu0
    %v1969 = vpop.f32.mrb[0].mxu0
    %v1970 = vpop.f32.mrb[0].mxu0
    %1971 = vdwg.mxu0
    %v1972 = vlog2.pop %v1815
    %v1973 = vmul.f32 %v1972, 0.6931472
    %v1974 = vlog2.pop %v1816
    %v1975 = vmul.f32 %v1974, 0.6931472
    %v1976 = vlog2.pop %v1817
    %v1977 = vmul.f32 %v1976, 0.6931472
    %v1978 = vadd.f32 %v1785, %v1973
    %v1979 = vadd.f32 %v1786, %v1975
    %v1980 = vadd.f32 %v1787, %v1977
    %v1981 = vsub.f32 %v1959, %v1978
    %v1982 = vsub.f32 %v1962, %v1979
    %v1983 = vsub.f32 %v1967, %v1980
    %v1987 = vcombine.high %v1981, %v1981
    %v1989 = vunpack.c.l.s4 1966171168
    %v1990 = vunpack.c.0.s8 %v1989
    %v1991 = vlaneseq
    %v1992 = vshrl.u32 %v1991, 7
    %v1993 = vsub.s32 %v1990, %v1992
    %v1994 = vrot.slane %v1981, %v1993
    %v1996 = vunpack.c.l.s4 1966171168
    %v1997 = vunpack.c.0.s8 %v1996
    %v1998 = vlaneseq
    %v1999 = vshrl.u32 %v1998, 7
    %v2000 = vsub.s32 %v1997, %v1999
    %v2001 = vrot.slane %v1987, %v2000
    %v2002 = vcombine.high %v1994, %v1994
    %v2003 = vcombine.high %v2001, %v2001
    %v2005 = vunpack.c.l.s4 1966171168
    %v2006 = vunpack.c.0.s8 %v2005
    %v2007 = vlaneseq
    %v2008 = vshrl.u32 %v2007, 7
    %v2009 = vsub.s32 %v2006, %v2008
    %v2010 = vrot.slane %v1994, %v2009
    %v2012 = vunpack.c.l.s4 1966171168
    %v2013 = vunpack.c.0.s8 %v2012
    %v2014 = vlaneseq
    %v2015 = vshrl.u32 %v2014, 7
    %v2016 = vsub.s32 %v2013, %v2015
    %v2017 = vrot.slane %v2001, %v2016
    %v2019 = vunpack.c.l.s4 1966171168
    %v2020 = vunpack.c.0.s8 %v2019
    %v2021 = vlaneseq
    %v2022 = vshrl.u32 %v2021, 7
    %v2023 = vsub.s32 %v2020, %v2022
    %v2024 = vrot.slane %v2002, %v2023
    %v2026 = vunpack.c.l.s4 1966171168
    %v2027 = vunpack.c.0.s8 %v2026
    %v2028 = vlaneseq
    %v2029 = vshrl.u32 %v2028, 7
    %v2030 = vsub.s32 %v2027, %v2029
    %v2031 = vrot.slane %v2003, %v2030
    %v2032 = vcombine.high %v2010, %v2010
    %v2033 = vcombine.high %v2017, %v2017
    %v2034 = vcombine.high %v2024, %v2024
    %v2035 = vcombine.high %v2031, %v2031
    %v2036 = vcombine.high %v1982, %v1982
    %v2038 = vunpack.c.l.s4 1966171168
    %v2039 = vunpack.c.0.s8 %v2038
    %v2040 = vlaneseq
    %v2041 = vshrl.u32 %v2040, 7
    %v2042 = vsub.s32 %v2039, %v2041
    %v2043 = vrot.slane %v1982, %v2042
    %v2045 = vunpack.c.l.s4 1966171168
    %v2046 = vunpack.c.0.s8 %v2045
    %v2047 = vlaneseq
    %v2048 = vshrl.u32 %v2047, 7
    %v2049 = vsub.s32 %v2046, %v2048
    %v2050 = vrot.slane %v2036, %v2049
    %v2051 = vcombine.high %v2043, %v2043
    %v2052 = vcombine.high %v2050, %v2050
    %v2054 = vunpack.c.l.s4 1966171168
    %v2055 = vunpack.c.0.s8 %v2054
    %v2056 = vlaneseq
    %v2057 = vshrl.u32 %v2056, 7
    %v2058 = vsub.s32 %v2055, %v2057
    %v2059 = vrot.slane %v2043, %v2058
    %v2061 = vunpack.c.l.s4 1966171168
    %v2062 = vunpack.c.0.s8 %v2061
    %v2063 = vlaneseq
    %v2064 = vshrl.u32 %v2063, 7
    %v2065 = vsub.s32 %v2062, %v2064
    %v2066 = vrot.slane %v2050, %v2065
    %v2068 = vunpack.c.l.s4 1966171168
    %v2069 = vunpack.c.0.s8 %v2068
    %v2070 = vlaneseq
    %v2071 = vshrl.u32 %v2070, 7
    %v2072 = vsub.s32 %v2069, %v2071
    %v2073 = vrot.slane %v2051, %v2072
    %v2075 = vunpack.c.l.s4 1966171168
    %v2076 = vunpack.c.0.s8 %v2075
    %v2077 = vlaneseq
    %v2078 = vshrl.u32 %v2077, 7
    %v2079 = vsub.s32 %v2076, %v2078
    %v2080 = vrot.slane %v2052, %v2079
    %v2081 = vcombine.high %v2059, %v2059
    %v2082 = vcombine.high %v2066, %v2066
    %v2083 = vcombine.high %v2073, %v2073
    %v2084 = vcombine.high %v2080, %v2080
    %v2085 = vcombine.high %v1983, %v1983
    %v2087 = vunpack.c.l.s4 1966171168
    %v2088 = vunpack.c.0.s8 %v2087
    %v2089 = vlaneseq
    %v2090 = vshrl.u32 %v2089, 7
    %v2091 = vsub.s32 %v2088, %v2090
    %v2092 = vrot.slane %v1983, %v2091
    %v2094 = vunpack.c.l.s4 1966171168
    %v2095 = vunpack.c.0.s8 %v2094
    %v2096 = vlaneseq
    %v2097 = vshrl.u32 %v2096, 7
    %v2098 = vsub.s32 %v2095, %v2097
    %v2099 = vrot.slane %v2085, %v2098
    %v2100 = vcombine.high %v2092, %v2092
    %v2101 = vcombine.high %v2099, %v2099
    %v2103 = vunpack.c.l.s4 1966171168
    %v2104 = vunpack.c.0.s8 %v2103
    %v2105 = vlaneseq
    %v2106 = vshrl.u32 %v2105, 7
    %v2107 = vsub.s32 %v2104, %v2106
    %v2108 = vrot.slane %v2092, %v2107
    %v2110 = vunpack.c.l.s4 1966171168
    %v2111 = vunpack.c.0.s8 %v2110
    %v2112 = vlaneseq
    %v2113 = vshrl.u32 %v2112, 7
    %v2114 = vsub.s32 %v2111, %v2113
    %v2115 = vrot.slane %v2099, %v2114
    %v2117 = vunpack.c.l.s4 1966171168
    %v2118 = vunpack.c.0.s8 %v2117
    %v2119 = vlaneseq
    %v2120 = vshrl.u32 %v2119, 7
    %v2121 = vsub.s32 %v2118, %v2120
    %v2122 = vrot.slane %v2100, %v2121
    %v2124 = vunpack.c.l.s4 1966171168
    %v2125 = vunpack.c.0.s8 %v2124
    %v2126 = vlaneseq
    %v2127 = vshrl.u32 %v2126, 7
    %v2128 = vsub.s32 %v2125, %v2127
    %v2129 = vrot.slane %v2101, %v2128
    %v2130 = vcombine.high %v2108, %v2108
    %v2131 = vcombine.high %v2115, %v2115
    %v2132 = vcombine.high %v2122, %v2122
    %v2133 = vcombine.high %v2129, %v2129
    %2158 = vst [vmem:[#allocation3 + $0x4] sm:$0x1] %v2010
    %2159 = vst [vmem:[#allocation3 + $0xc] sm:$0x1] %v2024
    %2160 = vst [vmem:[#allocation3 + $0x14] sm:$0x1] %v2032
    %2161 = vst [vmem:[#allocation3 + $0x1c] sm:$0x1] %v2034
    %2162 = vst [vmem:[#allocation3 + $0x24] sm:$0x1] %v2017
    %2163 = vst [vmem:[#allocation3 + $0x2c] sm:$0x1] %v2031
    %2164 = vst [vmem:[#allocation3 + $0x34] sm:$0x1] %v2033
    %2165 = vst [vmem:[#allocation3 + $0x3c] sm:$0x1] %v2035
    %2166 = vst [vmem:[#allocation3 + $0x44] sm:$0x1] %v2059
    %2167 = vst [vmem:[#allocation3 + $0x4c] sm:$0x1] %v2073
    %2168 = vst [vmem:[#allocation3 + $0x54] sm:$0x1] %v2081
    %2169 = vst [vmem:[#allocation3 + $0x5c] sm:$0x1] %v2083
    %2170 = vst [vmem:[#allocation3 + $0x64] sm:$0x1] %v2066
    %2171 = vst [vmem:[#allocation3 + $0x6c] sm:$0x1] %v2080
    %2172 = vst [vmem:[#allocation3 + $0x74] sm:$0x1] %v2082
    %2173 = vst [vmem:[#allocation3 + $0x7c] sm:$0x1] %v2084
    %2174 = vst [vmem:[#allocation3 + $0x84] sm:$0x1] %v2108
    %2175 = vst [vmem:[#allocation3 + $0x8c] sm:$0x1] %v2122
    %2176 = vst [vmem:[#allocation3 + $0x94] sm:$0x1] %v2130
    %2177 = vst [vmem:[#allocation3 + $0x9c] sm:$0x1] %v2132
    %2178 = vst [vmem:[#allocation3 + $0xa4] sm:$0x1] %v2115
    %2179 = vst [vmem:[#allocation3 + $0xac] sm:$0x1] %v2129
    %2180 = vst [vmem:[#allocation3 + $0xb4] sm:$0x1] %v2131
    %2181 = vst [vmem:[#allocation3 + $0xbc] sm:$0x1] %v2133
    %s2182 = scalar_lea.vmem [#allocation5], 120
    %v2183 = vld [vmem:[%s2182] sm:$0xff]
    %v2184 = vld [vmem:[%s2182 + $0x8] sm:$0xff]
    %v2185 = vld [vmem:[%s2182 + $0x10] sm:$0xff]
    %s2186 = scalar_lea.vmem [#allocation7], 320
    %v2187 = vld [vmem:[%s2186] sm:$0xf]
    %v2188 = vld [vmem:[%s2186 + $0x4] sm:$0xf]
    %v2189 = vld [vmem:[%s2186 + $0x8] sm:$0xf]
    %v2190 = vld [vmem:[%s2186 + $0xc] sm:$0xf]
    %v2191 = vld [vmem:[%s2186 + $0x10] sm:$0xf]
    %v2192 = vld [vmem:[%s2186 + $0x14] sm:$0xf]
    %v2193 = vld [vmem:[%s2186 + $0x18] sm:$0xf]
    %v2194 = vld [vmem:[%s2186 + $0x1c] sm:$0xf]
    %v2195 = vld [vmem:[%s2186 + $0x20] sm:$0xf]
    %v2196 = vld [vmem:[%s2186 + $0x24] sm:$0xf]
    %v2197 = vld [vmem:[%s2186 + $0x28] sm:$0xf]
    %v2198 = vld [vmem:[%s2186 + $0x2c] sm:$0xf]
    %v2199 = vld [vmem:[%s2186 + $0x30] sm:$0xf]
    %v2200 = vld [vmem:[%s2186 + $0x34] sm:$0xf]
    %v2201 = vld [vmem:[%s2186 + $0x38] sm:$0xf]
    %v2202 = vld [vmem:[%s2186 + $0x3c] sm:$0xf]
    %2203 = vmax.xlane.f32.xlu0 %v2183
    %v2204 = vpop.xlane.xlu0 %2203
    %2205 = vmax.xlane.f32.xlu0 %v2184
    %v2206 = vpop.xlane.xlu0 %2205
    %2207 = vmax.xlane.f32.xlu0 %v2185
    %v2208 = vpop.xlane.xlu0 %2207
    %v2209 = vmax.f32 %v2204, -1e+30
    %v2210 = vmax.f32 %v2206, -1e+30
    %v2211 = vmax.f32 %v2208, -1e+30
    %v2212 = vsub.f32 -1e+30, %v2209
    %v2213 = vsub.f32 -1e+30, %v2210
    %v2214 = vsub.f32 -1e+30, %v2211
    %v2215 = vmul.f32 %v2212, 1.442695
    %v2216 = vpow.pop %v2215
    %v2217 = vmul.f32 %v2213, 1.442695
    %v2218 = vpow.pop %v2217
    %v2219 = vmul.f32 %v2214, 1.442695
    %v2220 = vpow.pop %v2219
    %v2221 = vmul.f32 %v2216, 0.0
    %v2222 = vmul.f32 %v2218, 0.0
    %v2223 = vmul.f32 %v2220, 0.0
    %v2224 = vsub.f32 %v2183, %v2209
    %v2225 = vsub.f32 %v2184, %v2210
    %v2226 = vsub.f32 %v2185, %v2211
    %v2227 = vmul.f32 %v2224, 1.442695
    %v2228 = vpow.pop %v2227
    %v2229 = vmul.f32 %v2225, 1.442695
    %v2230 = vpow.pop %v2229
    %v2231 = vmul.f32 %v2226, 1.442695
    %v2232 = vpow.pop %v2231
    %2233 = vadd.xlane.f32.xlu0 %v2228
    %v2234 = vpop.xlane.xlu0 %2233
    %2235 = vadd.xlane.f32.xlu0 %v2230
    %v2236 = vpop.xlane.xlu0 %2235
    %2237 = vadd.xlane.f32.xlu0 %v2232
    %v2238 = vpop.xlane.xlu0 %2237
    %v2239 = vadd.f32 %v2221, %v2234
    %v2240 = vadd.f32 %v2222, %v2236
    %v2241 = vadd.f32 %v2223, %v2238
    %v2242 = vpack.c.bf16 %v2184, %v2183
    %v2243 = vpack.c.bf16 %v2185, %v2185
    %v2244 = vunpack.c.l.bf16 %v2242
    %v2245 = vunpack.c.h.bf16 %v2242
    %v2246 = vunpack.c.l.bf16 %v2243
    %v2247 = vsub.f32 %v2183, %v2244
    %v2248 = vsub.f32 %v2184, %v2245
    %v2249 = vsub.f32 %v2185, %v2246
    %v2250 = vpack.c.bf16 %v2248, %v2247
    %v2251 = vpack.c.bf16 %v2249, %v2249
    %v2268 = vunpack.c.l.b16 %v2187
    %v2269 = vunpack.c.l.b16 %v2188
    %v2270 = vunpack.c.l.b16 %v2189
    %v2271 = vunpack.c.l.b16 %v2190
    %v2272 = vunpack.c.l.b16 %v2191
    %v2273 = vunpack.c.l.b16 %v2192
    %v2274 = vunpack.c.l.b16 %v2193
    %v2275 = vunpack.c.l.b16 %v2194
    %v2276 = vunpack.c.l.b16 %v2195
    %v2277 = vunpack.c.l.b16 %v2196
    %v2278 = vunpack.c.l.b16 %v2197
    %v2279 = vunpack.c.l.b16 %v2198
    %v2280 = vunpack.c.l.b16 %v2199
    %v2281 = vunpack.c.l.b16 %v2200
    %v2282 = vunpack.c.l.b16 %v2201
    %v2283 = vunpack.c.l.b16 %v2202
    %v2284 = vpack.c.b16 %v2269, %v2268
    %v2285 = vpack.c.b16 %v2271, %v2270
    %v2286 = vpack.c.b16 %v2273, %v2272
    %v2287 = vpack.c.b16 %v2275, %v2274
    %v2288 = vpack.c.b16 %v2277, %v2276
    %v2289 = vpack.c.b16 %v2279, %v2278
    %v2290 = vpack.c.b16 %v2281, %v2280
    %v2291 = vpack.c.b16 %v2283, %v2282
    %2300 = vmatprep.subr.bf16.mxu0 0
    %2301 = vmatpush1.bf16.msra.mxu0 %v2284
    %2302 = vmatprep.subr.bf16.mxu0 0
    %2303 = vmatpush1.bf16.msra.mxu0 %v2285
    %2304 = vmatprep.subr.bf16.mxu0 0
    %2305 = vmatpush1.bf16.msra.mxu0 %v2286
    %2306 = vmatprep.subr.bf16.mxu0 0
    %2307 = vmatpush1.bf16.msra.mxu0 %v2287
    %2308 = vmatprep.subr.bf16.mxu0 0
    %2309 = vmatpush1.bf16.msra.mxu0 %v2288
    %2310 = vmatprep.subr.bf16.mxu0 0
    %2311 = vmatpush1.bf16.msra.mxu0 %v2289
    %2312 = vmatprep.subr.bf16.mxu0 0
    %2313 = vmatpush1.bf16.msra.mxu0 %v2290
    %2314 = vmatprep.subr.bf16.mxu0 0
    %2315 = vmatpush1.bf16.msra.mxu0 %v2291
    %2316 = vmatprep.subr.bf16.mxu0 0
    %2317 = vmatpush1.bf16.msra.mxu0 0
    %2318 = vmatprep.subr.bf16.mxu0 0
    %2319 = vmatpush1.bf16.msra.mxu0 0
    %2320 = vmatprep.subr.bf16.mxu0 0
    %2321 = vmatpush1.bf16.msra.mxu0 0
    %2322 = vmatprep.subr.bf16.mxu0 0
    %2323 = vmatpush1.bf16.msra.mxu0 0
    %2324 = vmatprep.subr.bf16.mxu0 0
    %2325 = vmatpush1.bf16.msra.mxu0 0
    %2326 = vmatprep.subr.bf16.mxu0 0
    %2327 = vmatpush1.bf16.msra.mxu0 0
    %2328 = vmatprep.subr.bf16.mxu0 0
    %2329 = vmatpush1.bf16.msra.mxu0 0
    %2330 = vmatprep.subr.bf16.mxu0 0
    %2331 = vmatpush1.bf16.msra.mxu0 0
    %2332 = vmatprep.mubr.bf16.mxu0 0
    %2333 = vmatmul.mubr.bf16.gmra.mrb[0].mxu0 %v2250
    %v2334 = vpop.f32.mrb[0].mxu0
    %v2335 = vadd.f32 0.0, %v2334
    %v2336 = vpop.f32.mrb[0].mxu0
    %v2337 = vpop.f32.mrb[0].mxu0
    %v2338 = vadd.f32 0.0, %v2337
    %v2339 = vpop.f32.mrb[0].mxu0
    %2340 = vmatprep.mubr.bf16.mxu0 0
    %2341 = vmatmul.mubr.bf16.gmra.mrb[0].mxu0 %v2251
    %v2342 = vpop.f32.mrb[0].mxu0
    %v2343 = vadd.f32 0.0, %v2342
    %v2344 = vpop.f32.mrb[0].mxu0
    %v2345 = vpop.f32.mrb[0].mxu0
    %v2346 = vpop.f32.mrb[0].mxu0
    %2347 = vdwg.mxu0
    %2348 = vmatprep.subr.bf16.mxu0 0
    %2349 = vmatpush1.bf16.msra.mxu0 %v2284
    %2350 = vmatprep.subr.bf16.mxu0 0
    %2351 = vmatpush1.bf16.msra.mxu0 %v2285
    %2352 = vmatprep.subr.bf16.mxu0 0
    %2353 = vmatpush1.bf16.msra.mxu0 %v2286
    %2354 = vmatprep.subr.bf16.mxu0 0
    %2355 = vmatpush1.bf16.msra.mxu0 %v2287
    %2356 = vmatprep.subr.bf16.mxu0 0
    %2357 = vmatpush1.bf16.msra.mxu0 %v2288
    %2358 = vmatprep.subr.bf16.mxu0 0
    %2359 = vmatpush1.bf16.msra.mxu0 %v2289
    %2360 = vmatprep.subr.bf16.mxu0 0
    %2361 = vmatpush1.bf16.msra.mxu0 %v2290
    %2362 = vmatprep.subr.bf16.mxu0 0
    %2363 = vmatpush1.bf16.msra.mxu0 %v2291
    %2364 = vmatprep.subr.bf16.mxu0 0
    %2365 = vmatpush1.bf16.msra.mxu0 0
    %2366 = vmatprep.subr.bf16.mxu0 0
    %2367 = vmatpush1.bf16.msra.mxu0 0
    %2368 = vmatprep.subr.bf16.mxu0 0
    %2369 = vmatpush1.bf16.msra.mxu0 0
    %2370 = vmatprep.subr.bf16.mxu0 0
    %2371 = vmatpush1.bf16.msra.mxu0 0
    %2372 = vmatprep.subr.bf16.mxu0 0
    %2373 = vmatpush1.bf16.msra.mxu0 0
    %2374 = vmatprep.subr.bf16.mxu0 0
    %2375 = vmatpush1.bf16.msra.mxu0 0
    %2376 = vmatprep.subr.bf16.mxu0 0
    %2377 = vmatpush1.bf16.msra.mxu0 0
    %2378 = vmatprep.subr.bf16.mxu0 0
    %2379 = vmatpush1.bf16.msra.mxu0 0
    %2380 = vmatprep.mubr.bf16.mxu0 0
    %2381 = vmatmul.mubr.bf16.gmra.mrb[0].mxu0 %v2242
    %v2382 = vpop.f32.mrb[0].mxu0
    %v2383 = vadd.f32 %v2335, %v2382
    %v2384 = vpop.f32.mrb[0].mxu0
    %v2385 = vpop.f32.mrb[0].mxu0
    %v2386 = vadd.f32 %v2338, %v2385
    %v2387 = vpop.f32.mrb[0].mxu0
    %2388 = vmatprep.mubr.bf16.mxu0 0
    %2389 = vmatmul.mubr.bf16.gmra.mrb[0].mxu0 %v2243
    %v2390 = vpop.f32.mrb[0].mxu0
    %v2391 = vadd.f32 %v2343, %v2390
    %v2392 = vpop.f32.mrb[0].mxu0
    %v2393 = vpop.f32.mrb[0].mxu0
    %v2394 = vpop.f32.mrb[0].mxu0
    %2395 = vdwg.mxu0
    %v2396 = vlog2.pop %v2239
    %v2397 = vmul.f32 %v2396, 0.6931472
    %v2398 = vlog2.pop %v2240
    %v2399 = vmul.f32 %v2398, 0.6931472
    %v2400 = vlog2.pop %v2241
    %v2401 = vmul.f32 %v2400, 0.6931472
    %v2402 = vadd.f32 %v2209, %v2397
    %v2403 = vadd.f32 %v2210, %v2399
    %v2404 = vadd.f32 %v2211, %v2401
    %v2405 = vsub.f32 %v2383, %v2402
    %v2406 = vsub.f32 %v2386, %v2403
    %v2407 = vsub.f32 %v2391, %v2404
    %v2411 = vcombine.high %v2405, %v2405
    %v2413 = vunpack.c.l.s4 1966171168
    %v2414 = vunpack.c.0.s8 %v2413
    %v2415 = vlaneseq
    %v2416 = vshrl.u32 %v2415, 7
    %v2417 = vsub.s32 %v2414, %v2416
    %v2418 = vrot.slane %v2405, %v2417
    %v2420 = vunpack.c.l.s4 1966171168
    %v2421 = vunpack.c.0.s8 %v2420
    %v2422 = vlaneseq
    %v2423 = vshrl.u32 %v2422, 7
    %v2424 = vsub.s32 %v2421, %v2423
    %v2425 = vrot.slane %v2411, %v2424
    %v2426 = vcombine.high %v2418, %v2418
    %v2427 = vcombine.high %v2425, %v2425
    %v2429 = vunpack.c.l.s4 1966171168
    %v2430 = vunpack.c.0.s8 %v2429
    %v2431 = vlaneseq
    %v2432 = vshrl.u32 %v2431, 7
    %v2433 = vsub.s32 %v2430, %v2432
    %v2434 = vrot.slane %v2418, %v2433
    %v2436 = vunpack.c.l.s4 1966171168
    %v2437 = vunpack.c.0.s8 %v2436
    %v2438 = vlaneseq
    %v2439 = vshrl.u32 %v2438, 7
    %v2440 = vsub.s32 %v2437, %v2439
    %v2441 = vrot.slane %v2425, %v2440
    %v2443 = vunpack.c.l.s4 1966171168
    %v2444 = vunpack.c.0.s8 %v2443
    %v2445 = vlaneseq
    %v2446 = vshrl.u32 %v2445, 7
    %v2447 = vsub.s32 %v2444, %v2446
    %v2448 = vrot.slane %v2426, %v2447
    %v2450 = vunpack.c.l.s4 1966171168
    %v2451 = vunpack.c.0.s8 %v2450
    %v2452 = vlaneseq
    %v2453 = vshrl.u32 %v2452, 7
    %v2454 = vsub.s32 %v2451, %v2453
    %v2455 = vrot.slane %v2427, %v2454
    %v2456 = vcombine.high %v2434, %v2434
    %v2457 = vcombine.high %v2441, %v2441
    %v2458 = vcombine.high %v2448, %v2448
    %v2459 = vcombine.high %v2455, %v2455
    %v2460 = vcombine.high %v2406, %v2406
    %v2462 = vunpack.c.l.s4 1966171168
    %v2463 = vunpack.c.0.s8 %v2462
    %v2464 = vlaneseq
    %v2465 = vshrl.u32 %v2464, 7
    %v2466 = vsub.s32 %v2463, %v2465
    %v2467 = vrot.slane %v2406, %v2466
    %v2469 = vunpack.c.l.s4 1966171168
    %v2470 = vunpack.c.0.s8 %v2469
    %v2471 = vlaneseq
    %v2472 = vshrl.u32 %v2471, 7
    %v2473 = vsub.s32 %v2470, %v2472
    %v2474 = vrot.slane %v2460, %v2473
    %v2475 = vcombine.high %v2467, %v2467
    %v2476 = vcombine.high %v2474, %v2474
    %v2478 = vunpack.c.l.s4 1966171168
    %v2479 = vunpack.c.0.s8 %v2478
    %v2480 = vlaneseq
    %v2481 = vshrl.u32 %v2480, 7
    %v2482 = vsub.s32 %v2479, %v2481
    %v2483 = vrot.slane %v2467, %v2482
    %v2485 = vunpack.c.l.s4 1966171168
    %v2486 = vunpack.c.0.s8 %v2485
    %v2487 = vlaneseq
    %v2488 = vshrl.u32 %v2487, 7
    %v2489 = vsub.s32 %v2486, %v2488
    %v2490 = vrot.slane %v2474, %v2489
    %v2492 = vunpack.c.l.s4 1966171168
    %v2493 = vunpack.c.0.s8 %v2492
    %v2494 = vlaneseq
    %v2495 = vshrl.u32 %v2494, 7
    %v2496 = vsub.s32 %v2493, %v2495
    %v2497 = vrot.slane %v2475, %v2496
    %v2499 = vunpack.c.l.s4 1966171168
    %v2500 = vunpack.c.0.s8 %v2499
    %v2501 = vlaneseq
    %v2502 = vshrl.u32 %v2501, 7
    %v2503 = vsub.s32 %v2500, %v2502
    %v2504 = vrot.slane %v2476, %v2503
    %v2505 = vcombine.high %v2483, %v2483
    %v2506 = vcombine.high %v2490, %v2490
    %v2507 = vcombine.high %v2497, %v2497
    %v2508 = vcombine.high %v2504, %v2504
    %v2509 = vcombine.high %v2407, %v2407
    %v2511 = vunpack.c.l.s4 1966171168
    %v2512 = vunpack.c.0.s8 %v2511
    %v2513 = vlaneseq
    %v2514 = vshrl.u32 %v2513, 7
    %v2515 = vsub.s32 %v2512, %v2514
    %v2516 = vrot.slane %v2407, %v2515
    %v2518 = vunpack.c.l.s4 1966171168
    %v2519 = vunpack.c.0.s8 %v2518
    %v2520 = vlaneseq
    %v2521 = vshrl.u32 %v2520, 7
    %v2522 = vsub.s32 %v2519, %v2521
    %v2523 = vrot.slane %v2509, %v2522
    %v2524 = vcombine.high %v2516, %v2516
    %v2525 = vcombine.high %v2523, %v2523
    %v2527 = vunpack.c.l.s4 1966171168
    %v2528 = vunpack.c.0.s8 %v2527
    %v2529 = vlaneseq
    %v2530 = vshrl.u32 %v2529, 7
    %v2531 = vsub.s32 %v2528, %v2530
    %v2532 = vrot.slane %v2516, %v2531
    %v2534 = vunpack.c.l.s4 1966171168
    %v2535 = vunpack.c.0.s8 %v2534
    %v2536 = vlaneseq
    %v2537 = vshrl.u32 %v2536, 7
    %v2538 = vsub.s32 %v2535, %v2537
    %v2539 = vrot.slane %v2523, %v2538
    %v2541 = vunpack.c.l.s4 1966171168
    %v2542 = vunpack.c.0.s8 %v2541
    %v2543 = vlaneseq
    %v2544 = vshrl.u32 %v2543, 7
    %v2545 = vsub.s32 %v2542, %v2544
    %v2546 = vrot.slane %v2524, %v2545
    %v2548 = vunpack.c.l.s4 1966171168
    %v2549 = vunpack.c.0.s8 %v2548
    %v2550 = vlaneseq
    %v2551 = vshrl.u32 %v2550, 7
    %v2552 = vsub.s32 %v2549, %v2551
    %v2553 = vrot.slane %v2525, %v2552
    %v2554 = vcombine.high %v2532, %v2532
    %v2555 = vcombine.high %v2539, %v2539
    %v2556 = vcombine.high %v2546, %v2546
    %v2557 = vcombine.high %v2553, %v2553
    %2582 = vst [vmem:[#allocation3 + $0x5] sm:$0x1] %v2434
    %2583 = vst [vmem:[#allocation3 + $0xd] sm:$0x1] %v2448
    %2584 = vst [vmem:[#allocation3 + $0x15] sm:$0x1] %v2456
    %2585 = vst [vmem:[#allocation3 + $0x1d] sm:$0x1] %v2458
    %2586 = vst [vmem:[#allocation3 + $0x25] sm:$0x1] %v2441
    %2587 = vst [vmem:[#allocation3 + $0x2d] sm:$0x1] %v2455
    %2588 = vst [vmem:[#allocation3 + $0x35] sm:$0x1] %v2457
    %2589 = vst [vmem:[#allocation3 + $0x3d] sm:$0x1] %v2459
    %2590 = vst [vmem:[#allocation3 + $0x45] sm:$0x1] %v2483
    %2591 = vst [vmem:[#allocation3 + $0x4d] sm:$0x1] %v2497
    %2592 = vst [vmem:[#allocation3 + $0x55] sm:$0x1] %v2505
    %2593 = vst [vmem:[#allocation3 + $0x5d] sm:$0x1] %v2507
    %2594 = vst [vmem:[#allocation3 + $0x65] sm:$0x1] %v2490
    %2595 = vst [vmem:[#allocation3 + $0x6d] sm:$0x1] %v2504
    %2596 = vst [vmem:[#allocation3 + $0x75] sm:$0x1] %v2506
    %2597 = vst [vmem:[#allocation3 + $0x7d] sm:$0x1] %v2508
    %2598 = vst [vmem:[#allocation3 + $0x85] sm:$0x1] %v2532
    %2599 = vst [vmem:[#allocation3 + $0x8d] sm:$0x1] %v2546
    %2600 = vst [vmem:[#allocation3 + $0x95] sm:$0x1] %v2554
    %2601 = vst [vmem:[#allocation3 + $0x9d] sm:$0x1] %v2556
    %2602 = vst [vmem:[#allocation3 + $0xa5] sm:$0x1] %v2539
    %2603 = vst [vmem:[#allocation3 + $0xad] sm:$0x1] %v2553
    %2604 = vst [vmem:[#allocation3 + $0xb5] sm:$0x1] %v2555
    %2605 = vst [vmem:[#allocation3 + $0xbd] sm:$0x1] %v2557
    %s2606 = scalar_lea.vmem [#allocation5], 144
    %v2607 = vld [vmem:[%s2606] sm:$0xff]
    %v2608 = vld [vmem:[%s2606 + $0x8] sm:$0xff]
    %v2609 = vld [vmem:[%s2606 + $0x10] sm:$0xff]
    %s2610 = scalar_lea.vmem [#allocation7], 384
    %v2611 = vld [vmem:[%s2610] sm:$0xf]
    %v2612 = vld [vmem:[%s2610 + $0x4] sm:$0xf]
    %v2613 = vld [vmem:[%s2610 + $0x8] sm:$0xf]
    %v2614 = vld [vmem:[%s2610 + $0xc] sm:$0xf]
    %v2615 = vld [vmem:[%s2610 + $0x10] sm:$0xf]
    %v2616 = vld [vmem:[%s2610 + $0x14] sm:$0xf]
    %v2617 = vld [vmem:[%s2610 + $0x18] sm:$0xf]
    %v2618 = vld [vmem:[%s2610 + $0x1c] sm:$0xf]
    %v2619 = vld [vmem:[%s2610 + $0x20] sm:$0xf]
    %v2620 = vld [vmem:[%s2610 + $0x24] sm:$0xf]
    %v2621 = vld [vmem:[%s2610 + $0x28] sm:$0xf]
    %v2622 = vld [vmem:[%s2610 + $0x2c] sm:$0xf]
    %v2623 = vld [vmem:[%s2610 + $0x30] sm:$0xf]
    %v2624 = vld [vmem:[%s2610 + $0x34] sm:$0xf]
    %v2625 = vld [vmem:[%s2610 + $0x38] sm:$0xf]
    %v2626 = vld [vmem:[%s2610 + $0x3c] sm:$0xf]
    %2627 = vmax.xlane.f32.xlu0 %v2607
    %v2628 = vpop.xlane.xlu0 %2627
    %2629 = vmax.xlane.f32.xlu0 %v2608
    %v2630 = vpop.xlane.xlu0 %2629
    %2631 = vmax.xlane.f32.xlu0 %v2609
    %v2632 = vpop.xlane.xlu0 %2631
    %v2633 = vmax.f32 %v2628, -1e+30
    %v2634 = vmax.f32 %v2630, -1e+30
    %v2635 = vmax.f32 %v2632, -1e+30
    %v2636 = vsub.f32 -1e+30, %v2633
    %v2637 = vsub.f32 -1e+30, %v2634
    %v2638 = vsub.f32 -1e+30, %v2635
    %v2639 = vmul.f32 %v2636, 1.442695
    %v2640 = vpow.pop %v2639
    %v2641 = vmul.f32 %v2637, 1.442695
    %v2642 = vpow.pop %v2641
    %v2643 = vmul.f32 %v2638, 1.442695
    %v2644 = vpow.pop %v2643
    %v2645 = vmul.f32 %v2640, 0.0
    %v2646 = vmul.f32 %v2642, 0.0
    %v2647 = vmul.f32 %v2644, 0.0
    %v2648 = vsub.f32 %v2607, %v2633
    %v2649 = vsub.f32 %v2608, %v2634
    %v2650 = vsub.f32 %v2609, %v2635
    %v2651 = vmul.f32 %v2648, 1.442695
    %v2652 = vpow.pop %v2651
    %v2653 = vmul.f32 %v2649, 1.442695
    %v2654 = vpow.pop %v2653
    %v2655 = vmul.f32 %v2650, 1.442695
    %v2656 = vpow.pop %v2655
    %2657 = vadd.xlane.f32.xlu0 %v2652
    %v2658 = vpop.xlane.xlu0 %2657
    %2659 = vadd.xlane.f32.xlu0 %v2654
    %v2660 = vpop.xlane.xlu0 %2659
    %2661 = vadd.xlane.f32.xlu0 %v2656
    %v2662 = vpop.xlane.xlu0 %2661
    %v2663 = vadd.f32 %v2645, %v2658
    %v2664 = vadd.f32 %v2646, %v2660
    %v2665 = vadd.f32 %v2647, %v2662
    %v2666 = vpack.c.bf16 %v2608, %v2607
    %v2667 = vpack.c.bf16 %v2609, %v2609
    %v2668 = vunpack.c.l.bf16 %v2666
    %v2669 = vunpack.c.h.bf16 %v2666
    %v2670 = vunpack.c.l.bf16 %v2667
    %v2671 = vsub.f32 %v2607, %v2668
    %v2672 = vsub.f32 %v2608, %v2669
    %v2673 = vsub.f32 %v2609, %v2670
    %v2674 = vpack.c.bf16 %v2672, %v2671
    %v2675 = vpack.c.bf16 %v2673, %v2673
    %v2692 = vunpack.c.l.b16 %v2611
    %v2693 = vunpack.c.l.b16 %v2612
    %v2694 = vunpack.c.l.b16 %v2613
    %v2695 = vunpack.c.l.b16 %v2614
    %v2696 = vunpack.c.l.b16 %v2615
    %v2697 = vunpack.c.l.b16 %v2616
    %v2698 = vunpack.c.l.b16 %v2617
    %v2699 = vunpack.c.l.b16 %v2618
    %v2700 = vunpack.c.l.b16 %v2619
    %v2701 = vunpack.c.l.b16 %v2620
    %v2702 = vunpack.c.l.b16 %v2621
    %v2703 = vunpack.c.l.b16 %v2622
    %v2704 = vunpack.c.l.b16 %v2623
    %v2705 = vunpack.c.l.b16 %v2624
    %v2706 = vunpack.c.l.b16 %v2625
    %v2707 = vunpack.c.l.b16 %v2626
    %v2708 = vpack.c.b16 %v2693, %v2692
    %v2709 = vpack.c.b16 %v2695, %v2694
    %v2710 = vpack.c.b16 %v2697, %v2696
    %v2711 = vpack.c.b16 %v2699, %v2698
    %v2712 = vpack.c.b16 %v2701, %v2700
    %v2713 = vpack.c.b16 %v2703, %v2702
    %v2714 = vpack.c.b16 %v2705, %v2704
    %v2715 = vpack.c.b16 %v2707, %v2706
    %2724 = vmatprep.subr.bf16.mxu0 0
    %2725 = vmatpush1.bf16.msra.mxu0 %v2708
    %2726 = vmatprep.subr.bf16.mxu0 0
    %2727 = vmatpush1.bf16.msra.mxu0 %v2709
    %2728 = vmatprep.subr.bf16.mxu0 0
    %2729 = vmatpush1.bf16.msra.mxu0 %v2710
    %2730 = vmatprep.subr.bf16.mxu0 0
    %2731 = vmatpush1.bf16.msra.mxu0 %v2711
    %2732 = vmatprep.subr.bf16.mxu0 0
    %2733 = vmatpush1.bf16.msra.mxu0 %v2712
    %2734 = vmatprep.subr.bf16.mxu0 0
    %2735 = vmatpush1.bf16.msra.mxu0 %v2713
    %2736 = vmatprep.subr.bf16.mxu0 0
    %2737 = vmatpush1.bf16.msra.mxu0 %v2714
    %2738 = vmatprep.subr.bf16.mxu0 0
    %2739 = vmatpush1.bf16.msra.mxu0 %v2715
    %2740 = vmatprep.subr.bf16.mxu0 0
    %2741 = vmatpush1.bf16.msra.mxu0 0
    %2742 = vmatprep.subr.bf16.mxu0 0
    %2743 = vmatpush1.bf16.msra.mxu0 0
    %2744 = vmatprep.subr.bf16.mxu0 0
    %2745 = vmatpush1.bf16.msra.mxu0 0
    %2746 = vmatprep.subr.bf16.mxu0 0
    %2747 = vmatpush1.bf16.msra.mxu0 0
    %2748 = vmatprep.subr.bf16.mxu0 0
    %2749 = vmatpush1.bf16.msra.mxu0 0
    %2750 = vmatprep.subr.bf16.mxu0 0
    %2751 = vmatpush1.bf16.msra.mxu0 0
    %2752 = vmatprep.subr.bf16.mxu0 0
    %2753 = vmatpush1.bf16.msra.mxu0 0
    %2754 = vmatprep.subr.bf16.mxu0 0
    %2755 = vmatpush1.bf16.msra.mxu0 0
    %2756 = vmatprep.mubr.bf16.mxu0 0
    %2757 = vmatmul.mubr.bf16.gmra.mrb[0].mxu0 %v2674
    %v2758 = vpop.f32.mrb[0].mxu0
    %v2759 = vadd.f32 0.0, %v2758
    %v2760 = vpop.f32.mrb[0].mxu0
    %v2761 = vpop.f32.mrb[0].mxu0
    %v2762 = vadd.f32 0.0, %v2761
    %v2763 = vpop.f32.mrb[0].mxu0
    %2764 = vmatprep.mubr.bf16.mxu0 0
    %2765 = vmatmul.mubr.bf16.gmra.mrb[0].mxu0 %v2675
    %v2766 = vpop.f32.mrb[0].mxu0
    %v2767 = vadd.f32 0.0, %v2766
    %v2768 = vpop.f32.mrb[0].mxu0
    %v2769 = vpop.f32.mrb[0].mxu0
    %v2770 = vpop.f32.mrb[0].mxu0
    %2771 = vdwg.mxu0
    %2772 = vmatprep.subr.bf16.mxu0 0
    %2773 = vmatpush1.bf16.msra.mxu0 %v2708
    %2774 = vmatprep.subr.bf16.mxu0 0
    %2775 = vmatpush1.bf16.msra.mxu0 %v2709
    %2776 = vmatprep.subr.bf16.mxu0 0
    %2777 = vmatpush1.bf16.msra.mxu0 %v2710
    %2778 = vmatprep.subr.bf16.mxu0 0
    %2779 = vmatpush1.bf16.msra.mxu0 %v2711
    %2780 = vmatprep.subr.bf16.mxu0 0
    %2781 = vmatpush1.bf16.msra.mxu0 %v2712
    %2782 = vmatprep.subr.bf16.mxu0 0
    %2783 = vmatpush1.bf16.msra.mxu0 %v2713
    %2784 = vmatprep.subr.bf16.mxu0 0
    %2785 = vmatpush1.bf16.msra.mxu0 %v2714
    %2786 = vmatprep.subr.bf16.mxu0 0
    %2787 = vmatpush1.bf16.msra.mxu0 %v2715
    %2788 = vmatprep.subr.bf16.mxu0 0
    %2789 = vmatpush1.bf16.msra.mxu0 0
    %2790 = vmatprep.subr.bf16.mxu0 0
    %2791 = vmatpush1.bf16.msra.mxu0 0
    %2792 = vmatprep.subr.bf16.mxu0 0
    %2793 = vmatpush1.bf16.msra.mxu0 0
    %2794 = vmatprep.subr.bf16.mxu0 0
    %2795 = vmatpush1.bf16.msra.mxu0 0
    %2796 = vmatprep.subr.bf16.mxu0 0
    %2797 = vmatpush1.bf16.msra.mxu0 0
    %2798 = vmatprep.subr.bf16.mxu0 0
    %2799 = vmatpush1.bf16.msra.mxu0 0
    %2800 = vmatprep.subr.bf16.mxu0 0
    %2801 = vmatpush1.bf16.msra.mxu0 0
    %2802 = vmatprep.subr.bf16.mxu0 0
    %2803 = vmatpush1.bf16.msra.mxu0 0
    %2804 = vmatprep.mubr.bf16.mxu0 0
    %2805 = vmatmul.mubr.bf16.gmra.mrb[0].mxu0 %v2666
    %v2806 = vpop.f32.mrb[0].mxu0
    %v2807 = vadd.f32 %v2759, %v2806
    %v2808 = vpop.f32.mrb[0].mxu0
    %v2809 = vpop.f32.mrb[0].mxu0
    %v2810 = vadd.f32 %v2762, %v2809
    %v2811 = vpop.f32.mrb[0].mxu0
    %2812 = vmatprep.mubr.bf16.mxu0 0
    %2813 = vmatmul.mubr.bf16.gmra.mrb[0].mxu0 %v2667
    %v2814 = vpop.f32.mrb[0].mxu0
    %v2815 = vadd.f32 %v2767, %v2814
    %v2816 = vpop.f32.mrb[0].mxu0
    %v2817 = vpop.f32.mrb[0].mxu0
    %v2818 = vpop.f32.mrb[0].mxu0
    %2819 = vdwg.mxu0
    %v2820 = vlog2.pop %v2663
    %v2821 = vmul.f32 %v2820, 0.6931472
    %v2822 = vlog2.pop %v2664
    %v2823 = vmul.f32 %v2822, 0.6931472
    %v2824 = vlog2.pop %v2665
    %v2825 = vmul.f32 %v2824, 0.6931472
    %v2826 = vadd.f32 %v2633, %v2821
    %v2827 = vadd.f32 %v2634, %v2823
    %v2828 = vadd.f32 %v2635, %v2825
    %v2829 = vsub.f32 %v2807, %v2826
    %v2830 = vsub.f32 %v2810, %v2827
    %v2831 = vsub.f32 %v2815, %v2828
    %v2835 = vcombine.high %v2829, %v2829
    %v2837 = vunpack.c.l.s4 1966171168
    %v2838 = vunpack.c.0.s8 %v2837
    %v2839 = vlaneseq
    %v2840 = vshrl.u32 %v2839, 7
    %v2841 = vsub.s32 %v2838, %v2840
    %v2842 = vrot.slane %v2829, %v2841
    %v2844 = vunpack.c.l.s4 1966171168
    %v2845 = vunpack.c.0.s8 %v2844
    %v2846 = vlaneseq
    %v2847 = vshrl.u32 %v2846, 7
    %v2848 = vsub.s32 %v2845, %v2847
    %v2849 = vrot.slane %v2835, %v2848
    %v2850 = vcombine.high %v2842, %v2842
    %v2851 = vcombine.high %v2849, %v2849
    %v2853 = vunpack.c.l.s4 1966171168
    %v2854 = vunpack.c.0.s8 %v2853
    %v2855 = vlaneseq
    %v2856 = vshrl.u32 %v2855, 7
    %v2857 = vsub.s32 %v2854, %v2856
    %v2858 = vrot.slane %v2842, %v2857
    %v2860 = vunpack.c.l.s4 1966171168
    %v2861 = vunpack.c.0.s8 %v2860
    %v2862 = vlaneseq
    %v2863 = vshrl.u32 %v2862, 7
    %v2864 = vsub.s32 %v2861, %v2863
    %v2865 = vrot.slane %v2849, %v2864
    %v2867 = vunpack.c.l.s4 1966171168
    %v2868 = vunpack.c.0.s8 %v2867
    %v2869 = vlaneseq
    %v2870 = vshrl.u32 %v2869, 7
    %v2871 = vsub.s32 %v2868, %v2870
    %v2872 = vrot.slane %v2850, %v2871
    %v2874 = vunpack.c.l.s4 1966171168
    %v2875 = vunpack.c.0.s8 %v2874
    %v2876 = vlaneseq
    %v2877 = vshrl.u32 %v2876, 7
    %v2878 = vsub.s32 %v2875, %v2877
    %v2879 = vrot.slane %v2851, %v2878
    %v2880 = vcombine.high %v2858, %v2858
    %v2881 = vcombine.high %v2865, %v2865
    %v2882 = vcombine.high %v2872, %v2872
    %v2883 = vcombine.high %v2879, %v2879
    %v2884 = vcombine.high %v2830, %v2830
    %v2886 = vunpack.c.l.s4 1966171168
    %v2887 = vunpack.c.0.s8 %v2886
    %v2888 = vlaneseq
    %v2889 = vshrl.u32 %v2888, 7
    %v2890 = vsub.s32 %v2887, %v2889
    %v2891 = vrot.slane %v2830, %v2890
    %v2893 = vunpack.c.l.s4 1966171168
    %v2894 = vunpack.c.0.s8 %v2893
    %v2895 = vlaneseq
    %v2896 = vshrl.u32 %v2895, 7
    %v2897 = vsub.s32 %v2894, %v2896
    %v2898 = vrot.slane %v2884, %v2897
    %v2899 = vcombine.high %v2891, %v2891
    %v2900 = vcombine.high %v2898, %v2898
    %v2902 = vunpack.c.l.s4 1966171168
    %v2903 = vunpack.c.0.s8 %v2902
    %v2904 = vlaneseq
    %v2905 = vshrl.u32 %v2904, 7
    %v2906 = vsub.s32 %v2903, %v2905
    %v2907 = vrot.slane %v2891, %v2906
    %v2909 = vunpack.c.l.s4 1966171168
    %v2910 = vunpack.c.0.s8 %v2909
    %v2911 = vlaneseq
    %v2912 = vshrl.u32 %v2911, 7
    %v2913 = vsub.s32 %v2910, %v2912
    %v2914 = vrot.slane %v2898, %v2913
    %v2916 = vunpack.c.l.s4 1966171168
    %v2917 = vunpack.c.0.s8 %v2916
    %v2918 = vlaneseq
    %v2919 = vshrl.u32 %v2918, 7
    %v2920 = vsub.s32 %v2917, %v2919
    %v2921 = vrot.slane %v2899, %v2920
    %v2923 = vunpack.c.l.s4 1966171168
    %v2924 = vunpack.c.0.s8 %v2923
    %v2925 = vlaneseq
    %v2926 = vshrl.u32 %v2925, 7
    %v2927 = vsub.s32 %v2924, %v2926
    %v2928 = vrot.slane %v2900, %v2927
    %v2929 = vcombine.high %v2907, %v2907
    %v2930 = vcombine.high %v2914, %v2914
    %v2931 = vcombine.high %v2921, %v2921
    %v2932 = vcombine.high %v2928, %v2928
    %v2933 = vcombine.high %v2831, %v2831
    %v2935 = vunpack.c.l.s4 1966171168
    %v2936 = vunpack.c.0.s8 %v2935
    %v2937 = vlaneseq
    %v2938 = vshrl.u32 %v2937, 7
    %v2939 = vsub.s32 %v2936, %v2938
    %v2940 = vrot.slane %v2831, %v2939
    %v2942 = vunpack.c.l.s4 1966171168
    %v2943 = vunpack.c.0.s8 %v2942
    %v2944 = vlaneseq
    %v2945 = vshrl.u32 %v2944, 7
    %v2946 = vsub.s32 %v2943, %v2945
    %v2947 = vrot.slane %v2933, %v2946
    %v2948 = vcombine.high %v2940, %v2940
    %v2949 = vcombine.high %v2947, %v2947
    %v2951 = vunpack.c.l.s4 1966171168
    %v2952 = vunpack.c.0.s8 %v2951
    %v2953 = vlaneseq
    %v2954 = vshrl.u32 %v2953, 7
    %v2955 = vsub.s32 %v2952, %v2954
    %v2956 = vrot.slane %v2940, %v2955
    %v2958 = vunpack.c.l.s4 1966171168
    %v2959 = vunpack.c.0.s8 %v2958
    %v2960 = vlaneseq
    %v2961 = vshrl.u32 %v2960, 7
    %v2962 = vsub.s32 %v2959, %v2961
    %v2963 = vrot.slane %v2947, %v2962
    %v2965 = vunpack.c.l.s4 1966171168
    %v2966 = vunpack.c.0.s8 %v2965
    %v2967 = vlaneseq
    %v2968 = vshrl.u32 %v2967, 7
    %v2969 = vsub.s32 %v2966, %v2968
    %v2970 = vrot.slane %v2948, %v2969
    %v2972 = vunpack.c.l.s4 1966171168
    %v2973 = vunpack.c.0.s8 %v2972
    %v2974 = vlaneseq
    %v2975 = vshrl.u32 %v2974, 7
    %v2976 = vsub.s32 %v2973, %v2975
    %v2977 = vrot.slane %v2949, %v2976
    %v2978 = vcombine.high %v2956, %v2956
    %v2979 = vcombine.high %v2963, %v2963
    %v2980 = vcombine.high %v2970, %v2970
    %v2981 = vcombine.high %v2977, %v2977
    %3006 = vst [vmem:[#allocation3 + $0x6] sm:$0x1] %v2858
    %3007 = vst [vmem:[#allocation3 + $0xe] sm:$0x1] %v2872
    %3008 = vst [vmem:[#allocation3 + $0x16] sm:$0x1] %v2880
    %3009 = vst [vmem:[#allocation3 + $0x1e] sm:$0x1] %v2882
    %3010 = vst [vmem:[#allocation3 + $0x26] sm:$0x1] %v2865
    %3011 = vst [vmem:[#allocation3 + $0x2e] sm:$0x1] %v2879
    %3012 = vst [vmem:[#allocation3 + $0x36] sm:$0x1] %v2881
    %3013 = vst [vmem:[#allocation3 + $0x3e] sm:$0x1] %v2883
    %3014 = vst [vmem:[#allocation3 + $0x46] sm:$0x1] %v2907
    %3015 = vst [vmem:[#allocation3 + $0x4e] sm:$0x1] %v2921
    %3016 = vst [vmem:[#allocation3 + $0x56] sm:$0x1] %v2929
    %3017 = vst [vmem:[#allocation3 + $0x5e] sm:$0x1] %v2931
    %3018 = vst [vmem:[#allocation3 + $0x66] sm:$0x1] %v2914
    %3019 = vst [vmem:[#allocation3 + $0x6e] sm:$0x1] %v2928
    %3020 = vst [vmem:[#allocation3 + $0x76] sm:$0x1] %v2930
    %3021 = vst [vmem:[#allocation3 + $0x7e] sm:$0x1] %v2932
    %3022 = vst [vmem:[#allocation3 + $0x86] sm:$0x1] %v2956
    %3023 = vst [vmem:[#allocation3 + $0x8e] sm:$0x1] %v2970
    %3024 = vst [vmem:[#allocation3 + $0x96] sm:$0x1] %v2978
    %3025 = vst [vmem:[#allocation3 + $0x9e] sm:$0x1] %v2980
    %3026 = vst [vmem:[#allocation3 + $0xa6] sm:$0x1] %v2963
    %3027 = vst [vmem:[#allocation3 + $0xae] sm:$0x1] %v2977
    %3028 = vst [vmem:[#allocation3 + $0xb6] sm:$0x1] %v2979
    %3029 = vst [vmem:[#allocation3 + $0xbe] sm:$0x1] %v2981
    %s3030 = scalar_lea.vmem [#allocation5], 168
    %v3031 = vld [vmem:[%s3030] sm:$0xff]
    %v3032 = vld [vmem:[%s3030 + $0x8] sm:$0xff]
    %v3033 = vld [vmem:[%s3030 + $0x10] sm:$0xff]
    %s3034 = scalar_lea.vmem [#allocation7], 448
    %v3035 = vld [vmem:[%s3034] sm:$0xf]
    %v3036 = vld [vmem:[%s3034 + $0x4] sm:$0xf]
    %v3037 = vld [vmem:[%s3034 + $0x8] sm:$0xf]
    %v3038 = vld [vmem:[%s3034 + $0xc] sm:$0xf]
    %v3039 = vld [vmem:[%s3034 + $0x10] sm:$0xf]
    %v3040 = vld [vmem:[%s3034 + $0x14] sm:$0xf]
    %v3041 = vld [vmem:[%s3034 + $0x18] sm:$0xf]
    %v3042 = vld [vmem:[%s3034 + $0x1c] sm:$0xf]
    %v3043 = vld [vmem:[%s3034 + $0x20] sm:$0xf]
    %v3044 = vld [vmem:[%s3034 + $0x24] sm:$0xf]
    %v3045 = vld [vmem:[%s3034 + $0x28] sm:$0xf]
    %v3046 = vld [vmem:[%s3034 + $0x2c] sm:$0xf]
    %v3047 = vld [vmem:[%s3034 + $0x30] sm:$0xf]
    %v3048 = vld [vmem:[%s3034 + $0x34] sm:$0xf]
    %v3049 = vld [vmem:[%s3034 + $0x38] sm:$0xf]
    %v3050 = vld [vmem:[%s3034 + $0x3c] sm:$0xf]
    %3051 = vmax.xlane.f32.xlu0 %v3031
    %v3052 = vpop.xlane.xlu0 %3051
    %3053 = vmax.xlane.f32.xlu0 %v3032
    %v3054 = vpop.xlane.xlu0 %3053
    %3055 = vmax.xlane.f32.xlu0 %v3033
    %v3056 = vpop.xlane.xlu0 %3055
    %v3057 = vmax.f32 %v3052, -1e+30
    %v3058 = vmax.f32 %v3054, -1e+30
    %v3059 = vmax.f32 %v3056, -1e+30
    %v3060 = vsub.f32 -1e+30, %v3057
    %v3061 = vsub.f32 -1e+30, %v3058
    %v3062 = vsub.f32 -1e+30, %v3059
    %v3063 = vmul.f32 %v3060, 1.442695
    %v3064 = vpow.pop %v3063
    %v3065 = vmul.f32 %v3061, 1.442695
    %v3066 = vpow.pop %v3065
    %v3067 = vmul.f32 %v3062, 1.442695
    %v3068 = vpow.pop %v3067
    %v3069 = vmul.f32 %v3064, 0.0
    %v3070 = vmul.f32 %v3066, 0.0
    %v3071 = vmul.f32 %v3068, 0.0
    %v3072 = vsub.f32 %v3031, %v3057
    %v3073 = vsub.f32 %v3032, %v3058
    %v3074 = vsub.f32 %v3033, %v3059
    %v3075 = vmul.f32 %v3072, 1.442695
    %v3076 = vpow.pop %v3075
    %v3077 = vmul.f32 %v3073, 1.442695
    %v3078 = vpow.pop %v3077
    %v3079 = vmul.f32 %v3074, 1.442695
    %v3080 = vpow.pop %v3079
    %3081 = vadd.xlane.f32.xlu0 %v3076
    %v3082 = vpop.xlane.xlu0 %3081
    %3083 = vadd.xlane.f32.xlu0 %v3078
    %v3084 = vpop.xlane.xlu0 %3083
    %3085 = vadd.xlane.f32.xlu0 %v3080
    %v3086 = vpop.xlane.xlu0 %3085
    %v3087 = vadd.f32 %v3069, %v3082
    %v3088 = vadd.f32 %v3070, %v3084
    %v3089 = vadd.f32 %v3071, %v3086
    %v3090 = vpack.c.bf16 %v3032, %v3031
    %v3091 = vpack.c.bf16 %v3033, %v3033
    %v3092 = vunpack.c.l.bf16 %v3090
    %v3093 = vunpack.c.h.bf16 %v3090
    %v3094 = vunpack.c.l.bf16 %v3091
    %v3095 = vsub.f32 %v3031, %v3092
    %v3096 = vsub.f32 %v3032, %v3093
    %v3097 = vsub.f32 %v3033, %v3094
    %v3098 = vpack.c.bf16 %v3096, %v3095
    %v3099 = vpack.c.bf16 %v3097, %v3097
    %v3116 = vunpack.c.l.b16 %v3035
    %v3117 = vunpack.c.l.b16 %v3036
    %v3118 = vunpack.c.l.b16 %v3037
    %v3119 = vunpack.c.l.b16 %v3038
    %v3120 = vunpack.c.l.b16 %v3039
    %v3121 = vunpack.c.l.b16 %v3040
    %v3122 = vunpack.c.l.b16 %v3041
    %v3123 = vunpack.c.l.b16 %v3042
    %v3124 = vunpack.c.l.b16 %v3043
    %v3125 = vunpack.c.l.b16 %v3044
    %v3126 = vunpack.c.l.b16 %v3045
    %v3127 = vunpack.c.l.b16 %v3046
    %v3128 = vunpack.c.l.b16 %v3047
    %v3129 = vunpack.c.l.b16 %v3048
    %v3130 = vunpack.c.l.b16 %v3049
    %v3131 = vunpack.c.l.b16 %v3050
    %v3132 = vpack.c.b16 %v3117, %v3116
    %v3133 = vpack.c.b16 %v3119, %v3118
    %v3134 = vpack.c.b16 %v3121, %v3120
    %v3135 = vpack.c.b16 %v3123, %v3122
    %v3136 = vpack.c.b16 %v3125, %v3124
    %v3137 = vpack.c.b16 %v3127, %v3126
    %v3138 = vpack.c.b16 %v3129, %v3128
    %v3139 = vpack.c.b16 %v3131, %v3130
    %3148 = vmatprep.subr.bf16.mxu0 0
    %3149 = vmatpush1.bf16.msra.mxu0 %v3132
    %3150 = vmatprep.subr.bf16.mxu0 0
    %3151 = vmatpush1.bf16.msra.mxu0 %v3133
    %3152 = vmatprep.subr.bf16.mxu0 0
    %3153 = vmatpush1.bf16.msra.mxu0 %v3134
    %3154 = vmatprep.subr.bf16.mxu0 0
    %3155 = vmatpush1.bf16.msra.mxu0 %v3135
    %3156 = vmatprep.subr.bf16.mxu0 0
    %3157 = vmatpush1.bf16.msra.mxu0 %v3136
    %3158 = vmatprep.subr.bf16.mxu0 0
    %3159 = vmatpush1.bf16.msra.mxu0 %v3137
    %3160 = vmatprep.subr.bf16.mxu0 0
    %3161 = vmatpush1.bf16.msra.mxu0 %v3138
    %3162 = vmatprep.subr.bf16.mxu0 0
    %3163 = vmatpush1.bf16.msra.mxu0 %v3139
    %3164 = vmatprep.subr.bf16.mxu0 0
    %3165 = vmatpush1.bf16.msra.mxu0 0
    %3166 = vmatprep.subr.bf16.mxu0 0
    %3167 = vmatpush1.bf16.msra.mxu0 0
    %3168 = vmatprep.subr.bf16.mxu0 0
    %3169 = vmatpush1.bf16.msra.mxu0 0
    %3170 = vmatprep.subr.bf16.mxu0 0
    %3171 = vmatpush1.bf16.msra.mxu0 0
    %3172 = vmatprep.subr.bf16.mxu0 0
    %3173 = vmatpush1.bf16.msra.mxu0 0
    %3174 = vmatprep.subr.bf16.mxu0 0
    %3175 = vmatpush1.bf16.msra.mxu0 0
    %3176 = vmatprep.subr.bf16.mxu0 0
    %3177 = vmatpush1.bf16.msra.mxu0 0
    %3178 = vmatprep.subr.bf16.mxu0 0
    %3179 = vmatpush1.bf16.msra.mxu0 0
    %3180 = vmatprep.mubr.bf16.mxu0 0
    %3181 = vmatmul.mubr.bf16.gmra.mrb[0].mxu0 %v3098
    %v3182 = vpop.f32.mrb[0].mxu0
    %v3183 = vadd.f32 0.0, %v3182
    %v3184 = vpop.f32.mrb[0].mxu0
    %v3185 = vpop.f32.mrb[0].mxu0
    %v3186 = vadd.f32 0.0, %v3185
    %v3187 = vpop.f32.mrb[0].mxu0
    %3188 = vmatprep.mubr.bf16.mxu0 0
    %3189 = vmatmul.mubr.bf16.gmra.mrb[0].mxu0 %v3099
    %v3190 = vpop.f32.mrb[0].mxu0
    %v3191 = vadd.f32 0.0, %v3190
    %v3192 = vpop.f32.mrb[0].mxu0
    %v3193 = vpop.f32.mrb[0].mxu0
    %v3194 = vpop.f32.mrb[0].mxu0
    %3195 = vdwg.mxu0
    %3196 = vmatprep.subr.bf16.mxu0 0
    %3197 = vmatpush1.bf16.msra.mxu0 %v3132
    %3198 = vmatprep.subr.bf16.mxu0 0
    %3199 = vmatpush1.bf16.msra.mxu0 %v3133
    %3200 = vmatprep.subr.bf16.mxu0 0
    %3201 = vmatpush1.bf16.msra.mxu0 %v3134
    %3202 = vmatprep.subr.bf16.mxu0 0
    %3203 = vmatpush1.bf16.msra.mxu0 %v3135
    %3204 = vmatprep.subr.bf16.mxu0 0
    %3205 = vmatpush1.bf16.msra.mxu0 %v3136
    %3206 = vmatprep.subr.bf16.mxu0 0
    %3207 = vmatpush1.bf16.msra.mxu0 %v3137
    %3208 = vmatprep.subr.bf16.mxu0 0
    %3209 = vmatpush1.bf16.msra.mxu0 %v3138
    %3210 = vmatprep.subr.bf16.mxu0 0
    %3211 = vmatpush1.bf16.msra.mxu0 %v3139
    %3212 = vmatprep.subr.bf16.mxu0 0
    %3213 = vmatpush1.bf16.msra.mxu0 0
    %3214 = vmatprep.subr.bf16.mxu0 0
    %3215 = vmatpush1.bf16.msra.mxu0 0
    %3216 = vmatprep.subr.bf16.mxu0 0
    %3217 = vmatpush1.bf16.msra.mxu0 0
    %3218 = vmatprep.subr.bf16.mxu0 0
    %3219 = vmatpush1.bf16.msra.mxu0 0
    %3220 = vmatprep.subr.bf16.mxu0 0
    %3221 = vmatpush1.bf16.msra.mxu0 0
    %3222 = vmatprep.subr.bf16.mxu0 0
    %3223 = vmatpush1.bf16.msra.mxu0 0
    %3224 = vmatprep.subr.bf16.mxu0 0
    %3225 = vmatpush1.bf16.msra.mxu0 0
    %3226 = vmatprep.subr.bf16.mxu0 0
    %3227 = vmatpush1.bf16.msra.mxu0 0
    %3228 = vmatprep.mubr.bf16.mxu0 0
    %3229 = vmatmul.mubr.bf16.gmra.mrb[0].mxu0 %v3090
    %v3230 = vpop.f32.mrb[0].mxu0
    %v3231 = vadd.f32 %v3183, %v3230
    %v3232 = vpop.f32.mrb[0].mxu0
    %v3233 = vpop.f32.mrb[0].mxu0
    %v3234 = vadd.f32 %v3186, %v3233
    %v3235 = vpop.f32.mrb[0].mxu0
    %3236 = vmatprep.mubr.bf16.mxu0 0
    %3237 = vmatmul.mubr.bf16.gmra.mrb[0].mxu0 %v3091
    %v3238 = vpop.f32.mrb[0].mxu0
    %v3239 = vadd.f32 %v3191, %v3238
    %v3240 = vpop.f32.mrb[0].mxu0
    %v3241 = vpop.f32.mrb[0].mxu0
    %v3242 = vpop.f32.mrb[0].mxu0
    %3243 = vdwg.mxu0
    %v3244 = vlog2.pop %v3087
    %v3245 = vmul.f32 %v3244, 0.6931472
    %v3246 = vlog2.pop %v3088
    %v3247 = vmul.f32 %v3246, 0.6931472
    %v3248 = vlog2.pop %v3089
    %v3249 = vmul.f32 %v3248, 0.6931472
    %v3250 = vadd.f32 %v3057, %v3245
    %v3251 = vadd.f32 %v3058, %v3247
    %v3252 = vadd.f32 %v3059, %v3249
    %v3253 = vsub.f32 %v3231, %v3250
    %v3254 = vsub.f32 %v3234, %v3251
    %v3255 = vsub.f32 %v3239, %v3252
    %v3259 = vcombine.high %v3253, %v3253
    %v3261 = vunpack.c.l.s4 1966171168
    %v3262 = vunpack.c.0.s8 %v3261
    %v3263 = vlaneseq
    %v3264 = vshrl.u32 %v3263, 7
    %v3265 = vsub.s32 %v3262, %v3264
    %v3266 = vrot.slane %v3253, %v3265
    %v3268 = vunpack.c.l.s4 1966171168
    %v3269 = vunpack.c.0.s8 %v3268
    %v3270 = vlaneseq
    %v3271 = vshrl.u32 %v3270, 7
    %v3272 = vsub.s32 %v3269, %v3271
    %v3273 = vrot.slane %v3259, %v3272
    %v3274 = vcombine.high %v3266, %v3266
    %v3275 = vcombine.high %v3273, %v3273
    %v3277 = vunpack.c.l.s4 1966171168
    %v3278 = vunpack.c.0.s8 %v3277
    %v3279 = vlaneseq
    %v3280 = vshrl.u32 %v3279, 7
    %v3281 = vsub.s32 %v3278, %v3280
    %v3282 = vrot.slane %v3266, %v3281
    %v3284 = vunpack.c.l.s4 1966171168
    %v3285 = vunpack.c.0.s8 %v3284
    %v3286 = vlaneseq
    %v3287 = vshrl.u32 %v3286, 7
    %v3288 = vsub.s32 %v3285, %v3287
    %v3289 = vrot.slane %v3273, %v3288
    %v3291 = vunpack.c.l.s4 1966171168
    %v3292 = vunpack.c.0.s8 %v3291
    %v3293 = vlaneseq
    %v3294 = vshrl.u32 %v3293, 7
    %v3295 = vsub.s32 %v3292, %v3294
    %v3296 = vrot.slane %v3274, %v3295
    %v3298 = vunpack.c.l.s4 1966171168
    %v3299 = vunpack.c.0.s8 %v3298
    %v3300 = vlaneseq
    %v3301 = vshrl.u32 %v3300, 7
    %v3302 = vsub.s32 %v3299, %v3301
    %v3303 = vrot.slane %v3275, %v3302
    %v3304 = vcombine.high %v3282, %v3282
    %v3305 = vcombine.high %v3289, %v3289
    %v3306 = vcombine.high %v3296, %v3296
    %v3307 = vcombine.high %v3303, %v3303
    %v3308 = vcombine.high %v3254, %v3254
    %v3310 = vunpack.c.l.s4 1966171168
    %v3311 = vunpack.c.0.s8 %v3310
    %v3312 = vlaneseq
    %v3313 = vshrl.u32 %v3312, 7
    %v3314 = vsub.s32 %v3311, %v3313
    %v3315 = vrot.slane %v3254, %v3314
    %v3317 = vunpack.c.l.s4 1966171168
    %v3318 = vunpack.c.0.s8 %v3317
    %v3319 = vlaneseq
    %v3320 = vshrl.u32 %v3319, 7
    %v3321 = vsub.s32 %v3318, %v3320
    %v3322 = vrot.slane %v3308, %v3321
    %v3323 = vcombine.high %v3315, %v3315
    %v3324 = vcombine.high %v3322, %v3322
    %v3326 = vunpack.c.l.s4 1966171168
    %v3327 = vunpack.c.0.s8 %v3326
    %v3328 = vlaneseq
    %v3329 = vshrl.u32 %v3328, 7
    %v3330 = vsub.s32 %v3327, %v3329
    %v3331 = vrot.slane %v3315, %v3330
    %v3333 = vunpack.c.l.s4 1966171168
    %v3334 = vunpack.c.0.s8 %v3333
    %v3335 = vlaneseq
    %v3336 = vshrl.u32 %v3335, 7
    %v3337 = vsub.s32 %v3334, %v3336
    %v3338 = vrot.slane %v3322, %v3337
    %v3340 = vunpack.c.l.s4 1966171168
    %v3341 = vunpack.c.0.s8 %v3340
    %v3342 = vlaneseq
    %v3343 = vshrl.u32 %v3342, 7
    %v3344 = vsub.s32 %v3341, %v3343
    %v3345 = vrot.slane %v3323, %v3344
    %v3347 = vunpack.c.l.s4 1966171168
    %v3348 = vunpack.c.0.s8 %v3347
    %v3349 = vlaneseq
    %v3350 = vshrl.u32 %v3349, 7
    %v3351 = vsub.s32 %v3348, %v3350
    %v3352 = vrot.slane %v3324, %v3351
    %v3353 = vcombine.high %v3331, %v3331
    %v3354 = vcombine.high %v3338, %v3338
    %v3355 = vcombine.high %v3345, %v3345
    %v3356 = vcombine.high %v3352, %v3352
    %v3357 = vcombine.high %v3255, %v3255
    %v3359 = vunpack.c.l.s4 1966171168
    %v3360 = vunpack.c.0.s8 %v3359
    %v3361 = vlaneseq
    %v3362 = vshrl.u32 %v3361, 7
    %v3363 = vsub.s32 %v3360, %v3362
    %v3364 = vrot.slane %v3255, %v3363
    %v3366 = vunpack.c.l.s4 1966171168
    %v3367 = vunpack.c.0.s8 %v3366
    %v3368 = vlaneseq
    %v3369 = vshrl.u32 %v3368, 7
    %v3370 = vsub.s32 %v3367, %v3369
    %v3371 = vrot.slane %v3357, %v3370
    %v3372 = vcombine.high %v3364, %v3364
    %v3373 = vcombine.high %v3371, %v3371
    %v3375 = vunpack.c.l.s4 1966171168
    %v3376 = vunpack.c.0.s8 %v3375
    %v3377 = vlaneseq
    %v3378 = vshrl.u32 %v3377, 7
    %v3379 = vsub.s32 %v3376, %v3378
    %v3380 = vrot.slane %v3364, %v3379
    %v3382 = vunpack.c.l.s4 1966171168
    %v3383 = vunpack.c.0.s8 %v3382
    %v3384 = vlaneseq
    %v3385 = vshrl.u32 %v3384, 7
    %v3386 = vsub.s32 %v3383, %v3385
    %v3387 = vrot.slane %v3371, %v3386
    %v3389 = vunpack.c.l.s4 1966171168
    %v3390 = vunpack.c.0.s8 %v3389
    %v3391 = vlaneseq
    %v3392 = vshrl.u32 %v3391, 7
    %v3393 = vsub.s32 %v3390, %v3392
    %v3394 = vrot.slane %v3372, %v3393
    %v3396 = vunpack.c.l.s4 1966171168
    %v3397 = vunpack.c.0.s8 %v3396
    %v3398 = vlaneseq
    %v3399 = vshrl.u32 %v3398, 7
    %v3400 = vsub.s32 %v3397, %v3399
    %v3401 = vrot.slane %v3373, %v3400
    %v3402 = vcombine.high %v3380, %v3380
    %v3403 = vcombine.high %v3387, %v3387
    %v3404 = vcombine.high %v3394, %v3394
    %v3405 = vcombine.high %v3401, %v3401
    %3430 = vst [vmem:[#allocation3 + $0x7] sm:$0x1] %v3282
    %3431 = vst [vmem:[#allocation3 + $0xf] sm:$0x1] %v3296
    %3432 = vst [vmem:[#allocation3 + $0x17] sm:$0x1] %v3304
    %3433 = vst [vmem:[#allocation3 + $0x1f] sm:$0x1] %v3306
    %3434 = vst [vmem:[#allocation3 + $0x27] sm:$0x1] %v3289
    %3435 = vst [vmem:[#allocation3 + $0x2f] sm:$0x1] %v3303
    %3436 = vst [vmem:[#allocation3 + $0x37] sm:$0x1] %v3305
    %3437 = vst [vmem:[#allocation3 + $0x3f] sm:$0x1] %v3307
    %3438 = vst [vmem:[#allocation3 + $0x47] sm:$0x1] %v3331
    %3439 = vst [vmem:[#allocation3 + $0x4f] sm:$0x1] %v3345
    %3440 = vst [vmem:[#allocation3 + $0x57] sm:$0x1] %v3353
    %3441 = vst [vmem:[#allocation3 + $0x5f] sm:$0x1] %v3355
    %3442 = vst [vmem:[#allocation3 + $0x67] sm:$0x1] %v3338
    %3443 = vst [vmem:[#allocation3 + $0x6f] sm:$0x1] %v3352
    %3444 = vst [vmem:[#allocation3 + $0x77] sm:$0x1] %v3354
    %3445 = vst [vmem:[#allocation3 + $0x7f] sm:$0x1] %v3356
    %3446 = vst [vmem:[#allocation3 + $0x87] sm:$0x1] %v3380
    %3447 = vst [vmem:[#allocation3 + $0x8f] sm:$0x1] %v3394
    %3448 = vst [vmem:[#allocation3 + $0x97] sm:$0x1] %v3402
    %3449 = vst [vmem:[#allocation3 + $0x9f] sm:$0x1] %v3404
    %3450 = vst [vmem:[#allocation3 + $0xa7] sm:$0x1] %v3387
    %3451 = vst [vmem:[#allocation3 + $0xaf] sm:$0x1] %v3401
    %3452 = vst [vmem:[#allocation3 + $0xb7] sm:$0x1] %v3403
    %3453 = vst [vmem:[#allocation3 + $0xbf] sm:$0x1] %v3405
    %s3454 = smul.u32 0, 24
    %v3455 = vstv %s3454
    %v3456 = vadd.s32 %v3455, 1
    %v3457 = vadd.s32 %v3455, 2
    %v3458 = vadd.s32 %v3455, 3
    %v3459 = vadd.s32 %v3455, 4
    %v3460 = vadd.s32 %v3455, 5
    %v3461 = vadd.s32 %v3455, 6
    %v3462 = vadd.s32 %v3455, 7
    %v3463 = vadd.s32 %v3455, 8
    %v3464 = vadd.s32 %v3455, 9
    %v3465 = vadd.s32 %v3455, 10
    %v3466 = vadd.s32 %v3455, 11
    %v3467 = vadd.s32 %v3455, 12
    %v3468 = vadd.s32 %v3455, 13
    %v3469 = vadd.s32 %v3455, 14
    %v3470 = vadd.s32 %v3455, 15
    %v3471 = vadd.s32 %v3455, 16
    %v3472 = vadd.s32 %v3455, 17
    %v3473 = vadd.s32 %v3455, 18
    %v3474 = vadd.s32 %v3455, 19
    %v3475 = vadd.s32 %v3455, 20
    %v3476 = vadd.s32 %v3455, 21
    %v3477 = vadd.s32 %v3455, 22
    %v3478 = vadd.s32 %v3455, 23
    %vm3479 = vcmp.ge.s32.totalorder %v3455, 1
    %vm3480 = vcmp.ge.s32.totalorder %v3456, 1
    %vm3481 = vcmp.ge.s32.totalorder %v3457, 1
    %vm3482 = vcmp.ge.s32.totalorder %v3458, 1
    %vm3483 = vcmp.ge.s32.totalorder %v3459, 1
    %vm3484 = vcmp.ge.s32.totalorder %v3460, 1
    %vm3485 = vcmp.ge.s32.totalorder %v3461, 1
    %vm3486 = vcmp.ge.s32.totalorder %v3462, 1
    %vm3487 = vcmp.ge.s32.totalorder %v3463, 1
    %vm3488 = vcmp.ge.s32.totalorder %v3464, 1
    %vm3489 = vcmp.ge.s32.totalorder %v3465, 1
    %vm3490 = vcmp.ge.s32.totalorder %v3466, 1
    %vm3491 = vcmp.ge.s32.totalorder %v3467, 1
    %vm3492 = vcmp.ge.s32.totalorder %v3468, 1
    %vm3493 = vcmp.ge.s32.totalorder %v3469, 1
    %vm3494 = vcmp.ge.s32.totalorder %v3470, 1
    %vm3495 = vcmp.ge.s32.totalorder %v3471, 1
    %vm3496 = vcmp.ge.s32.totalorder %v3472, 1
    %vm3497 = vcmp.ge.s32.totalorder %v3473, 1
    %vm3498 = vcmp.ge.s32.totalorder %v3474, 1
    %vm3499 = vcmp.ge.s32.totalorder %v3475, 1
    %vm3500 = vcmp.ge.s32.totalorder %v3476, 1
    %vm3501 = vcmp.ge.s32.totalorder %v3477, 1
    %vm3502 = vcmp.ge.s32.totalorder %v3478, 1
    %3503 = vset.pattern.permute.xlu0 0
    %3504 = vperm.xlu0 %3503, %v58
    %v3505 = vpop.permute.xlu0 %3504
    %vm3506 = vcmp.lt.s32.totalorder %v3455, %v3505
    %vm3507 = vcmp.lt.s32.totalorder %v3456, %v3505
    %vm3508 = vcmp.lt.s32.totalorder %v3457, %v3505
    %vm3509 = vcmp.lt.s32.totalorder %v3458, %v3505
    %vm3510 = vcmp.lt.s32.totalorder %v3459, %v3505
    %vm3511 = vcmp.lt.s32.totalorder %v3460, %v3505
    %vm3512 = vcmp.lt.s32.totalorder %v3461, %v3505
    %vm3513 = vcmp.lt.s32.totalorder %v3462, %v3505
    %vm3514 = vcmp.lt.s32.totalorder %v3463, %v3505
    %vm3515 = vcmp.lt.s32.totalorder %v3464, %v3505
    %vm3516 = vcmp.lt.s32.totalorder %v3465, %v3505
    %vm3517 = vcmp.lt.s32.totalorder %v3466, %v3505
    %vm3518 = vcmp.lt.s32.totalorder %v3467, %v3505
    %vm3519 = vcmp.lt.s32.totalorder %v3468, %v3505
    %vm3520 = vcmp.lt.s32.totalorder %v3469, %v3505
    %vm3521 = vcmp.lt.s32.totalorder %v3470, %v3505
    %vm3522 = vcmp.lt.s32.totalorder %v3471, %v3505
    %vm3523 = vcmp.lt.s32.totalorder %v3472, %v3505
    %vm3524 = vcmp.lt.s32.totalorder %v3473, %v3505
    %vm3525 = vcmp.lt.s32.totalorder %v3474, %v3505
    %vm3526 = vcmp.lt.s32.totalorder %v3475, %v3505
    %vm3527 = vcmp.lt.s32.totalorder %v3476, %v3505
    %vm3528 = vcmp.lt.s32.totalorder %v3477, %v3505
    %vm3529 = vcmp.lt.s32.totalorder %v3478, %v3505
    %vm3530 = vmand %vm3479, %vm3506
    %vm3531 = vmand %vm3480, %vm3507
    %vm3532 = vmand %vm3481, %vm3508
    %vm3533 = vmand %vm3482, %vm3509
    %vm3534 = vmand %vm3483, %vm3510
    %vm3535 = vmand %vm3484, %vm3511
    %vm3536 = vmand %vm3485, %vm3512
    %vm3537 = vmand %vm3486, %vm3513
    %vm3538 = vmand %vm3487, %vm3514
    %vm3539 = vmand %vm3488, %vm3515
    %vm3540 = vmand %vm3489, %vm3516
    %vm3541 = vmand %vm3490, %vm3517
    %vm3542 = vmand %vm3491, %vm3518
    %vm3543 = vmand %vm3492, %vm3519
    %vm3544 = vmand %vm3493, %vm3520
    %vm3545 = vmand %vm3494, %vm3521
    %vm3546 = vmand %vm3495, %vm3522
    %vm3547 = vmand %vm3496, %vm3523
    %vm3548 = vmand %vm3497, %vm3524
    %vm3549 = vmand %vm3498, %vm3525
    %vm3550 = vmand %vm3499, %vm3526
    %vm3551 = vmand %vm3500, %vm3527
    %vm3552 = vmand %vm3501, %vm3528
    %vm3553 = vmand %vm3502, %vm3529
    %v3554 = vsel %vm3530, 1.0, 0.0
    %v3555 = vsel %vm3531, 1.0, 0.0
    %v3556 = vsel %vm3532, 1.0, 0.0
    %v3557 = vsel %vm3533, 1.0, 0.0
    %v3558 = vsel %vm3534, 1.0, 0.0
    %v3559 = vsel %vm3535, 1.0, 0.0
    %v3560 = vsel %vm3536, 1.0, 0.0
    %v3561 = vsel %vm3537, 1.0, 0.0
    %v3562 = vsel %vm3538, 1.0, 0.0
    %v3563 = vsel %vm3539, 1.0, 0.0
    %v3564 = vsel %vm3540, 1.0, 0.0
    %v3565 = vsel %vm3541, 1.0, 0.0
    %v3566 = vsel %vm3542, 1.0, 0.0
    %v3567 = vsel %vm3543, 1.0, 0.0
    %v3568 = vsel %vm3544, 1.0, 0.0
    %v3569 = vsel %vm3545, 1.0, 0.0
    %v3570 = vsel %vm3546, 1.0, 0.0
    %v3571 = vsel %vm3547, 1.0, 0.0
    %v3572 = vsel %vm3548, 1.0, 0.0
    %v3573 = vsel %vm3549, 1.0, 0.0
    %v3574 = vsel %vm3550, 1.0, 0.0
    %v3575 = vsel %vm3551, 1.0, 0.0
    %v3576 = vsel %vm3552, 1.0, 0.0
    %v3577 = vsel %vm3553, 1.0, 0.0
    %3578 = vst [vmem:[#allocation4] sm:$0xff] %v3554
    %3579 = vst [vmem:[#allocation4 + $0x8] sm:$0xff] %v3555
    %3580 = vst [vmem:[#allocation4 + $0x10] sm:$0xff] %v3556
    %3581 = vst [vmem:[#allocation4 + $0x18] sm:$0xff] %v3557
    %3582 = vst [vmem:[#allocation4 + $0x20] sm:$0xff] %v3558
    %3583 = vst [vmem:[#allocation4 + $0x28] sm:$0xff] %v3559
    %3584 = vst [vmem:[#allocation4 + $0x30] sm:$0xff] %v3560
    %3585 = vst [vmem:[#allocation4 + $0x38] sm:$0xff] %v3561
    %3586 = vst [vmem:[#allocation4 + $0x40] sm:$0xff] %v3562
    %3587 = vst [vmem:[#allocation4 + $0x48] sm:$0xff] %v3563
    %3588 = vst [vmem:[#allocation4 + $0x50] sm:$0xff] %v3564
    %3589 = vst [vmem:[#allocation4 + $0x58] sm:$0xff] %v3565
    %3590 = vst [vmem:[#allocation4 + $0x60] sm:$0xff] %v3566
    %3591 = vst [vmem:[#allocation4 + $0x68] sm:$0xff] %v3567
    %3592 = vst [vmem:[#allocation4 + $0x70] sm:$0xff] %v3568
    %3593 = vst [vmem:[#allocation4 + $0x78] sm:$0xff] %v3569
    %3594 = vst [vmem:[#allocation4 + $0x80] sm:$0xff] %v3570
    %3595 = vst [vmem:[#allocation4 + $0x88] sm:$0xff] %v3571
    %3596 = vst [vmem:[#allocation4 + $0x90] sm:$0xff] %v3572
    %3597 = vst [vmem:[#allocation4 + $0x98] sm:$0xff] %v3573
    %3598 = vst [vmem:[#allocation4 + $0xa0] sm:$0xff] %v3574
    %3599 = vst [vmem:[#allocation4 + $0xa8] sm:$0xff] %v3575
    %3600 = vst [vmem:[#allocation4 + $0xb0] sm:$0xff] %v3576
    %3601 = vst [vmem:[#allocation4 + $0xb8] sm:$0xff] %v3577
    %p3602 = scmp.eq.s32.totalorder 0, 0
    // Predicated region
    $region30: #{tpu_custom_call.1} parent=1 // pred_check
      %p3603 = pneg %p3602
    $region31: #{tpu_custom_call.1} parent=1 // pred_check_branch
      %3605 = sbr.rel (%p3603) target = $region33
    $region32: #{tpu_custom_call.1} parent=1 // pred_region
      %vm3606 = vcmask 7168
      %3607 = vst.msk [vmem:[%s4] sm:$0xff] %vm3606, 0.0
      %vm3608 = vcmp.lt.s32.totalorder %v60, 2
      %v3609 = vld [vmem:[#allocation3] sm:$0xff]
      %v3610 = vsel %vm3608, %v3609, -1e+30
      %3611 = vst [vmem:[#allocation2] sm:$0xff] %v3610
    $region33: #{tpu_custom_call.1} parent=1 // pred_fallthru
      _
    %v3612 = vld [vmem:[#allocation2] sm:$0xff]
    loop: start=0, step=1, limit=3
    $region34: #{tpu_custom_call.1} parent=1 // loop_pre_header
      _
    $region35: #{tpu_custom_call.1} parent=1 // loop_header
      %s3614 = sphi 0, %s3618
      %p3615 = scmp.ge.s32.totalorder %s3614, 3
      %v3619 = vphi %v3612, %v3867
    $region36: #{tpu_custom_call.1} parent=1 // loop_header_branch
      %3617 = sbr.rel (%p3615) target = $region40
    $region37: #{tpu_custom_call.1} parent=1 // loop_body
      %s3620 = smul.u32 %s3614, 8
      %s3621 = smul.u32 %s3620, 8
      %s3622 = scalar_lea.vmem [#allocation3], %s3621
      %v3623 = vld [vmem:[%s3622] sm:$0xff]
      %s3624 = scalar_lea.vmem [#allocation4], %s3621
      %v3625 = vld [vmem:[%s3624] sm:$0xff]
      %3626 = vrot.lane.b32.xlu0 %v3619, 1
      %v3627 = vpop.permute.xlu0 %3626
      %v3628 = vadd.f32 %v3627, %v62
      %3629 = vrot.lane.b32.xlu0 %v3619, 2
      %v3630 = vpop.permute.xlu0 %3629
      %v3631 = vadd.f32 %v3630, %v63
      %v3632 = vmax.f32 %v3619, %v3628
      %v3633 = vmax.f32 %v3632, %v3631
      %v3634 = vsub.f32 %v3619, %v3633
      %v3635 = vmul.f32 %v3634, 1.442695
      %v3636 = vpow.pop %v3635
      %v3637 = vsub.f32 %v3628, %v3633
      %v3638 = vmul.f32 %v3637, 1.442695
      %v3639 = vpow.pop %v3638
      %v3640 = vadd.f32 %v3636, %v3639
      %v3641 = vsub.f32 %v3631, %v3633
      %v3642 = vmul.f32 %v3641, 1.442695
      %v3643 = vpow.pop %v3642
      %v3644 = vadd.f32 %v3640, %v3643
      %v3645 = vlog2.pop %v3644
      %v3646 = vmul.f32 %v3645, 0.6931472
      %v3647 = vadd.f32 %v3633, %v3646
      %vm3648 = vcmp.gt.f32.partialorder %v3625, 0.5
      %v3649 = vadd.f32 %v3623, %v3647
      %v3650 = vsel %vm3648, %v3649, %v3619
      %s3651 = sadd.s32 %s3620, 1
      %s3652 = smul.u32 %s3651, 8
      %s3653 = scalar_lea.vmem [#allocation3], %s3652
      %v3654 = vld [vmem:[%s3653] sm:$0xff]
      %s3655 = scalar_lea.vmem [#allocation4], %s3652
      %v3656 = vld [vmem:[%s3655] sm:$0xff]
      %3657 = vrot.lane.b32.xlu0 %v3650, 1
      %v3658 = vpop.permute.xlu0 %3657
      %v3659 = vadd.f32 %v3658, %v62
      %3660 = vrot.lane.b32.xlu0 %v3650, 2
      %v3661 = vpop.permute.xlu0 %3660
      %v3662 = vadd.f32 %v3661, %v63
      %v3663 = vmax.f32 %v3650, %v3659
      %v3664 = vmax.f32 %v3663, %v3662
      %v3665 = vsub.f32 %v3650, %v3664
      %v3666 = vmul.f32 %v3665, 1.442695
      %v3667 = vpow.pop %v3666
      %v3668 = vsub.f32 %v3659, %v3664
      %v3669 = vmul.f32 %v3668, 1.442695
      %v3670 = vpow.pop %v3669
      %v3671 = vadd.f32 %v3667, %v3670
      %v3672 = vsub.f32 %v3662, %v3664
      %v3673 = vmul.f32 %v3672, 1.442695
      %v3674 = vpow.pop %v3673
      %v3675 = vadd.f32 %v3671, %v3674
      %v3676 = vlog2.pop %v3675
      %v3677 = vmul.f32 %v3676, 0.6931472
      %v3678 = vadd.f32 %v3664, %v3677
      %vm3679 = vcmp.gt.f32.partialorder %v3656, 0.5
      %v3680 = vadd.f32 %v3654, %v3678
      %v3681 = vsel %vm3679, %v3680, %v3650
      %s3682 = sadd.s32 %s3620, 2
      %s3683 = smul.u32 %s3682, 8
      %s3684 = scalar_lea.vmem [#allocation3], %s3683
      %v3685 = vld [vmem:[%s3684] sm:$0xff]
      %s3686 = scalar_lea.vmem [#allocation4], %s3683
      %v3687 = vld [vmem:[%s3686] sm:$0xff]
      %3688 = vrot.lane.b32.xlu0 %v3681, 1
      %v3689 = vpop.permute.xlu0 %3688
      %v3690 = vadd.f32 %v3689, %v62
      %3691 = vrot.lane.b32.xlu0 %v3681, 2
      %v3692 = vpop.permute.xlu0 %3691
      %v3693 = vadd.f32 %v3692, %v63
      %v3694 = vmax.f32 %v3681, %v3690
      %v3695 = vmax.f32 %v3694, %v3693
      %v3696 = vsub.f32 %v3681, %v3695
      %v3697 = vmul.f32 %v3696, 1.442695
      %v3698 = vpow.pop %v3697
      %v3699 = vsub.f32 %v3690, %v3695
      %v3700 = vmul.f32 %v3699, 1.442695
      %v3701 = vpow.pop %v3700
      %v3702 = vadd.f32 %v3698, %v3701
      %v3703 = vsub.f32 %v3693, %v3695
      %v3704 = vmul.f32 %v3703, 1.442695
      %v3705 = vpow.pop %v3704
      %v3706 = vadd.f32 %v3702, %v3705
      %v3707 = vlog2.pop %v3706
      %v3708 = vmul.f32 %v3707, 0.6931472
      %v3709 = vadd.f32 %v3695, %v3708
      %vm3710 = vcmp.gt.f32.partialorder %v3687, 0.5
      %v3711 = vadd.f32 %v3685, %v3709
      %v3712 = vsel %vm3710, %v3711, %v3681
      %s3713 = sadd.s32 %s3620, 3
      %s3714 = smul.u32 %s3713, 8
      %s3715 = scalar_lea.vmem [#allocation3], %s3714
      %v3716 = vld [vmem:[%s3715] sm:$0xff]
      %s3717 = scalar_lea.vmem [#allocation4], %s3714
      %v3718 = vld [vmem:[%s3717] sm:$0xff]
      %3719 = vrot.lane.b32.xlu0 %v3712, 1
      %v3720 = vpop.permute.xlu0 %3719
      %v3721 = vadd.f32 %v3720, %v62
      %3722 = vrot.lane.b32.xlu0 %v3712, 2
      %v3723 = vpop.permute.xlu0 %3722
      %v3724 = vadd.f32 %v3723, %v63
      %v3725 = vmax.f32 %v3712, %v3721
      %v3726 = vmax.f32 %v3725, %v3724
      %v3727 = vsub.f32 %v3712, %v3726
      %v3728 = vmul.f32 %v3727, 1.442695
      %v3729 = vpow.pop %v3728
      %v3730 = vsub.f32 %v3721, %v3726
      %v3731 = vmul.f32 %v3730, 1.442695
      %v3732 = vpow.pop %v3731
      %v3733 = vadd.f32 %v3729, %v3732
      %v3734 = vsub.f32 %v3724, %v3726
      %v3735 = vmul.f32 %v3734, 1.442695
      %v3736 = vpow.pop %v3735
      %v3737 = vadd.f32 %v3733, %v3736
      %v3738 = vlog2.pop %v3737
      %v3739 = vmul.f32 %v3738, 0.6931472
      %v3740 = vadd.f32 %v3726, %v3739
      %vm3741 = vcmp.gt.f32.partialorder %v3718, 0.5
      %v3742 = vadd.f32 %v3716, %v3740
      %v3743 = vsel %vm3741, %v3742, %v3712
      %s3744 = sadd.s32 %s3620, 4
      %s3745 = smul.u32 %s3744, 8
      %s3746 = scalar_lea.vmem [#allocation3], %s3745
      %v3747 = vld [vmem:[%s3746] sm:$0xff]
      %s3748 = scalar_lea.vmem [#allocation4], %s3745
      %v3749 = vld [vmem:[%s3748] sm:$0xff]
      %3750 = vrot.lane.b32.xlu0 %v3743, 1
      %v3751 = vpop.permute.xlu0 %3750
      %v3752 = vadd.f32 %v3751, %v62
      %3753 = vrot.lane.b32.xlu0 %v3743, 2
      %v3754 = vpop.permute.xlu0 %3753
      %v3755 = vadd.f32 %v3754, %v63
      %v3756 = vmax.f32 %v3743, %v3752
      %v3757 = vmax.f32 %v3756, %v3755
      %v3758 = vsub.f32 %v3743, %v3757
      %v3759 = vmul.f32 %v3758, 1.442695
      %v3760 = vpow.pop %v3759
      %v3761 = vsub.f32 %v3752, %v3757
      %v3762 = vmul.f32 %v3761, 1.442695
      %v3763 = vpow.pop %v3762
      %v3764 = vadd.f32 %v3760, %v3763
      %v3765 = vsub.f32 %v3755, %v3757
      %v3766 = vmul.f32 %v3765, 1.442695
      %v3767 = vpow.pop %v3766
      %v3768 = vadd.f32 %v3764, %v3767
      %v3769 = vlog2.pop %v3768
      %v3770 = vmul.f32 %v3769, 0.6931472
      %v3771 = vadd.f32 %v3757, %v3770
      %vm3772 = vcmp.gt.f32.partialorder %v3749, 0.5
      %v3773 = vadd.f32 %v3747, %v3771
      %v3774 = vsel %vm3772, %v3773, %v3743
      %s3775 = sadd.s32 %s3620, 5
      %s3776 = smul.u32 %s3775, 8
      %s3777 = scalar_lea.vmem [#allocation3], %s3776
      %v3778 = vld [vmem:[%s3777] sm:$0xff]
      %s3779 = scalar_lea.vmem [#allocation4], %s3776
      %v3780 = vld [vmem:[%s3779] sm:$0xff]
      %3781 = vrot.lane.b32.xlu0 %v3774, 1
      %v3782 = vpop.permute.xlu0 %3781
      %v3783 = vadd.f32 %v3782, %v62
      %3784 = vrot.lane.b32.xlu0 %v3774, 2
      %v3785 = vpop.permute.xlu0 %3784
      %v3786 = vadd.f32 %v3785, %v63
      %v3787 = vmax.f32 %v3774, %v3783
      %v3788 = vmax.f32 %v3787, %v3786
      %v3789 = vsub.f32 %v3774, %v3788
      %v3790 = vmul.f32 %v3789, 1.442695
      %v3791 = vpow.pop %v3790
      %v3792 = vsub.f32 %v3783, %v3788
      %v3793 = vmul.f32 %v3792, 1.442695
      %v3794 = vpow.pop %v3793
      %v3795 = vadd.f32 %v3791, %v3794
      %v3796 = vsub.f32 %v3786, %v3788
      %v3797 = vmul.f32 %v3796, 1.442695
      %v3798 = vpow.pop %v3797
      %v3799 = vadd.f32 %v3795, %v3798
      %v3800 = vlog2.pop %v3799
      %v3801 = vmul.f32 %v3800, 0.6931472
      %v3802 = vadd.f32 %v3788, %v3801
      %vm3803 = vcmp.gt.f32.partialorder %v3780, 0.5
      %v3804 = vadd.f32 %v3778, %v3802
      %v3805 = vsel %vm3803, %v3804, %v3774
      %s3806 = sadd.s32 %s3620, 6
      %s3807 = smul.u32 %s3806, 8
      %s3808 = scalar_lea.vmem [#allocation3], %s3807
      %v3809 = vld [vmem:[%s3808] sm:$0xff]
      %s3810 = scalar_lea.vmem [#allocation4], %s3807
      %v3811 = vld [vmem:[%s3810] sm:$0xff]
      %3812 = vrot.lane.b32.xlu0 %v3805, 1
      %v3813 = vpop.permute.xlu0 %3812
      %v3814 = vadd.f32 %v3813, %v62
      %3815 = vrot.lane.b32.xlu0 %v3805, 2
      %v3816 = vpop.permute.xlu0 %3815
      %v3817 = vadd.f32 %v3816, %v63
      %v3818 = vmax.f32 %v3805, %v3814
      %v3819 = vmax.f32 %v3818, %v3817
      %v3820 = vsub.f32 %v3805, %v3819
      %v3821 = vmul.f32 %v3820, 1.442695
      %v3822 = vpow.pop %v3821
      %v3823 = vsub.f32 %v3814, %v3819
      %v3824 = vmul.f32 %v3823, 1.442695
      %v3825 = vpow.pop %v3824
      %v3826 = vadd.f32 %v3822, %v3825
      %v3827 = vsub.f32 %v3817, %v3819
      %v3828 = vmul.f32 %v3827, 1.442695
      %v3829 = vpow.pop %v3828
      %v3830 = vadd.f32 %v3826, %v3829
      %v3831 = vlog2.pop %v3830
      %v3832 = vmul.f32 %v3831, 0.6931472
      %v3833 = vadd.f32 %v3819, %v3832
      %vm3834 = vcmp.gt.f32.partialorder %v3811, 0.5
      %v3835 = vadd.f32 %v3809, %v3833
      %v3836 = vsel %vm3834, %v3835, %v3805
      %s3837 = sadd.s32 %s3620, 7
      %s3838 = smul.u32 %s3837, 8
      %s3839 = scalar_lea.vmem [#allocation3], %s3838
      %v3840 = vld [vmem:[%s3839] sm:$0xff]
      %s3841 = scalar_lea.vmem [#allocation4], %s3838
      %v3842 = vld [vmem:[%s3841] sm:$0xff]
      %3843 = vrot.lane.b32.xlu0 %v3836, 1
      %v3844 = vpop.permute.xlu0 %3843
      %v3845 = vadd.f32 %v3844, %v62
      %3846 = vrot.lane.b32.xlu0 %v3836, 2
      %v3847 = vpop.permute.xlu0 %3846
      %v3848 = vadd.f32 %v3847, %v63
      %v3849 = vmax.f32 %v3836, %v3845
      %v3850 = vmax.f32 %v3849, %v3848
      %v3851 = vsub.f32 %v3836, %v3850
      %v3852 = vmul.f32 %v3851, 1.442695
      %v3853 = vpow.pop %v3852
      %v3854 = vsub.f32 %v3845, %v3850
      %v3855 = vmul.f32 %v3854, 1.442695
      %v3856 = vpow.pop %v3855
      %v3857 = vadd.f32 %v3853, %v3856
      %v3858 = vsub.f32 %v3848, %v3850
      %v3859 = vmul.f32 %v3858, 1.442695
      %v3860 = vpow.pop %v3859
      %v3861 = vadd.f32 %v3857, %v3860
      %v3862 = vlog2.pop %v3861
      %v3863 = vmul.f32 %v3862, 0.6931472
      %v3864 = vadd.f32 %v3850, %v3863
      %vm3865 = vcmp.gt.f32.partialorder %v3842, 0.5
      %v3866 = vadd.f32 %v3840, %v3864
      %v3867 = vsel %vm3865, %v3866, %v3836
    $region38: #{tpu_custom_call.1} parent=1 // loop_footer
      %s3618 = sadd.s32 1, %s3614
    $region39: #{tpu_custom_call.1} parent=1 // loop_footer_branch
      %3613 = sbr.rel target = $region35
    $region40: #{tpu_custom_call.1} parent=1 // loop_exit
      _
    %3868 = vst [vmem:[#allocation2] sm:$0xff] %v3619
    // Predicated region
    $region41: #{tpu_custom_call.1} parent=1 // pred_check
      %p3869 = pneg %p3602
    $region42: #{tpu_custom_call.1} parent=1 // pred_check_branch
      %3871 = sbr.rel (%p3869) target = $region44
    $region43: #{tpu_custom_call.1} parent=1 // pred_region
      %v3872 = vsub.s32 %v58, 1
      %3873 = vset.pattern.permute.xlu0 1
      %3874 = vperm.xlu0 %3873, %v3872
      %v3875 = vpop.permute.xlu0 %3874
      %vm3876 = vcmp.eq.s32.totalorder %v60, %v3875
      %v3877 = vsub.s32 %v58, 2
      %3878 = vset.pattern.permute.xlu0 1
      %3879 = vperm.xlu0 %3878, %v3877
      %v3880 = vpop.permute.xlu0 %3879
      %vm3881 = vcmp.eq.s32.totalorder %v60, %v3880
      %vm3882 = vmor %vm3876, %vm3881
      %v3883 = vsel %vm3882, %v3619, -1e+30
      %3884 = vmax.xlane.f32.xlu0 %v3883
      %v3885 = vpop.xlane.xlu0 %3884
      %v3886 = vsub.f32 %v3883, %v3885
      %v3887 = vmul.f32 %v3886, 1.442695
      %v3888 = vpow.pop %v3887
      %3889 = vadd.xlane.f32.xlu0 %v3888
      %v3890 = vpop.xlane.xlu0 %3889
      %v3891 = vlog2.pop %v3890
      %v3892 = vmul.f32 %v3891, 0.6931472
      %v3893 = vadd.f32 %v3885, %v3892
      %v3894 = vsub.f32 0.0, %v3893
      %v3895 = vmul.f32 %v3894, %v57
      %3897 = vrot.lane.b32.xlu0 %v3895, 126
      %v3898 = vpop.permute.xlu0 %3897
      %vm3900 = vcmask 7168
      %3901 = vst.msk [vmem:[%s4] sm:$0xff] %vm3900, %v3898
    $region44: #{tpu_custom_call.1} parent=1 // pred_fallthru
      _
    // Predicated region
    $region45: #{tpu_custom_call.1} parent=1 // pred_check
      _
    $region46: #{tpu_custom_call.1} parent=1 // pred_check_branch
      %3903 = sbr.rel (0) target = $region48
    $region47: #{tpu_custom_call.1} parent=1 // pred_region
      _
    $region48: #{tpu_custom_call.1} parent=1 // pred_fallthru
      _
    // Predicated region
    $region49: #{tpu_custom_call.1} parent=1 // pred_check
      _
    $region50: #{tpu_custom_call.1} parent=1 // pred_check_branch
      %3905 = sbr.rel (0) target = $region52
    $region51: #{tpu_custom_call.1} parent=1 // pred_region
      _
    $region52: #{tpu_custom_call.1} parent=1 // pred_fallthru
      _
    %3906 = vsyncpa [#allocation6], 1
    %3907 = vsyncpa [#allocation8], 1

</llo_original>
